<compile_context>
chip_gen: v5e
topology: v5e:2x2
jax: 0.10.0
libtpu: 0.0.40
codegen_flags: <defaults>
</compile_context>

<pallas_src>
import functools
import math

import jax
import jax.numpy as jnp
from jax.experimental import pallas as pl
from jax.experimental.pallas import tpu as pltpu

N_CLASSES = 8
FEATURE_SIZE = 32
IN_C = 3
IN_HW = 16
OUT_PAD = 128                       # lane-dense logits block (cols 8..127 are zero)

# Spatial chain: 16 -conv-> 14 -conv-> 12 -pool-> 6 -conv-> 4 -pool-> 2
C1, C2, C3 = 32, 64, 128
H1 = W1 = 14
H2 = W2 = 12
H2P = W2P = 6
H3 = W3 = 4
H3P = W3P = 2
FLAT = C3 * H3P * W3P               # 512 (PyTorch fc1 in_features)

PARAM_ORDER = ("wc1", "bc1", "wc2", "bc2", "wc3", "bc3",
               "w_fc1", "b_fc1", "w_fc2", "b_fc2")


# ----------------------------- in-kernel helpers --------------------------- #
def _im2col_store(x, col_ref):
    """Write the nine 3x3-tap shifted windows of NHWC `x` into lane-column
    slices of `col_ref` (shape (TB, OH, OW, 9*Cin), bf16).

    Each store is a plain lane-offset masked store of a shifted window (no
    per-tap reshape); the whole-layer relayout happens once at matmul time.
    """
    _, h, w, cin = x.shape
    oh, ow = h - 2, w - 2
    for kh in range(3):
        for kw in range(3):
            t = kh * 3 + kw
            col_ref[:, :, :, t * cin:(t + 1) * cin] = (
                x[:, kh:kh + oh, kw:kw + ow, :].astype(jnp.bfloat16))


def _conv_matmul_relu(col_ref, w_ref, b_ref, m):
    """One MXU matmul over the full 9*Cin im2col K dim, + f32 bias + ReLU.

    col_ref: (TB, OH, OW, 9*Cin) bf16; w_ref: (9*Cin, Cout) bf16;
    b_ref: (1, Cout) f32.  Returns f32 (m, Cout) with m = TB*OH*OW.
    """
    k = w_ref.shape[0]
    lhs = col_ref[...].reshape(m, k)                       # bf16 (M, 9*Cin)
    acc = jnp.dot(lhs, w_ref[...], preferred_element_type=jnp.float32)
    return jnp.maximum(acc + b_ref[...], 0.0)


def _maxpool2x2_via_scratch(act2d, act_ref, tb, oh, ow, c):
    """2x2/stride-2 max-pool of a conv output given in (M, C) row-major form.

    The activation is parked in a VMEM scratch; W-pooling = max of even/odd
    rows via native sublane-strided loads (stride 2 on the second-minor dim,
    no relayout); H-pooling = max over an outer-dim split (leading-dim reshape
    only, minor dims (OW/2, C) untouched).  Returns f32 (TB, OH/2, OW/2, C).
    """
    act_ref[...] = act2d
    half = (tb * oh * ow) // 2
    w_max = jnp.maximum(act_ref[pl.ds(0, half, 2), :],     # even W columns
                        act_ref[pl.ds(1, half, 2), :])     # odd  W columns
    w_max = w_max.reshape(tb, oh // 2, 2, ow // 2, c)      # split H (outer dims)
    return jnp.max(w_max, axis=2)                          # (TB, OH/2, OW/2, C)


# ------------------------------ fused kernel ------------------------------- #
def room_classifier_kernel(x_ref, wc1_ref, bc1_ref, wc2_ref, bc2_ref,
                           wc3_ref, bc3_ref, wf1_ref, bf1_ref, wf2_ref, bf2_ref,
                           o_ref,
                           col1_ref, col2_ref, col3_ref, a2_ref, a3_ref,
                           fcin_ref):
    tb = x_ref.shape[0]

    # conv1 + ReLU: (TB,16,16,3) -> (TB,14,14,32)
    _im2col_store(x_ref[...], col1_ref)
    h1 = _conv_matmul_relu(col1_ref, wc1_ref, bc1_ref, tb * H1 * W1)
    h1 = h1.reshape(tb, H1, W1, C1)

    # conv2 + ReLU + 2x2 maxpool: -> (TB,6,6,64)
    _im2col_store(h1, col2_ref)
    h2 = _conv_matmul_relu(col2_ref, wc2_ref, bc2_ref, tb * H2 * W2)
    h2 = _maxpool2x2_via_scratch(h2, a2_ref, tb, H2, W2, C2)

    # conv3 + ReLU + 2x2 maxpool: -> (TB,2,2,128)
    _im2col_store(h2, col3_ref)
    h3 = _conv_matmul_relu(col3_ref, wc3_ref, bc3_ref, tb * H3 * W3)
    h3 = _maxpool2x2_via_scratch(h3, a3_ref, tb, H3, W3, C3)

    # Flatten into a (TB, 512) scratch with 128-aligned lane stores.  PyTorch's
    # NCHW flatten order is absorbed by the host-side fc1 weight repack, so
    # this store IS the flatten (no transpose / lane regroup in-kernel).
    for p in range(H3P * W3P):
        i, j = p // W3P, p % W3P
        fcin_ref[:, p * C3:(p + 1) * C3] = h3[:, i, j, :].astype(jnp.bfloat16)

    # fc1 -> Dropout -> ReLU  (one K=512 MXU matmul).
    # TODO(synk): dropout is implemented as inference-mode identity (no RNG mask).
    hf = jnp.dot(fcin_ref[...], wf1_ref[...], preferred_element_type=jnp.float32)
    hf = jnp.maximum(hf + bf1_ref[...], 0.0)               # (TB, 32) f32

    # fc2 -> logits, stored lane-dense (128 cols; 8..127 are zero padding).
    logits = (jnp.dot(hf.astype(jnp.bfloat16), wf2_ref[...],
                      preferred_element_type=jnp.float32) + bf2_ref[...])
    o_ref[:, 0, :] = logits                                # (TB, 128)


# --------------------------------- wrapper --------------------------------- #
@functools.partial(jax.jit, static_argnames=("batch_tile",))
def room_classifier_forward(x_nchw, kparams, *, batch_tile=1):
    """x_nchw: (B, 3, 16, 16) PyTorch-style input; kparams from prepare_params."""
    x = jnp.transpose(x_nchw, (0, 2, 3, 1)).astype(jnp.bfloat16)   # NCHW -> NHWC
    b = x.shape[0]
    tb = batch_tile
    assert b % tb == 0, "batch must be divisible by batch_tile"

    x_spec = pl.BlockSpec((tb, IN_HW, IN_HW, IN_C), lambda i: (i, 0, 0, 0))
    w_specs = [pl.BlockSpec(kparams[k].shape, lambda i: (0, 0))
               for k in PARAM_ORDER]

    out = pl.pallas_call(
        room_classifier_kernel,
        out_shape=jax.ShapeDtypeStruct((b, 1, OUT_PAD), jnp.float32),
        grid=(b // tb,),
        in_specs=[x_spec] + w_specs,
        out_specs=pl.BlockSpec((tb, 1, OUT_PAD), lambda i: (i, 0, 0)),
        scratch_shapes=[
            pltpu.VMEM((tb, H1, W1, 9 * IN_C), jnp.bfloat16),   # im2col conv1
            pltpu.VMEM((tb, H2, W2, 9 * C1), jnp.bfloat16),     # im2col conv2
            pltpu.VMEM((tb, H3, W3, 9 * C2), jnp.bfloat16),     # im2col conv3
            pltpu.VMEM((tb * H2 * W2, C2), jnp.float32),        # conv2 pre-pool
            pltpu.VMEM((tb * H3 * W3, C3), jnp.float32),        # conv3 pre-pool
            pltpu.VMEM((tb, FLAT), jnp.bfloat16),               # fc1 input
        ],
        compiler_params=pltpu.CompilerParams(
            dimension_semantics=("parallel",)),
    )(x, *[kparams[k] for k in PARAM_ORDER])

    return out[:, 0, :N_CLASSES]                           # drop lane padding


# ------------------------------- parameters -------------------------------- #
def _xavier_uniform(key, fan_in, fan_out, shape):
    bound = math.sqrt(6.0 / (fan_in + fan_out))
    return jax.random.uniform(key, shape, jnp.float32, -bound, bound)


def init_params_torch_layout(key, cin=IN_C, feature_size=FEATURE_SIZE,
                             n_classes=N_CLASSES):
    """Random parameters in PyTorch layouts (OIHW conv weights, (out,in) linears)."""
    filters = [C1, C2, C3]
    keys = jax.random.split(key, 10)
    p = {}
    c_prev = cin
    for i, c_out in enumerate(filters):
        fan_in = 3 * 3 * c_prev
        bound = 1.0 / math.sqrt(fan_in)
        p[f"conv{i+1}_w"] = jax.random.uniform(
            keys[2 * i], (c_out, c_prev, 3, 3), jnp.float32, -bound, bound)
        p[f"conv{i+1}_b"] = jax.random.uniform(
            keys[2 * i + 1], (c_out,), jnp.float32, -bound, bound)
        c_prev = c_out
    p["fc1_w"] = _xavier_uniform(keys[6], FLAT, feature_size, (feature_size, FLAT))
    b1 = 1.0 / math.sqrt(FLAT)
    p["fc1_b"] = jax.random.uniform(keys[7], (feature_size,), jnp.float32, -b1, b1)
    p["fc2_w"] = _xavier_uniform(keys[8], feature_size, n_classes,
                                 (n_classes, feature_size))
    b2 = 1.0 / math.sqrt(feature_size)
    p["fc2_b"] = jax.random.uniform(keys[9], (n_classes,), jnp.float32, -b2, b2)
    return p


def prepare_params(p):
    """One-time host-side repack of PyTorch-layout params into kernel layouts."""
    kp = {}
    for i in (1, 2, 3):
        w = p[f"conv{i}_w"]                              # (Cout, Cin, 3, 3) OIHW
        cout, cin = w.shape[0], w.shape[1]
        # OIHW -> (kh, kw, ci, co) -> (9*Cin, Cout): row index (kh*3+kw)*Cin+ci
        # matches the kernel's im2col lane order.
        kp[f"wc{i}"] = (jnp.transpose(w, (2, 3, 1, 0))
                        .reshape(9 * cin, cout).astype(jnp.bfloat16))
        kp[f"bc{i}"] = p[f"conv{i}_b"].reshape(1, cout).astype(jnp.float32)

    # PyTorch flattens NCHW: fc1 weight column index is c*(H*W) + h*W + w.
    # Kernel K order is (h*W + w)*C + c (NHWC pooled activation written at
    # 128-aligned lane offsets), so repack (F, C*HW) -> (HW, C, F) -> (512, F).
    fw = p["fc1_w"]                                      # (F, 512)
    f = fw.shape[0]
    kp["w_fc1"] = (jnp.transpose(fw.reshape(f, C3, H3P * W3P), (2, 1, 0))
                   .reshape(H3P * W3P * C3, f).astype(jnp.bfloat16))
    kp["b_fc1"] = p["fc1_b"].reshape(1, f).astype(jnp.float32)

    # fc2: transpose to (F, n_classes) and zero-pad to 128 output lanes so the
    # final store is lane-dense (the wrapper slices [:, :8]).
    w2 = p["fc2_w"].T.astype(jnp.bfloat16)               # (F, n_classes)
    kp["w_fc2"] = jnp.zeros((f, OUT_PAD), jnp.bfloat16).at[:, :w2.shape[1]].set(w2)
    b2 = p["fc2_b"].astype(jnp.float32)
    kp["b_fc2"] = jnp.zeros((1, OUT_PAD), jnp.float32).at[0, :b2.shape[0]].set(b2)
    return kp


# ----------------------------------- main ----------------------------------- #
if __name__ == "__main__":
    key = jax.random.PRNGKey(0)
    k_x, k_p = jax.random.split(key)
    x = jax.random.normal(k_x, (2, IN_C, IN_HW, IN_HW), jnp.float32)  # NCHW
    kparams = prepare_params(init_params_torch_layout(k_p))
    out = room_classifier_forward(x, kparams, batch_tile=1)
    jax.block_until_ready(out)
    assert out.shape == (2, N_CLASSES) and out.dtype == jnp.float32
    assert bool(jnp.all(jnp.isfinite(out)))
    print("KERNEL_OK")
</pallas_src>

<mosaic_0001>
module attributes {stable_mosaic.version = 11 : i64} {
  func.func @room_classifier_kernel(%arg0: i32, %arg1: memref<1x16x16x3xbf16, #tpu.memory_space<vmem>>, %arg2: memref<27x32xbf16, #tpu.memory_space<vmem>>, %arg3: memref<1x32xf32, #tpu.memory_space<vmem>>, %arg4: memref<288x64xbf16, #tpu.memory_space<vmem>>, %arg5: memref<1x64xf32, #tpu.memory_space<vmem>>, %arg6: memref<576x128xbf16, #tpu.memory_space<vmem>>, %arg7: memref<1x128xf32, #tpu.memory_space<vmem>>, %arg8: memref<512x32xbf16, #tpu.memory_space<vmem>>, %arg9: memref<1x32xf32, #tpu.memory_space<vmem>>, %arg10: memref<32x128xbf16, #tpu.memory_space<vmem>>, %arg11: memref<1x128xf32, #tpu.memory_space<vmem>>, %arg12: memref<1x1x128xf32, #tpu.memory_space<vmem>>, %arg13: memref<1x14x14x27xbf16, #tpu.memory_space<vmem>>, %arg14: memref<1x12x12x288xbf16, #tpu.memory_space<vmem>>, %arg15: memref<1x4x4x576xbf16, #tpu.memory_space<vmem>>, %arg16: memref<144x64xf32, #tpu.memory_space<vmem>>, %arg17: memref<16x128xf32, #tpu.memory_space<vmem>>, %arg18: memref<1x512xbf16, #tpu.memory_space<vmem>>) attributes {dimension_semantics = [#tpu.dimension_semantics<parallel>], iteration_bounds = array<i64: 2>, scalar_prefetch = 0 : i64, scratch_operands = 6 : i64, tpu.core_type = #tpu.core_type<tc>, window_params = [{transform_indices = @transform_0, window_bounds = array<i64: 1, 16, 16, 3>}, {pipeline_mode = #tpu.pipeline_mode<synchronous>, transform_indices = @transform_1, window_bounds = array<i64: 27, 32>}, {pipeline_mode = #tpu.pipeline_mode<synchronous>, transform_indices = @transform_2, window_bounds = array<i64: 1, 32>}, {pipeline_mode = #tpu.pipeline_mode<synchronous>, transform_indices = @transform_3, window_bounds = array<i64: 288, 64>}, {pipeline_mode = #tpu.pipeline_mode<synchronous>, transform_indices = @transform_4, window_bounds = array<i64: 1, 64>}, {pipeline_mode = #tpu.pipeline_mode<synchronous>, transform_indices = @transform_5, window_bounds = array<i64: 576, 128>}, {pipeline_mode = #tpu.pipeline_mode<synchronous>, transform_indices = @transform_6, window_bounds = array<i64: 1, 128>}, {pipeline_mode = #tpu.pipeline_mode<synchronous>, transform_indices = @transform_7, window_bounds = array<i64: 512, 32>}, {pipeline_mode = #tpu.pipeline_mode<synchronous>, transform_indices = @transform_8, window_bounds = array<i64: 1, 32>}, {pipeline_mode = #tpu.pipeline_mode<synchronous>, transform_indices = @transform_9, window_bounds = array<i64: 32, 128>}, {pipeline_mode = #tpu.pipeline_mode<synchronous>, transform_indices = @transform_10, window_bounds = array<i64: 1, 128>}, {transform_indices = @transform_11, window_bounds = array<i64: 1, 1, 128>}]} {
    %c0 = arith.constant 0 : index
    %c0_0 = arith.constant 0 : index
    %c0_1 = arith.constant 0 : index
    %c0_2 = arith.constant 0 : index
    %0 = vector.load %arg1[%c0, %c0_0, %c0_1, %c0_2] : memref<1x16x16x3xbf16, #tpu.memory_space<vmem>>, vector<1x16x16x3xbf16>
    %1 = vector.extract_strided_slice %0 {offsets = [0, 0, 0, 0], sizes = [1, 14, 14, 3], strides = [1, 1, 1, 1]} : vector<1x16x16x3xbf16> to vector<1x14x14x3xbf16>
    %c0_3 = arith.constant 0 : index
    %c0_4 = arith.constant 0 : index
    %c0_5 = arith.constant 0 : index
    %c0_6 = arith.constant 0 : index
    %2 = vector.load %arg13[%c0_3, %c0_4, %c0_5, %c0_6] : memref<1x14x14x27xbf16, #tpu.memory_space<vmem>>, vector<1x14x14x3xbf16>
    tpu.vector_store %arg13[%c0_3, %c0_4, %c0_5, %c0_6], %1 {strides = array<i32>} : memref<1x14x14x27xbf16, #tpu.memory_space<vmem>>, vector<1x14x14x3xbf16>,
    %3 = vector.extract_strided_slice %0 {offsets = [0, 0, 1, 0], sizes = [1, 14, 14, 3], strides = [1, 1, 1, 1]} : vector<1x16x16x3xbf16> to vector<1x14x14x3xbf16>
    %c0_7 = arith.constant 0 : index
    %c0_8 = arith.constant 0 : index
    %c0_9 = arith.constant 0 : index
    %c3 = arith.constant 3 : index
    %4 = vector.load %arg13[%c0_7, %c0_8, %c0_9, %c3] : memref<1x14x14x27xbf16, #tpu.memory_space<vmem>>, vector<1x14x14x3xbf16>
    tpu.vector_store %arg13[%c0_7, %c0_8, %c0_9, %c3], %3 {strides = array<i32>} : memref<1x14x14x27xbf16, #tpu.memory_space<vmem>>, vector<1x14x14x3xbf16>,
    %5 = vector.extract_strided_slice %0 {offsets = [0, 0, 2, 0], sizes = [1, 14, 14, 3], strides = [1, 1, 1, 1]} : vector<1x16x16x3xbf16> to vector<1x14x14x3xbf16>
    %c0_10 = arith.constant 0 : index
    %c0_11 = arith.constant 0 : index
    %c0_12 = arith.constant 0 : index
    %c6 = arith.constant 6 : index
    %6 = vector.load %arg13[%c0_10, %c0_11, %c0_12, %c6] : memref<1x14x14x27xbf16, #tpu.memory_space<vmem>>, vector<1x14x14x3xbf16>
    tpu.vector_store %arg13[%c0_10, %c0_11, %c0_12, %c6], %5 {strides = array<i32>} : memref<1x14x14x27xbf16, #tpu.memory_space<vmem>>, vector<1x14x14x3xbf16>,
    %7 = vector.extract_strided_slice %0 {offsets = [0, 1, 0, 0], sizes = [1, 14, 14, 3], strides = [1, 1, 1, 1]} : vector<1x16x16x3xbf16> to vector<1x14x14x3xbf16>
    %c0_13 = arith.constant 0 : index
    %c0_14 = arith.constant 0 : index
    %c0_15 = arith.constant 0 : index
    %c9 = arith.constant 9 : index
    %8 = vector.load %arg13[%c0_13, %c0_14, %c0_15, %c9] : memref<1x14x14x27xbf16, #tpu.memory_space<vmem>>, vector<1x14x14x3xbf16>
    tpu.vector_store %arg13[%c0_13, %c0_14, %c0_15, %c9], %7 {strides = array<i32>} : memref<1x14x14x27xbf16, #tpu.memory_space<vmem>>, vector<1x14x14x3xbf16>,
    %9 = vector.extract_strided_slice %0 {offsets = [0, 1, 1, 0], sizes = [1, 14, 14, 3], strides = [1, 1, 1, 1]} : vector<1x16x16x3xbf16> to vector<1x14x14x3xbf16>
    %c0_16 = arith.constant 0 : index
    %c0_17 = arith.constant 0 : index
    %c0_18 = arith.constant 0 : index
    %c12 = arith.constant 12 : index
    %10 = vector.load %arg13[%c0_16, %c0_17, %c0_18, %c12] : memref<1x14x14x27xbf16, #tpu.memory_space<vmem>>, vector<1x14x14x3xbf16>
    tpu.vector_store %arg13[%c0_16, %c0_17, %c0_18, %c12], %9 {strides = array<i32>} : memref<1x14x14x27xbf16, #tpu.memory_space<vmem>>, vector<1x14x14x3xbf16>,
    %11 = vector.extract_strided_slice %0 {offsets = [0, 1, 2, 0], sizes = [1, 14, 14, 3], strides = [1, 1, 1, 1]} : vector<1x16x16x3xbf16> to vector<1x14x14x3xbf16>
    %c0_19 = arith.constant 0 : index
    %c0_20 = arith.constant 0 : index
    %c0_21 = arith.constant 0 : index
    %c15 = arith.constant 15 : index
    %12 = vector.load %arg13[%c0_19, %c0_20, %c0_21, %c15] : memref<1x14x14x27xbf16, #tpu.memory_space<vmem>>, vector<1x14x14x3xbf16>
    tpu.vector_store %arg13[%c0_19, %c0_20, %c0_21, %c15], %11 {strides = array<i32>} : memref<1x14x14x27xbf16, #tpu.memory_space<vmem>>, vector<1x14x14x3xbf16>,
    %13 = vector.extract_strided_slice %0 {offsets = [0, 2, 0, 0], sizes = [1, 14, 14, 3], strides = [1, 1, 1, 1]} : vector<1x16x16x3xbf16> to vector<1x14x14x3xbf16>
    %c0_22 = arith.constant 0 : index
    %c0_23 = arith.constant 0 : index
    %c0_24 = arith.constant 0 : index
    %c18 = arith.constant 18 : index
    %14 = vector.load %arg13[%c0_22, %c0_23, %c0_24, %c18] : memref<1x14x14x27xbf16, #tpu.memory_space<vmem>>, vector<1x14x14x3xbf16>
    tpu.vector_store %arg13[%c0_22, %c0_23, %c0_24, %c18], %13 {strides = array<i32>} : memref<1x14x14x27xbf16, #tpu.memory_space<vmem>>, vector<1x14x14x3xbf16>,
    %15 = vector.extract_strided_slice %0 {offsets = [0, 2, 1, 0], sizes = [1, 14, 14, 3], strides = [1, 1, 1, 1]} : vector<1x16x16x3xbf16> to vector<1x14x14x3xbf16>
    %c0_25 = arith.constant 0 : index
    %c0_26 = arith.constant 0 : index
    %c0_27 = arith.constant 0 : index
    %c21 = arith.constant 21 : index
    %16 = vector.load %arg13[%c0_25, %c0_26, %c0_27, %c21] : memref<1x14x14x27xbf16, #tpu.memory_space<vmem>>, vector<1x14x14x3xbf16>
    tpu.vector_store %arg13[%c0_25, %c0_26, %c0_27, %c21], %15 {strides = array<i32>} : memref<1x14x14x27xbf16, #tpu.memory_space<vmem>>, vector<1x14x14x3xbf16>,
    %17 = vector.extract_strided_slice %0 {offsets = [0, 2, 2, 0], sizes = [1, 14, 14, 3], strides = [1, 1, 1, 1]} : vector<1x16x16x3xbf16> to vector<1x14x14x3xbf16>
    %c0_28 = arith.constant 0 : index
    %c0_29 = arith.constant 0 : index
    %c0_30 = arith.constant 0 : index
    %c24 = arith.constant 24 : index
    %18 = vector.load %arg13[%c0_28, %c0_29, %c0_30, %c24] : memref<1x14x14x27xbf16, #tpu.memory_space<vmem>>, vector<1x14x14x3xbf16>
    tpu.vector_store %arg13[%c0_28, %c0_29, %c0_30, %c24], %17 {strides = array<i32>} : memref<1x14x14x27xbf16, #tpu.memory_space<vmem>>, vector<1x14x14x3xbf16>,
    %c0_31 = arith.constant 0 : index
    %c0_32 = arith.constant 0 : index
    %c0_33 = arith.constant 0 : index
    %c0_34 = arith.constant 0 : index
    %19 = vector.load %arg13[%c0_31, %c0_32, %c0_33, %c0_34] : memref<1x14x14x27xbf16, #tpu.memory_space<vmem>>, vector<1x14x14x27xbf16>
    %20 = vector.shape_cast %19 : vector<1x14x14x27xbf16> to vector<196x27xbf16>
    %c0_35 = arith.constant 0 : index
    %c0_36 = arith.constant 0 : index
    %21 = vector.load %arg2[%c0_35, %c0_36] : memref<27x32xbf16, #tpu.memory_space<vmem>>, vector<27x32xbf16>
    %cst = arith.constant dense<0.000000e+00> : vector<196x32xf32>
    %22 = tpu.matmul %20, %21, %cst {dimension_numbers = #tpu.dot_dimension_numbers<[1], [0], [0], [1], [0, 0, 1, 1], [], []>} : vector<196x27xbf16>, vector<27x32xbf16>, vector<196x32xf32> -> vector<196x32xf32>
    %c0_37 = arith.constant 0 : index
    %c0_38 = arith.constant 0 : index
    %23 = vector.load %arg3[%c0_37, %c0_38] : memref<1x32xf32, #tpu.memory_space<vmem>>, vector<1x32xf32>
    %24 = vector.broadcast %23 : vector<1x32xf32> to vector<196x32xf32>
    %25 = arith.addf %22, %24 : vector<196x32xf32>
    %cst_39 = arith.constant 0.000000e+00 : f32
    %26 = vector.broadcast %cst_39 : f32 to vector<196x32xf32>
    %27 = arith.maximumf %25, %26 : vector<196x32xf32>
    %28 = vector.shape_cast %27 : vector<196x32xf32> to vector<1x14x14x32xf32>
    %29 = vector.extract_strided_slice %28 {offsets = [0, 0, 0, 0], sizes = [1, 12, 12, 32], strides = [1, 1, 1, 1]} : vector<1x14x14x32xf32> to vector<1x12x12x32xf32>
    %30 = arith.truncf %29 : vector<1x12x12x32xf32> to vector<1x12x12x32xbf16>
    %c0_40 = arith.constant 0 : index
    %c0_41 = arith.constant 0 : index
    %c0_42 = arith.constant 0 : index
    %c0_43 = arith.constant 0 : index
    %31 = vector.load %arg14[%c0_40, %c0_41, %c0_42, %c0_43] : memref<1x12x12x288xbf16, #tpu.memory_space<vmem>>, vector<1x12x12x32xbf16>
    tpu.vector_store %arg14[%c0_40, %c0_41, %c0_42, %c0_43], %30 {strides = array<i32>} : memref<1x12x12x288xbf16, #tpu.memory_space<vmem>>, vector<1x12x12x32xbf16>,
    %32 = vector.extract_strided_slice %28 {offsets = [0, 0, 1, 0], sizes = [1, 12, 12, 32], strides = [1, 1, 1, 1]} : vector<1x14x14x32xf32> to vector<1x12x12x32xf32>
    %33 = arith.truncf %32 : vector<1x12x12x32xf32> to vector<1x12x12x32xbf16>
    %c0_44 = arith.constant 0 : index
    %c0_45 = arith.constant 0 : index
    %c0_46 = arith.constant 0 : index
    %c32 = arith.constant 32 : index
    %34 = vector.load %arg14[%c0_44, %c0_45, %c0_46, %c32] : memref<1x12x12x288xbf16, #tpu.memory_space<vmem>>, vector<1x12x12x32xbf16>
    tpu.vector_store %arg14[%c0_44, %c0_45, %c0_46, %c32], %33 {strides = array<i32>} : memref<1x12x12x288xbf16, #tpu.memory_space<vmem>>, vector<1x12x12x32xbf16>,
    %35 = vector.extract_strided_slice %28 {offsets = [0, 0, 2, 0], sizes = [1, 12, 12, 32], strides = [1, 1, 1, 1]} : vector<1x14x14x32xf32> to vector<1x12x12x32xf32>
    %36 = arith.truncf %35 : vector<1x12x12x32xf32> to vector<1x12x12x32xbf16>
    %c0_47 = arith.constant 0 : index
    %c0_48 = arith.constant 0 : index
    %c0_49 = arith.constant 0 : index
    %c64 = arith.constant 64 : index
    %37 = vector.load %arg14[%c0_47, %c0_48, %c0_49, %c64] : memref<1x12x12x288xbf16, #tpu.memory_space<vmem>>, vector<1x12x12x32xbf16>
    tpu.vector_store %arg14[%c0_47, %c0_48, %c0_49, %c64], %36 {strides = array<i32>} : memref<1x12x12x288xbf16, #tpu.memory_space<vmem>>, vector<1x12x12x32xbf16>,
    %38 = vector.extract_strided_slice %28 {offsets = [0, 1, 0, 0], sizes = [1, 12, 12, 32], strides = [1, 1, 1, 1]} : vector<1x14x14x32xf32> to vector<1x12x12x32xf32>
    %39 = arith.truncf %38 : vector<1x12x12x32xf32> to vector<1x12x12x32xbf16>
    %c0_50 = arith.constant 0 : index
    %c0_51 = arith.constant 0 : index
    %c0_52 = arith.constant 0 : index
    %c96 = arith.constant 96 : index
    %40 = vector.load %arg14[%c0_50, %c0_51, %c0_52, %c96] : memref<1x12x12x288xbf16, #tpu.memory_space<vmem>>, vector<1x12x12x32xbf16>
    tpu.vector_store %arg14[%c0_50, %c0_51, %c0_52, %c96], %39 {strides = array<i32>} : memref<1x12x12x288xbf16, #tpu.memory_space<vmem>>, vector<1x12x12x32xbf16>,
    %41 = vector.extract_strided_slice %28 {offsets = [0, 1, 1, 0], sizes = [1, 12, 12, 32], strides = [1, 1, 1, 1]} : vector<1x14x14x32xf32> to vector<1x12x12x32xf32>
    %42 = arith.truncf %41 : vector<1x12x12x32xf32> to vector<1x12x12x32xbf16>
    %c0_53 = arith.constant 0 : index
    %c0_54 = arith.constant 0 : index
    %c0_55 = arith.constant 0 : index
    %c128 = arith.constant 128 : index
    %43 = vector.load %arg14[%c0_53, %c0_54, %c0_55, %c128] : memref<1x12x12x288xbf16, #tpu.memory_space<vmem>>, vector<1x12x12x32xbf16>
    tpu.vector_store %arg14[%c0_53, %c0_54, %c0_55, %c128], %42 {strides = array<i32>} : memref<1x12x12x288xbf16, #tpu.memory_space<vmem>>, vector<1x12x12x32xbf16>,
    %44 = vector.extract_strided_slice %28 {offsets = [0, 1, 2, 0], sizes = [1, 12, 12, 32], strides = [1, 1, 1, 1]} : vector<1x14x14x32xf32> to vector<1x12x12x32xf32>
    %45 = arith.truncf %44 : vector<1x12x12x32xf32> to vector<1x12x12x32xbf16>
    %c0_56 = arith.constant 0 : index
    %c0_57 = arith.constant 0 : index
    %c0_58 = arith.constant 0 : index
    %c160 = arith.constant 160 : index
    %46 = vector.load %arg14[%c0_56, %c0_57, %c0_58, %c160] : memref<1x12x12x288xbf16, #tpu.memory_space<vmem>>, vector<1x12x12x32xbf16>
    tpu.vector_store %arg14[%c0_56, %c0_57, %c0_58, %c160], %45 {strides = array<i32>} : memref<1x12x12x288xbf16, #tpu.memory_space<vmem>>, vector<1x12x12x32xbf16>,
    %47 = vector.extract_strided_slice %28 {offsets = [0, 2, 0, 0], sizes = [1, 12, 12, 32], strides = [1, 1, 1, 1]} : vector<1x14x14x32xf32> to vector<1x12x12x32xf32>
    %48 = arith.truncf %47 : vector<1x12x12x32xf32> to vector<1x12x12x32xbf16>
    %c0_59 = arith.constant 0 : index
    %c0_60 = arith.constant 0 : index
    %c0_61 = arith.constant 0 : index
    %c192 = arith.constant 192 : index
    %49 = vector.load %arg14[%c0_59, %c0_60, %c0_61, %c192] : memref<1x12x12x288xbf16, #tpu.memory_space<vmem>>, vector<1x12x12x32xbf16>
    tpu.vector_store %arg14[%c0_59, %c0_60, %c0_61, %c192], %48 {strides = array<i32>} : memref<1x12x12x288xbf16, #tpu.memory_space<vmem>>, vector<1x12x12x32xbf16>,
    %50 = vector.extract_strided_slice %28 {offsets = [0, 2, 1, 0], sizes = [1, 12, 12, 32], strides = [1, 1, 1, 1]} : vector<1x14x14x32xf32> to vector<1x12x12x32xf32>
    %51 = arith.truncf %50 : vector<1x12x12x32xf32> to vector<1x12x12x32xbf16>
    %c0_62 = arith.constant 0 : index
    %c0_63 = arith.constant 0 : index
    %c0_64 = arith.constant 0 : index
    %c224 = arith.constant 224 : index
    %52 = vector.load %arg14[%c0_62, %c0_63, %c0_64, %c224] : memref<1x12x12x288xbf16, #tpu.memory_space<vmem>>, vector<1x12x12x32xbf16>
    tpu.vector_store %arg14[%c0_62, %c0_63, %c0_64, %c224], %51 {strides = array<i32>} : memref<1x12x12x288xbf16, #tpu.memory_space<vmem>>, vector<1x12x12x32xbf16>,
    %53 = vector.extract_strided_slice %28 {offsets = [0, 2, 2, 0], sizes = [1, 12, 12, 32], strides = [1, 1, 1, 1]} : vector<1x14x14x32xf32> to vector<1x12x12x32xf32>
    %54 = arith.truncf %53 : vector<1x12x12x32xf32> to vector<1x12x12x32xbf16>
    %c0_65 = arith.constant 0 : index
    %c0_66 = arith.constant 0 : index
    %c0_67 = arith.constant 0 : index
    %c256 = arith.constant 256 : index
    %55 = vector.load %arg14[%c0_65, %c0_66, %c0_67, %c256] : memref<1x12x12x288xbf16, #tpu.memory_space<vmem>>, vector<1x12x12x32xbf16>
    tpu.vector_store %arg14[%c0_65, %c0_66, %c0_67, %c256], %54 {strides = array<i32>} : memref<1x12x12x288xbf16, #tpu.memory_space<vmem>>, vector<1x12x12x32xbf16>,
    %c0_68 = arith.constant 0 : index
    %c0_69 = arith.constant 0 : index
    %c0_70 = arith.constant 0 : index
    %c0_71 = arith.constant 0 : index
    %56 = vector.load %arg14[%c0_68, %c0_69, %c0_70, %c0_71] : memref<1x12x12x288xbf16, #tpu.memory_space<vmem>>, vector<1x12x12x288xbf16>
    %57 = vector.shape_cast %56 : vector<1x12x12x288xbf16> to vector<144x288xbf16>
    %c0_72 = arith.constant 0 : index
    %c0_73 = arith.constant 0 : index
    %58 = vector.load %arg4[%c0_72, %c0_73] : memref<288x64xbf16, #tpu.memory_space<vmem>>, vector<288x64xbf16>
    %cst_74 = arith.constant dense<0.000000e+00> : vector<144x64xf32>
    %59 = tpu.matmul %57, %58, %cst_74 {dimension_numbers = #tpu.dot_dimension_numbers<[1], [0], [0], [1], [0, 0, 1, 1], [], []>} : vector<144x288xbf16>, vector<288x64xbf16>, vector<144x64xf32> -> vector<144x64xf32>
    %c0_75 = arith.constant 0 : index
    %c0_76 = arith.constant 0 : index
    %60 = vector.load %arg5[%c0_75, %c0_76] : memref<1x64xf32, #tpu.memory_space<vmem>>, vector<1x64xf32>
    %61 = vector.broadcast %60 : vector<1x64xf32> to vector<144x64xf32>
    %62 = arith.addf %59, %61 : vector<144x64xf32>
    %cst_77 = arith.constant 0.000000e+00 : f32
    %63 = vector.broadcast %cst_77 : f32 to vector<144x64xf32>
    %64 = arith.maximumf %62, %63 : vector<144x64xf32>
    %c0_78 = arith.constant 0 : index
    %c0_79 = arith.constant 0 : index
    %65 = vector.load %arg16[%c0_78, %c0_79] : memref<144x64xf32, #tpu.memory_space<vmem>>, vector<144x64xf32>
    tpu.vector_store %arg16[%c0_78, %c0_79], %64 {strides = array<i32>} : memref<144x64xf32, #tpu.memory_space<vmem>>, vector<144x64xf32>,
    %c0_80 = arith.constant 0 : index
    %c0_81 = arith.constant 0 : index
    %66 = tpu.strided_load %arg16[%c0_80, %c0_81] {strides = array<i32: 2, 1>} : memref<144x64xf32, #tpu.memory_space<vmem>>, vector<72x64xf32>
    %c1 = arith.constant 1 : index
    %c0_82 = arith.constant 0 : index
    %67 = tpu.strided_load %arg16[%c1, %c0_82] {strides = array<i32: 2, 1>} : memref<144x64xf32, #tpu.memory_space<vmem>>, vector<72x64xf32>
    %68 = arith.maximumf %66, %67 : vector<72x64xf32>
    %69 = vector.shape_cast %68 : vector<72x64xf32> to vector<1x6x2x6x64xf32>
    %cst_83 = arith.constant dense<0xFF800000> : vector<1x6x6x64xf32>
    %70 = vector.multi_reduction <maximumf>, %69, %cst_83 [2] : vector<1x6x2x6x64xf32> to vector<1x6x6x64xf32>
    %71 = vector.extract_strided_slice %70 {offsets = [0, 0, 0, 0], sizes = [1, 4, 4, 64], strides = [1, 1, 1, 1]} : vector<1x6x6x64xf32> to vector<1x4x4x64xf32>
    %72 = arith.truncf %71 : vector<1x4x4x64xf32> to vector<1x4x4x64xbf16>
    %c0_84 = arith.constant 0 : index
    %c0_85 = arith.constant 0 : index
    %c0_86 = arith.constant 0 : index
    %c0_87 = arith.constant 0 : index
    %73 = vector.load %arg15[%c0_84, %c0_85, %c0_86, %c0_87] : memref<1x4x4x576xbf16, #tpu.memory_space<vmem>>, vector<1x4x4x64xbf16>
    tpu.vector_store %arg15[%c0_84, %c0_85, %c0_86, %c0_87], %72 {strides = array<i32>} : memref<1x4x4x576xbf16, #tpu.memory_space<vmem>>, vector<1x4x4x64xbf16>,
    %74 = vector.extract_strided_slice %70 {offsets = [0, 0, 1, 0], sizes = [1, 4, 4, 64], strides = [1, 1, 1, 1]} : vector<1x6x6x64xf32> to vector<1x4x4x64xf32>
    %75 = arith.truncf %74 : vector<1x4x4x64xf32> to vector<1x4x4x64xbf16>
    %c0_88 = arith.constant 0 : index
    %c0_89 = arith.constant 0 : index
    %c0_90 = arith.constant 0 : index
    %c64_91 = arith.constant 64 : index
    %76 = vector.load %arg15[%c0_88, %c0_89, %c0_90, %c64_91] : memref<1x4x4x576xbf16, #tpu.memory_space<vmem>>, vector<1x4x4x64xbf16>
    tpu.vector_store %arg15[%c0_88, %c0_89, %c0_90, %c64_91], %75 {strides = array<i32>} : memref<1x4x4x576xbf16, #tpu.memory_space<vmem>>, vector<1x4x4x64xbf16>,
    %77 = vector.extract_strided_slice %70 {offsets = [0, 0, 2, 0], sizes = [1, 4, 4, 64], strides = [1, 1, 1, 1]} : vector<1x6x6x64xf32> to vector<1x4x4x64xf32>
    %78 = arith.truncf %77 : vector<1x4x4x64xf32> to vector<1x4x4x64xbf16>
    %c0_92 = arith.constant 0 : index
    %c0_93 = arith.constant 0 : index
    %c0_94 = arith.constant 0 : index
    %c128_95 = arith.constant 128 : index
    %79 = vector.load %arg15[%c0_92, %c0_93, %c0_94, %c128_95] : memref<1x4x4x576xbf16, #tpu.memory_space<vmem>>, vector<1x4x4x64xbf16>
    tpu.vector_store %arg15[%c0_92, %c0_93, %c0_94, %c128_95], %78 {strides = array<i32>} : memref<1x4x4x576xbf16, #tpu.memory_space<vmem>>, vector<1x4x4x64xbf16>,
    %80 = vector.extract_strided_slice %70 {offsets = [0, 1, 0, 0], sizes = [1, 4, 4, 64], strides = [1, 1, 1, 1]} : vector<1x6x6x64xf32> to vector<1x4x4x64xf32>
    %81 = arith.truncf %80 : vector<1x4x4x64xf32> to vector<1x4x4x64xbf16>
    %c0_96 = arith.constant 0 : index
    %c0_97 = arith.constant 0 : index
    %c0_98 = arith.constant 0 : index
    %c192_99 = arith.constant 192 : index
    %82 = vector.load %arg15[%c0_96, %c0_97, %c0_98, %c192_99] : memref<1x4x4x576xbf16, #tpu.memory_space<vmem>>, vector<1x4x4x64xbf16>
    tpu.vector_store %arg15[%c0_96, %c0_97, %c0_98, %c192_99], %81 {strides = array<i32>} : memref<1x4x4x576xbf16, #tpu.memory_space<vmem>>, vector<1x4x4x64xbf16>,
    %83 = vector.extract_strided_slice %70 {offsets = [0, 1, 1, 0], sizes = [1, 4, 4, 64], strides = [1, 1, 1, 1]} : vector<1x6x6x64xf32> to vector<1x4x4x64xf32>
    %84 = arith.truncf %83 : vector<1x4x4x64xf32> to vector<1x4x4x64xbf16>
    %c0_100 = arith.constant 0 : index
    %c0_101 = arith.constant 0 : index
    %c0_102 = arith.constant 0 : index
    %c256_103 = arith.constant 256 : index
    %85 = vector.load %arg15[%c0_100, %c0_101, %c0_102, %c256_103] : memref<1x4x4x576xbf16, #tpu.memory_space<vmem>>, vector<1x4x4x64xbf16>
    tpu.vector_store %arg15[%c0_100, %c0_101, %c0_102, %c256_103], %84 {strides = array<i32>} : memref<1x4x4x576xbf16, #tpu.memory_space<vmem>>, vector<1x4x4x64xbf16>,
    %86 = vector.extract_strided_slice %70 {offsets = [0, 1, 2, 0], sizes = [1, 4, 4, 64], strides = [1, 1, 1, 1]} : vector<1x6x6x64xf32> to vector<1x4x4x64xf32>
    %87 = arith.truncf %86 : vector<1x4x4x64xf32> to vector<1x4x4x64xbf16>
    %c0_104 = arith.constant 0 : index
    %c0_105 = arith.constant 0 : index
    %c0_106 = arith.constant 0 : index
    %c320 = arith.constant 320 : index
    %88 = vector.load %arg15[%c0_104, %c0_105, %c0_106, %c320] : memref<1x4x4x576xbf16, #tpu.memory_space<vmem>>, vector<1x4x4x64xbf16>
    tpu.vector_store %arg15[%c0_104, %c0_105, %c0_106, %c320], %87 {strides = array<i32>} : memref<1x4x4x576xbf16, #tpu.memory_space<vmem>>, vector<1x4x4x64xbf16>,
    %89 = vector.extract_strided_slice %70 {offsets = [0, 2, 0, 0], sizes = [1, 4, 4, 64], strides = [1, 1, 1, 1]} : vector<1x6x6x64xf32> to vector<1x4x4x64xf32>
    %90 = arith.truncf %89 : vector<1x4x4x64xf32> to vector<1x4x4x64xbf16>
    %c0_107 = arith.constant 0 : index
    %c0_108 = arith.constant 0 : index
    %c0_109 = arith.constant 0 : index
    %c384 = arith.constant 384 : index
    %91 = vector.load %arg15[%c0_107, %c0_108, %c0_109, %c384] : memref<1x4x4x576xbf16, #tpu.memory_space<vmem>>, vector<1x4x4x64xbf16>
    tpu.vector_store %arg15[%c0_107, %c0_108, %c0_109, %c384], %90 {strides = array<i32>} : memref<1x4x4x576xbf16, #tpu.memory_space<vmem>>, vector<1x4x4x64xbf16>,
    %92 = vector.extract_strided_slice %70 {offsets = [0, 2, 1, 0], sizes = [1, 4, 4, 64], strides = [1, 1, 1, 1]} : vector<1x6x6x64xf32> to vector<1x4x4x64xf32>
    %93 = arith.truncf %92 : vector<1x4x4x64xf32> to vector<1x4x4x64xbf16>
    %c0_110 = arith.constant 0 : index
    %c0_111 = arith.constant 0 : index
    %c0_112 = arith.constant 0 : index
    %c448 = arith.constant 448 : index
    %94 = vector.load %arg15[%c0_110, %c0_111, %c0_112, %c448] : memref<1x4x4x576xbf16, #tpu.memory_space<vmem>>, vector<1x4x4x64xbf16>
    tpu.vector_store %arg15[%c0_110, %c0_111, %c0_112, %c448], %93 {strides = array<i32>} : memref<1x4x4x576xbf16, #tpu.memory_space<vmem>>, vector<1x4x4x64xbf16>,
    %95 = vector.extract_strided_slice %70 {offsets = [0, 2, 2, 0], sizes = [1, 4, 4, 64], strides = [1, 1, 1, 1]} : vector<1x6x6x64xf32> to vector<1x4x4x64xf32>
    %96 = arith.truncf %95 : vector<1x4x4x64xf32> to vector<1x4x4x64xbf16>
    %c0_113 = arith.constant 0 : index
    %c0_114 = arith.constant 0 : index
    %c0_115 = arith.constant 0 : index
    %c512 = arith.constant 512 : index
    %97 = vector.load %arg15[%c0_113, %c0_114, %c0_115, %c512] : memref<1x4x4x576xbf16, #tpu.memory_space<vmem>>, vector<1x4x4x64xbf16>
    tpu.vector_store %arg15[%c0_113, %c0_114, %c0_115, %c512], %96 {strides = array<i32>} : memref<1x4x4x576xbf16, #tpu.memory_space<vmem>>, vector<1x4x4x64xbf16>,
    %c0_116 = arith.constant 0 : index
    %c0_117 = arith.constant 0 : index
    %c0_118 = arith.constant 0 : index
    %c0_119 = arith.constant 0 : index
    %98 = vector.load %arg15[%c0_116, %c0_117, %c0_118, %c0_119] : memref<1x4x4x576xbf16, #tpu.memory_space<vmem>>, vector<1x4x4x576xbf16>
    %99 = vector.shape_cast %98 : vector<1x4x4x576xbf16> to vector<16x576xbf16>
    %c0_120 = arith.constant 0 : index
    %c0_121 = arith.constant 0 : index
    %100 = vector.load %arg6[%c0_120, %c0_121] : memref<576x128xbf16, #tpu.memory_space<vmem>>, vector<576x128xbf16>
    %cst_122 = arith.constant dense<0.000000e+00> : vector<16x128xf32>
    %101 = tpu.matmul %99, %100, %cst_122 {dimension_numbers = #tpu.dot_dimension_numbers<[1], [0], [0], [1], [0, 0, 1, 1], [], []>} : vector<16x576xbf16>, vector<576x128xbf16>, vector<16x128xf32> -> vector<16x128xf32>
    %c0_123 = arith.constant 0 : index
    %c0_124 = arith.constant 0 : index
    %102 = vector.load %arg7[%c0_123, %c0_124] : memref<1x128xf32, #tpu.memory_space<vmem>>, vector<1x128xf32>
    %103 = vector.broadcast %102 : vector<1x128xf32> to vector<16x128xf32>
    %104 = arith.addf %101, %103 : vector<16x128xf32>
    %cst_125 = arith.constant 0.000000e+00 : f32
    %105 = vector.broadcast %cst_125 : f32 to vector<16x128xf32>
    %106 = arith.maximumf %104, %105 : vector<16x128xf32>
    %c0_126 = arith.constant 0 : index
    %c0_127 = arith.constant 0 : index
    %107 = vector.load %arg17[%c0_126, %c0_127] : memref<16x128xf32, #tpu.memory_space<vmem>>, vector<16x128xf32>
    tpu.vector_store %arg17[%c0_126, %c0_127], %106 {strides = array<i32>} : memref<16x128xf32, #tpu.memory_space<vmem>>, vector<16x128xf32>,
    %c0_128 = arith.constant 0 : index
    %c0_129 = arith.constant 0 : index
    %108 = tpu.strided_load %arg17[%c0_128, %c0_129] {strides = array<i32: 2, 1>} : memref<16x128xf32, #tpu.memory_space<vmem>>, vector<8x128xf32>
    %c1_130 = arith.constant 1 : index
    %c0_131 = arith.constant 0 : index
    %109 = tpu.strided_load %arg17[%c1_130, %c0_131] {strides = array<i32: 2, 1>} : memref<16x128xf32, #tpu.memory_space<vmem>>, vector<8x128xf32>
    %110 = arith.maximumf %108, %109 : vector<8x128xf32>
    %111 = vector.shape_cast %110 : vector<8x128xf32> to vector<1x2x2x2x128xf32>
    %cst_132 = arith.constant dense<0xFF800000> : vector<1x2x2x128xf32>
    %112 = vector.multi_reduction <maximumf>, %111, %cst_132 [2] : vector<1x2x2x2x128xf32> to vector<1x2x2x128xf32>
    %113 = vector.extract_strided_slice %112 {offsets = [0, 0, 0, 0], sizes = [1, 1, 1, 128], strides = [1, 1, 1, 1]} : vector<1x2x2x128xf32> to vector<1x1x1x128xf32>
    %114 = vector.shape_cast %113 : vector<1x1x1x128xf32> to vector<1x128xf32>
    %115 = arith.truncf %114 : vector<1x128xf32> to vector<1x128xbf16>
    %c0_133 = arith.constant 0 : index
    %c0_134 = arith.constant 0 : index
    %116 = vector.load %arg18[%c0_133, %c0_134] : memref<1x512xbf16, #tpu.memory_space<vmem>>, vector<1x128xbf16>
    tpu.vector_store %arg18[%c0_133, %c0_134], %115 {strides = array<i32>} : memref<1x512xbf16, #tpu.memory_space<vmem>>, vector<1x128xbf16>,
    %117 = vector.extract_strided_slice %112 {offsets = [0, 0, 1, 0], sizes = [1, 1, 1, 128], strides = [1, 1, 1, 1]} : vector<1x2x2x128xf32> to vector<1x1x1x128xf32>
    %118 = vector.shape_cast %117 : vector<1x1x1x128xf32> to vector<1x128xf32>
    %119 = arith.truncf %118 : vector<1x128xf32> to vector<1x128xbf16>
    %c0_135 = arith.constant 0 : index
    %c128_136 = arith.constant 128 : index
    %120 = vector.load %arg18[%c0_135, %c128_136] : memref<1x512xbf16, #tpu.memory_space<vmem>>, vector<1x128xbf16>
    tpu.vector_store %arg18[%c0_135, %c128_136], %119 {strides = array<i32>} : memref<1x512xbf16, #tpu.memory_space<vmem>>, vector<1x128xbf16>,
    %121 = vector.extract_strided_slice %112 {offsets = [0, 1, 0, 0], sizes = [1, 1, 1, 128], strides = [1, 1, 1, 1]} : vector<1x2x2x128xf32> to vector<1x1x1x128xf32>
    %122 = vector.shape_cast %121 : vector<1x1x1x128xf32> to vector<1x128xf32>
    %123 = arith.truncf %122 : vector<1x128xf32> to vector<1x128xbf16>
    %c0_137 = arith.constant 0 : index
    %c256_138 = arith.constant 256 : index
    %124 = vector.load %arg18[%c0_137, %c256_138] : memref<1x512xbf16, #tpu.memory_space<vmem>>, vector<1x128xbf16>
    tpu.vector_store %arg18[%c0_137, %c256_138], %123 {strides = array<i32>} : memref<1x512xbf16, #tpu.memory_space<vmem>>, vector<1x128xbf16>,
    %125 = vector.extract_strided_slice %112 {offsets = [0, 1, 1, 0], sizes = [1, 1, 1, 128], strides = [1, 1, 1, 1]} : vector<1x2x2x128xf32> to vector<1x1x1x128xf32>
    %126 = vector.shape_cast %125 : vector<1x1x1x128xf32> to vector<1x128xf32>
    %127 = arith.truncf %126 : vector<1x128xf32> to vector<1x128xbf16>
    %c0_139 = arith.constant 0 : index
    %c384_140 = arith.constant 384 : index
    %128 = vector.load %arg18[%c0_139, %c384_140] : memref<1x512xbf16, #tpu.memory_space<vmem>>, vector<1x128xbf16>
    tpu.vector_store %arg18[%c0_139, %c384_140], %127 {strides = array<i32>} : memref<1x512xbf16, #tpu.memory_space<vmem>>, vector<1x128xbf16>,
    %c0_141 = arith.constant 0 : index
    %c0_142 = arith.constant 0 : index
    %129 = vector.load %arg18[%c0_141, %c0_142] : memref<1x512xbf16, #tpu.memory_space<vmem>>, vector<1x512xbf16>
    %c0_143 = arith.constant 0 : index
    %c0_144 = arith.constant 0 : index
    %130 = vector.load %arg8[%c0_143, %c0_144] : memref<512x32xbf16, #tpu.memory_space<vmem>>, vector<512x32xbf16>
    %cst_145 = arith.constant dense<0.000000e+00> : vector<1x32xf32>
    %131 = tpu.matmul %129, %130, %cst_145 {dimension_numbers = #tpu.dot_dimension_numbers<[1], [0], [0], [1], [0, 0, 1, 1], [], []>} : vector<1x512xbf16>, vector<512x32xbf16>, vector<1x32xf32> -> vector<1x32xf32>
    %c0_146 = arith.constant 0 : index
    %c0_147 = arith.constant 0 : index
    %132 = vector.load %arg9[%c0_146, %c0_147] : memref<1x32xf32, #tpu.memory_space<vmem>>, vector<1x32xf32>
    %133 = arith.addf %131, %132 : vector<1x32xf32>
    %cst_148 = arith.constant 0.000000e+00 : f32
    %134 = vector.broadcast %cst_148 : f32 to vector<1x32xf32>
    %135 = arith.maximumf %133, %134 : vector<1x32xf32>
    %136 = arith.truncf %135 : vector<1x32xf32> to vector<1x32xbf16>
    %c0_149 = arith.constant 0 : index
    %c0_150 = arith.constant 0 : index
    %137 = vector.load %arg10[%c0_149, %c0_150] : memref<32x128xbf16, #tpu.memory_space<vmem>>, vector<32x128xbf16>
    %cst_151 = arith.constant dense<0.000000e+00> : vector<1x128xf32>
    %138 = tpu.matmul %136, %137, %cst_151 {dimension_numbers = #tpu.dot_dimension_numbers<[1], [0], [0], [1], [0, 0, 1, 1], [], []>} : vector<1x32xbf16>, vector<32x128xbf16>, vector<1x128xf32> -> vector<1x128xf32>
    %c0_152 = arith.constant 0 : index
    %c0_153 = arith.constant 0 : index
    %139 = vector.load %arg11[%c0_152, %c0_153] : memref<1x128xf32, #tpu.memory_space<vmem>>, vector<1x128xf32>
    %140 = arith.addf %138, %139 : vector<1x128xf32>
    %c0_154 = arith.constant 0 : index
    %c0_155 = arith.constant 0 : index
    %c0_156 = arith.constant 0 : index
    %141 = vector.load %arg12[%c0_154, %c0_155, %c0_156] : memref<1x1x128xf32, #tpu.memory_space<vmem>>, vector<1x1x128xf32>
    %142 = vector.shape_cast %141 : vector<1x1x128xf32> to vector<1x128xf32>
    %143 = vector.shape_cast %140 : vector<1x128xf32> to vector<1x1x128xf32>
    tpu.vector_store %arg12[%c0_154, %c0_155, %c0_156], %143 {strides = array<i32>} : memref<1x1x128xf32, #tpu.memory_space<vmem>>, vector<1x1x128xf32>,
    return
  }
  func.func @transform_0(%arg0: i32) -> (i32, i32, i32, i32) {
    %c0_i32 = arith.constant 0 : i32
    %c0_i32_0 = arith.constant 0 : i32
    %c0_i32_1 = arith.constant 0 : i32
    %c0_i32_2 = arith.constant 0 : i32
    return %arg0, %c0_i32, %c0_i32_0, %c0_i32_1 : i32, i32, i32, i32
  }
  func.func @transform_1(%arg0: i32) -> (i32, i32) {
    %c0_i32 = arith.constant 0 : i32
    %c0_i32_0 = arith.constant 0 : i32
    %c0_i32_1 = arith.constant 0 : i32
    return %c0_i32, %c0_i32_0 : i32, i32
  }
  func.func @transform_2(%arg0: i32) -> (i32, i32) {
    %c0_i32 = arith.constant 0 : i32
    %c0_i32_0 = arith.constant 0 : i32
    %c0_i32_1 = arith.constant 0 : i32
    return %c0_i32, %c0_i32_0 : i32, i32
  }
  func.func @transform_3(%arg0: i32) -> (i32, i32) {
    %c0_i32 = arith.constant 0 : i32
    %c0_i32_0 = arith.constant 0 : i32
    %c0_i32_1 = arith.constant 0 : i32
    return %c0_i32, %c0_i32_0 : i32, i32
  }
  func.func @transform_4(%arg0: i32) -> (i32, i32) {
    %c0_i32 = arith.constant 0 : i32
    %c0_i32_0 = arith.constant 0 : i32
    %c0_i32_1 = arith.constant 0 : i32
    return %c0_i32, %c0_i32_0 : i32, i32
  }
  func.func @transform_5(%arg0: i32) -> (i32, i32) {
    %c0_i32 = arith.constant 0 : i32
    %c0_i32_0 = arith.constant 0 : i32
    %c0_i32_1 = arith.constant 0 : i32
    return %c0_i32, %c0_i32_0 : i32, i32
  }
  func.func @transform_6(%arg0: i32) -> (i32, i32) {
    %c0_i32 = arith.constant 0 : i32
    %c0_i32_0 = arith.constant 0 : i32
    %c0_i32_1 = arith.constant 0 : i32
    return %c0_i32, %c0_i32_0 : i32, i32
  }
  func.func @transform_7(%arg0: i32) -> (i32, i32) {
    %c0_i32 = arith.constant 0 : i32
    %c0_i32_0 = arith.constant 0 : i32
    %c0_i32_1 = arith.constant 0 : i32
    return %c0_i32, %c0_i32_0 : i32, i32
  }
  func.func @transform_8(%arg0: i32) -> (i32, i32) {
    %c0_i32 = arith.constant 0 : i32
    %c0_i32_0 = arith.constant 0 : i32
    %c0_i32_1 = arith.constant 0 : i32
    return %c0_i32, %c0_i32_0 : i32, i32
  }
  func.func @transform_9(%arg0: i32) -> (i32, i32) {
    %c0_i32 = arith.constant 0 : i32
    %c0_i32_0 = arith.constant 0 : i32
    %c0_i32_1 = arith.constant 0 : i32
    return %c0_i32, %c0_i32_0 : i32, i32
  }
  func.func @transform_10(%arg0: i32) -> (i32, i32) {
    %c0_i32 = arith.constant 0 : i32
    %c0_i32_0 = arith.constant 0 : i32
    %c0_i32_1 = arith.constant 0 : i32
    return %c0_i32, %c0_i32_0 : i32, i32
  }
  func.func @transform_11(%arg0: i32) -> (i32, i32, i32) {
    %c0_i32 = arith.constant 0 : i32
    %c0_i32_0 = arith.constant 0 : i32
    %c0_i32_1 = arith.constant 0 : i32
    return %arg0, %c0_i32, %c0_i32_0 : i32, i32, i32
  }
}

</mosaic_0001>

<llo_original>
// kernel: room_classifier_forward.1
$region0: #{room_classifier_forward.1}
  #allocation0 [shape = 'u32[]', space=smem, size = 0x4, offset = 0x4, fixed_abs, tag = 'smem constant byte address 0x4 - core index']
  #allocation1 [shape = 'u32[72,128]{1,0:T(1,128)}', space=vmem, size = 0x9000, scoped, tag = 'internal scratch']
  #allocation2 [shape = 'bf16[1,14,14,27]{3,2,1,0:T(8,128)(2,1)}', space=vmem, size = 0xe000, scoped, tag = 'scratch operand']
  #allocation3 [shape = 'bf16[1,12,12,288]{3,2,1,0:T(8,128)(2,1)}', space=vmem, size = 0x24000, scoped, tag = 'scratch operand']
  #allocation4 [shape = 'bf16[1,4,4,576]{3,2,1,0:T(4,128)(2,1)}', space=vmem, size = 0x5000, scoped, tag = 'scratch operand']
  #allocation5 [shape = 'f32[144,64]{1,0:T(8,128)}', space=vmem, size = 0x12000, scoped, tag = 'scratch operand']
  #allocation6 [shape = 'f32[16,128]{1,0:T(8,128)}', space=vmem, size = 0x2000, scoped, tag = 'scratch operand']
  #allocation7 [shape = 'bf16[1,512]{1,0:T(2,128)(2,1)}', space=vmem, size = 0x800, scoped, tag = 'scratch operand']
  %s0 = inlined_call_operand.vmem [shape: bf16[2,16,16,3], index: 0, kind: input, shape index: {}]
  %s1 = inlined_call_operand.vmem [shape: bf16[27,32], index: 1, kind: input, shape index: {}]
  %s2 = inlined_call_operand.vmem [shape: f32[1,32], index: 2, kind: input, shape index: {}]
  %s3 = inlined_call_operand.vmem [shape: bf16[288,64], index: 3, kind: input, shape index: {}]
  %s4 = inlined_call_operand.vmem [shape: f32[1,64], index: 4, kind: input, shape index: {}]
  %s5 = inlined_call_operand.vmem [shape: bf16[576,128], index: 5, kind: input, shape index: {}]
  %s6 = inlined_call_operand.vmem [shape: f32[1,128], index: 6, kind: input, shape index: {}]
  %s7 = inlined_call_operand.vmem [shape: bf16[512,32], index: 7, kind: input, shape index: {}]
  %s8 = inlined_call_operand.vmem [shape: f32[1,32], index: 8, kind: input, shape index: {}]
  %s9 = inlined_call_operand.vmem [shape: bf16[32,128], index: 9, kind: input, shape index: {}]
  %s10 = inlined_call_operand.vmem [shape: f32[1,128], index: 10, kind: input, shape index: {}]
  %s11 = inlined_call_operand.hbm [shape: f32[2,1,128], index: 11, kind: output, shape index: {}]
  %s12 = sld [smem:[#allocation0]]
  $region77: #{room_classifier_forward.1} parent=0
    _
  %s14 = ssub.s32 1, %s12
  %s15 = scalar_select 0, %s14, %s12
  $region1: #{room_classifier_forward.1} parent=0
    #allocation8 [shape = 'u8[1024]{0}', space=vmem, size = 0x400, scoped, tag = 'output window, operand 0']
    #allocation9 [shape = 's32[2]{0}', space=sflag, size = 0x8, scoped, tag = 'scoped memory for room_classifier_forward.1']
    %16 = vsyncpa [#allocation9], 0
    %s17 = scalar_lea.sflag [#allocation9], 1
    %18 = vsyncpa %s17, 0
    loop: start=0, step=1, limit=4
    $region2: #{room_classifier_forward.1} parent=1 // loop_pre_header
      _
    $region3: #{room_classifier_forward.1} parent=1 // loop_header
      %s20 = sphi 0, %s24
      %p21 = scmp.ge.s32.totalorder %s20, 4
      %s30 = sphi 0, %s32
      %s33 = sphi 0, %s30
      %s34 = sphi 0, %s33
      %s50 = sphi 0, %s34
      %s54 = sphi 0, %s54
      %s56 = sphi 0, %s54
      %s57 = sphi 0, %s56
      %s71 = sphi 0, %s57
      %s75 = sphi 0, %s75
      %s77 = sphi 0, %s75
      %s78 = sphi 0, %s77
      %s92 = sphi 0, %s78
      %s96 = sphi 0, %s96
      %s98 = sphi 0, %s96
      %s99 = sphi 0, %s98
      %s113 = sphi 0, %s99
      %s117 = sphi 0, %s117
      %s119 = sphi 0, %s117
      %s120 = sphi 0, %s119
      %s134 = sphi 0, %s120
      %s138 = sphi 0, %s138
      %s140 = sphi 0, %s138
      %s141 = sphi 0, %s140
      %s155 = sphi 0, %s141
      %s159 = sphi 0, %s159
      %s161 = sphi 0, %s159
      %s162 = sphi 0, %s161
      %s176 = sphi 0, %s162
      %s180 = sphi 0, %s180
      %s182 = sphi 0, %s180
      %s183 = sphi 0, %s182
      %s197 = sphi 0, %s183
      %s201 = sphi 0, %s201
      %s203 = sphi 0, %s201
      %s204 = sphi 0, %s203
      %s218 = sphi 0, %s204
      %s222 = sphi 0, %s222
      %s224 = sphi 0, %s222
      %s225 = sphi 0, %s224
      %s239 = sphi 0, %s225
      %s243 = sphi 0, %s243
      %s245 = sphi 0, %s243
      %s246 = sphi 0, %s245
      %s260 = sphi 0, %s246
      %s266 = sphi 0, %s268
      %s269 = sphi 0, %s266
      %s270 = sphi 0, %s269
      %s286 = sphi 0, %s270
    $region4: #{room_classifier_forward.1} parent=1 // loop_header_branch
      %23 = sbr.rel (%p21) target = $region8
    $region5: #{room_classifier_forward.1} parent=1 // loop_body
      %s25 = ssub.s32 %s20, 1
      %s26 = ssub.s32 %s20, 2
      %s27 = sadd.s32 %s20, 1
      %s28 = ssub.s32 %s20, %s27
      %p29 = scmp.eq.s32.totalorder %s28, 0
      %s31 = sadd.s32 %s30, 1
      %s32 = scalar_select %p29, %s30, %s31
      %p35 = pneg %p29
      %p36 = scmp.eq.s32.totalorder %s20, 1
      %p37 = por %p35, %p36
      %p38 = scmp.ne.s32.totalorder %s30, %s33
      %p39 = scmp.eq.s32.totalorder %s20, 0
      %p40 = por %p38, %p39
      %p41 = scmp.ne.s32.totalorder %s30, %s33
      %p42 = scmp.eq.s32.totalorder %s25, 1
      %p43 = por %p41, %p42
      %p44 = scmp.ne.s32.totalorder %s33, %s34
      %p45 = scmp.eq.s32.totalorder %s25, 0
      %p46 = por %p44, %p45
      %p47 = scmp.ne.s32.totalorder %s33, %s34
      %p48 = scmp.eq.s32.totalorder %s26, 1
      %p49 = por %p47, %p48
      %p51 = scmp.ne.s32.totalorder %s34, %s50
      %p52 = scmp.eq.s32.totalorder %s26, 0
      %p53 = por %p51, %p52
      %s55 = sadd.s32 %s54, 1
      %p58 = scmp.eq.s32.totalorder %s20, 1
      %p59 = scmp.ne.s32.totalorder %s54, %s56
      %p60 = scmp.eq.s32.totalorder %s20, 0
      %p61 = por %p59, %p60
      %p62 = scmp.ne.s32.totalorder %s54, %s56
      %p63 = scmp.eq.s32.totalorder %s25, 1
      %p64 = por %p62, %p63
      %p65 = scmp.ne.s32.totalorder %s56, %s57
      %p66 = scmp.eq.s32.totalorder %s25, 0
      %p67 = por %p65, %p66
      %p68 = scmp.ne.s32.totalorder %s56, %s57
      %p69 = scmp.eq.s32.totalorder %s26, 1
      %p70 = por %p68, %p69
      %p72 = scmp.ne.s32.totalorder %s57, %s71
      %p73 = scmp.eq.s32.totalorder %s26, 0
      %p74 = por %p72, %p73
      %s76 = sadd.s32 %s75, 1
      %p79 = scmp.eq.s32.totalorder %s20, 1
      %p80 = scmp.ne.s32.totalorder %s75, %s77
      %p81 = scmp.eq.s32.totalorder %s20, 0
      %p82 = por %p80, %p81
      %p83 = scmp.ne.s32.totalorder %s75, %s77
      %p84 = scmp.eq.s32.totalorder %s25, 1
      %p85 = por %p83, %p84
      %p86 = scmp.ne.s32.totalorder %s77, %s78
      %p87 = scmp.eq.s32.totalorder %s25, 0
      %p88 = por %p86, %p87
      %p89 = scmp.ne.s32.totalorder %s77, %s78
      %p90 = scmp.eq.s32.totalorder %s26, 1
      %p91 = por %p89, %p90
      %p93 = scmp.ne.s32.totalorder %s78, %s92
      %p94 = scmp.eq.s32.totalorder %s26, 0
      %p95 = por %p93, %p94
      %s97 = sadd.s32 %s96, 1
      %p100 = scmp.eq.s32.totalorder %s20, 1
      %p101 = scmp.ne.s32.totalorder %s96, %s98
      %p102 = scmp.eq.s32.totalorder %s20, 0
      %p103 = por %p101, %p102
      %p104 = scmp.ne.s32.totalorder %s96, %s98
      %p105 = scmp.eq.s32.totalorder %s25, 1
      %p106 = por %p104, %p105
      %p107 = scmp.ne.s32.totalorder %s98, %s99
      %p108 = scmp.eq.s32.totalorder %s25, 0
      %p109 = por %p107, %p108
      %p110 = scmp.ne.s32.totalorder %s98, %s99
      %p111 = scmp.eq.s32.totalorder %s26, 1
      %p112 = por %p110, %p111
      %p114 = scmp.ne.s32.totalorder %s99, %s113
      %p115 = scmp.eq.s32.totalorder %s26, 0
      %p116 = por %p114, %p115
      %s118 = sadd.s32 %s117, 1
      %p121 = scmp.eq.s32.totalorder %s20, 1
      %p122 = scmp.ne.s32.totalorder %s117, %s119
      %p123 = scmp.eq.s32.totalorder %s20, 0
      %p124 = por %p122, %p123
      %p125 = scmp.ne.s32.totalorder %s117, %s119
      %p126 = scmp.eq.s32.totalorder %s25, 1
      %p127 = por %p125, %p126
      %p128 = scmp.ne.s32.totalorder %s119, %s120
      %p129 = scmp.eq.s32.totalorder %s25, 0
      %p130 = por %p128, %p129
      %p131 = scmp.ne.s32.totalorder %s119, %s120
      %p132 = scmp.eq.s32.totalorder %s26, 1
      %p133 = por %p131, %p132
      %p135 = scmp.ne.s32.totalorder %s120, %s134
      %p136 = scmp.eq.s32.totalorder %s26, 0
      %p137 = por %p135, %p136
      %s139 = sadd.s32 %s138, 1
      %p142 = scmp.eq.s32.totalorder %s20, 1
      %p143 = scmp.ne.s32.totalorder %s138, %s140
      %p144 = scmp.eq.s32.totalorder %s20, 0
      %p145 = por %p143, %p144
      %p146 = scmp.ne.s32.totalorder %s138, %s140
      %p147 = scmp.eq.s32.totalorder %s25, 1
      %p148 = por %p146, %p147
      %p149 = scmp.ne.s32.totalorder %s140, %s141
      %p150 = scmp.eq.s32.totalorder %s25, 0
      %p151 = por %p149, %p150
      %p152 = scmp.ne.s32.totalorder %s140, %s141
      %p153 = scmp.eq.s32.totalorder %s26, 1
      %p154 = por %p152, %p153
      %p156 = scmp.ne.s32.totalorder %s141, %s155
      %p157 = scmp.eq.s32.totalorder %s26, 0
      %p158 = por %p156, %p157
      %s160 = sadd.s32 %s159, 1
      %p163 = scmp.eq.s32.totalorder %s20, 1
      %p164 = scmp.ne.s32.totalorder %s159, %s161
      %p165 = scmp.eq.s32.totalorder %s20, 0
      %p166 = por %p164, %p165
      %p167 = scmp.ne.s32.totalorder %s159, %s161
      %p168 = scmp.eq.s32.totalorder %s25, 1
      %p169 = por %p167, %p168
      %p170 = scmp.ne.s32.totalorder %s161, %s162
      %p171 = scmp.eq.s32.totalorder %s25, 0
      %p172 = por %p170, %p171
      %p173 = scmp.ne.s32.totalorder %s161, %s162
      %p174 = scmp.eq.s32.totalorder %s26, 1
      %p175 = por %p173, %p174
      %p177 = scmp.ne.s32.totalorder %s162, %s176
      %p178 = scmp.eq.s32.totalorder %s26, 0
      %p179 = por %p177, %p178
      %s181 = sadd.s32 %s180, 1
      %p184 = scmp.eq.s32.totalorder %s20, 1
      %p185 = scmp.ne.s32.totalorder %s180, %s182
      %p186 = scmp.eq.s32.totalorder %s20, 0
      %p187 = por %p185, %p186
      %p188 = scmp.ne.s32.totalorder %s180, %s182
      %p189 = scmp.eq.s32.totalorder %s25, 1
      %p190 = por %p188, %p189
      %p191 = scmp.ne.s32.totalorder %s182, %s183
      %p192 = scmp.eq.s32.totalorder %s25, 0
      %p193 = por %p191, %p192
      %p194 = scmp.ne.s32.totalorder %s182, %s183
      %p195 = scmp.eq.s32.totalorder %s26, 1
      %p196 = por %p194, %p195
      %p198 = scmp.ne.s32.totalorder %s183, %s197
      %p199 = scmp.eq.s32.totalorder %s26, 0
      %p200 = por %p198, %p199
      %s202 = sadd.s32 %s201, 1
      %p205 = scmp.eq.s32.totalorder %s20, 1
      %p206 = scmp.ne.s32.totalorder %s201, %s203
      %p207 = scmp.eq.s32.totalorder %s20, 0
      %p208 = por %p206, %p207
      %p209 = scmp.ne.s32.totalorder %s201, %s203
      %p210 = scmp.eq.s32.totalorder %s25, 1
      %p211 = por %p209, %p210
      %p212 = scmp.ne.s32.totalorder %s203, %s204
      %p213 = scmp.eq.s32.totalorder %s25, 0
      %p214 = por %p212, %p213
      %p215 = scmp.ne.s32.totalorder %s203, %s204
      %p216 = scmp.eq.s32.totalorder %s26, 1
      %p217 = por %p215, %p216
      %p219 = scmp.ne.s32.totalorder %s204, %s218
      %p220 = scmp.eq.s32.totalorder %s26, 0
      %p221 = por %p219, %p220
      %s223 = sadd.s32 %s222, 1
      %p226 = scmp.eq.s32.totalorder %s20, 1
      %p227 = scmp.ne.s32.totalorder %s222, %s224
      %p228 = scmp.eq.s32.totalorder %s20, 0
      %p229 = por %p227, %p228
      %p230 = scmp.ne.s32.totalorder %s222, %s224
      %p231 = scmp.eq.s32.totalorder %s25, 1
      %p232 = por %p230, %p231
      %p233 = scmp.ne.s32.totalorder %s224, %s225
      %p234 = scmp.eq.s32.totalorder %s25, 0
      %p235 = por %p233, %p234
      %p236 = scmp.ne.s32.totalorder %s224, %s225
      %p237 = scmp.eq.s32.totalorder %s26, 1
      %p238 = por %p236, %p237
      %p240 = scmp.ne.s32.totalorder %s225, %s239
      %p241 = scmp.eq.s32.totalorder %s26, 0
      %p242 = por %p240, %p241
      %s244 = sadd.s32 %s243, 1
      %p247 = scmp.eq.s32.totalorder %s20, 1
      %p248 = scmp.ne.s32.totalorder %s243, %s245
      %p249 = scmp.eq.s32.totalorder %s20, 0
      %p250 = por %p248, %p249
      %p251 = scmp.ne.s32.totalorder %s243, %s245
      %p252 = scmp.eq.s32.totalorder %s25, 1
      %p253 = por %p251, %p252
      %p254 = scmp.ne.s32.totalorder %s245, %s246
      %p255 = scmp.eq.s32.totalorder %s25, 0
      %p256 = por %p254, %p255
      %p257 = scmp.ne.s32.totalorder %s245, %s246
      %p258 = scmp.eq.s32.totalorder %s26, 1
      %p259 = por %p257, %p258
      %p261 = scmp.ne.s32.totalorder %s246, %s260
      %p262 = scmp.eq.s32.totalorder %s26, 0
      %p263 = por %p261, %p262
      %s264 = ssub.s32 %s20, %s27
      %p265 = scmp.eq.s32.totalorder %s264, 0
      %s267 = sadd.s32 %s266, 1
      %s268 = scalar_select %p265, %s266, %s267
      %p271 = pneg %p265
      %p272 = scmp.eq.s32.totalorder %s20, 1
      %p273 = por %p271, %p272
      %p274 = scmp.ne.s32.totalorder %s266, %s269
      %p275 = scmp.eq.s32.totalorder %s20, 0
      %p276 = por %p274, %p275
      %p277 = scmp.ne.s32.totalorder %s266, %s269
      %p278 = scmp.eq.s32.totalorder %s25, 1
      %p279 = por %p277, %p278
      %p280 = scmp.ne.s32.totalorder %s269, %s270
      %p281 = scmp.eq.s32.totalorder %s25, 0
      %p282 = por %p280, %p281
      %p283 = scmp.ne.s32.totalorder %s269, %s270
      %p284 = scmp.eq.s32.totalorder %s26, 1
      %p285 = por %p283, %p284
      %p287 = scmp.ne.s32.totalorder %s270, %s286
      %p288 = scmp.eq.s32.totalorder %s26, 0
      %p289 = por %p287, %p288
      %p290 = scmp.le.s32.totalorder 1, %s20
      %p291 = scmp.lt.s32.totalorder %s20, 3
      %p292 = pnand %p290, %p291
      %p293 = pneg %p292
      // Predicated region
      $region9: #{room_classifier_forward.1} parent=5 // pred_check
        _
      $region10: #{room_classifier_forward.1} parent=5 // pred_check_branch
        %295 = sbr.rel (%p292) target = $region12
      $region11: #{room_classifier_forward.1} parent=5 // pred_region
        %s296 = ssub.s32 %s20, 1
        // Predicated region
        $region13: #{room_classifier_forward.1} parent=11 // pred_check
          %p297 = pneg %p67
        $region14: #{room_classifier_forward.1} parent=11 // pred_check_branch
          %299 = sbr.rel (%p297) target = $region16
        $region15: #{room_classifier_forward.1} parent=11 // pred_region
          _
        $region16: #{room_classifier_forward.1} parent=11 // pred_fallthru
          _
        // Predicated region
        $region17: #{room_classifier_forward.1} parent=11 // pred_check
          %p300 = pneg %p88
        $region18: #{room_classifier_forward.1} parent=11 // pred_check_branch
          %302 = sbr.rel (%p300) target = $region20
        $region19: #{room_classifier_forward.1} parent=11 // pred_region
          _
        $region20: #{room_classifier_forward.1} parent=11 // pred_fallthru
          _
        // Predicated region
        $region21: #{room_classifier_forward.1} parent=11 // pred_check
          %p303 = pneg %p109
        $region22: #{room_classifier_forward.1} parent=11 // pred_check_branch
          %305 = sbr.rel (%p303) target = $region24
        $region23: #{room_classifier_forward.1} parent=11 // pred_region
          _
        $region24: #{room_classifier_forward.1} parent=11 // pred_fallthru
          _
        // Predicated region
        $region25: #{room_classifier_forward.1} parent=11 // pred_check
          %p306 = pneg %p130
        $region26: #{room_classifier_forward.1} parent=11 // pred_check_branch
          %308 = sbr.rel (%p306) target = $region28
        $region27: #{room_classifier_forward.1} parent=11 // pred_region
          _
        $region28: #{room_classifier_forward.1} parent=11 // pred_fallthru
          _
        // Predicated region
        $region29: #{room_classifier_forward.1} parent=11 // pred_check
          %p309 = pneg %p151
        $region30: #{room_classifier_forward.1} parent=11 // pred_check_branch
          %311 = sbr.rel (%p309) target = $region32
        $region31: #{room_classifier_forward.1} parent=11 // pred_region
          _
        $region32: #{room_classifier_forward.1} parent=11 // pred_fallthru
          _
        // Predicated region
        $region33: #{room_classifier_forward.1} parent=11 // pred_check
          %p312 = pneg %p172
        $region34: #{room_classifier_forward.1} parent=11 // pred_check_branch
          %314 = sbr.rel (%p312) target = $region36
        $region35: #{room_classifier_forward.1} parent=11 // pred_region
          _
        $region36: #{room_classifier_forward.1} parent=11 // pred_fallthru
          _
        // Predicated region
        $region37: #{room_classifier_forward.1} parent=11 // pred_check
          %p315 = pneg %p193
        $region38: #{room_classifier_forward.1} parent=11 // pred_check_branch
          %317 = sbr.rel (%p315) target = $region40
        $region39: #{room_classifier_forward.1} parent=11 // pred_region
          _
        $region40: #{room_classifier_forward.1} parent=11 // pred_fallthru
          _
        // Predicated region
        $region41: #{room_classifier_forward.1} parent=11 // pred_check
          %p318 = pneg %p214
        $region42: #{room_classifier_forward.1} parent=11 // pred_check_branch
          %320 = sbr.rel (%p318) target = $region44
        $region43: #{room_classifier_forward.1} parent=11 // pred_region
          _
        $region44: #{room_classifier_forward.1} parent=11 // pred_fallthru
          _
        // Predicated region
        $region45: #{room_classifier_forward.1} parent=11 // pred_check
          %p321 = pneg %p235
        $region46: #{room_classifier_forward.1} parent=11 // pred_check_branch
          %323 = sbr.rel (%p321) target = $region48
        $region47: #{room_classifier_forward.1} parent=11 // pred_region
          _
        $region48: #{room_classifier_forward.1} parent=11 // pred_fallthru
          _
        // Predicated region
        $region49: #{room_classifier_forward.1} parent=11 // pred_check
          %p324 = pneg %p256
        $region50: #{room_classifier_forward.1} parent=11 // pred_check_branch
          %326 = sbr.rel (%p324) target = $region52
        $region51: #{room_classifier_forward.1} parent=11 // pred_region
          _
        $region52: #{room_classifier_forward.1} parent=11 // pred_fallthru
          _
      $region12: #{room_classifier_forward.1} parent=5 // pred_fallthru
        _
      %p327 = scmp.lt.s32.totalorder %s20, 2
      // Predicated region
      $region53: #{room_classifier_forward.1} parent=5 // pred_check
        %p328 = pneg %p327
      $region54: #{room_classifier_forward.1} parent=5 // pred_check_branch
        %330 = sbr.rel (%p328) target = $region56
      $region55: #{room_classifier_forward.1} parent=5 // pred_region
        // Predicated region
        $region57: #{room_classifier_forward.1} parent=55 // pred_check
          %p331 = pneg %p40
        $region58: #{room_classifier_forward.1} parent=55 // pred_check_branch
          %333 = sbr.rel (%p331) target = $region60
        $region59: #{room_classifier_forward.1} parent=55 // pred_region
          %p334 = scmp.lt.s32.totalorder %s20, 1
          %s335 = scalar_select %p334, %s20, 1
          %s336 = smul.addr %s335, 32
          %s337 = smul.addr %s336, 4
          %s338 = scalar_lea.vmem %s0, %s337
        $region60: #{room_classifier_forward.1} parent=55 // pred_fallthru
          _
      $region56: #{room_classifier_forward.1} parent=5 // pred_fallthru
        _
      %p339 = scmp.le.s32.totalorder 1, %s20
      %p340 = scmp.lt.s32.totalorder %s20, 3
      %p341 = pnand %p339, %p340
      %p342 = pneg %p341
      // Predicated region
      $region61: #{room_classifier_forward.1} parent=5 // pred_check
        _
      $region62: #{room_classifier_forward.1} parent=5 // pred_check_branch
        %344 = sbr.rel (%p341) target = $region64
      $region63: #{room_classifier_forward.1} parent=5 // pred_region
        %s345 = ssub.s32 %s20, 1
        %p346 = scmp.lt.s32.totalorder %s25, 1
        %s347 = scalar_select %p346, %s25, 1
        %s348 = smul.addr %s347, 32
        %s349 = smul.addr %s348, 4
        %s350 = scalar_lea.vmem %s0, %s349
        %p351 = pneg %p46
        %p352 = pneg %p43
        %p353 = pneg %p67
        %p354 = pneg %p64
        %p355 = pneg %p88
        %p356 = pneg %p85
        %p357 = pneg %p109
        %p358 = pneg %p106
        %p359 = pneg %p130
        %p360 = pneg %p127
        %p361 = pneg %p151
        %p362 = pneg %p148
        %p363 = pneg %p172
        %p364 = pneg %p169
        %p365 = pneg %p193
        %p366 = pneg %p190
        %p367 = pneg %p214
        %p368 = pneg %p211
        %p369 = pneg %p235
        %p370 = pneg %p232
        %p371 = pneg %p256
        %p372 = pneg %p253
        %p373 = pneg %p282
        %p374 = pneg %p279
        %s375 = sand.u32 %s269, 1
        %s376 = scalar_lea.sflag [#allocation9], %s375
        %s377 = sand.u32 %s269, 1
        %s378 = scalar_lea.vmem [#allocation8], %s377
        %p379 = scmp.lt.s32.totalorder %s25, 1
        %s380 = scalar_select %p379, %s25, 1
        %s381 = smul.addr %s380, 32
        %s382 = smul.addr %s381, 4
        %s383 = scalar_lea.vmem %s0, %s382
        %v385 = vld [vmem:[%s383] sm:$0xf]
        %v386 = vld [vmem:[%s383 + $0x4] sm:$0xf]
        %v387 = vld [vmem:[%s383 + $0x8] sm:$0xf]
        %v388 = vld [vmem:[%s383 + $0xc] sm:$0xf]
        %v389 = vld [vmem:[%s383 + $0x10] sm:$0xf]
        %v390 = vld [vmem:[%s383 + $0x14] sm:$0xf]
        %v391 = vld [vmem:[%s383 + $0x18] sm:$0xf]
        %v392 = vld [vmem:[%s383 + $0x1c] sm:$0xf]
        %v393 = vld [vmem:[%s383 + $0x20] sm:$0xf]
        %v394 = vld [vmem:[%s383 + $0x24] sm:$0xf]
        %v395 = vld [vmem:[%s383 + $0x28] sm:$0xf]
        %v396 = vld [vmem:[%s383 + $0x2c] sm:$0xf]
        %v397 = vld [vmem:[%s383 + $0x30] sm:$0xf]
        %v398 = vld [vmem:[%s383 + $0x34] sm:$0xf]
        %v399 = vld [vmem:[%s383 + $0x38] sm:$0xf]
        %v400 = vld [vmem:[%s383 + $0x3c] sm:$0xf]
        %v401 = vld [vmem:[%s383 + $0x40] sm:$0xf]
        %v402 = vld [vmem:[%s383 + $0x44] sm:$0xf]
        %v403 = vld [vmem:[%s383 + $0x48] sm:$0xf]
        %v404 = vld [vmem:[%s383 + $0x4c] sm:$0xf]
        %v405 = vld [vmem:[%s383 + $0x50] sm:$0xf]
        %v406 = vld [vmem:[%s383 + $0x54] sm:$0xf]
        %v407 = vld [vmem:[%s383 + $0x58] sm:$0xf]
        %v408 = vld [vmem:[%s383 + $0x5c] sm:$0xf]
        %v409 = vld [vmem:[%s383 + $0x60] sm:$0xf]
        %v410 = vld [vmem:[%s383 + $0x64] sm:$0xf]
        %v411 = vld [vmem:[%s383 + $0x68] sm:$0xf]
        %v412 = vld [vmem:[%s383 + $0x6c] sm:$0xf]
        %v413 = vld [vmem:[%s383 + $0x70] sm:$0xf]
        %v414 = vld [vmem:[%s383 + $0x74] sm:$0xf]
        %v415 = vld [vmem:[%s383 + $0x78] sm:$0xf]
        %v416 = vld [vmem:[%s383 + $0x7c] sm:$0xf]
        %vm417 = vcmask 19456
        %418 = vst.msk [vmem:[#allocation2] sm:$0xf] %vm417, %v385
        %vm419 = vcmask 18432
        %420 = vst.msk [vmem:[#allocation2 + $0x4] sm:$0x7] %vm419, %v386
        %421 = vst.msk [vmem:[#allocation2 + $0x8] sm:$0xf] %vm417, %v387
        %422 = vst.msk [vmem:[#allocation2 + $0xc] sm:$0x7] %vm419, %v388
        %423 = vst.msk [vmem:[#allocation2 + $0x10] sm:$0xf] %vm417, %v389
        %424 = vst.msk [vmem:[#allocation2 + $0x14] sm:$0x7] %vm419, %v390
        %425 = vst.msk [vmem:[#allocation2 + $0x18] sm:$0xf] %vm417, %v391
        %426 = vst.msk [vmem:[#allocation2 + $0x1c] sm:$0x7] %vm419, %v392
        %427 = vst.msk [vmem:[#allocation2 + $0x20] sm:$0xf] %vm417, %v393
        %428 = vst.msk [vmem:[#allocation2 + $0x24] sm:$0x7] %vm419, %v394
        %429 = vst.msk [vmem:[#allocation2 + $0x28] sm:$0xf] %vm417, %v395
        %430 = vst.msk [vmem:[#allocation2 + $0x2c] sm:$0x7] %vm419, %v396
        %431 = vst.msk [vmem:[#allocation2 + $0x30] sm:$0xf] %vm417, %v397
        %432 = vst.msk [vmem:[#allocation2 + $0x34] sm:$0x7] %vm419, %v398
        %433 = vst.msk [vmem:[#allocation2 + $0x38] sm:$0xf] %vm417, %v399
        %434 = vst.msk [vmem:[#allocation2 + $0x3c] sm:$0x7] %vm419, %v400
        %435 = vst.msk [vmem:[#allocation2 + $0x40] sm:$0xf] %vm417, %v401
        %436 = vst.msk [vmem:[#allocation2 + $0x44] sm:$0x7] %vm419, %v402
        %437 = vst.msk [vmem:[#allocation2 + $0x48] sm:$0xf] %vm417, %v403
        %438 = vst.msk [vmem:[#allocation2 + $0x4c] sm:$0x7] %vm419, %v404
        %439 = vst.msk [vmem:[#allocation2 + $0x50] sm:$0xf] %vm417, %v405
        %440 = vst.msk [vmem:[#allocation2 + $0x54] sm:$0x7] %vm419, %v406
        %441 = vst.msk [vmem:[#allocation2 + $0x58] sm:$0xf] %vm417, %v407
        %442 = vst.msk [vmem:[#allocation2 + $0x5c] sm:$0x7] %vm419, %v408
        %443 = vst.msk [vmem:[#allocation2 + $0x60] sm:$0xf] %vm417, %v409
        %444 = vst.msk [vmem:[#allocation2 + $0x64] sm:$0x7] %vm419, %v410
        %445 = vst.msk [vmem:[#allocation2 + $0x68] sm:$0xf] %vm417, %v411
        %446 = vst.msk [vmem:[#allocation2 + $0x6c] sm:$0x7] %vm419, %v412
        %vm447 = vsmask.f32 3328
        %vm448 = vsmask.f32 7440
        %vm449 = vmor %vm447, %vm448
        %v451 = vshrl.u32 %v385, 16
        %v453 = vrot.slane %v451, 4
        %v454 = vshll.u32 %v385, 16
        %v456 = vrot.slane %v454, 5
        %v457 = vor.u32 %v453, %v456
        %v458 = vrot.slane %v457, 4
        %v460 = vshll.u32 %v386, 16
        %v462 = vrot.slane %v460, 5
        %v463 = vsel %vm449, %v458, %v462
        %v464 = vshrl.u32 %v386, 16
        %v466 = vrot.slane %v464, 4
        %v467 = vor.u32 %v466, %v462
        %v468 = vrot.slane %v467, 4
        %v470 = vshrl.u32 %v387, 16
        %v472 = vrot.slane %v470, 4
        %v473 = vshll.u32 %v387, 16
        %v475 = vrot.slane %v473, 5
        %v476 = vor.u32 %v472, %v475
        %v477 = vrot.slane %v476, 4
        %v479 = vshll.u32 %v388, 16
        %v481 = vrot.slane %v479, 5
        %v482 = vsel %vm449, %v477, %v481
        %v483 = vshrl.u32 %v388, 16
        %v485 = vrot.slane %v483, 4
        %v486 = vor.u32 %v485, %v481
        %v487 = vrot.slane %v486, 4
        %v489 = vshrl.u32 %v389, 16
        %v491 = vrot.slane %v489, 4
        %v492 = vshll.u32 %v389, 16
        %v494 = vrot.slane %v492, 5
        %v495 = vor.u32 %v491, %v494
        %v496 = vrot.slane %v495, 4
        %v498 = vshll.u32 %v390, 16
        %v500 = vrot.slane %v498, 5
        %v501 = vsel %vm449, %v496, %v500
        %v502 = vshrl.u32 %v390, 16
        %v504 = vrot.slane %v502, 4
        %v505 = vor.u32 %v504, %v500
        %v506 = vrot.slane %v505, 4
        %v508 = vshrl.u32 %v391, 16
        %v510 = vrot.slane %v508, 4
        %v511 = vshll.u32 %v391, 16
        %v513 = vrot.slane %v511, 5
        %v514 = vor.u32 %v510, %v513
        %v515 = vrot.slane %v514, 4
        %v517 = vshll.u32 %v392, 16
        %v519 = vrot.slane %v517, 5
        %v520 = vsel %vm449, %v515, %v519
        %v521 = vshrl.u32 %v392, 16
        %v523 = vrot.slane %v521, 4
        %v524 = vor.u32 %v523, %v519
        %v525 = vrot.slane %v524, 4
        %v527 = vshrl.u32 %v393, 16
        %v529 = vrot.slane %v527, 4
        %v530 = vshll.u32 %v393, 16
        %v532 = vrot.slane %v530, 5
        %v533 = vor.u32 %v529, %v532
        %v534 = vrot.slane %v533, 4
        %v536 = vshll.u32 %v394, 16
        %v538 = vrot.slane %v536, 5
        %v539 = vsel %vm449, %v534, %v538
        %v540 = vshrl.u32 %v394, 16
        %v542 = vrot.slane %v540, 4
        %v543 = vor.u32 %v542, %v538
        %v544 = vrot.slane %v543, 4
        %v546 = vshrl.u32 %v395, 16
        %v548 = vrot.slane %v546, 4
        %v549 = vshll.u32 %v395, 16
        %v551 = vrot.slane %v549, 5
        %v552 = vor.u32 %v548, %v551
        %v553 = vrot.slane %v552, 4
        %v555 = vshll.u32 %v396, 16
        %v557 = vrot.slane %v555, 5
        %v558 = vsel %vm449, %v553, %v557
        %v559 = vshrl.u32 %v396, 16
        %v561 = vrot.slane %v559, 4
        %v562 = vor.u32 %v561, %v557
        %v563 = vrot.slane %v562, 4
        %v565 = vshrl.u32 %v397, 16
        %v567 = vrot.slane %v565, 4
        %v568 = vshll.u32 %v397, 16
        %v570 = vrot.slane %v568, 5
        %v571 = vor.u32 %v567, %v570
        %v572 = vrot.slane %v571, 4
        %v574 = vshll.u32 %v398, 16
        %v576 = vrot.slane %v574, 5
        %v577 = vsel %vm449, %v572, %v576
        %v578 = vshrl.u32 %v398, 16
        %v580 = vrot.slane %v578, 4
        %v581 = vor.u32 %v580, %v576
        %v582 = vrot.slane %v581, 4
        %v584 = vshrl.u32 %v399, 16
        %v586 = vrot.slane %v584, 4
        %v587 = vshll.u32 %v399, 16
        %v589 = vrot.slane %v587, 5
        %v590 = vor.u32 %v586, %v589
        %v591 = vrot.slane %v590, 4
        %v593 = vshll.u32 %v400, 16
        %v595 = vrot.slane %v593, 5
        %v596 = vsel %vm449, %v591, %v595
        %v597 = vshrl.u32 %v400, 16
        %v599 = vrot.slane %v597, 4
        %v600 = vor.u32 %v599, %v595
        %v601 = vrot.slane %v600, 4
        %v603 = vshrl.u32 %v401, 16
        %v605 = vrot.slane %v603, 4
        %v606 = vshll.u32 %v401, 16
        %v608 = vrot.slane %v606, 5
        %v609 = vor.u32 %v605, %v608
        %v610 = vrot.slane %v609, 4
        %v612 = vshll.u32 %v402, 16
        %v614 = vrot.slane %v612, 5
        %v615 = vsel %vm449, %v610, %v614
        %v616 = vshrl.u32 %v402, 16
        %v618 = vrot.slane %v616, 4
        %v619 = vor.u32 %v618, %v614
        %v620 = vrot.slane %v619, 4
        %v622 = vshrl.u32 %v403, 16
        %v624 = vrot.slane %v622, 4
        %v625 = vshll.u32 %v403, 16
        %v627 = vrot.slane %v625, 5
        %v628 = vor.u32 %v624, %v627
        %v629 = vrot.slane %v628, 4
        %v631 = vshll.u32 %v404, 16
        %v633 = vrot.slane %v631, 5
        %v634 = vsel %vm449, %v629, %v633
        %v635 = vshrl.u32 %v404, 16
        %v637 = vrot.slane %v635, 4
        %v638 = vor.u32 %v637, %v633
        %v639 = vrot.slane %v638, 4
        %v641 = vshrl.u32 %v405, 16
        %v643 = vrot.slane %v641, 4
        %v644 = vshll.u32 %v405, 16
        %v646 = vrot.slane %v644, 5
        %v647 = vor.u32 %v643, %v646
        %v648 = vrot.slane %v647, 4
        %v650 = vshll.u32 %v406, 16
        %v652 = vrot.slane %v650, 5
        %v653 = vsel %vm449, %v648, %v652
        %v654 = vshrl.u32 %v406, 16
        %v656 = vrot.slane %v654, 4
        %v657 = vor.u32 %v656, %v652
        %v658 = vrot.slane %v657, 4
        %v660 = vshrl.u32 %v407, 16
        %v662 = vrot.slane %v660, 4
        %v663 = vshll.u32 %v407, 16
        %v665 = vrot.slane %v663, 5
        %v666 = vor.u32 %v662, %v665
        %v667 = vrot.slane %v666, 4
        %v669 = vshll.u32 %v408, 16
        %v671 = vrot.slane %v669, 5
        %v672 = vsel %vm449, %v667, %v671
        %v673 = vshrl.u32 %v408, 16
        %v675 = vrot.slane %v673, 4
        %v676 = vor.u32 %v675, %v671
        %v677 = vrot.slane %v676, 4
        %v679 = vshrl.u32 %v409, 16
        %v681 = vrot.slane %v679, 4
        %v682 = vshll.u32 %v409, 16
        %v684 = vrot.slane %v682, 5
        %v685 = vor.u32 %v681, %v684
        %v686 = vrot.slane %v685, 4
        %v688 = vshll.u32 %v410, 16
        %v690 = vrot.slane %v688, 5
        %v691 = vsel %vm449, %v686, %v690
        %v692 = vshrl.u32 %v410, 16
        %v694 = vrot.slane %v692, 4
        %v695 = vor.u32 %v694, %v690
        %v696 = vrot.slane %v695, 4
        %v698 = vshrl.u32 %v411, 16
        %v700 = vrot.slane %v698, 4
        %v701 = vshll.u32 %v411, 16
        %v703 = vrot.slane %v701, 5
        %v704 = vor.u32 %v700, %v703
        %v705 = vrot.slane %v704, 4
        %v707 = vshll.u32 %v412, 16
        %v709 = vrot.slane %v707, 5
        %v710 = vsel %vm449, %v705, %v709
        %v711 = vshrl.u32 %v412, 16
        %v713 = vrot.slane %v711, 4
        %v714 = vor.u32 %v713, %v709
        %v715 = vrot.slane %v714, 4
        %716 = vrot.lane.b32.xlu0 %v463, 3
        %v717 = vpop.permute.xlu0 %716
        %718 = vrot.lane.b32.xlu0 %v468, 3
        %v719 = vpop.permute.xlu0 %718
        %720 = vrot.lane.b32.xlu0 %v482, 3
        %v721 = vpop.permute.xlu0 %720
        %722 = vrot.lane.b32.xlu0 %v487, 3
        %v723 = vpop.permute.xlu0 %722
        %724 = vrot.lane.b32.xlu0 %v501, 3
        %v725 = vpop.permute.xlu0 %724
        %726 = vrot.lane.b32.xlu0 %v506, 3
        %v727 = vpop.permute.xlu0 %726
        %728 = vrot.lane.b32.xlu0 %v520, 3
        %v729 = vpop.permute.xlu0 %728
        %730 = vrot.lane.b32.xlu0 %v525, 3
        %v731 = vpop.permute.xlu0 %730
        %732 = vrot.lane.b32.xlu0 %v539, 3
        %v733 = vpop.permute.xlu0 %732
        %734 = vrot.lane.b32.xlu0 %v544, 3
        %v735 = vpop.permute.xlu0 %734
        %736 = vrot.lane.b32.xlu0 %v558, 3
        %v737 = vpop.permute.xlu0 %736
        %738 = vrot.lane.b32.xlu0 %v563, 3
        %v739 = vpop.permute.xlu0 %738
        %740 = vrot.lane.b32.xlu0 %v577, 3
        %v741 = vpop.permute.xlu0 %740
        %742 = vrot.lane.b32.xlu0 %v582, 3
        %v743 = vpop.permute.xlu0 %742
        %744 = vrot.lane.b32.xlu0 %v596, 3
        %v745 = vpop.permute.xlu0 %744
        %746 = vrot.lane.b32.xlu0 %v601, 3
        %v747 = vpop.permute.xlu0 %746
        %748 = vrot.lane.b32.xlu0 %v615, 3
        %v749 = vpop.permute.xlu0 %748
        %750 = vrot.lane.b32.xlu0 %v620, 3
        %v751 = vpop.permute.xlu0 %750
        %752 = vrot.lane.b32.xlu0 %v634, 3
        %v753 = vpop.permute.xlu0 %752
        %754 = vrot.lane.b32.xlu0 %v639, 3
        %v755 = vpop.permute.xlu0 %754
        %756 = vrot.lane.b32.xlu0 %v653, 3
        %v757 = vpop.permute.xlu0 %756
        %758 = vrot.lane.b32.xlu0 %v658, 3
        %v759 = vpop.permute.xlu0 %758
        %760 = vrot.lane.b32.xlu0 %v672, 3
        %v761 = vpop.permute.xlu0 %760
        %762 = vrot.lane.b32.xlu0 %v677, 3
        %v763 = vpop.permute.xlu0 %762
        %764 = vrot.lane.b32.xlu0 %v691, 3
        %v765 = vpop.permute.xlu0 %764
        %766 = vrot.lane.b32.xlu0 %v696, 3
        %v767 = vpop.permute.xlu0 %766
        %768 = vrot.lane.b32.xlu0 %v710, 3
        %v769 = vpop.permute.xlu0 %768
        %770 = vrot.lane.b32.xlu0 %v715, 3
        %v771 = vpop.permute.xlu0 %770
        %vm800 = vcmask 44056
        %801 = vst.msk [vmem:[#allocation2] sm:$0xf] %vm800, %v717
        %vm802 = vcmask 43032
        %803 = vst.msk [vmem:[#allocation2 + $0x4] sm:$0x7] %vm802, %v719
        %804 = vst.msk [vmem:[#allocation2 + $0x8] sm:$0xf] %vm800, %v721
        %805 = vst.msk [vmem:[#allocation2 + $0xc] sm:$0x7] %vm802, %v723
        %806 = vst.msk [vmem:[#allocation2 + $0x10] sm:$0xf] %vm800, %v725
        %807 = vst.msk [vmem:[#allocation2 + $0x14] sm:$0x7] %vm802, %v727
        %808 = vst.msk [vmem:[#allocation2 + $0x18] sm:$0xf] %vm800, %v729
        %809 = vst.msk [vmem:[#allocation2 + $0x1c] sm:$0x7] %vm802, %v731
        %810 = vst.msk [vmem:[#allocation2 + $0x20] sm:$0xf] %vm800, %v733
        %811 = vst.msk [vmem:[#allocation2 + $0x24] sm:$0x7] %vm802, %v735
        %812 = vst.msk [vmem:[#allocation2 + $0x28] sm:$0xf] %vm800, %v737
        %813 = vst.msk [vmem:[#allocation2 + $0x2c] sm:$0x7] %vm802, %v739
        %814 = vst.msk [vmem:[#allocation2 + $0x30] sm:$0xf] %vm800, %v741
        %815 = vst.msk [vmem:[#allocation2 + $0x34] sm:$0x7] %vm802, %v743
        %816 = vst.msk [vmem:[#allocation2 + $0x38] sm:$0xf] %vm800, %v745
        %817 = vst.msk [vmem:[#allocation2 + $0x3c] sm:$0x7] %vm802, %v747
        %818 = vst.msk [vmem:[#allocation2 + $0x40] sm:$0xf] %vm800, %v749
        %819 = vst.msk [vmem:[#allocation2 + $0x44] sm:$0x7] %vm802, %v751
        %820 = vst.msk [vmem:[#allocation2 + $0x48] sm:$0xf] %vm800, %v753
        %821 = vst.msk [vmem:[#allocation2 + $0x4c] sm:$0x7] %vm802, %v755
        %822 = vst.msk [vmem:[#allocation2 + $0x50] sm:$0xf] %vm800, %v757
        %823 = vst.msk [vmem:[#allocation2 + $0x54] sm:$0x7] %vm802, %v759
        %824 = vst.msk [vmem:[#allocation2 + $0x58] sm:$0xf] %vm800, %v761
        %825 = vst.msk [vmem:[#allocation2 + $0x5c] sm:$0x7] %vm802, %v763
        %826 = vst.msk [vmem:[#allocation2 + $0x60] sm:$0xf] %vm800, %v765
        %827 = vst.msk [vmem:[#allocation2 + $0x64] sm:$0x7] %vm802, %v767
        %828 = vst.msk [vmem:[#allocation2 + $0x68] sm:$0xf] %vm800, %v769
        %829 = vst.msk [vmem:[#allocation2 + $0x6c] sm:$0x7] %vm802, %v771
        %vm858 = vcmask 1042432
        %vm859 = vcmask 1046532
        %vm860 = vmor %vm858, %vm859
        %v861 = vrot.slane %v385, 5
        %v862 = vrot.slane %v861, 4
        %v863 = vrot.slane %v386, 5
        %v864 = vsel %vm860, %v862, %v863
        %v865 = vrot.slane %v863, 4
        %v866 = vrot.slane %v387, 5
        %v867 = vrot.slane %v866, 4
        %v868 = vrot.slane %v388, 5
        %v869 = vsel %vm860, %v867, %v868
        %v870 = vrot.slane %v868, 4
        %v871 = vrot.slane %v389, 5
        %v872 = vrot.slane %v871, 4
        %v873 = vrot.slane %v390, 5
        %v874 = vsel %vm860, %v872, %v873
        %v875 = vrot.slane %v873, 4
        %v876 = vrot.slane %v391, 5
        %v877 = vrot.slane %v876, 4
        %v878 = vrot.slane %v392, 5
        %v879 = vsel %vm860, %v877, %v878
        %v880 = vrot.slane %v878, 4
        %v881 = vrot.slane %v393, 5
        %v882 = vrot.slane %v881, 4
        %v883 = vrot.slane %v394, 5
        %v884 = vsel %vm860, %v882, %v883
        %v885 = vrot.slane %v883, 4
        %v886 = vrot.slane %v395, 5
        %v887 = vrot.slane %v886, 4
        %v888 = vrot.slane %v396, 5
        %v889 = vsel %vm860, %v887, %v888
        %v890 = vrot.slane %v888, 4
        %v891 = vrot.slane %v397, 5
        %v892 = vrot.slane %v891, 4
        %v893 = vrot.slane %v398, 5
        %v894 = vsel %vm860, %v892, %v893
        %v895 = vrot.slane %v893, 4
        %v896 = vrot.slane %v399, 5
        %v897 = vrot.slane %v896, 4
        %v898 = vrot.slane %v400, 5
        %v899 = vsel %vm860, %v897, %v898
        %v900 = vrot.slane %v898, 4
        %v901 = vrot.slane %v401, 5
        %v902 = vrot.slane %v901, 4
        %v903 = vrot.slane %v402, 5
        %v904 = vsel %vm860, %v902, %v903
        %v905 = vrot.slane %v903, 4
        %v906 = vrot.slane %v403, 5
        %v907 = vrot.slane %v906, 4
        %v908 = vrot.slane %v404, 5
        %v909 = vsel %vm860, %v907, %v908
        %v910 = vrot.slane %v908, 4
        %v911 = vrot.slane %v405, 5
        %v912 = vrot.slane %v911, 4
        %v913 = vrot.slane %v406, 5
        %v914 = vsel %vm860, %v912, %v913
        %v915 = vrot.slane %v913, 4
        %v916 = vrot.slane %v407, 5
        %v917 = vrot.slane %v916, 4
        %v918 = vrot.slane %v408, 5
        %v919 = vsel %vm860, %v917, %v918
        %v920 = vrot.slane %v918, 4
        %v921 = vrot.slane %v409, 5
        %v922 = vrot.slane %v921, 4
        %v923 = vrot.slane %v410, 5
        %v924 = vsel %vm860, %v922, %v923
        %v925 = vrot.slane %v923, 4
        %v926 = vrot.slane %v411, 5
        %v927 = vrot.slane %v926, 4
        %v928 = vrot.slane %v412, 5
        %v929 = vsel %vm860, %v927, %v928
        %v930 = vrot.slane %v928, 4
        %931 = vrot.lane.b32.xlu0 %v864, 6
        %v932 = vpop.permute.xlu0 %931
        %933 = vrot.lane.b32.xlu0 %v865, 6
        %v934 = vpop.permute.xlu0 %933
        %935 = vrot.lane.b32.xlu0 %v869, 6
        %v936 = vpop.permute.xlu0 %935
        %937 = vrot.lane.b32.xlu0 %v870, 6
        %v938 = vpop.permute.xlu0 %937
        %939 = vrot.lane.b32.xlu0 %v874, 6
        %v940 = vpop.permute.xlu0 %939
        %941 = vrot.lane.b32.xlu0 %v875, 6
        %v942 = vpop.permute.xlu0 %941
        %943 = vrot.lane.b32.xlu0 %v879, 6
        %v944 = vpop.permute.xlu0 %943
        %945 = vrot.lane.b32.xlu0 %v880, 6
        %v946 = vpop.permute.xlu0 %945
        %947 = vrot.lane.b32.xlu0 %v884, 6
        %v948 = vpop.permute.xlu0 %947
        %949 = vrot.lane.b32.xlu0 %v885, 6
        %v950 = vpop.permute.xlu0 %949
        %951 = vrot.lane.b32.xlu0 %v889, 6
        %v952 = vpop.permute.xlu0 %951
        %953 = vrot.lane.b32.xlu0 %v890, 6
        %v954 = vpop.permute.xlu0 %953
        %955 = vrot.lane.b32.xlu0 %v894, 6
        %v956 = vpop.permute.xlu0 %955
        %957 = vrot.lane.b32.xlu0 %v895, 6
        %v958 = vpop.permute.xlu0 %957
        %959 = vrot.lane.b32.xlu0 %v899, 6
        %v960 = vpop.permute.xlu0 %959
        %961 = vrot.lane.b32.xlu0 %v900, 6
        %v962 = vpop.permute.xlu0 %961
        %963 = vrot.lane.b32.xlu0 %v904, 6
        %v964 = vpop.permute.xlu0 %963
        %965 = vrot.lane.b32.xlu0 %v905, 6
        %v966 = vpop.permute.xlu0 %965
        %967 = vrot.lane.b32.xlu0 %v909, 6
        %v968 = vpop.permute.xlu0 %967
        %969 = vrot.lane.b32.xlu0 %v910, 6
        %v970 = vpop.permute.xlu0 %969
        %971 = vrot.lane.b32.xlu0 %v914, 6
        %v972 = vpop.permute.xlu0 %971
        %973 = vrot.lane.b32.xlu0 %v915, 6
        %v974 = vpop.permute.xlu0 %973
        %975 = vrot.lane.b32.xlu0 %v919, 6
        %v976 = vpop.permute.xlu0 %975
        %977 = vrot.lane.b32.xlu0 %v920, 6
        %v978 = vpop.permute.xlu0 %977
        %979 = vrot.lane.b32.xlu0 %v924, 6
        %v980 = vpop.permute.xlu0 %979
        %981 = vrot.lane.b32.xlu0 %v925, 6
        %v982 = vpop.permute.xlu0 %981
        %983 = vrot.lane.b32.xlu0 %v929, 6
        %v984 = vpop.permute.xlu0 %983
        %985 = vrot.lane.b32.xlu0 %v930, 6
        %v986 = vpop.permute.xlu0 %985
        %vm1015 = vcmask 68656
        %1016 = vst.msk [vmem:[#allocation2] sm:$0xf] %vm1015, %v932
        %vm1017 = vcmask 67632
        %1018 = vst.msk [vmem:[#allocation2 + $0x4] sm:$0x7] %vm1017, %v934
        %1019 = vst.msk [vmem:[#allocation2 + $0x8] sm:$0xf] %vm1015, %v936
        %1020 = vst.msk [vmem:[#allocation2 + $0xc] sm:$0x7] %vm1017, %v938
        %1021 = vst.msk [vmem:[#allocation2 + $0x10] sm:$0xf] %vm1015, %v940
        %1022 = vst.msk [vmem:[#allocation2 + $0x14] sm:$0x7] %vm1017, %v942
        %1023 = vst.msk [vmem:[#allocation2 + $0x18] sm:$0xf] %vm1015, %v944
        %1024 = vst.msk [vmem:[#allocation2 + $0x1c] sm:$0x7] %vm1017, %v946
        %1025 = vst.msk [vmem:[#allocation2 + $0x20] sm:$0xf] %vm1015, %v948
        %1026 = vst.msk [vmem:[#allocation2 + $0x24] sm:$0x7] %vm1017, %v950
        %1027 = vst.msk [vmem:[#allocation2 + $0x28] sm:$0xf] %vm1015, %v952
        %1028 = vst.msk [vmem:[#allocation2 + $0x2c] sm:$0x7] %vm1017, %v954
        %1029 = vst.msk [vmem:[#allocation2 + $0x30] sm:$0xf] %vm1015, %v956
        %1030 = vst.msk [vmem:[#allocation2 + $0x34] sm:$0x7] %vm1017, %v958
        %1031 = vst.msk [vmem:[#allocation2 + $0x38] sm:$0xf] %vm1015, %v960
        %1032 = vst.msk [vmem:[#allocation2 + $0x3c] sm:$0x7] %vm1017, %v962
        %1033 = vst.msk [vmem:[#allocation2 + $0x40] sm:$0xf] %vm1015, %v964
        %1034 = vst.msk [vmem:[#allocation2 + $0x44] sm:$0x7] %vm1017, %v966
        %1035 = vst.msk [vmem:[#allocation2 + $0x48] sm:$0xf] %vm1015, %v968
        %1036 = vst.msk [vmem:[#allocation2 + $0x4c] sm:$0x7] %vm1017, %v970
        %1037 = vst.msk [vmem:[#allocation2 + $0x50] sm:$0xf] %vm1015, %v972
        %1038 = vst.msk [vmem:[#allocation2 + $0x54] sm:$0x7] %vm1017, %v974
        %1039 = vst.msk [vmem:[#allocation2 + $0x58] sm:$0xf] %vm1015, %v976
        %1040 = vst.msk [vmem:[#allocation2 + $0x5c] sm:$0x7] %vm1017, %v978
        %1041 = vst.msk [vmem:[#allocation2 + $0x60] sm:$0xf] %vm1015, %v980
        %1042 = vst.msk [vmem:[#allocation2 + $0x64] sm:$0x7] %vm1017, %v982
        %1043 = vst.msk [vmem:[#allocation2 + $0x68] sm:$0xf] %vm1015, %v984
        %1044 = vst.msk [vmem:[#allocation2 + $0x6c] sm:$0x7] %vm1017, %v986
        %1047 = vrot.lane.b32.xlu0 %v387, 9
        %v1048 = vpop.permute.xlu0 %1047
        %1049 = vrot.lane.b32.xlu0 %v388, 9
        %v1050 = vpop.permute.xlu0 %1049
        %1051 = vrot.lane.b32.xlu0 %v389, 9
        %v1052 = vpop.permute.xlu0 %1051
        %1053 = vrot.lane.b32.xlu0 %v390, 9
        %v1054 = vpop.permute.xlu0 %1053
        %1055 = vrot.lane.b32.xlu0 %v391, 9
        %v1056 = vpop.permute.xlu0 %1055
        %1057 = vrot.lane.b32.xlu0 %v392, 9
        %v1058 = vpop.permute.xlu0 %1057
        %1059 = vrot.lane.b32.xlu0 %v393, 9
        %v1060 = vpop.permute.xlu0 %1059
        %1061 = vrot.lane.b32.xlu0 %v394, 9
        %v1062 = vpop.permute.xlu0 %1061
        %1063 = vrot.lane.b32.xlu0 %v395, 9
        %v1064 = vpop.permute.xlu0 %1063
        %1065 = vrot.lane.b32.xlu0 %v396, 9
        %v1066 = vpop.permute.xlu0 %1065
        %1067 = vrot.lane.b32.xlu0 %v397, 9
        %v1068 = vpop.permute.xlu0 %1067
        %1069 = vrot.lane.b32.xlu0 %v398, 9
        %v1070 = vpop.permute.xlu0 %1069
        %1071 = vrot.lane.b32.xlu0 %v399, 9
        %v1072 = vpop.permute.xlu0 %1071
        %1073 = vrot.lane.b32.xlu0 %v400, 9
        %v1074 = vpop.permute.xlu0 %1073
        %1075 = vrot.lane.b32.xlu0 %v401, 9
        %v1076 = vpop.permute.xlu0 %1075
        %1077 = vrot.lane.b32.xlu0 %v402, 9
        %v1078 = vpop.permute.xlu0 %1077
        %1079 = vrot.lane.b32.xlu0 %v403, 9
        %v1080 = vpop.permute.xlu0 %1079
        %1081 = vrot.lane.b32.xlu0 %v404, 9
        %v1082 = vpop.permute.xlu0 %1081
        %1083 = vrot.lane.b32.xlu0 %v405, 9
        %v1084 = vpop.permute.xlu0 %1083
        %1085 = vrot.lane.b32.xlu0 %v406, 9
        %v1086 = vpop.permute.xlu0 %1085
        %1087 = vrot.lane.b32.xlu0 %v407, 9
        %v1088 = vpop.permute.xlu0 %1087
        %1089 = vrot.lane.b32.xlu0 %v408, 9
        %v1090 = vpop.permute.xlu0 %1089
        %1091 = vrot.lane.b32.xlu0 %v409, 9
        %v1092 = vpop.permute.xlu0 %1091
        %1093 = vrot.lane.b32.xlu0 %v410, 9
        %v1094 = vpop.permute.xlu0 %1093
        %1095 = vrot.lane.b32.xlu0 %v411, 9
        %v1096 = vpop.permute.xlu0 %1095
        %1097 = vrot.lane.b32.xlu0 %v412, 9
        %v1098 = vpop.permute.xlu0 %1097
        %1099 = vrot.lane.b32.xlu0 %v413, 9
        %v1100 = vpop.permute.xlu0 %1099
        %1101 = vrot.lane.b32.xlu0 %v414, 9
        %v1102 = vpop.permute.xlu0 %1101
        %vm1131 = vcmask 93256
        %1132 = vst.msk [vmem:[#allocation2] sm:$0xf] %vm1131, %v1048
        %vm1133 = vcmask 92232
        %1134 = vst.msk [vmem:[#allocation2 + $0x4] sm:$0x7] %vm1133, %v1050
        %1135 = vst.msk [vmem:[#allocation2 + $0x8] sm:$0xf] %vm1131, %v1052
        %1136 = vst.msk [vmem:[#allocation2 + $0xc] sm:$0x7] %vm1133, %v1054
        %1137 = vst.msk [vmem:[#allocation2 + $0x10] sm:$0xf] %vm1131, %v1056
        %1138 = vst.msk [vmem:[#allocation2 + $0x14] sm:$0x7] %vm1133, %v1058
        %1139 = vst.msk [vmem:[#allocation2 + $0x18] sm:$0xf] %vm1131, %v1060
        %1140 = vst.msk [vmem:[#allocation2 + $0x1c] sm:$0x7] %vm1133, %v1062
        %1141 = vst.msk [vmem:[#allocation2 + $0x20] sm:$0xf] %vm1131, %v1064
        %1142 = vst.msk [vmem:[#allocation2 + $0x24] sm:$0x7] %vm1133, %v1066
        %1143 = vst.msk [vmem:[#allocation2 + $0x28] sm:$0xf] %vm1131, %v1068
        %1144 = vst.msk [vmem:[#allocation2 + $0x2c] sm:$0x7] %vm1133, %v1070
        %1145 = vst.msk [vmem:[#allocation2 + $0x30] sm:$0xf] %vm1131, %v1072
        %1146 = vst.msk [vmem:[#allocation2 + $0x34] sm:$0x7] %vm1133, %v1074
        %1147 = vst.msk [vmem:[#allocation2 + $0x38] sm:$0xf] %vm1131, %v1076
        %1148 = vst.msk [vmem:[#allocation2 + $0x3c] sm:$0x7] %vm1133, %v1078
        %1149 = vst.msk [vmem:[#allocation2 + $0x40] sm:$0xf] %vm1131, %v1080
        %1150 = vst.msk [vmem:[#allocation2 + $0x44] sm:$0x7] %vm1133, %v1082
        %1151 = vst.msk [vmem:[#allocation2 + $0x48] sm:$0xf] %vm1131, %v1084
        %1152 = vst.msk [vmem:[#allocation2 + $0x4c] sm:$0x7] %vm1133, %v1086
        %1153 = vst.msk [vmem:[#allocation2 + $0x50] sm:$0xf] %vm1131, %v1088
        %1154 = vst.msk [vmem:[#allocation2 + $0x54] sm:$0x7] %vm1133, %v1090
        %1155 = vst.msk [vmem:[#allocation2 + $0x58] sm:$0xf] %vm1131, %v1092
        %1156 = vst.msk [vmem:[#allocation2 + $0x5c] sm:$0x7] %vm1133, %v1094
        %1157 = vst.msk [vmem:[#allocation2 + $0x60] sm:$0xf] %vm1131, %v1096
        %1158 = vst.msk [vmem:[#allocation2 + $0x64] sm:$0x7] %vm1133, %v1098
        %1159 = vst.msk [vmem:[#allocation2 + $0x68] sm:$0xf] %vm1131, %v1100
        %1160 = vst.msk [vmem:[#allocation2 + $0x6c] sm:$0x7] %vm1133, %v1102
        %v1162 = vshrl.u32 %v413, 16
        %v1164 = vrot.slane %v1162, 4
        %v1165 = vshll.u32 %v413, 16
        %v1167 = vrot.slane %v1165, 5
        %v1168 = vor.u32 %v1164, %v1167
        %v1169 = vrot.slane %v1168, 4
        %v1171 = vshll.u32 %v414, 16
        %v1173 = vrot.slane %v1171, 5
        %v1174 = vsel %vm449, %v1169, %v1173
        %v1175 = vshrl.u32 %v414, 16
        %v1177 = vrot.slane %v1175, 4
        %v1178 = vor.u32 %v1177, %v1173
        %v1179 = vrot.slane %v1178, 4
        %1180 = vrot.lane.b32.xlu0 %v482, 12
        %v1181 = vpop.permute.xlu0 %1180
        %1182 = vrot.lane.b32.xlu0 %v487, 12
        %v1183 = vpop.permute.xlu0 %1182
        %1184 = vrot.lane.b32.xlu0 %v501, 12
        %v1185 = vpop.permute.xlu0 %1184
        %1186 = vrot.lane.b32.xlu0 %v506, 12
        %v1187 = vpop.permute.xlu0 %1186
        %1188 = vrot.lane.b32.xlu0 %v520, 12
        %v1189 = vpop.permute.xlu0 %1188
        %1190 = vrot.lane.b32.xlu0 %v525, 12
        %v1191 = vpop.permute.xlu0 %1190
        %1192 = vrot.lane.b32.xlu0 %v539, 12
        %v1193 = vpop.permute.xlu0 %1192
        %1194 = vrot.lane.b32.xlu0 %v544, 12
        %v1195 = vpop.permute.xlu0 %1194
        %1196 = vrot.lane.b32.xlu0 %v558, 12
        %v1197 = vpop.permute.xlu0 %1196
        %1198 = vrot.lane.b32.xlu0 %v563, 12
        %v1199 = vpop.permute.xlu0 %1198
        %1200 = vrot.lane.b32.xlu0 %v577, 12
        %v1201 = vpop.permute.xlu0 %1200
        %1202 = vrot.lane.b32.xlu0 %v582, 12
        %v1203 = vpop.permute.xlu0 %1202
        %1204 = vrot.lane.b32.xlu0 %v596, 12
        %v1205 = vpop.permute.xlu0 %1204
        %1206 = vrot.lane.b32.xlu0 %v601, 12
        %v1207 = vpop.permute.xlu0 %1206
        %1208 = vrot.lane.b32.xlu0 %v615, 12
        %v1209 = vpop.permute.xlu0 %1208
        %1210 = vrot.lane.b32.xlu0 %v620, 12
        %v1211 = vpop.permute.xlu0 %1210
        %1212 = vrot.lane.b32.xlu0 %v634, 12
        %v1213 = vpop.permute.xlu0 %1212
        %1214 = vrot.lane.b32.xlu0 %v639, 12
        %v1215 = vpop.permute.xlu0 %1214
        %1216 = vrot.lane.b32.xlu0 %v653, 12
        %v1217 = vpop.permute.xlu0 %1216
        %1218 = vrot.lane.b32.xlu0 %v658, 12
        %v1219 = vpop.permute.xlu0 %1218
        %1220 = vrot.lane.b32.xlu0 %v672, 12
        %v1221 = vpop.permute.xlu0 %1220
        %1222 = vrot.lane.b32.xlu0 %v677, 12
        %v1223 = vpop.permute.xlu0 %1222
        %1224 = vrot.lane.b32.xlu0 %v691, 12
        %v1225 = vpop.permute.xlu0 %1224
        %1226 = vrot.lane.b32.xlu0 %v696, 12
        %v1227 = vpop.permute.xlu0 %1226
        %1228 = vrot.lane.b32.xlu0 %v710, 12
        %v1229 = vpop.permute.xlu0 %1228
        %1230 = vrot.lane.b32.xlu0 %v715, 12
        %v1231 = vpop.permute.xlu0 %1230
        %1232 = vrot.lane.b32.xlu0 %v1174, 12
        %v1233 = vpop.permute.xlu0 %1232
        %1234 = vrot.lane.b32.xlu0 %v1179, 12
        %v1235 = vpop.permute.xlu0 %1234
        %vm1264 = vcmask 117856
        %1265 = vst.msk [vmem:[#allocation2] sm:$0xf] %vm1264, %v1181
        %vm1266 = vcmask 116832
        %1267 = vst.msk [vmem:[#allocation2 + $0x4] sm:$0x7] %vm1266, %v1183
        %1268 = vst.msk [vmem:[#allocation2 + $0x8] sm:$0xf] %vm1264, %v1185
        %1269 = vst.msk [vmem:[#allocation2 + $0xc] sm:$0x7] %vm1266, %v1187
        %1270 = vst.msk [vmem:[#allocation2 + $0x10] sm:$0xf] %vm1264, %v1189
        %1271 = vst.msk [vmem:[#allocation2 + $0x14] sm:$0x7] %vm1266, %v1191
        %1272 = vst.msk [vmem:[#allocation2 + $0x18] sm:$0xf] %vm1264, %v1193
        %1273 = vst.msk [vmem:[#allocation2 + $0x1c] sm:$0x7] %vm1266, %v1195
        %1274 = vst.msk [vmem:[#allocation2 + $0x20] sm:$0xf] %vm1264, %v1197
        %1275 = vst.msk [vmem:[#allocation2 + $0x24] sm:$0x7] %vm1266, %v1199
        %1276 = vst.msk [vmem:[#allocation2 + $0x28] sm:$0xf] %vm1264, %v1201
        %1277 = vst.msk [vmem:[#allocation2 + $0x2c] sm:$0x7] %vm1266, %v1203
        %1278 = vst.msk [vmem:[#allocation2 + $0x30] sm:$0xf] %vm1264, %v1205
        %1279 = vst.msk [vmem:[#allocation2 + $0x34] sm:$0x7] %vm1266, %v1207
        %1280 = vst.msk [vmem:[#allocation2 + $0x38] sm:$0xf] %vm1264, %v1209
        %1281 = vst.msk [vmem:[#allocation2 + $0x3c] sm:$0x7] %vm1266, %v1211
        %1282 = vst.msk [vmem:[#allocation2 + $0x40] sm:$0xf] %vm1264, %v1213
        %1283 = vst.msk [vmem:[#allocation2 + $0x44] sm:$0x7] %vm1266, %v1215
        %1284 = vst.msk [vmem:[#allocation2 + $0x48] sm:$0xf] %vm1264, %v1217
        %1285 = vst.msk [vmem:[#allocation2 + $0x4c] sm:$0x7] %vm1266, %v1219
        %1286 = vst.msk [vmem:[#allocation2 + $0x50] sm:$0xf] %vm1264, %v1221
        %1287 = vst.msk [vmem:[#allocation2 + $0x54] sm:$0x7] %vm1266, %v1223
        %1288 = vst.msk [vmem:[#allocation2 + $0x58] sm:$0xf] %vm1264, %v1225
        %1289 = vst.msk [vmem:[#allocation2 + $0x5c] sm:$0x7] %vm1266, %v1227
        %1290 = vst.msk [vmem:[#allocation2 + $0x60] sm:$0xf] %vm1264, %v1229
        %1291 = vst.msk [vmem:[#allocation2 + $0x64] sm:$0x7] %vm1266, %v1231
        %1292 = vst.msk [vmem:[#allocation2 + $0x68] sm:$0xf] %vm1264, %v1233
        %1293 = vst.msk [vmem:[#allocation2 + $0x6c] sm:$0x7] %vm1266, %v1235
        %v1294 = vrot.slane %v413, 5
        %v1295 = vrot.slane %v1294, 4
        %v1296 = vrot.slane %v414, 5
        %v1297 = vsel %vm860, %v1295, %v1296
        %v1298 = vrot.slane %v1296, 4
        %1299 = vrot.lane.b32.xlu0 %v869, 15
        %v1300 = vpop.permute.xlu0 %1299
        %1301 = vrot.lane.b32.xlu0 %v870, 15
        %v1302 = vpop.permute.xlu0 %1301
        %1303 = vrot.lane.b32.xlu0 %v874, 15
        %v1304 = vpop.permute.xlu0 %1303
        %1305 = vrot.lane.b32.xlu0 %v875, 15
        %v1306 = vpop.permute.xlu0 %1305
        %1307 = vrot.lane.b32.xlu0 %v879, 15
        %v1308 = vpop.permute.xlu0 %1307
        %1309 = vrot.lane.b32.xlu0 %v880, 15
        %v1310 = vpop.permute.xlu0 %1309
        %1311 = vrot.lane.b32.xlu0 %v884, 15
        %v1312 = vpop.permute.xlu0 %1311
        %1313 = vrot.lane.b32.xlu0 %v885, 15
        %v1314 = vpop.permute.xlu0 %1313
        %1315 = vrot.lane.b32.xlu0 %v889, 15
        %v1316 = vpop.permute.xlu0 %1315
        %1317 = vrot.lane.b32.xlu0 %v890, 15
        %v1318 = vpop.permute.xlu0 %1317
        %1319 = vrot.lane.b32.xlu0 %v894, 15
        %v1320 = vpop.permute.xlu0 %1319
        %1321 = vrot.lane.b32.xlu0 %v895, 15
        %v1322 = vpop.permute.xlu0 %1321
        %1323 = vrot.lane.b32.xlu0 %v899, 15
        %v1324 = vpop.permute.xlu0 %1323
        %1325 = vrot.lane.b32.xlu0 %v900, 15
        %v1326 = vpop.permute.xlu0 %1325
        %1327 = vrot.lane.b32.xlu0 %v904, 15
        %v1328 = vpop.permute.xlu0 %1327
        %1329 = vrot.lane.b32.xlu0 %v905, 15
        %v1330 = vpop.permute.xlu0 %1329
        %1331 = vrot.lane.b32.xlu0 %v909, 15
        %v1332 = vpop.permute.xlu0 %1331
        %1333 = vrot.lane.b32.xlu0 %v910, 15
        %v1334 = vpop.permute.xlu0 %1333
        %1335 = vrot.lane.b32.xlu0 %v914, 15
        %v1336 = vpop.permute.xlu0 %1335
        %1337 = vrot.lane.b32.xlu0 %v915, 15
        %v1338 = vpop.permute.xlu0 %1337
        %1339 = vrot.lane.b32.xlu0 %v919, 15
        %v1340 = vpop.permute.xlu0 %1339
        %1341 = vrot.lane.b32.xlu0 %v920, 15
        %v1342 = vpop.permute.xlu0 %1341
        %1343 = vrot.lane.b32.xlu0 %v924, 15
        %v1344 = vpop.permute.xlu0 %1343
        %1345 = vrot.lane.b32.xlu0 %v925, 15
        %v1346 = vpop.permute.xlu0 %1345
        %1347 = vrot.lane.b32.xlu0 %v929, 15
        %v1348 = vpop.permute.xlu0 %1347
        %1349 = vrot.lane.b32.xlu0 %v930, 15
        %v1350 = vpop.permute.xlu0 %1349
        %1351 = vrot.lane.b32.xlu0 %v1297, 15
        %v1352 = vpop.permute.xlu0 %1351
        %1353 = vrot.lane.b32.xlu0 %v1298, 15
        %v1354 = vpop.permute.xlu0 %1353
        %vm1383 = vcmask 142456
        %1384 = vst.msk [vmem:[#allocation2] sm:$0xf] %vm1383, %v1300
        %vm1385 = vcmask 141432
        %1386 = vst.msk [vmem:[#allocation2 + $0x4] sm:$0x7] %vm1385, %v1302
        %1387 = vst.msk [vmem:[#allocation2 + $0x8] sm:$0xf] %vm1383, %v1304
        %1388 = vst.msk [vmem:[#allocation2 + $0xc] sm:$0x7] %vm1385, %v1306
        %1389 = vst.msk [vmem:[#allocation2 + $0x10] sm:$0xf] %vm1383, %v1308
        %1390 = vst.msk [vmem:[#allocation2 + $0x14] sm:$0x7] %vm1385, %v1310
        %1391 = vst.msk [vmem:[#allocation2 + $0x18] sm:$0xf] %vm1383, %v1312
        %1392 = vst.msk [vmem:[#allocation2 + $0x1c] sm:$0x7] %vm1385, %v1314
        %1393 = vst.msk [vmem:[#allocation2 + $0x20] sm:$0xf] %vm1383, %v1316
        %1394 = vst.msk [vmem:[#allocation2 + $0x24] sm:$0x7] %vm1385, %v1318
        %1395 = vst.msk [vmem:[#allocation2 + $0x28] sm:$0xf] %vm1383, %v1320
        %1396 = vst.msk [vmem:[#allocation2 + $0x2c] sm:$0x7] %vm1385, %v1322
        %1397 = vst.msk [vmem:[#allocation2 + $0x30] sm:$0xf] %vm1383, %v1324
        %1398 = vst.msk [vmem:[#allocation2 + $0x34] sm:$0x7] %vm1385, %v1326
        %1399 = vst.msk [vmem:[#allocation2 + $0x38] sm:$0xf] %vm1383, %v1328
        %1400 = vst.msk [vmem:[#allocation2 + $0x3c] sm:$0x7] %vm1385, %v1330
        %1401 = vst.msk [vmem:[#allocation2 + $0x40] sm:$0xf] %vm1383, %v1332
        %1402 = vst.msk [vmem:[#allocation2 + $0x44] sm:$0x7] %vm1385, %v1334
        %1403 = vst.msk [vmem:[#allocation2 + $0x48] sm:$0xf] %vm1383, %v1336
        %1404 = vst.msk [vmem:[#allocation2 + $0x4c] sm:$0x7] %vm1385, %v1338
        %1405 = vst.msk [vmem:[#allocation2 + $0x50] sm:$0xf] %vm1383, %v1340
        %1406 = vst.msk [vmem:[#allocation2 + $0x54] sm:$0x7] %vm1385, %v1342
        %1407 = vst.msk [vmem:[#allocation2 + $0x58] sm:$0xf] %vm1383, %v1344
        %1408 = vst.msk [vmem:[#allocation2 + $0x5c] sm:$0x7] %vm1385, %v1346
        %1409 = vst.msk [vmem:[#allocation2 + $0x60] sm:$0xf] %vm1383, %v1348
        %1410 = vst.msk [vmem:[#allocation2 + $0x64] sm:$0x7] %vm1385, %v1350
        %1411 = vst.msk [vmem:[#allocation2 + $0x68] sm:$0xf] %vm1383, %v1352
        %1412 = vst.msk [vmem:[#allocation2 + $0x6c] sm:$0x7] %vm1385, %v1354
        %1415 = vrot.lane.b32.xlu0 %v389, 18
        %v1416 = vpop.permute.xlu0 %1415
        %1417 = vrot.lane.b32.xlu0 %v390, 18
        %v1418 = vpop.permute.xlu0 %1417
        %1419 = vrot.lane.b32.xlu0 %v391, 18
        %v1420 = vpop.permute.xlu0 %1419
        %1421 = vrot.lane.b32.xlu0 %v392, 18
        %v1422 = vpop.permute.xlu0 %1421
        %1423 = vrot.lane.b32.xlu0 %v393, 18
        %v1424 = vpop.permute.xlu0 %1423
        %1425 = vrot.lane.b32.xlu0 %v394, 18
        %v1426 = vpop.permute.xlu0 %1425
        %1427 = vrot.lane.b32.xlu0 %v395, 18
        %v1428 = vpop.permute.xlu0 %1427
        %1429 = vrot.lane.b32.xlu0 %v396, 18
        %v1430 = vpop.permute.xlu0 %1429
        %1431 = vrot.lane.b32.xlu0 %v397, 18
        %v1432 = vpop.permute.xlu0 %1431
        %1433 = vrot.lane.b32.xlu0 %v398, 18
        %v1434 = vpop.permute.xlu0 %1433
        %1435 = vrot.lane.b32.xlu0 %v399, 18
        %v1436 = vpop.permute.xlu0 %1435
        %1437 = vrot.lane.b32.xlu0 %v400, 18
        %v1438 = vpop.permute.xlu0 %1437
        %1439 = vrot.lane.b32.xlu0 %v401, 18
        %v1440 = vpop.permute.xlu0 %1439
        %1441 = vrot.lane.b32.xlu0 %v402, 18
        %v1442 = vpop.permute.xlu0 %1441
        %1443 = vrot.lane.b32.xlu0 %v403, 18
        %v1444 = vpop.permute.xlu0 %1443
        %1445 = vrot.lane.b32.xlu0 %v404, 18
        %v1446 = vpop.permute.xlu0 %1445
        %1447 = vrot.lane.b32.xlu0 %v405, 18
        %v1448 = vpop.permute.xlu0 %1447
        %1449 = vrot.lane.b32.xlu0 %v406, 18
        %v1450 = vpop.permute.xlu0 %1449
        %1451 = vrot.lane.b32.xlu0 %v407, 18
        %v1452 = vpop.permute.xlu0 %1451
        %1453 = vrot.lane.b32.xlu0 %v408, 18
        %v1454 = vpop.permute.xlu0 %1453
        %1455 = vrot.lane.b32.xlu0 %v409, 18
        %v1456 = vpop.permute.xlu0 %1455
        %1457 = vrot.lane.b32.xlu0 %v410, 18
        %v1458 = vpop.permute.xlu0 %1457
        %1459 = vrot.lane.b32.xlu0 %v411, 18
        %v1460 = vpop.permute.xlu0 %1459
        %1461 = vrot.lane.b32.xlu0 %v412, 18
        %v1462 = vpop.permute.xlu0 %1461
        %1463 = vrot.lane.b32.xlu0 %v413, 18
        %v1464 = vpop.permute.xlu0 %1463
        %1465 = vrot.lane.b32.xlu0 %v414, 18
        %v1466 = vpop.permute.xlu0 %1465
        %1467 = vrot.lane.b32.xlu0 %v415, 18
        %v1468 = vpop.permute.xlu0 %1467
        %1469 = vrot.lane.b32.xlu0 %v416, 18
        %v1470 = vpop.permute.xlu0 %1469
        %vm1499 = vcmask 167056
        %1500 = vst.msk [vmem:[#allocation2] sm:$0xf] %vm1499, %v1416
        %vm1501 = vcmask 166032
        %1502 = vst.msk [vmem:[#allocation2 + $0x4] sm:$0x7] %vm1501, %v1418
        %1503 = vst.msk [vmem:[#allocation2 + $0x8] sm:$0xf] %vm1499, %v1420
        %1504 = vst.msk [vmem:[#allocation2 + $0xc] sm:$0x7] %vm1501, %v1422
        %1505 = vst.msk [vmem:[#allocation2 + $0x10] sm:$0xf] %vm1499, %v1424
        %1506 = vst.msk [vmem:[#allocation2 + $0x14] sm:$0x7] %vm1501, %v1426
        %1507 = vst.msk [vmem:[#allocation2 + $0x18] sm:$0xf] %vm1499, %v1428
        %1508 = vst.msk [vmem:[#allocation2 + $0x1c] sm:$0x7] %vm1501, %v1430
        %1509 = vst.msk [vmem:[#allocation2 + $0x20] sm:$0xf] %vm1499, %v1432
        %1510 = vst.msk [vmem:[#allocation2 + $0x24] sm:$0x7] %vm1501, %v1434
        %1511 = vst.msk [vmem:[#allocation2 + $0x28] sm:$0xf] %vm1499, %v1436
        %1512 = vst.msk [vmem:[#allocation2 + $0x2c] sm:$0x7] %vm1501, %v1438
        %1513 = vst.msk [vmem:[#allocation2 + $0x30] sm:$0xf] %vm1499, %v1440
        %1514 = vst.msk [vmem:[#allocation2 + $0x34] sm:$0x7] %vm1501, %v1442
        %1515 = vst.msk [vmem:[#allocation2 + $0x38] sm:$0xf] %vm1499, %v1444
        %1516 = vst.msk [vmem:[#allocation2 + $0x3c] sm:$0x7] %vm1501, %v1446
        %1517 = vst.msk [vmem:[#allocation2 + $0x40] sm:$0xf] %vm1499, %v1448
        %1518 = vst.msk [vmem:[#allocation2 + $0x44] sm:$0x7] %vm1501, %v1450
        %1519 = vst.msk [vmem:[#allocation2 + $0x48] sm:$0xf] %vm1499, %v1452
        %1520 = vst.msk [vmem:[#allocation2 + $0x4c] sm:$0x7] %vm1501, %v1454
        %1521 = vst.msk [vmem:[#allocation2 + $0x50] sm:$0xf] %vm1499, %v1456
        %1522 = vst.msk [vmem:[#allocation2 + $0x54] sm:$0x7] %vm1501, %v1458
        %1523 = vst.msk [vmem:[#allocation2 + $0x58] sm:$0xf] %vm1499, %v1460
        %1524 = vst.msk [vmem:[#allocation2 + $0x5c] sm:$0x7] %vm1501, %v1462
        %1525 = vst.msk [vmem:[#allocation2 + $0x60] sm:$0xf] %vm1499, %v1464
        %1526 = vst.msk [vmem:[#allocation2 + $0x64] sm:$0x7] %vm1501, %v1466
        %1527 = vst.msk [vmem:[#allocation2 + $0x68] sm:$0xf] %vm1499, %v1468
        %1528 = vst.msk [vmem:[#allocation2 + $0x6c] sm:$0x7] %vm1501, %v1470
        %v1530 = vshrl.u32 %v415, 16
        %v1532 = vrot.slane %v1530, 4
        %v1533 = vshll.u32 %v415, 16
        %v1535 = vrot.slane %v1533, 5
        %v1536 = vor.u32 %v1532, %v1535
        %v1537 = vrot.slane %v1536, 4
        %v1539 = vshll.u32 %v416, 16
        %v1541 = vrot.slane %v1539, 5
        %v1542 = vsel %vm449, %v1537, %v1541
        %v1543 = vshrl.u32 %v416, 16
        %v1545 = vrot.slane %v1543, 4
        %v1546 = vor.u32 %v1545, %v1541
        %v1547 = vrot.slane %v1546, 4
        %1548 = vrot.lane.b32.xlu0 %v501, 21
        %v1549 = vpop.permute.xlu0 %1548
        %1550 = vrot.lane.b32.xlu0 %v506, 21
        %v1551 = vpop.permute.xlu0 %1550
        %1552 = vrot.lane.b32.xlu0 %v520, 21
        %v1553 = vpop.permute.xlu0 %1552
        %1554 = vrot.lane.b32.xlu0 %v525, 21
        %v1555 = vpop.permute.xlu0 %1554
        %1556 = vrot.lane.b32.xlu0 %v539, 21
        %v1557 = vpop.permute.xlu0 %1556
        %1558 = vrot.lane.b32.xlu0 %v544, 21
        %v1559 = vpop.permute.xlu0 %1558
        %1560 = vrot.lane.b32.xlu0 %v558, 21
        %v1561 = vpop.permute.xlu0 %1560
        %1562 = vrot.lane.b32.xlu0 %v563, 21
        %v1563 = vpop.permute.xlu0 %1562
        %1564 = vrot.lane.b32.xlu0 %v577, 21
        %v1565 = vpop.permute.xlu0 %1564
        %1566 = vrot.lane.b32.xlu0 %v582, 21
        %v1567 = vpop.permute.xlu0 %1566
        %1568 = vrot.lane.b32.xlu0 %v596, 21
        %v1569 = vpop.permute.xlu0 %1568
        %1570 = vrot.lane.b32.xlu0 %v601, 21
        %v1571 = vpop.permute.xlu0 %1570
        %1572 = vrot.lane.b32.xlu0 %v615, 21
        %v1573 = vpop.permute.xlu0 %1572
        %1574 = vrot.lane.b32.xlu0 %v620, 21
        %v1575 = vpop.permute.xlu0 %1574
        %1576 = vrot.lane.b32.xlu0 %v634, 21
        %v1577 = vpop.permute.xlu0 %1576
        %1578 = vrot.lane.b32.xlu0 %v639, 21
        %v1579 = vpop.permute.xlu0 %1578
        %1580 = vrot.lane.b32.xlu0 %v653, 21
        %v1581 = vpop.permute.xlu0 %1580
        %1582 = vrot.lane.b32.xlu0 %v658, 21
        %v1583 = vpop.permute.xlu0 %1582
        %1584 = vrot.lane.b32.xlu0 %v672, 21
        %v1585 = vpop.permute.xlu0 %1584
        %1586 = vrot.lane.b32.xlu0 %v677, 21
        %v1587 = vpop.permute.xlu0 %1586
        %1588 = vrot.lane.b32.xlu0 %v691, 21
        %v1589 = vpop.permute.xlu0 %1588
        %1590 = vrot.lane.b32.xlu0 %v696, 21
        %v1591 = vpop.permute.xlu0 %1590
        %1592 = vrot.lane.b32.xlu0 %v710, 21
        %v1593 = vpop.permute.xlu0 %1592
        %1594 = vrot.lane.b32.xlu0 %v715, 21
        %v1595 = vpop.permute.xlu0 %1594
        %1596 = vrot.lane.b32.xlu0 %v1174, 21
        %v1597 = vpop.permute.xlu0 %1596
        %1598 = vrot.lane.b32.xlu0 %v1179, 21
        %v1599 = vpop.permute.xlu0 %1598
        %1600 = vrot.lane.b32.xlu0 %v1542, 21
        %v1601 = vpop.permute.xlu0 %1600
        %1602 = vrot.lane.b32.xlu0 %v1547, 21
        %v1603 = vpop.permute.xlu0 %1602
        %vm1632 = vcmask 191656
        %1633 = vst.msk [vmem:[#allocation2] sm:$0xf] %vm1632, %v1549
        %vm1634 = vcmask 190632
        %1635 = vst.msk [vmem:[#allocation2 + $0x4] sm:$0x7] %vm1634, %v1551
        %1636 = vst.msk [vmem:[#allocation2 + $0x8] sm:$0xf] %vm1632, %v1553
        %1637 = vst.msk [vmem:[#allocation2 + $0xc] sm:$0x7] %vm1634, %v1555
        %1638 = vst.msk [vmem:[#allocation2 + $0x10] sm:$0xf] %vm1632, %v1557
        %1639 = vst.msk [vmem:[#allocation2 + $0x14] sm:$0x7] %vm1634, %v1559
        %1640 = vst.msk [vmem:[#allocation2 + $0x18] sm:$0xf] %vm1632, %v1561
        %1641 = vst.msk [vmem:[#allocation2 + $0x1c] sm:$0x7] %vm1634, %v1563
        %1642 = vst.msk [vmem:[#allocation2 + $0x20] sm:$0xf] %vm1632, %v1565
        %1643 = vst.msk [vmem:[#allocation2 + $0x24] sm:$0x7] %vm1634, %v1567
        %1644 = vst.msk [vmem:[#allocation2 + $0x28] sm:$0xf] %vm1632, %v1569
        %1645 = vst.msk [vmem:[#allocation2 + $0x2c] sm:$0x7] %vm1634, %v1571
        %1646 = vst.msk [vmem:[#allocation2 + $0x30] sm:$0xf] %vm1632, %v1573
        %1647 = vst.msk [vmem:[#allocation2 + $0x34] sm:$0x7] %vm1634, %v1575
        %1648 = vst.msk [vmem:[#allocation2 + $0x38] sm:$0xf] %vm1632, %v1577
        %1649 = vst.msk [vmem:[#allocation2 + $0x3c] sm:$0x7] %vm1634, %v1579
        %1650 = vst.msk [vmem:[#allocation2 + $0x40] sm:$0xf] %vm1632, %v1581
        %1651 = vst.msk [vmem:[#allocation2 + $0x44] sm:$0x7] %vm1634, %v1583
        %1652 = vst.msk [vmem:[#allocation2 + $0x48] sm:$0xf] %vm1632, %v1585
        %1653 = vst.msk [vmem:[#allocation2 + $0x4c] sm:$0x7] %vm1634, %v1587
        %1654 = vst.msk [vmem:[#allocation2 + $0x50] sm:$0xf] %vm1632, %v1589
        %1655 = vst.msk [vmem:[#allocation2 + $0x54] sm:$0x7] %vm1634, %v1591
        %1656 = vst.msk [vmem:[#allocation2 + $0x58] sm:$0xf] %vm1632, %v1593
        %1657 = vst.msk [vmem:[#allocation2 + $0x5c] sm:$0x7] %vm1634, %v1595
        %1658 = vst.msk [vmem:[#allocation2 + $0x60] sm:$0xf] %vm1632, %v1597
        %1659 = vst.msk [vmem:[#allocation2 + $0x64] sm:$0x7] %vm1634, %v1599
        %1660 = vst.msk [vmem:[#allocation2 + $0x68] sm:$0xf] %vm1632, %v1601
        %1661 = vst.msk [vmem:[#allocation2 + $0x6c] sm:$0x7] %vm1634, %v1603
        %v1662 = vrot.slane %v415, 5
        %v1663 = vrot.slane %v1662, 4
        %v1664 = vrot.slane %v416, 5
        %v1665 = vsel %vm860, %v1663, %v1664
        %v1666 = vrot.slane %v1664, 4
        %1667 = vrot.lane.b32.xlu0 %v874, 24
        %v1668 = vpop.permute.xlu0 %1667
        %1669 = vrot.lane.b32.xlu0 %v875, 24
        %v1670 = vpop.permute.xlu0 %1669
        %1671 = vrot.lane.b32.xlu0 %v879, 24
        %v1672 = vpop.permute.xlu0 %1671
        %1673 = vrot.lane.b32.xlu0 %v880, 24
        %v1674 = vpop.permute.xlu0 %1673
        %1675 = vrot.lane.b32.xlu0 %v884, 24
        %v1676 = vpop.permute.xlu0 %1675
        %1677 = vrot.lane.b32.xlu0 %v885, 24
        %v1678 = vpop.permute.xlu0 %1677
        %1679 = vrot.lane.b32.xlu0 %v889, 24
        %v1680 = vpop.permute.xlu0 %1679
        %1681 = vrot.lane.b32.xlu0 %v890, 24
        %v1682 = vpop.permute.xlu0 %1681
        %1683 = vrot.lane.b32.xlu0 %v894, 24
        %v1684 = vpop.permute.xlu0 %1683
        %1685 = vrot.lane.b32.xlu0 %v895, 24
        %v1686 = vpop.permute.xlu0 %1685
        %1687 = vrot.lane.b32.xlu0 %v899, 24
        %v1688 = vpop.permute.xlu0 %1687
        %1689 = vrot.lane.b32.xlu0 %v900, 24
        %v1690 = vpop.permute.xlu0 %1689
        %1691 = vrot.lane.b32.xlu0 %v904, 24
        %v1692 = vpop.permute.xlu0 %1691
        %1693 = vrot.lane.b32.xlu0 %v905, 24
        %v1694 = vpop.permute.xlu0 %1693
        %1695 = vrot.lane.b32.xlu0 %v909, 24
        %v1696 = vpop.permute.xlu0 %1695
        %1697 = vrot.lane.b32.xlu0 %v910, 24
        %v1698 = vpop.permute.xlu0 %1697
        %1699 = vrot.lane.b32.xlu0 %v914, 24
        %v1700 = vpop.permute.xlu0 %1699
        %1701 = vrot.lane.b32.xlu0 %v915, 24
        %v1702 = vpop.permute.xlu0 %1701
        %1703 = vrot.lane.b32.xlu0 %v919, 24
        %v1704 = vpop.permute.xlu0 %1703
        %1705 = vrot.lane.b32.xlu0 %v920, 24
        %v1706 = vpop.permute.xlu0 %1705
        %1707 = vrot.lane.b32.xlu0 %v924, 24
        %v1708 = vpop.permute.xlu0 %1707
        %1709 = vrot.lane.b32.xlu0 %v925, 24
        %v1710 = vpop.permute.xlu0 %1709
        %1711 = vrot.lane.b32.xlu0 %v929, 24
        %v1712 = vpop.permute.xlu0 %1711
        %1713 = vrot.lane.b32.xlu0 %v930, 24
        %v1714 = vpop.permute.xlu0 %1713
        %1715 = vrot.lane.b32.xlu0 %v1297, 24
        %v1716 = vpop.permute.xlu0 %1715
        %1717 = vrot.lane.b32.xlu0 %v1298, 24
        %v1718 = vpop.permute.xlu0 %1717
        %1719 = vrot.lane.b32.xlu0 %v1665, 24
        %v1720 = vpop.permute.xlu0 %1719
        %1721 = vrot.lane.b32.xlu0 %v1666, 24
        %v1722 = vpop.permute.xlu0 %1721
        %vm1751 = vcmask 216256
        %1752 = vst.msk [vmem:[#allocation2] sm:$0xf] %vm1751, %v1668
        %vm1753 = vcmask 215232
        %1754 = vst.msk [vmem:[#allocation2 + $0x4] sm:$0x7] %vm1753, %v1670
        %1755 = vst.msk [vmem:[#allocation2 + $0x8] sm:$0xf] %vm1751, %v1672
        %1756 = vst.msk [vmem:[#allocation2 + $0xc] sm:$0x7] %vm1753, %v1674
        %1757 = vst.msk [vmem:[#allocation2 + $0x10] sm:$0xf] %vm1751, %v1676
        %1758 = vst.msk [vmem:[#allocation2 + $0x14] sm:$0x7] %vm1753, %v1678
        %1759 = vst.msk [vmem:[#allocation2 + $0x18] sm:$0xf] %vm1751, %v1680
        %1760 = vst.msk [vmem:[#allocation2 + $0x1c] sm:$0x7] %vm1753, %v1682
        %1761 = vst.msk [vmem:[#allocation2 + $0x20] sm:$0xf] %vm1751, %v1684
        %1762 = vst.msk [vmem:[#allocation2 + $0x24] sm:$0x7] %vm1753, %v1686
        %1763 = vst.msk [vmem:[#allocation2 + $0x28] sm:$0xf] %vm1751, %v1688
        %1764 = vst.msk [vmem:[#allocation2 + $0x2c] sm:$0x7] %vm1753, %v1690
        %1765 = vst.msk [vmem:[#allocation2 + $0x30] sm:$0xf] %vm1751, %v1692
        %1766 = vst.msk [vmem:[#allocation2 + $0x34] sm:$0x7] %vm1753, %v1694
        %1767 = vst.msk [vmem:[#allocation2 + $0x38] sm:$0xf] %vm1751, %v1696
        %1768 = vst.msk [vmem:[#allocation2 + $0x3c] sm:$0x7] %vm1753, %v1698
        %1769 = vst.msk [vmem:[#allocation2 + $0x40] sm:$0xf] %vm1751, %v1700
        %1770 = vst.msk [vmem:[#allocation2 + $0x44] sm:$0x7] %vm1753, %v1702
        %1771 = vst.msk [vmem:[#allocation2 + $0x48] sm:$0xf] %vm1751, %v1704
        %1772 = vst.msk [vmem:[#allocation2 + $0x4c] sm:$0x7] %vm1753, %v1706
        %1773 = vst.msk [vmem:[#allocation2 + $0x50] sm:$0xf] %vm1751, %v1708
        %1774 = vst.msk [vmem:[#allocation2 + $0x54] sm:$0x7] %vm1753, %v1710
        %1775 = vst.msk [vmem:[#allocation2 + $0x58] sm:$0xf] %vm1751, %v1712
        %1776 = vst.msk [vmem:[#allocation2 + $0x5c] sm:$0x7] %vm1753, %v1714
        %1777 = vst.msk [vmem:[#allocation2 + $0x60] sm:$0xf] %vm1751, %v1716
        %1778 = vst.msk [vmem:[#allocation2 + $0x64] sm:$0x7] %vm1753, %v1718
        %1779 = vst.msk [vmem:[#allocation2 + $0x68] sm:$0xf] %vm1751, %v1720
        %1780 = vst.msk [vmem:[#allocation2 + $0x6c] sm:$0x7] %vm1753, %v1722
        %v1781 = vld [vmem:[#allocation2] sm:$0xf]
        %v1782 = vld [vmem:[#allocation2 + $0x4] sm:$0x7]
        %v1783 = vld [vmem:[#allocation2 + $0x8] sm:$0xf]
        %v1784 = vld [vmem:[#allocation2 + $0xc] sm:$0x7]
        %v1785 = vld [vmem:[#allocation2 + $0x10] sm:$0xf]
        %v1786 = vld [vmem:[#allocation2 + $0x14] sm:$0x7]
        %v1787 = vld [vmem:[#allocation2 + $0x18] sm:$0xf]
        %v1788 = vld [vmem:[#allocation2 + $0x1c] sm:$0x7]
        %v1789 = vld [vmem:[#allocation2 + $0x20] sm:$0xf]
        %v1790 = vld [vmem:[#allocation2 + $0x24] sm:$0x7]
        %v1791 = vld [vmem:[#allocation2 + $0x28] sm:$0xf]
        %v1792 = vld [vmem:[#allocation2 + $0x2c] sm:$0x7]
        %v1793 = vld [vmem:[#allocation2 + $0x30] sm:$0xf]
        %v1794 = vld [vmem:[#allocation2 + $0x34] sm:$0x7]
        %v1795 = vld [vmem:[#allocation2 + $0x38] sm:$0xf]
        %v1796 = vld [vmem:[#allocation2 + $0x3c] sm:$0x7]
        %v1797 = vld [vmem:[#allocation2 + $0x40] sm:$0xf]
        %v1798 = vld [vmem:[#allocation2 + $0x44] sm:$0x7]
        %v1799 = vld [vmem:[#allocation2 + $0x48] sm:$0xf]
        %v1800 = vld [vmem:[#allocation2 + $0x4c] sm:$0x7]
        %v1801 = vld [vmem:[#allocation2 + $0x50] sm:$0xf]
        %v1802 = vld [vmem:[#allocation2 + $0x54] sm:$0x7]
        %v1803 = vld [vmem:[#allocation2 + $0x58] sm:$0xf]
        %v1804 = vld [vmem:[#allocation2 + $0x5c] sm:$0x7]
        %v1805 = vld [vmem:[#allocation2 + $0x60] sm:$0xf]
        %v1806 = vld [vmem:[#allocation2 + $0x64] sm:$0x7]
        %v1807 = vld [vmem:[#allocation2 + $0x68] sm:$0xf]
        %v1808 = vld [vmem:[#allocation2 + $0x6c] sm:$0x7]
        %v1837 = vrot.slane %v1781, 3
        %v1838 = vrot.slane %v1782, 3
        %v1839 = vrot.slane %v1783, 3
        %v1840 = vrot.slane %v1784, 3
        %v1841 = vrot.slane %v1785, 3
        %v1842 = vrot.slane %v1786, 3
        %v1843 = vrot.slane %v1787, 3
        %v1844 = vrot.slane %v1788, 3
        %v1845 = vrot.slane %v1789, 3
        %v1846 = vrot.slane %v1790, 3
        %v1847 = vrot.slane %v1791, 3
        %v1848 = vrot.slane %v1792, 3
        %v1849 = vrot.slane %v1793, 3
        %v1850 = vrot.slane %v1794, 3
        %v1851 = vrot.slane %v1795, 3
        %v1852 = vrot.slane %v1796, 3
        %v1853 = vrot.slane %v1797, 3
        %v1854 = vrot.slane %v1798, 3
        %v1855 = vrot.slane %v1799, 3
        %v1856 = vrot.slane %v1800, 3
        %v1857 = vrot.slane %v1801, 3
        %v1858 = vrot.slane %v1802, 3
        %v1859 = vrot.slane %v1803, 3
        %v1860 = vrot.slane %v1804, 3
        %v1861 = vrot.slane %v1805, 3
        %v1862 = vrot.slane %v1806, 3
        %v1863 = vrot.slane %v1807, 3
        %v1864 = vrot.slane %v1808, 3
        %vm1865 = vcmask 1040384
        %v1868 = vsel %vm1865, %v1781, %v1837
        %vm1869 = vcmask 1041409
        %v1870 = vsel %vm1869, %v1781, %v1837
        %v1872 = vrot.slane %v1870, 1
        %vm1873 = vcmask 1042434
        %v1874 = vsel %vm1873, %v1781, %v1837
        %v1876 = vrot.slane %v1874, 2
        %vm1877 = vcmask 1043459
        %v1878 = vsel %vm1877, %v1781, %v1837
        %v1880 = vrot.slane %v1878, 3
        %v1883 = vsel %vm1865, %v1782, %v1838
        %v1884 = vsel %vm1869, %v1782, %v1838
        %v1886 = vrot.slane %v1884, 1
        %v1887 = vsel %vm1873, %v1782, %v1838
        %v1889 = vrot.slane %v1887, 2
        %v1892 = vsel %vm1865, %v1783, %v1839
        %v1893 = vsel %vm1869, %v1783, %v1839
        %v1895 = vrot.slane %v1893, 1
        %v1896 = vsel %vm1873, %v1783, %v1839
        %v1898 = vrot.slane %v1896, 2
        %v1899 = vsel %vm1877, %v1783, %v1839
        %v1901 = vrot.slane %v1899, 3
        %v1904 = vsel %vm1865, %v1784, %v1840
        %v1905 = vsel %vm1869, %v1784, %v1840
        %v1907 = vrot.slane %v1905, 1
        %v1908 = vsel %vm1873, %v1784, %v1840
        %v1910 = vrot.slane %v1908, 2
        %v1913 = vsel %vm1865, %v1785, %v1841
        %v1914 = vsel %vm1869, %v1785, %v1841
        %v1916 = vrot.slane %v1914, 1
        %v1917 = vsel %vm1873, %v1785, %v1841
        %v1919 = vrot.slane %v1917, 2
        %v1920 = vsel %vm1877, %v1785, %v1841
        %v1922 = vrot.slane %v1920, 3
        %v1925 = vsel %vm1865, %v1786, %v1842
        %v1926 = vsel %vm1869, %v1786, %v1842
        %v1928 = vrot.slane %v1926, 1
        %v1929 = vsel %vm1873, %v1786, %v1842
        %v1931 = vrot.slane %v1929, 2
        %v1934 = vsel %vm1865, %v1787, %v1843
        %v1935 = vsel %vm1869, %v1787, %v1843
        %v1937 = vrot.slane %v1935, 1
        %v1938 = vsel %vm1873, %v1787, %v1843
        %v1940 = vrot.slane %v1938, 2
        %v1941 = vsel %vm1877, %v1787, %v1843
        %v1943 = vrot.slane %v1941, 3
        %v1946 = vsel %vm1865, %v1788, %v1844
        %v1947 = vsel %vm1869, %v1788, %v1844
        %v1949 = vrot.slane %v1947, 1
        %v1950 = vsel %vm1873, %v1788, %v1844
        %v1952 = vrot.slane %v1950, 2
        %v1955 = vsel %vm1865, %v1789, %v1845
        %v1956 = vsel %vm1869, %v1789, %v1845
        %v1958 = vrot.slane %v1956, 1
        %v1959 = vsel %vm1873, %v1789, %v1845
        %v1961 = vrot.slane %v1959, 2
        %v1962 = vsel %vm1877, %v1789, %v1845
        %v1964 = vrot.slane %v1962, 3
        %v1967 = vsel %vm1865, %v1790, %v1846
        %v1968 = vsel %vm1869, %v1790, %v1846
        %v1970 = vrot.slane %v1968, 1
        %v1971 = vsel %vm1873, %v1790, %v1846
        %v1973 = vrot.slane %v1971, 2
        %v1976 = vsel %vm1865, %v1791, %v1847
        %v1977 = vsel %vm1869, %v1791, %v1847
        %v1979 = vrot.slane %v1977, 1
        %v1980 = vsel %vm1873, %v1791, %v1847
        %v1982 = vrot.slane %v1980, 2
        %v1983 = vsel %vm1877, %v1791, %v1847
        %v1985 = vrot.slane %v1983, 3
        %v1988 = vsel %vm1865, %v1792, %v1848
        %v1989 = vsel %vm1869, %v1792, %v1848
        %v1991 = vrot.slane %v1989, 1
        %v1992 = vsel %vm1873, %v1792, %v1848
        %v1994 = vrot.slane %v1992, 2
        %v1997 = vsel %vm1865, %v1793, %v1849
        %v1998 = vsel %vm1869, %v1793, %v1849
        %v2000 = vrot.slane %v1998, 1
        %v2001 = vsel %vm1873, %v1793, %v1849
        %v2003 = vrot.slane %v2001, 2
        %v2004 = vsel %vm1877, %v1793, %v1849
        %v2006 = vrot.slane %v2004, 3
        %v2009 = vsel %vm1865, %v1794, %v1850
        %v2010 = vsel %vm1869, %v1794, %v1850
        %v2012 = vrot.slane %v2010, 1
        %v2013 = vsel %vm1873, %v1794, %v1850
        %v2015 = vrot.slane %v2013, 2
        %v2018 = vsel %vm1865, %v1795, %v1851
        %v2019 = vsel %vm1869, %v1795, %v1851
        %v2021 = vrot.slane %v2019, 1
        %v2022 = vsel %vm1873, %v1795, %v1851
        %v2024 = vrot.slane %v2022, 2
        %v2025 = vsel %vm1877, %v1795, %v1851
        %v2027 = vrot.slane %v2025, 3
        %v2030 = vsel %vm1865, %v1796, %v1852
        %v2031 = vsel %vm1869, %v1796, %v1852
        %v2033 = vrot.slane %v2031, 1
        %v2034 = vsel %vm1873, %v1796, %v1852
        %v2036 = vrot.slane %v2034, 2
        %v2039 = vsel %vm1865, %v1797, %v1853
        %v2040 = vsel %vm1869, %v1797, %v1853
        %v2042 = vrot.slane %v2040, 1
        %v2043 = vsel %vm1873, %v1797, %v1853
        %v2045 = vrot.slane %v2043, 2
        %v2046 = vsel %vm1877, %v1797, %v1853
        %v2048 = vrot.slane %v2046, 3
        %v2051 = vsel %vm1865, %v1798, %v1854
        %v2052 = vsel %vm1869, %v1798, %v1854
        %v2054 = vrot.slane %v2052, 1
        %v2055 = vsel %vm1873, %v1798, %v1854
        %v2057 = vrot.slane %v2055, 2
        %v2060 = vsel %vm1865, %v1799, %v1855
        %v2061 = vsel %vm1869, %v1799, %v1855
        %v2063 = vrot.slane %v2061, 1
        %v2064 = vsel %vm1873, %v1799, %v1855
        %v2066 = vrot.slane %v2064, 2
        %v2067 = vsel %vm1877, %v1799, %v1855
        %v2069 = vrot.slane %v2067, 3
        %v2072 = vsel %vm1865, %v1800, %v1856
        %v2073 = vsel %vm1869, %v1800, %v1856
        %v2075 = vrot.slane %v2073, 1
        %v2076 = vsel %vm1873, %v1800, %v1856
        %v2078 = vrot.slane %v2076, 2
        %v2081 = vsel %vm1865, %v1801, %v1857
        %v2082 = vsel %vm1869, %v1801, %v1857
        %v2084 = vrot.slane %v2082, 1
        %v2085 = vsel %vm1873, %v1801, %v1857
        %v2087 = vrot.slane %v2085, 2
        %v2088 = vsel %vm1877, %v1801, %v1857
        %v2090 = vrot.slane %v2088, 3
        %v2093 = vsel %vm1865, %v1802, %v1858
        %v2094 = vsel %vm1869, %v1802, %v1858
        %v2096 = vrot.slane %v2094, 1
        %v2097 = vsel %vm1873, %v1802, %v1858
        %v2099 = vrot.slane %v2097, 2
        %v2102 = vsel %vm1865, %v1803, %v1859
        %v2103 = vsel %vm1869, %v1803, %v1859
        %v2105 = vrot.slane %v2103, 1
        %v2106 = vsel %vm1873, %v1803, %v1859
        %v2108 = vrot.slane %v2106, 2
        %v2109 = vsel %vm1877, %v1803, %v1859
        %v2111 = vrot.slane %v2109, 3
        %v2114 = vsel %vm1865, %v1804, %v1860
        %v2115 = vsel %vm1869, %v1804, %v1860
        %v2117 = vrot.slane %v2115, 1
        %v2118 = vsel %vm1873, %v1804, %v1860
        %v2120 = vrot.slane %v2118, 2
        %v2123 = vsel %vm1865, %v1805, %v1861
        %v2124 = vsel %vm1869, %v1805, %v1861
        %v2126 = vrot.slane %v2124, 1
        %v2127 = vsel %vm1873, %v1805, %v1861
        %v2129 = vrot.slane %v2127, 2
        %v2130 = vsel %vm1877, %v1805, %v1861
        %v2132 = vrot.slane %v2130, 3
        %v2135 = vsel %vm1865, %v1806, %v1862
        %v2136 = vsel %vm1869, %v1806, %v1862
        %v2138 = vrot.slane %v2136, 1
        %v2139 = vsel %vm1873, %v1806, %v1862
        %v2141 = vrot.slane %v2139, 2
        %v2144 = vsel %vm1865, %v1807, %v1863
        %v2145 = vsel %vm1869, %v1807, %v1863
        %v2147 = vrot.slane %v2145, 1
        %v2148 = vsel %vm1873, %v1807, %v1863
        %v2150 = vrot.slane %v2148, 2
        %v2151 = vsel %vm1877, %v1807, %v1863
        %v2153 = vrot.slane %v2151, 3
        %v2156 = vsel %vm1865, %v1808, %v1864
        %v2157 = vsel %vm1869, %v1808, %v1864
        %v2159 = vrot.slane %v2157, 1
        %v2160 = vsel %vm1873, %v1808, %v1864
        %v2162 = vrot.slane %v2160, 2
        %v2163 = vld [vmem:[%s1] sm:$0xf]
        %v2164 = vld [vmem:[%s1 + $0x4] sm:$0xf]
        %v2165 = vld [vmem:[%s1 + $0x8] sm:$0xf]
        %v2166 = vld [vmem:[%s1 + $0xc] sm:$0x3]
        %v2167 = vld [vmem:[%s2] sm:$0x1]
        %v2169 = vperm.slane %v2167, 0
        %2171 = vst [vmem:[#allocation1] ss:$9 sm:$0xff] %v1868
        %s2173 = scalar_lea.vmem [#allocation1], 1
        %2174 = vst [vmem:[%s2173] ss:$9 sm:$0xff] %v1872
        %s2176 = scalar_lea.vmem [#allocation1], 2
        %2177 = vst [vmem:[%s2176] ss:$9 sm:$0xff] %v1876
        %s2179 = scalar_lea.vmem [#allocation1], 3
        %2180 = vst [vmem:[%s2179] ss:$9 sm:$0xff] %v1880
        %s2181 = scalar_lea.vmem [#allocation1], 4
        %2182 = vst [vmem:[%s2181] ss:$9 sm:$0xff] %v1883
        %s2184 = scalar_lea.vmem [#allocation1], 5
        %2185 = vst [vmem:[%s2184] ss:$9 sm:$0xff] %v1886
        %s2187 = scalar_lea.vmem [#allocation1], 6
        %2188 = vst [vmem:[%s2187] ss:$9 sm:$0xff] %v1889
        %s2189 = scalar_lea.vmem [#allocation1], 7
        %2190 = vst [vmem:[%s2189] ss:$9 sm:$0xff] %v1892
        %v2191 = vld [vmem:[#allocation1] sm:$0xff]
        %2193 = vst [vmem:[#allocation1] ss:$9 sm:$0xff] %v1895
        %2195 = vst [vmem:[%s2173] ss:$9 sm:$0xff] %v1898
        %2197 = vst [vmem:[%s2176] ss:$9 sm:$0xff] %v1901
        %2198 = vst [vmem:[%s2179] ss:$9 sm:$0xff] %v1904
        %2200 = vst [vmem:[%s2181] ss:$9 sm:$0xff] %v1907
        %2202 = vst [vmem:[%s2184] ss:$9 sm:$0xff] %v1910
        %2203 = vst [vmem:[%s2187] ss:$9 sm:$0xff] %v1913
        %2205 = vst [vmem:[%s2189] ss:$9 sm:$0xff] %v1916
        %v2206 = vld [vmem:[#allocation1] sm:$0xff]
        %2208 = vst [vmem:[#allocation1] ss:$9 sm:$0xff] %v1919
        %2210 = vst [vmem:[%s2173] ss:$9 sm:$0xff] %v1922
        %2211 = vst [vmem:[%s2176] ss:$9 sm:$0xff] %v1925
        %2213 = vst [vmem:[%s2179] ss:$9 sm:$0xff] %v1928
        %2215 = vst [vmem:[%s2181] ss:$9 sm:$0xff] %v1931
        %2216 = vst [vmem:[%s2184] ss:$9 sm:$0xff] %v1934
        %2218 = vst [vmem:[%s2187] ss:$9 sm:$0xff] %v1937
        %2220 = vst [vmem:[%s2189] ss:$9 sm:$0xff] %v1940
        %v2221 = vld [vmem:[#allocation1] sm:$0xff]
        %2223 = vst [vmem:[#allocation1] ss:$9 sm:$0xff] %v1943
        %2224 = vst [vmem:[%s2173] ss:$9 sm:$0xff] %v1946
        %2226 = vst [vmem:[%s2176] ss:$9 sm:$0xff] %v1949
        %2228 = vst [vmem:[%s2179] ss:$9 sm:$0xff] %v1952
        %2229 = vst [vmem:[%s2181] ss:$9 sm:$0xff] %v1955
        %2231 = vst [vmem:[%s2184] ss:$9 sm:$0xff] %v1958
        %2233 = vst [vmem:[%s2187] ss:$9 sm:$0xff] %v1961
        %2235 = vst [vmem:[%s2189] ss:$9 sm:$0xff] %v1964
        %v2236 = vld [vmem:[#allocation1] sm:$0xff]
        %2237 = vst [vmem:[#allocation1] ss:$9 sm:$0xff] %v1967
        %2239 = vst [vmem:[%s2173] ss:$9 sm:$0xff] %v1970
        %2241 = vst [vmem:[%s2176] ss:$9 sm:$0xff] %v1973
        %2242 = vst [vmem:[%s2179] ss:$9 sm:$0xff] %v1976
        %2244 = vst [vmem:[%s2181] ss:$9 sm:$0xff] %v1979
        %2246 = vst [vmem:[%s2184] ss:$9 sm:$0xff] %v1982
        %2248 = vst [vmem:[%s2187] ss:$9 sm:$0xff] %v1985
        %2249 = vst [vmem:[%s2189] ss:$9 sm:$0xff] %v1988
        %v2250 = vld [vmem:[#allocation1] sm:$0xff]
        %2252 = vst [vmem:[#allocation1] ss:$9 sm:$0xff] %v1991
        %2254 = vst [vmem:[%s2173] ss:$9 sm:$0xff] %v1994
        %2255 = vst [vmem:[%s2176] ss:$9 sm:$0xff] %v1997
        %2257 = vst [vmem:[%s2179] ss:$9 sm:$0xff] %v2000
        %2259 = vst [vmem:[%s2181] ss:$9 sm:$0xff] %v2003
        %2261 = vst [vmem:[%s2184] ss:$9 sm:$0xff] %v2006
        %2262 = vst [vmem:[%s2187] ss:$9 sm:$0xff] %v2009
        %2264 = vst [vmem:[%s2189] ss:$9 sm:$0xff] %v2012
        %v2265 = vld [vmem:[#allocation1] sm:$0xff]
        %2267 = vst [vmem:[#allocation1] ss:$9 sm:$0xff] %v2015
        %2268 = vst [vmem:[%s2173] ss:$9 sm:$0xff] %v2018
        %2270 = vst [vmem:[%s2176] ss:$9 sm:$0xff] %v2021
        %2272 = vst [vmem:[%s2179] ss:$9 sm:$0xff] %v2024
        %2274 = vst [vmem:[%s2181] ss:$9 sm:$0xff] %v2027
        %2275 = vst [vmem:[%s2184] ss:$9 sm:$0xff] %v2030
        %2277 = vst [vmem:[%s2187] ss:$9 sm:$0xff] %v2033
        %2279 = vst [vmem:[%s2189] ss:$9 sm:$0xff] %v2036
        %v2280 = vld [vmem:[#allocation1] sm:$0xff]
        %2281 = vst [vmem:[#allocation1] ss:$9 sm:$0xff] %v2039
        %2283 = vst [vmem:[%s2173] ss:$9 sm:$0xff] %v2042
        %2285 = vst [vmem:[%s2176] ss:$9 sm:$0xff] %v2045
        %2287 = vst [vmem:[%s2179] ss:$9 sm:$0xff] %v2048
        %2288 = vst [vmem:[%s2181] ss:$9 sm:$0xff] %v2051
        %2290 = vst [vmem:[%s2184] ss:$9 sm:$0xff] %v2054
        %2292 = vst [vmem:[%s2187] ss:$9 sm:$0xff] %v2057
        %2293 = vst [vmem:[%s2189] ss:$9 sm:$0xff] %v2060
        %v2294 = vld [vmem:[#allocation1] sm:$0xff]
        %2296 = vst [vmem:[#allocation1] ss:$9 sm:$0xff] %v2063
        %2298 = vst [vmem:[%s2173] ss:$9 sm:$0xff] %v2066
        %2300 = vst [vmem:[%s2176] ss:$9 sm:$0xff] %v2069
        %2301 = vst [vmem:[%s2179] ss:$9 sm:$0xff] %v2072
        %2303 = vst [vmem:[%s2181] ss:$9 sm:$0xff] %v2075
        %2305 = vst [vmem:[%s2184] ss:$9 sm:$0xff] %v2078
        %2306 = vst [vmem:[%s2187] ss:$9 sm:$0xff] %v2081
        %2308 = vst [vmem:[%s2189] ss:$9 sm:$0xff] %v2084
        %v2309 = vld [vmem:[#allocation1] sm:$0xff]
        %2311 = vst [vmem:[#allocation1] ss:$9 sm:$0xff] %v2087
        %2313 = vst [vmem:[%s2173] ss:$9 sm:$0xff] %v2090
        %2314 = vst [vmem:[%s2176] ss:$9 sm:$0xff] %v2093
        %2316 = vst [vmem:[%s2179] ss:$9 sm:$0xff] %v2096
        %2318 = vst [vmem:[%s2181] ss:$9 sm:$0xff] %v2099
        %2319 = vst [vmem:[%s2184] ss:$9 sm:$0xff] %v2102
        %2321 = vst [vmem:[%s2187] ss:$9 sm:$0xff] %v2105
        %2323 = vst [vmem:[%s2189] ss:$9 sm:$0xff] %v2108
        %v2324 = vld [vmem:[#allocation1] sm:$0xff]
        %2326 = vst [vmem:[#allocation1] ss:$9 sm:$0xff] %v2111
        %2327 = vst [vmem:[%s2173] ss:$9 sm:$0xff] %v2114
        %2329 = vst [vmem:[%s2176] ss:$9 sm:$0xff] %v2117
        %2331 = vst [vmem:[%s2179] ss:$9 sm:$0xff] %v2120
        %2332 = vst [vmem:[%s2181] ss:$9 sm:$0xff] %v2123
        %2334 = vst [vmem:[%s2184] ss:$9 sm:$0xff] %v2126
        %2336 = vst [vmem:[%s2187] ss:$9 sm:$0xff] %v2129
        %2338 = vst [vmem:[%s2189] ss:$9 sm:$0xff] %v2132
        %v2339 = vld [vmem:[#allocation1] sm:$0xff]
        %2340 = vst [vmem:[#allocation1] ss:$9 sm:$0xff] %v2135
        %2342 = vst [vmem:[%s2173] ss:$9 sm:$0xff] %v2138
        %2344 = vst [vmem:[%s2176] ss:$9 sm:$0xff] %v2141
        %2345 = vst [vmem:[%s2179] ss:$9 sm:$0xff] %v2144
        %2347 = vst [vmem:[%s2181] ss:$9 sm:$0xff] %v2147
        %2349 = vst [vmem:[%s2184] ss:$9 sm:$0xff] %v2150
        %2351 = vst [vmem:[%s2187] ss:$9 sm:$0xff] %v2153
        %2352 = vst [vmem:[%s2189] ss:$9 sm:$0xff] %v2156
        %v2353 = vld [vmem:[#allocation1] sm:$0xff]
        %2355 = vst [vmem:[#allocation1] ss:$9 sm:$0xff] %v2159
        %2357 = vst [vmem:[%s2173] ss:$9 sm:$0xff] %v2162
        %v2358 = vld [vmem:[#allocation1] sm:$0xff]
        %v2363 = vunpack.c.l.b16 %v2163
        %v2364 = vunpack.c.l.b16 %v2164
        %v2365 = vunpack.c.l.b16 %v2165
        %v2366 = vunpack.c.l.b16 %v2166
        %v2367 = vpack.c.b16 %v2364, %v2363
        %v2368 = vpack.c.b16 %v2366, %v2365
        %vm2370 = vcmask 220160
        %v2371 = vsel %vm2370, %v2191, 0
        %v2373 = vsel %vm2370, %v2206, 0
        %v2375 = vsel %vm2370, %v2221, 0
        %v2377 = vsel %vm2370, %v2236, 0
        %v2379 = vsel %vm2370, %v2250, 0
        %v2381 = vsel %vm2370, %v2265, 0
        %v2383 = vsel %vm2370, %v2280, 0
        %v2385 = vsel %vm2370, %v2294, 0
        %v2387 = vsel %vm2370, %v2309, 0
        %v2389 = vsel %vm2370, %v2324, 0
        %v2391 = vsel %vm2370, %v2339, 0
        %v2393 = vsel %vm2370, %v2353, 0
        %v2395 = vsel %vm2370, %v2358, 0
        %vm2397 = vcmask 1044480
        %vm2398 = vcmask 1045504
        %v2399 = vsel %vm2397, 4294967295, 65535
        %v2400 = vsel %vm2398, %v2399, 0
        %v2402 = vand.u32 %v2368, %v2400
        %2404 = vmatpush.bf16.msra.mxu0 0
        %2405 = vmatpush.bf16.msra.mxu0 0
        %2406 = vmatpush.bf16.msra.mxu0 0
        %2407 = vmatpush.bf16.msra.mxu0 0
        %2408 = vmatpush.bf16.msra.mxu0 0
        %2409 = vmatpush.bf16.msra.mxu0 0
        %2410 = vmatpush.bf16.msra.mxu0 %v2402
        %2411 = vmatpush.bf16.msra.mxu0 %v2367
        %2412 = vmatmul.bf16.gmra.mxu0 %v2371
        %v2413 = vpop.f32.mrf.mxu0
        %v2414 = vadd.f32 %v2169, %v2413
        %v2415 = vpop.f32.mrf.mxu0
        %v2416 = vadd.f32 %v2169, %v2415
        %2417 = vmatmul.bf16.gmra.mxu0 %v2373
        %v2418 = vpop.f32.mrf.mxu0
        %v2419 = vadd.f32 %v2169, %v2418
        %v2420 = vpop.f32.mrf.mxu0
        %v2421 = vadd.f32 %v2169, %v2420
        %2422 = vmatmul.bf16.gmra.mxu0 %v2375
        %v2423 = vpop.f32.mrf.mxu0
        %v2424 = vadd.f32 %v2169, %v2423
        %v2425 = vpop.f32.mrf.mxu0
        %v2426 = vadd.f32 %v2169, %v2425
        %2427 = vmatmul.bf16.gmra.mxu0 %v2377
        %v2428 = vpop.f32.mrf.mxu0
        %v2429 = vadd.f32 %v2169, %v2428
        %v2430 = vpop.f32.mrf.mxu0
        %v2431 = vadd.f32 %v2169, %v2430
        %2432 = vmatmul.bf16.gmra.mxu0 %v2379
        %v2433 = vpop.f32.mrf.mxu0
        %v2434 = vadd.f32 %v2169, %v2433
        %v2435 = vpop.f32.mrf.mxu0
        %v2436 = vadd.f32 %v2169, %v2435
        %2437 = vmatmul.bf16.gmra.mxu0 %v2381
        %v2438 = vpop.f32.mrf.mxu0
        %v2439 = vadd.f32 %v2169, %v2438
        %v2440 = vpop.f32.mrf.mxu0
        %v2441 = vadd.f32 %v2169, %v2440
        %2442 = vmatmul.bf16.gmra.mxu0 %v2383
        %v2443 = vpop.f32.mrf.mxu0
        %v2444 = vadd.f32 %v2169, %v2443
        %v2445 = vpop.f32.mrf.mxu0
        %v2446 = vadd.f32 %v2169, %v2445
        %2447 = vmatmul.bf16.gmra.mxu0 %v2385
        %v2448 = vpop.f32.mrf.mxu0
        %v2449 = vadd.f32 %v2169, %v2448
        %v2450 = vpop.f32.mrf.mxu0
        %v2451 = vadd.f32 %v2169, %v2450
        %2452 = vmatmul.bf16.gmra.mxu0 %v2387
        %v2453 = vpop.f32.mrf.mxu0
        %v2454 = vadd.f32 %v2169, %v2453
        %v2455 = vpop.f32.mrf.mxu0
        %v2456 = vadd.f32 %v2169, %v2455
        %2457 = vmatmul.bf16.gmra.mxu0 %v2389
        %v2458 = vpop.f32.mrf.mxu0
        %v2459 = vadd.f32 %v2169, %v2458
        %v2460 = vpop.f32.mrf.mxu0
        %v2461 = vadd.f32 %v2169, %v2460
        %2462 = vmatmul.bf16.gmra.mxu0 %v2391
        %v2463 = vpop.f32.mrf.mxu0
        %v2464 = vadd.f32 %v2169, %v2463
        %v2465 = vpop.f32.mrf.mxu0
        %v2466 = vadd.f32 %v2169, %v2465
        %2467 = vmatmul.bf16.gmra.mxu0 %v2393
        %v2468 = vpop.f32.mrf.mxu0
        %v2469 = vadd.f32 %v2169, %v2468
        %v2470 = vpop.f32.mrf.mxu0
        %v2471 = vadd.f32 %v2169, %v2470
        %2472 = vmatmul.bf16.gmra.mxu0 %v2395
        %v2473 = vpop.f32.mrf.mxu0
        %v2474 = vadd.f32 %v2169, %v2473
        %v2475 = vpop.f32.mrf.mxu0
        %2476 = vdwg.mxu0
        %v2477 = vmax.f32 %v2414, 0.0
        %v2478 = vmax.f32 %v2416, 0.0
        %v2479 = vmax.f32 %v2419, 0.0
        %v2480 = vmax.f32 %v2421, 0.0
        %v2481 = vmax.f32 %v2424, 0.0
        %v2482 = vmax.f32 %v2426, 0.0
        %v2483 = vmax.f32 %v2429, 0.0
        %v2484 = vmax.f32 %v2431, 0.0
        %v2485 = vmax.f32 %v2434, 0.0
        %v2486 = vmax.f32 %v2436, 0.0
        %v2487 = vmax.f32 %v2439, 0.0
        %v2488 = vmax.f32 %v2441, 0.0
        %v2489 = vmax.f32 %v2444, 0.0
        %v2490 = vmax.f32 %v2446, 0.0
        %v2491 = vmax.f32 %v2449, 0.0
        %v2492 = vmax.f32 %v2451, 0.0
        %v2493 = vmax.f32 %v2454, 0.0
        %v2494 = vmax.f32 %v2456, 0.0
        %v2495 = vmax.f32 %v2459, 0.0
        %v2496 = vmax.f32 %v2461, 0.0
        %v2497 = vmax.f32 %v2464, 0.0
        %v2498 = vmax.f32 %v2466, 0.0
        %v2499 = vmax.f32 %v2469, 0.0
        %v2500 = vmax.f32 %v2471, 0.0
        %v2501 = vmax.f32 %v2474, 0.0
        %v2527 = vrot.slane %v2477, 2
        %v2528 = vrot.slane %v2477, 4
        %v2529 = vrot.slane %v2477, 6
        %v2530 = vrot.slane %v2478, 2
        %v2531 = vrot.slane %v2478, 4
        %v2532 = vrot.slane %v2478, 6
        %v2533 = vrot.slane %v2479, 2
        %v2534 = vrot.slane %v2479, 4
        %v2535 = vrot.slane %v2479, 6
        %v2536 = vrot.slane %v2480, 2
        %v2537 = vrot.slane %v2480, 4
        %v2538 = vrot.slane %v2480, 6
        %v2539 = vrot.slane %v2481, 2
        %v2540 = vrot.slane %v2481, 4
        %v2541 = vrot.slane %v2481, 6
        %v2542 = vrot.slane %v2482, 2
        %v2543 = vrot.slane %v2482, 4
        %v2544 = vrot.slane %v2482, 6
        %v2545 = vrot.slane %v2483, 2
        %v2546 = vrot.slane %v2483, 4
        %v2547 = vrot.slane %v2483, 6
        %v2548 = vrot.slane %v2484, 2
        %v2549 = vrot.slane %v2484, 4
        %v2550 = vrot.slane %v2484, 6
        %v2551 = vrot.slane %v2485, 2
        %v2552 = vrot.slane %v2485, 4
        %v2553 = vrot.slane %v2485, 6
        %v2554 = vrot.slane %v2486, 2
        %v2555 = vrot.slane %v2486, 4
        %v2556 = vrot.slane %v2486, 6
        %v2557 = vrot.slane %v2487, 2
        %v2558 = vrot.slane %v2487, 4
        %v2559 = vrot.slane %v2487, 6
        %v2560 = vrot.slane %v2488, 2
        %v2561 = vrot.slane %v2488, 4
        %v2562 = vrot.slane %v2488, 6
        %v2563 = vrot.slane %v2489, 2
        %v2564 = vrot.slane %v2489, 4
        %v2565 = vrot.slane %v2489, 6
        %v2566 = vrot.slane %v2490, 2
        %v2567 = vrot.slane %v2490, 4
        %v2568 = vrot.slane %v2490, 6
        %v2569 = vrot.slane %v2491, 2
        %v2570 = vrot.slane %v2491, 4
        %v2571 = vrot.slane %v2491, 6
        %v2572 = vrot.slane %v2492, 2
        %v2573 = vrot.slane %v2492, 4
        %v2574 = vrot.slane %v2492, 6
        %v2575 = vrot.slane %v2493, 2
        %v2576 = vrot.slane %v2493, 4
        %v2577 = vrot.slane %v2493, 6
        %v2578 = vrot.slane %v2494, 2
        %v2579 = vrot.slane %v2494, 4
        %v2580 = vrot.slane %v2494, 6
        %v2581 = vrot.slane %v2495, 2
        %v2582 = vrot.slane %v2495, 4
        %v2583 = vrot.slane %v2495, 6
        %v2584 = vrot.slane %v2496, 2
        %v2585 = vrot.slane %v2496, 4
        %v2586 = vrot.slane %v2496, 6
        %v2587 = vrot.slane %v2497, 2
        %v2588 = vrot.slane %v2497, 4
        %v2589 = vrot.slane %v2497, 6
        %v2590 = vrot.slane %v2498, 2
        %v2591 = vrot.slane %v2498, 4
        %v2592 = vrot.slane %v2498, 6
        %v2593 = vrot.slane %v2499, 2
        %v2594 = vrot.slane %v2499, 4
        %v2595 = vrot.slane %v2499, 6
        %v2596 = vrot.slane %v2500, 2
        %v2597 = vrot.slane %v2500, 4
        %v2598 = vrot.slane %v2500, 6
        %v2599 = vrot.slane %v2501, 2
        %2600 = vst [vmem:[#allocation1] ss:$4 sm:$0xff] %v2477
        %s2601 = scalar_lea.vmem [#allocation1], 1
        %2602 = vst [vmem:[%s2601] ss:$4 sm:$0xff] %v2527
        %s2603 = scalar_lea.vmem [#allocation1], 2
        %2604 = vst [vmem:[%s2603] ss:$4 sm:$0xff] %v2528
        %s2605 = scalar_lea.vmem [#allocation1], 3
        %2606 = vst [vmem:[%s2605] ss:$4 sm:$0xff] %v2529
        %s2607 = scalar_lea.vmem [#allocation1], 32
        %2608 = vst [vmem:[%s2607] ss:$4 sm:$0xff] %v2478
        %s2609 = scalar_lea.vmem [#allocation1], 33
        %2610 = vst [vmem:[%s2609] ss:$4 sm:$0xff] %v2530
        %v2611 = vld.sshfl [vmem:[#allocation1] sm:$0xff pattern:$0x73625140]
        %v2612 = vld.sshfl [vmem:[#allocation1 + $0x20] sm:$0xff pattern:$0x73625140]
        %2613 = vst [vmem:[#allocation1] ss:$4 sm:$0xff] %v2532
        %2614 = vst [vmem:[%s2601] ss:$4 sm:$0xff] %v2479
        %2615 = vst [vmem:[%s2603] ss:$4 sm:$0xff] %v2533
        %2616 = vst [vmem:[%s2605] ss:$4 sm:$0xff] %v2534
        %2617 = vst [vmem:[%s2607] ss:$4 sm:$0xff] %v2535
        %2618 = vst [vmem:[%s2609] ss:$4 sm:$0xff] %v2480
        %v2619 = vld.sshfl [vmem:[#allocation1] sm:$0xff pattern:$0x73625140]
        %v2620 = vld.sshfl [vmem:[#allocation1 + $0x20] sm:$0xff pattern:$0x73625140]
        %2621 = vst [vmem:[#allocation1] ss:$4 sm:$0xff] %v2537
        %2622 = vst [vmem:[%s2601] ss:$4 sm:$0xff] %v2538
        %2623 = vst [vmem:[%s2603] ss:$4 sm:$0xff] %v2481
        %2624 = vst [vmem:[%s2605] ss:$4 sm:$0xff] %v2539
        %2625 = vst [vmem:[%s2607] ss:$4 sm:$0xff] %v2540
        %2626 = vst [vmem:[%s2609] ss:$4 sm:$0xff] %v2541
        %v2627 = vld.sshfl [vmem:[#allocation1] sm:$0xff pattern:$0x73625140]
        %v2628 = vld.sshfl [vmem:[#allocation1 + $0x20] sm:$0xff pattern:$0x73625140]
        %2629 = vst [vmem:[#allocation1] ss:$4 sm:$0xff] %v2542
        %2630 = vst [vmem:[%s2601] ss:$4 sm:$0xff] %v2543
        %2631 = vst [vmem:[%s2603] ss:$4 sm:$0xff] %v2544
        %2632 = vst [vmem:[%s2605] ss:$4 sm:$0xff] %v2483
        %2633 = vst [vmem:[%s2607] ss:$4 sm:$0xff] %v2545
        %2634 = vst [vmem:[%s2609] ss:$4 sm:$0xff] %v2546
        %v2635 = vld.sshfl [vmem:[#allocation1] sm:$0xff pattern:$0x73625140]
        %v2636 = vld.sshfl [vmem:[#allocation1 + $0x20] sm:$0xff pattern:$0x73625140]
        %2637 = vst [vmem:[#allocation1] ss:$4 sm:$0xff] %v2484
        %2638 = vst [vmem:[%s2601] ss:$4 sm:$0xff] %v2548
        %2639 = vst [vmem:[%s2603] ss:$4 sm:$0xff] %v2549
        %2640 = vst [vmem:[%s2605] ss:$4 sm:$0xff] %v2550
        %2641 = vst [vmem:[%s2607] ss:$4 sm:$0xff] %v2485
        %2642 = vst [vmem:[%s2609] ss:$4 sm:$0xff] %v2551
        %v2643 = vld.sshfl [vmem:[#allocation1] sm:$0xff pattern:$0x73625140]
        %v2644 = vld.sshfl [vmem:[#allocation1 + $0x20] sm:$0xff pattern:$0x73625140]
        %2645 = vst [vmem:[#allocation1] ss:$4 sm:$0xff] %v2553
        %2646 = vst [vmem:[%s2601] ss:$4 sm:$0xff] %v2486
        %2647 = vst [vmem:[%s2603] ss:$4 sm:$0xff] %v2554
        %2648 = vst [vmem:[%s2605] ss:$4 sm:$0xff] %v2555
        %2649 = vst [vmem:[%s2607] ss:$4 sm:$0xff] %v2556
        %2650 = vst [vmem:[%s2609] ss:$4 sm:$0xff] %v2487
        %v2651 = vld.sshfl [vmem:[#allocation1] sm:$0xff pattern:$0x73625140]
        %v2652 = vld.sshfl [vmem:[#allocation1 + $0x20] sm:$0xff pattern:$0x73625140]
        %2653 = vst [vmem:[#allocation1] ss:$4 sm:$0xff] %v2558
        %2654 = vst [vmem:[%s2601] ss:$4 sm:$0xff] %v2559
        %2655 = vst [vmem:[%s2603] ss:$4 sm:$0xff] %v2488
        %2656 = vst [vmem:[%s2605] ss:$4 sm:$0xff] %v2560
        %2657 = vst [vmem:[%s2607] ss:$4 sm:$0xff] %v2561
        %2658 = vst [vmem:[%s2609] ss:$4 sm:$0xff] %v2562
        %v2659 = vld.sshfl [vmem:[#allocation1] sm:$0xff pattern:$0x73625140]
        %v2660 = vld.sshfl [vmem:[#allocation1 + $0x20] sm:$0xff pattern:$0x73625140]
        %2661 = vst [vmem:[#allocation1] ss:$4 sm:$0xff] %v2563
        %2662 = vst [vmem:[%s2601] ss:$4 sm:$0xff] %v2564
        %2663 = vst [vmem:[%s2603] ss:$4 sm:$0xff] %v2565
        %2664 = vst [vmem:[%s2605] ss:$4 sm:$0xff] %v2490
        %2665 = vst [vmem:[%s2607] ss:$4 sm:$0xff] %v2566
        %2666 = vst [vmem:[%s2609] ss:$4 sm:$0xff] %v2567
        %v2667 = vld.sshfl [vmem:[#allocation1] sm:$0xff pattern:$0x73625140]
        %v2668 = vld.sshfl [vmem:[#allocation1 + $0x20] sm:$0xff pattern:$0x73625140]
        %2669 = vst [vmem:[#allocation1] ss:$4 sm:$0xff] %v2491
        %2670 = vst [vmem:[%s2601] ss:$4 sm:$0xff] %v2569
        %2671 = vst [vmem:[%s2603] ss:$4 sm:$0xff] %v2570
        %2672 = vst [vmem:[%s2605] ss:$4 sm:$0xff] %v2571
        %2673 = vst [vmem:[%s2607] ss:$4 sm:$0xff] %v2492
        %2674 = vst [vmem:[%s2609] ss:$4 sm:$0xff] %v2572
        %v2675 = vld.sshfl [vmem:[#allocation1] sm:$0xff pattern:$0x73625140]
        %v2676 = vld.sshfl [vmem:[#allocation1 + $0x20] sm:$0xff pattern:$0x73625140]
        %2677 = vst [vmem:[#allocation1] ss:$4 sm:$0xff] %v2574
        %2678 = vst [vmem:[%s2601] ss:$4 sm:$0xff] %v2493
        %2679 = vst [vmem:[%s2603] ss:$4 sm:$0xff] %v2575
        %2680 = vst [vmem:[%s2605] ss:$4 sm:$0xff] %v2576
        %2681 = vst [vmem:[%s2607] ss:$4 sm:$0xff] %v2577
        %2682 = vst [vmem:[%s2609] ss:$4 sm:$0xff] %v2494
        %v2683 = vld.sshfl [vmem:[#allocation1] sm:$0xff pattern:$0x73625140]
        %v2684 = vld.sshfl [vmem:[#allocation1 + $0x20] sm:$0xff pattern:$0x73625140]
        %2685 = vst [vmem:[#allocation1] ss:$4 sm:$0xff] %v2579
        %2686 = vst [vmem:[%s2601] ss:$4 sm:$0xff] %v2580
        %2687 = vst [vmem:[%s2603] ss:$4 sm:$0xff] %v2495
        %2688 = vst [vmem:[%s2605] ss:$4 sm:$0xff] %v2581
        %2689 = vst [vmem:[%s2607] ss:$4 sm:$0xff] %v2582
        %2690 = vst [vmem:[%s2609] ss:$4 sm:$0xff] %v2583
        %v2691 = vld.sshfl [vmem:[#allocation1] sm:$0xff pattern:$0x73625140]
        %v2692 = vld.sshfl [vmem:[#allocation1 + $0x20] sm:$0xff pattern:$0x73625140]
        %2693 = vst [vmem:[#allocation1] ss:$4 sm:$0xff] %v2584
        %2694 = vst [vmem:[%s2601] ss:$4 sm:$0xff] %v2585
        %2695 = vst [vmem:[%s2603] ss:$4 sm:$0xff] %v2586
        %2696 = vst [vmem:[%s2605] ss:$4 sm:$0xff] %v2497
        %2697 = vst [vmem:[%s2607] ss:$4 sm:$0xff] %v2587
        %2698 = vst [vmem:[%s2609] ss:$4 sm:$0xff] %v2588
        %v2699 = vld.sshfl [vmem:[#allocation1] sm:$0xff pattern:$0x73625140]
        %v2700 = vld.sshfl [vmem:[#allocation1 + $0x20] sm:$0xff pattern:$0x73625140]
        %v2725 = vpack.c.bf16 %v2611, %v2611
        %v2726 = vpack.c.bf16 %v2612, %v2612
        %v2727 = vpack.c.bf16 %v2619, %v2619
        %v2728 = vpack.c.bf16 %v2620, %v2620
        %v2729 = vpack.c.bf16 %v2627, %v2627
        %v2730 = vpack.c.bf16 %v2628, %v2628
        %v2731 = vpack.c.bf16 %v2635, %v2635
        %v2732 = vpack.c.bf16 %v2636, %v2636
        %v2733 = vpack.c.bf16 %v2643, %v2643
        %v2734 = vpack.c.bf16 %v2644, %v2644
        %v2735 = vpack.c.bf16 %v2651, %v2651
        %v2736 = vpack.c.bf16 %v2652, %v2652
        %v2737 = vpack.c.bf16 %v2659, %v2659
        %v2738 = vpack.c.bf16 %v2660, %v2660
        %v2739 = vpack.c.bf16 %v2667, %v2667
        %v2740 = vpack.c.bf16 %v2668, %v2668
        %v2741 = vpack.c.bf16 %v2675, %v2675
        %v2742 = vpack.c.bf16 %v2676, %v2676
        %v2743 = vpack.c.bf16 %v2683, %v2683
        %v2744 = vpack.c.bf16 %v2684, %v2684
        %v2745 = vpack.c.bf16 %v2691, %v2691
        %v2746 = vpack.c.bf16 %v2692, %v2692
        %v2747 = vpack.c.bf16 %v2699, %v2699
        %v2748 = vpack.c.bf16 %v2700, %v2700
        %vm2749 = vcmask 257024
        %2750 = vst.msk [vmem:[#allocation3] sm:$0xf] %vm2749, %v2725
        %vm2751 = vcmask 254976
        %2752 = vst.msk [vmem:[#allocation3 + $0xc] sm:$0x3] %vm2751, %v2726
        %2753 = vst.msk [vmem:[#allocation3 + $0x18] sm:$0xf] %vm2749, %v2727
        %2754 = vst.msk [vmem:[#allocation3 + $0x24] sm:$0x3] %vm2751, %v2728
        %2755 = vst.msk [vmem:[#allocation3 + $0x30] sm:$0xf] %vm2749, %v2729
        %2756 = vst.msk [vmem:[#allocation3 + $0x3c] sm:$0x3] %vm2751, %v2730
        %2757 = vst.msk [vmem:[#allocation3 + $0x48] sm:$0xf] %vm2749, %v2731
        %2758 = vst.msk [vmem:[#allocation3 + $0x54] sm:$0x3] %vm2751, %v2732
        %2759 = vst.msk [vmem:[#allocation3 + $0x60] sm:$0xf] %vm2749, %v2733
        %2760 = vst.msk [vmem:[#allocation3 + $0x6c] sm:$0x3] %vm2751, %v2734
        %2761 = vst.msk [vmem:[#allocation3 + $0x78] sm:$0xf] %vm2749, %v2735
        %2762 = vst.msk [vmem:[#allocation3 + $0x84] sm:$0x3] %vm2751, %v2736
        %2763 = vst.msk [vmem:[#allocation3 + $0x90] sm:$0xf] %vm2749, %v2737
        %2764 = vst.msk [vmem:[#allocation3 + $0x9c] sm:$0x3] %vm2751, %v2738
        %2765 = vst.msk [vmem:[#allocation3 + $0xa8] sm:$0xf] %vm2749, %v2739
        %2766 = vst.msk [vmem:[#allocation3 + $0xb4] sm:$0x3] %vm2751, %v2740
        %2767 = vst.msk [vmem:[#allocation3 + $0xc0] sm:$0xf] %vm2749, %v2741
        %2768 = vst.msk [vmem:[#allocation3 + $0xcc] sm:$0x3] %vm2751, %v2742
        %2769 = vst.msk [vmem:[#allocation3 + $0xd8] sm:$0xf] %vm2749, %v2743
        %2770 = vst.msk [vmem:[#allocation3 + $0xe4] sm:$0x3] %vm2751, %v2744
        %2771 = vst.msk [vmem:[#allocation3 + $0xf0] sm:$0xf] %vm2749, %v2745
        %2772 = vst.msk [vmem:[#allocation3 + $0xfc] sm:$0x3] %vm2751, %v2746
        %2773 = vst.msk [vmem:[#allocation3 + $0x108] sm:$0xf] %vm2749, %v2747
        %2774 = vst.msk [vmem:[#allocation3 + $0x114] sm:$0x3] %vm2751, %v2748
        %2775 = vst [vmem:[#allocation1] ss:$4 sm:$0xff] %v2477
        %s2776 = scalar_lea.vmem [#allocation1], 1
        %2777 = vst [vmem:[%s2776] ss:$4 sm:$0xff] %v2527
        %s2778 = scalar_lea.vmem [#allocation1], 2
        %2779 = vst [vmem:[%s2778] ss:$4 sm:$0xff] %v2528
        %s2780 = scalar_lea.vmem [#allocation1], 3
        %2781 = vst [vmem:[%s2780] ss:$4 sm:$0xff] %v2529
        %s2782 = scalar_lea.vmem [#allocation1], 32
        %2783 = vst [vmem:[%s2782] ss:$4 sm:$0xff] %v2478
        %s2784 = scalar_lea.vmem [#allocation1], 33
        %2785 = vst [vmem:[%s2784] ss:$4 sm:$0xff] %v2530
        %s2786 = scalar_lea.vmem [#allocation1], 34
        %2787 = vst [vmem:[%s2786] ss:$4 sm:$0xff] %v2531
        %v2788 = vld.sshfl [vmem:[#allocation1] sm:$0xff pattern:$0x73625140]
        %v2789 = vld.sshfl [vmem:[#allocation1 + $0x20] sm:$0xff pattern:$0x73625140]
        %2790 = vst [vmem:[#allocation1] ss:$4 sm:$0xff] %v2532
        %2791 = vst [vmem:[%s2776] ss:$4 sm:$0xff] %v2479
        %2792 = vst [vmem:[%s2778] ss:$4 sm:$0xff] %v2533
        %2793 = vst [vmem:[%s2780] ss:$4 sm:$0xff] %v2534
        %2794 = vst [vmem:[%s2782] ss:$4 sm:$0xff] %v2535
        %2795 = vst [vmem:[%s2784] ss:$4 sm:$0xff] %v2480
        %2796 = vst [vmem:[%s2786] ss:$4 sm:$0xff] %v2536
        %v2797 = vld.sshfl [vmem:[#allocation1] sm:$0xff pattern:$0x73625140]
        %v2798 = vld.sshfl [vmem:[#allocation1 + $0x20] sm:$0xff pattern:$0x73625140]
        %2799 = vst [vmem:[#allocation1] ss:$4 sm:$0xff] %v2537
        %2800 = vst [vmem:[%s2776] ss:$4 sm:$0xff] %v2538
        %2801 = vst [vmem:[%s2778] ss:$4 sm:$0xff] %v2481
        %2802 = vst [vmem:[%s2780] ss:$4 sm:$0xff] %v2539
        %2803 = vst [vmem:[%s2782] ss:$4 sm:$0xff] %v2540
        %2804 = vst [vmem:[%s2784] ss:$4 sm:$0xff] %v2541
        %2805 = vst [vmem:[%s2786] ss:$4 sm:$0xff] %v2482
        %v2806 = vld.sshfl [vmem:[#allocation1] sm:$0xff pattern:$0x73625140]
        %v2807 = vld.sshfl [vmem:[#allocation1 + $0x20] sm:$0xff pattern:$0x73625140]
        %2808 = vst [vmem:[#allocation1] ss:$4 sm:$0xff] %v2542
        %2809 = vst [vmem:[%s2776] ss:$4 sm:$0xff] %v2543
        %2810 = vst [vmem:[%s2778] ss:$4 sm:$0xff] %v2544
        %2811 = vst [vmem:[%s2780] ss:$4 sm:$0xff] %v2483
        %2812 = vst [vmem:[%s2782] ss:$4 sm:$0xff] %v2545
        %2813 = vst [vmem:[%s2784] ss:$4 sm:$0xff] %v2546
        %2814 = vst [vmem:[%s2786] ss:$4 sm:$0xff] %v2547
        %v2815 = vld.sshfl [vmem:[#allocation1] sm:$0xff pattern:$0x73625140]
        %v2816 = vld.sshfl [vmem:[#allocation1 + $0x20] sm:$0xff pattern:$0x73625140]
        %2817 = vst [vmem:[#allocation1] ss:$4 sm:$0xff] %v2484
        %2818 = vst [vmem:[%s2776] ss:$4 sm:$0xff] %v2548
        %2819 = vst [vmem:[%s2778] ss:$4 sm:$0xff] %v2549
        %2820 = vst [vmem:[%s2780] ss:$4 sm:$0xff] %v2550
        %2821 = vst [vmem:[%s2782] ss:$4 sm:$0xff] %v2485
        %2822 = vst [vmem:[%s2784] ss:$4 sm:$0xff] %v2551
        %2823 = vst [vmem:[%s2786] ss:$4 sm:$0xff] %v2552
        %v2824 = vld.sshfl [vmem:[#allocation1] sm:$0xff pattern:$0x73625140]
        %v2825 = vld.sshfl [vmem:[#allocation1 + $0x20] sm:$0xff pattern:$0x73625140]
        %2826 = vst [vmem:[#allocation1] ss:$4 sm:$0xff] %v2553
        %2827 = vst [vmem:[%s2776] ss:$4 sm:$0xff] %v2486
        %2828 = vst [vmem:[%s2778] ss:$4 sm:$0xff] %v2554
        %2829 = vst [vmem:[%s2780] ss:$4 sm:$0xff] %v2555
        %2830 = vst [vmem:[%s2782] ss:$4 sm:$0xff] %v2556
        %2831 = vst [vmem:[%s2784] ss:$4 sm:$0xff] %v2487
        %2832 = vst [vmem:[%s2786] ss:$4 sm:$0xff] %v2557
        %v2833 = vld.sshfl [vmem:[#allocation1] sm:$0xff pattern:$0x73625140]
        %v2834 = vld.sshfl [vmem:[#allocation1 + $0x20] sm:$0xff pattern:$0x73625140]
        %2835 = vst [vmem:[#allocation1] ss:$4 sm:$0xff] %v2558
        %2836 = vst [vmem:[%s2776] ss:$4 sm:$0xff] %v2559
        %2837 = vst [vmem:[%s2778] ss:$4 sm:$0xff] %v2488
        %2838 = vst [vmem:[%s2780] ss:$4 sm:$0xff] %v2560
        %2839 = vst [vmem:[%s2782] ss:$4 sm:$0xff] %v2561
        %2840 = vst [vmem:[%s2784] ss:$4 sm:$0xff] %v2562
        %2841 = vst [vmem:[%s2786] ss:$4 sm:$0xff] %v2489
        %v2842 = vld.sshfl [vmem:[#allocation1] sm:$0xff pattern:$0x73625140]
        %v2843 = vld.sshfl [vmem:[#allocation1 + $0x20] sm:$0xff pattern:$0x73625140]
        %2844 = vst [vmem:[#allocation1] ss:$4 sm:$0xff] %v2563
        %2845 = vst [vmem:[%s2776] ss:$4 sm:$0xff] %v2564
        %2846 = vst [vmem:[%s2778] ss:$4 sm:$0xff] %v2565
        %2847 = vst [vmem:[%s2780] ss:$4 sm:$0xff] %v2490
        %2848 = vst [vmem:[%s2782] ss:$4 sm:$0xff] %v2566
        %2849 = vst [vmem:[%s2784] ss:$4 sm:$0xff] %v2567
        %2850 = vst [vmem:[%s2786] ss:$4 sm:$0xff] %v2568
        %v2851 = vld.sshfl [vmem:[#allocation1] sm:$0xff pattern:$0x73625140]
        %v2852 = vld.sshfl [vmem:[#allocation1 + $0x20] sm:$0xff pattern:$0x73625140]
        %2853 = vst [vmem:[#allocation1] ss:$4 sm:$0xff] %v2491
        %2854 = vst [vmem:[%s2776] ss:$4 sm:$0xff] %v2569
        %2855 = vst [vmem:[%s2778] ss:$4 sm:$0xff] %v2570
        %2856 = vst [vmem:[%s2780] ss:$4 sm:$0xff] %v2571
        %2857 = vst [vmem:[%s2782] ss:$4 sm:$0xff] %v2492
        %2858 = vst [vmem:[%s2784] ss:$4 sm:$0xff] %v2572
        %2859 = vst [vmem:[%s2786] ss:$4 sm:$0xff] %v2573
        %v2860 = vld.sshfl [vmem:[#allocation1] sm:$0xff pattern:$0x73625140]
        %v2861 = vld.sshfl [vmem:[#allocation1 + $0x20] sm:$0xff pattern:$0x73625140]
        %2862 = vst [vmem:[#allocation1] ss:$4 sm:$0xff] %v2574
        %2863 = vst [vmem:[%s2776] ss:$4 sm:$0xff] %v2493
        %2864 = vst [vmem:[%s2778] ss:$4 sm:$0xff] %v2575
        %2865 = vst [vmem:[%s2780] ss:$4 sm:$0xff] %v2576
        %2866 = vst [vmem:[%s2782] ss:$4 sm:$0xff] %v2577
        %2867 = vst [vmem:[%s2784] ss:$4 sm:$0xff] %v2494
        %2868 = vst [vmem:[%s2786] ss:$4 sm:$0xff] %v2578
        %v2869 = vld.sshfl [vmem:[#allocation1] sm:$0xff pattern:$0x73625140]
        %v2870 = vld.sshfl [vmem:[#allocation1 + $0x20] sm:$0xff pattern:$0x73625140]
        %2871 = vst [vmem:[#allocation1] ss:$4 sm:$0xff] %v2579
        %2872 = vst [vmem:[%s2776] ss:$4 sm:$0xff] %v2580
        %2873 = vst [vmem:[%s2778] ss:$4 sm:$0xff] %v2495
        %2874 = vst [vmem:[%s2780] ss:$4 sm:$0xff] %v2581
        %2875 = vst [vmem:[%s2782] ss:$4 sm:$0xff] %v2582
        %2876 = vst [vmem:[%s2784] ss:$4 sm:$0xff] %v2583
        %2877 = vst [vmem:[%s2786] ss:$4 sm:$0xff] %v2496
        %v2878 = vld.sshfl [vmem:[#allocation1] sm:$0xff pattern:$0x73625140]
        %v2879 = vld.sshfl [vmem:[#allocation1 + $0x20] sm:$0xff pattern:$0x73625140]
        %2880 = vst [vmem:[#allocation1] ss:$4 sm:$0xff] %v2584
        %2881 = vst [vmem:[%s2776] ss:$4 sm:$0xff] %v2585
        %2882 = vst [vmem:[%s2778] ss:$4 sm:$0xff] %v2586
        %2883 = vst [vmem:[%s2780] ss:$4 sm:$0xff] %v2497
        %2884 = vst [vmem:[%s2782] ss:$4 sm:$0xff] %v2587
        %2885 = vst [vmem:[%s2784] ss:$4 sm:$0xff] %v2588
        %2886 = vst [vmem:[%s2786] ss:$4 sm:$0xff] %v2589
        %v2887 = vld.sshfl [vmem:[#allocation1] sm:$0xff pattern:$0x73625140]
        %v2888 = vld.sshfl [vmem:[#allocation1 + $0x20] sm:$0xff pattern:$0x73625140]
        %v2913 = vpack.c.bf16 %v2788, %v2788
        %v2914 = vpack.c.bf16 %v2789, %v2789
        %v2915 = vpack.c.bf16 %v2797, %v2797
        %v2916 = vpack.c.bf16 %v2798, %v2798
        %v2917 = vpack.c.bf16 %v2806, %v2806
        %v2918 = vpack.c.bf16 %v2807, %v2807
        %v2919 = vpack.c.bf16 %v2815, %v2815
        %v2920 = vpack.c.bf16 %v2816, %v2816
        %v2921 = vpack.c.bf16 %v2824, %v2824
        %v2922 = vpack.c.bf16 %v2825, %v2825
        %v2923 = vpack.c.bf16 %v2833, %v2833
        %v2924 = vpack.c.bf16 %v2834, %v2834
        %v2925 = vpack.c.bf16 %v2842, %v2842
        %v2926 = vpack.c.bf16 %v2843, %v2843
        %v2927 = vpack.c.bf16 %v2851, %v2851
        %v2928 = vpack.c.bf16 %v2852, %v2852
        %v2929 = vpack.c.bf16 %v2860, %v2860
        %v2930 = vpack.c.bf16 %v2861, %v2861
        %v2931 = vpack.c.bf16 %v2869, %v2869
        %v2932 = vpack.c.bf16 %v2870, %v2870
        %v2933 = vpack.c.bf16 %v2878, %v2878
        %v2934 = vpack.c.bf16 %v2879, %v2879
        %v2935 = vpack.c.bf16 %v2887, %v2887
        %v2936 = vpack.c.bf16 %v2888, %v2888
        %v2938 = vshrl.u32 %v2913, 16
        %v2940 = vrot.slane %v2938, 4
        %v2941 = vshll.u32 %v2913, 16
        %v2943 = vrot.slane %v2941, 5
        %v2944 = vor.u32 %v2940, %v2943
        %v2945 = vrot.slane %v2944, 4
        %v2947 = vshll.u32 %v2914, 16
        %v2949 = vrot.slane %v2947, 5
        %v2950 = vsel %vm449, %v2945, %v2949
        %v2951 = vshrl.u32 %v2914, 16
        %v2953 = vrot.slane %v2951, 4
        %v2954 = vor.u32 %v2953, %v2949
        %v2955 = vrot.slane %v2954, 4
        %v2957 = vshrl.u32 %v2915, 16
        %v2959 = vrot.slane %v2957, 4
        %v2960 = vshll.u32 %v2915, 16
        %v2962 = vrot.slane %v2960, 5
        %v2963 = vor.u32 %v2959, %v2962
        %v2964 = vrot.slane %v2963, 4
        %v2966 = vshll.u32 %v2916, 16
        %v2968 = vrot.slane %v2966, 5
        %v2969 = vsel %vm449, %v2964, %v2968
        %v2970 = vshrl.u32 %v2916, 16
        %v2972 = vrot.slane %v2970, 4
        %v2973 = vor.u32 %v2972, %v2968
        %v2974 = vrot.slane %v2973, 4
        %v2976 = vshrl.u32 %v2917, 16
        %v2978 = vrot.slane %v2976, 4
        %v2979 = vshll.u32 %v2917, 16
        %v2981 = vrot.slane %v2979, 5
        %v2982 = vor.u32 %v2978, %v2981
        %v2983 = vrot.slane %v2982, 4
        %v2985 = vshll.u32 %v2918, 16
        %v2987 = vrot.slane %v2985, 5
        %v2988 = vsel %vm449, %v2983, %v2987
        %v2989 = vshrl.u32 %v2918, 16
        %v2991 = vrot.slane %v2989, 4
        %v2992 = vor.u32 %v2991, %v2987
        %v2993 = vrot.slane %v2992, 4
        %v2995 = vshrl.u32 %v2919, 16
        %v2997 = vrot.slane %v2995, 4
        %v2998 = vshll.u32 %v2919, 16
        %v3000 = vrot.slane %v2998, 5
        %v3001 = vor.u32 %v2997, %v3000
        %v3002 = vrot.slane %v3001, 4
        %v3004 = vshll.u32 %v2920, 16
        %v3006 = vrot.slane %v3004, 5
        %v3007 = vsel %vm449, %v3002, %v3006
        %v3008 = vshrl.u32 %v2920, 16
        %v3010 = vrot.slane %v3008, 4
        %v3011 = vor.u32 %v3010, %v3006
        %v3012 = vrot.slane %v3011, 4
        %v3014 = vshrl.u32 %v2921, 16
        %v3016 = vrot.slane %v3014, 4
        %v3017 = vshll.u32 %v2921, 16
        %v3019 = vrot.slane %v3017, 5
        %v3020 = vor.u32 %v3016, %v3019
        %v3021 = vrot.slane %v3020, 4
        %v3023 = vshll.u32 %v2922, 16
        %v3025 = vrot.slane %v3023, 5
        %v3026 = vsel %vm449, %v3021, %v3025
        %v3027 = vshrl.u32 %v2922, 16
        %v3029 = vrot.slane %v3027, 4
        %v3030 = vor.u32 %v3029, %v3025
        %v3031 = vrot.slane %v3030, 4
        %v3033 = vshrl.u32 %v2923, 16
        %v3035 = vrot.slane %v3033, 4
        %v3036 = vshll.u32 %v2923, 16
        %v3038 = vrot.slane %v3036, 5
        %v3039 = vor.u32 %v3035, %v3038
        %v3040 = vrot.slane %v3039, 4
        %v3042 = vshll.u32 %v2924, 16
        %v3044 = vrot.slane %v3042, 5
        %v3045 = vsel %vm449, %v3040, %v3044
        %v3046 = vshrl.u32 %v2924, 16
        %v3048 = vrot.slane %v3046, 4
        %v3049 = vor.u32 %v3048, %v3044
        %v3050 = vrot.slane %v3049, 4
        %v3052 = vshrl.u32 %v2925, 16
        %v3054 = vrot.slane %v3052, 4
        %v3055 = vshll.u32 %v2925, 16
        %v3057 = vrot.slane %v3055, 5
        %v3058 = vor.u32 %v3054, %v3057
        %v3059 = vrot.slane %v3058, 4
        %v3061 = vshll.u32 %v2926, 16
        %v3063 = vrot.slane %v3061, 5
        %v3064 = vsel %vm449, %v3059, %v3063
        %v3065 = vshrl.u32 %v2926, 16
        %v3067 = vrot.slane %v3065, 4
        %v3068 = vor.u32 %v3067, %v3063
        %v3069 = vrot.slane %v3068, 4
        %v3071 = vshrl.u32 %v2927, 16
        %v3073 = vrot.slane %v3071, 4
        %v3074 = vshll.u32 %v2927, 16
        %v3076 = vrot.slane %v3074, 5
        %v3077 = vor.u32 %v3073, %v3076
        %v3078 = vrot.slane %v3077, 4
        %v3080 = vshll.u32 %v2928, 16
        %v3082 = vrot.slane %v3080, 5
        %v3083 = vsel %vm449, %v3078, %v3082
        %v3084 = vshrl.u32 %v2928, 16
        %v3086 = vrot.slane %v3084, 4
        %v3087 = vor.u32 %v3086, %v3082
        %v3088 = vrot.slane %v3087, 4
        %v3090 = vshrl.u32 %v2929, 16
        %v3092 = vrot.slane %v3090, 4
        %v3093 = vshll.u32 %v2929, 16
        %v3095 = vrot.slane %v3093, 5
        %v3096 = vor.u32 %v3092, %v3095
        %v3097 = vrot.slane %v3096, 4
        %v3099 = vshll.u32 %v2930, 16
        %v3101 = vrot.slane %v3099, 5
        %v3102 = vsel %vm449, %v3097, %v3101
        %v3103 = vshrl.u32 %v2930, 16
        %v3105 = vrot.slane %v3103, 4
        %v3106 = vor.u32 %v3105, %v3101
        %v3107 = vrot.slane %v3106, 4
        %v3109 = vshrl.u32 %v2931, 16
        %v3111 = vrot.slane %v3109, 4
        %v3112 = vshll.u32 %v2931, 16
        %v3114 = vrot.slane %v3112, 5
        %v3115 = vor.u32 %v3111, %v3114
        %v3116 = vrot.slane %v3115, 4
        %v3118 = vshll.u32 %v2932, 16
        %v3120 = vrot.slane %v3118, 5
        %v3121 = vsel %vm449, %v3116, %v3120
        %v3122 = vshrl.u32 %v2932, 16
        %v3124 = vrot.slane %v3122, 4
        %v3125 = vor.u32 %v3124, %v3120
        %v3126 = vrot.slane %v3125, 4
        %v3128 = vshrl.u32 %v2933, 16
        %v3130 = vrot.slane %v3128, 4
        %v3131 = vshll.u32 %v2933, 16
        %v3133 = vrot.slane %v3131, 5
        %v3134 = vor.u32 %v3130, %v3133
        %v3135 = vrot.slane %v3134, 4
        %v3137 = vshll.u32 %v2934, 16
        %v3139 = vrot.slane %v3137, 5
        %v3140 = vsel %vm449, %v3135, %v3139
        %v3141 = vshrl.u32 %v2934, 16
        %v3143 = vrot.slane %v3141, 4
        %v3144 = vor.u32 %v3143, %v3139
        %v3145 = vrot.slane %v3144, 4
        %v3147 = vshrl.u32 %v2935, 16
        %v3149 = vrot.slane %v3147, 4
        %v3150 = vshll.u32 %v2935, 16
        %v3152 = vrot.slane %v3150, 5
        %v3153 = vor.u32 %v3149, %v3152
        %v3154 = vrot.slane %v3153, 4
        %v3156 = vshll.u32 %v2936, 16
        %v3158 = vrot.slane %v3156, 5
        %v3159 = vsel %vm449, %v3154, %v3158
        %v3160 = vshrl.u32 %v2936, 16
        %v3162 = vrot.slane %v3160, 4
        %v3163 = vor.u32 %v3162, %v3158
        %v3164 = vrot.slane %v3163, 4
        %3165 = vrot.lane.b32.xlu0 %v2950, 32
        %v3166 = vpop.permute.xlu0 %3165
        %3167 = vrot.lane.b32.xlu0 %v2955, 32
        %v3168 = vpop.permute.xlu0 %3167
        %3169 = vrot.lane.b32.xlu0 %v2969, 32
        %v3170 = vpop.permute.xlu0 %3169
        %3171 = vrot.lane.b32.xlu0 %v2974, 32
        %v3172 = vpop.permute.xlu0 %3171
        %3173 = vrot.lane.b32.xlu0 %v2988, 32
        %v3174 = vpop.permute.xlu0 %3173
        %3175 = vrot.lane.b32.xlu0 %v2993, 32
        %v3176 = vpop.permute.xlu0 %3175
        %3177 = vrot.lane.b32.xlu0 %v3007, 32
        %v3178 = vpop.permute.xlu0 %3177
        %3179 = vrot.lane.b32.xlu0 %v3012, 32
        %v3180 = vpop.permute.xlu0 %3179
        %3181 = vrot.lane.b32.xlu0 %v3026, 32
        %v3182 = vpop.permute.xlu0 %3181
        %3183 = vrot.lane.b32.xlu0 %v3031, 32
        %v3184 = vpop.permute.xlu0 %3183
        %3185 = vrot.lane.b32.xlu0 %v3045, 32
        %v3186 = vpop.permute.xlu0 %3185
        %3187 = vrot.lane.b32.xlu0 %v3050, 32
        %v3188 = vpop.permute.xlu0 %3187
        %3189 = vrot.lane.b32.xlu0 %v3064, 32
        %v3190 = vpop.permute.xlu0 %3189
        %3191 = vrot.lane.b32.xlu0 %v3069, 32
        %v3192 = vpop.permute.xlu0 %3191
        %3193 = vrot.lane.b32.xlu0 %v3083, 32
        %v3194 = vpop.permute.xlu0 %3193
        %3195 = vrot.lane.b32.xlu0 %v3088, 32
        %v3196 = vpop.permute.xlu0 %3195
        %3197 = vrot.lane.b32.xlu0 %v3102, 32
        %v3198 = vpop.permute.xlu0 %3197
        %3199 = vrot.lane.b32.xlu0 %v3107, 32
        %v3200 = vpop.permute.xlu0 %3199
        %3201 = vrot.lane.b32.xlu0 %v3121, 32
        %v3202 = vpop.permute.xlu0 %3201
        %3203 = vrot.lane.b32.xlu0 %v3126, 32
        %v3204 = vpop.permute.xlu0 %3203
        %3205 = vrot.lane.b32.xlu0 %v3140, 32
        %v3206 = vpop.permute.xlu0 %3205
        %3207 = vrot.lane.b32.xlu0 %v3145, 32
        %v3208 = vpop.permute.xlu0 %3207
        %3209 = vrot.lane.b32.xlu0 %v3159, 32
        %v3210 = vpop.permute.xlu0 %3209
        %3211 = vrot.lane.b32.xlu0 %v3164, 32
        %v3212 = vpop.permute.xlu0 %3211
        %vm3237 = vcmask 519424
        %3238 = vst.msk [vmem:[#allocation3] sm:$0xf] %vm3237, %v3166
        %vm3239 = vcmask 517376
        %3240 = vst.msk [vmem:[#allocation3 + $0xc] sm:$0x3] %vm3239, %v3168
        %3241 = vst.msk [vmem:[#allocation3 + $0x18] sm:$0xf] %vm3237, %v3170
        %3242 = vst.msk [vmem:[#allocation3 + $0x24] sm:$0x3] %vm3239, %v3172
        %3243 = vst.msk [vmem:[#allocation3 + $0x30] sm:$0xf] %vm3237, %v3174
        %3244 = vst.msk [vmem:[#allocation3 + $0x3c] sm:$0x3] %vm3239, %v3176
        %3245 = vst.msk [vmem:[#allocation3 + $0x48] sm:$0xf] %vm3237, %v3178
        %3246 = vst.msk [vmem:[#allocation3 + $0x54] sm:$0x3] %vm3239, %v3180
        %3247 = vst.msk [vmem:[#allocation3 + $0x60] sm:$0xf] %vm3237, %v3182
        %3248 = vst.msk [vmem:[#allocation3 + $0x6c] sm:$0x3] %vm3239, %v3184
        %3249 = vst.msk [vmem:[#allocation3 + $0x78] sm:$0xf] %vm3237, %v3186
        %3250 = vst.msk [vmem:[#allocation3 + $0x84] sm:$0x3] %vm3239, %v3188
        %3251 = vst.msk [vmem:[#allocation3 + $0x90] sm:$0xf] %vm3237, %v3190
        %3252 = vst.msk [vmem:[#allocation3 + $0x9c] sm:$0x3] %vm3239, %v3192
        %3253 = vst.msk [vmem:[#allocation3 + $0xa8] sm:$0xf] %vm3237, %v3194
        %3254 = vst.msk [vmem:[#allocation3 + $0xb4] sm:$0x3] %vm3239, %v3196
        %3255 = vst.msk [vmem:[#allocation3 + $0xc0] sm:$0xf] %vm3237, %v3198
        %3256 = vst.msk [vmem:[#allocation3 + $0xcc] sm:$0x3] %vm3239, %v3200
        %3257 = vst.msk [vmem:[#allocation3 + $0xd8] sm:$0xf] %vm3237, %v3202
        %3258 = vst.msk [vmem:[#allocation3 + $0xe4] sm:$0x3] %vm3239, %v3204
        %3259 = vst.msk [vmem:[#allocation3 + $0xf0] sm:$0xf] %vm3237, %v3206
        %3260 = vst.msk [vmem:[#allocation3 + $0xfc] sm:$0x3] %vm3239, %v3208
        %3261 = vst.msk [vmem:[#allocation3 + $0x108] sm:$0xf] %vm3237, %v3210
        %3262 = vst.msk [vmem:[#allocation3 + $0x114] sm:$0x3] %vm3239, %v3212
        %3263 = vst [vmem:[#allocation1] ss:$4 sm:$0xff] %v2527
        %s3264 = scalar_lea.vmem [#allocation1], 1
        %3265 = vst [vmem:[%s3264] ss:$4 sm:$0xff] %v2528
        %s3266 = scalar_lea.vmem [#allocation1], 2
        %3267 = vst [vmem:[%s3266] ss:$4 sm:$0xff] %v2529
        %s3268 = scalar_lea.vmem [#allocation1], 3
        %3269 = vst [vmem:[%s3268] ss:$4 sm:$0xff] %v2478
        %s3270 = scalar_lea.vmem [#allocation1], 32
        %3271 = vst [vmem:[%s3270] ss:$4 sm:$0xff] %v2530
        %s3272 = scalar_lea.vmem [#allocation1], 33
        %3273 = vst [vmem:[%s3272] ss:$4 sm:$0xff] %v2531
        %v3274 = vld.sshfl [vmem:[#allocation1] sm:$0xff pattern:$0x73625140]
        %v3275 = vld.sshfl [vmem:[#allocation1 + $0x20] sm:$0xff pattern:$0x73625140]
        %3276 = vst [vmem:[#allocation1] ss:$4 sm:$0xff] %v2479
        %3277 = vst [vmem:[%s3264] ss:$4 sm:$0xff] %v2533
        %3278 = vst [vmem:[%s3266] ss:$4 sm:$0xff] %v2534
        %3279 = vst [vmem:[%s3268] ss:$4 sm:$0xff] %v2535
        %3280 = vst [vmem:[%s3270] ss:$4 sm:$0xff] %v2480
        %3281 = vst [vmem:[%s3272] ss:$4 sm:$0xff] %v2536
        %v3282 = vld.sshfl [vmem:[#allocation1] sm:$0xff pattern:$0x73625140]
        %v3283 = vld.sshfl [vmem:[#allocation1 + $0x20] sm:$0xff pattern:$0x73625140]
        %3284 = vst [vmem:[#allocation1] ss:$4 sm:$0xff] %v2538
        %3285 = vst [vmem:[%s3264] ss:$4 sm:$0xff] %v2481
        %3286 = vst [vmem:[%s3266] ss:$4 sm:$0xff] %v2539
        %3287 = vst [vmem:[%s3268] ss:$4 sm:$0xff] %v2540
        %3288 = vst [vmem:[%s3270] ss:$4 sm:$0xff] %v2541
        %3289 = vst [vmem:[%s3272] ss:$4 sm:$0xff] %v2482
        %v3290 = vld.sshfl [vmem:[#allocation1] sm:$0xff pattern:$0x73625140]
        %v3291 = vld.sshfl [vmem:[#allocation1 + $0x20] sm:$0xff pattern:$0x73625140]
        %3292 = vst [vmem:[#allocation1] ss:$4 sm:$0xff] %v2543
        %3293 = vst [vmem:[%s3264] ss:$4 sm:$0xff] %v2544
        %3294 = vst [vmem:[%s3266] ss:$4 sm:$0xff] %v2483
        %3295 = vst [vmem:[%s3268] ss:$4 sm:$0xff] %v2545
        %3296 = vst [vmem:[%s3270] ss:$4 sm:$0xff] %v2546
        %3297 = vst [vmem:[%s3272] ss:$4 sm:$0xff] %v2547
        %v3298 = vld.sshfl [vmem:[#allocation1] sm:$0xff pattern:$0x73625140]
        %v3299 = vld.sshfl [vmem:[#allocation1 + $0x20] sm:$0xff pattern:$0x73625140]
        %3300 = vst [vmem:[#allocation1] ss:$4 sm:$0xff] %v2548
        %3301 = vst [vmem:[%s3264] ss:$4 sm:$0xff] %v2549
        %3302 = vst [vmem:[%s3266] ss:$4 sm:$0xff] %v2550
        %3303 = vst [vmem:[%s3268] ss:$4 sm:$0xff] %v2485
        %3304 = vst [vmem:[%s3270] ss:$4 sm:$0xff] %v2551
        %3305 = vst [vmem:[%s3272] ss:$4 sm:$0xff] %v2552
        %v3306 = vld.sshfl [vmem:[#allocation1] sm:$0xff pattern:$0x73625140]
        %v3307 = vld.sshfl [vmem:[#allocation1 + $0x20] sm:$0xff pattern:$0x73625140]
        %3308 = vst [vmem:[#allocation1] ss:$4 sm:$0xff] %v2486
        %3309 = vst [vmem:[%s3264] ss:$4 sm:$0xff] %v2554
        %3310 = vst [vmem:[%s3266] ss:$4 sm:$0xff] %v2555
        %3311 = vst [vmem:[%s3268] ss:$4 sm:$0xff] %v2556
        %3312 = vst [vmem:[%s3270] ss:$4 sm:$0xff] %v2487
        %3313 = vst [vmem:[%s3272] ss:$4 sm:$0xff] %v2557
        %v3314 = vld.sshfl [vmem:[#allocation1] sm:$0xff pattern:$0x73625140]
        %v3315 = vld.sshfl [vmem:[#allocation1 + $0x20] sm:$0xff pattern:$0x73625140]
        %3316 = vst [vmem:[#allocation1] ss:$4 sm:$0xff] %v2559
        %3317 = vst [vmem:[%s3264] ss:$4 sm:$0xff] %v2488
        %3318 = vst [vmem:[%s3266] ss:$4 sm:$0xff] %v2560
        %3319 = vst [vmem:[%s3268] ss:$4 sm:$0xff] %v2561
        %3320 = vst [vmem:[%s3270] ss:$4 sm:$0xff] %v2562
        %3321 = vst [vmem:[%s3272] ss:$4 sm:$0xff] %v2489
        %v3322 = vld.sshfl [vmem:[#allocation1] sm:$0xff pattern:$0x73625140]
        %v3323 = vld.sshfl [vmem:[#allocation1 + $0x20] sm:$0xff pattern:$0x73625140]
        %3324 = vst [vmem:[#allocation1] ss:$4 sm:$0xff] %v2564
        %3325 = vst [vmem:[%s3264] ss:$4 sm:$0xff] %v2565
        %3326 = vst [vmem:[%s3266] ss:$4 sm:$0xff] %v2490
        %3327 = vst [vmem:[%s3268] ss:$4 sm:$0xff] %v2566
        %3328 = vst [vmem:[%s3270] ss:$4 sm:$0xff] %v2567
        %3329 = vst [vmem:[%s3272] ss:$4 sm:$0xff] %v2568
        %v3330 = vld.sshfl [vmem:[#allocation1] sm:$0xff pattern:$0x73625140]
        %v3331 = vld.sshfl [vmem:[#allocation1 + $0x20] sm:$0xff pattern:$0x73625140]
        %3332 = vst [vmem:[#allocation1] ss:$4 sm:$0xff] %v2569
        %3333 = vst [vmem:[%s3264] ss:$4 sm:$0xff] %v2570
        %3334 = vst [vmem:[%s3266] ss:$4 sm:$0xff] %v2571
        %3335 = vst [vmem:[%s3268] ss:$4 sm:$0xff] %v2492
        %3336 = vst [vmem:[%s3270] ss:$4 sm:$0xff] %v2572
        %3337 = vst [vmem:[%s3272] ss:$4 sm:$0xff] %v2573
        %v3338 = vld.sshfl [vmem:[#allocation1] sm:$0xff pattern:$0x73625140]
        %v3339 = vld.sshfl [vmem:[#allocation1 + $0x20] sm:$0xff pattern:$0x73625140]
        %3340 = vst [vmem:[#allocation1] ss:$4 sm:$0xff] %v2493
        %3341 = vst [vmem:[%s3264] ss:$4 sm:$0xff] %v2575
        %3342 = vst [vmem:[%s3266] ss:$4 sm:$0xff] %v2576
        %3343 = vst [vmem:[%s3268] ss:$4 sm:$0xff] %v2577
        %3344 = vst [vmem:[%s3270] ss:$4 sm:$0xff] %v2494
        %3345 = vst [vmem:[%s3272] ss:$4 sm:$0xff] %v2578
        %v3346 = vld.sshfl [vmem:[#allocation1] sm:$0xff pattern:$0x73625140]
        %v3347 = vld.sshfl [vmem:[#allocation1 + $0x20] sm:$0xff pattern:$0x73625140]
        %3348 = vst [vmem:[#allocation1] ss:$4 sm:$0xff] %v2580
        %3349 = vst [vmem:[%s3264] ss:$4 sm:$0xff] %v2495
        %3350 = vst [vmem:[%s3266] ss:$4 sm:$0xff] %v2581
        %3351 = vst [vmem:[%s3268] ss:$4 sm:$0xff] %v2582
        %3352 = vst [vmem:[%s3270] ss:$4 sm:$0xff] %v2583
        %3353 = vst [vmem:[%s3272] ss:$4 sm:$0xff] %v2496
        %v3354 = vld.sshfl [vmem:[#allocation1] sm:$0xff pattern:$0x73625140]
        %v3355 = vld.sshfl [vmem:[#allocation1 + $0x20] sm:$0xff pattern:$0x73625140]
        %3356 = vst [vmem:[#allocation1] ss:$4 sm:$0xff] %v2585
        %3357 = vst [vmem:[%s3264] ss:$4 sm:$0xff] %v2586
        %3358 = vst [vmem:[%s3266] ss:$4 sm:$0xff] %v2497
        %3359 = vst [vmem:[%s3268] ss:$4 sm:$0xff] %v2587
        %3360 = vst [vmem:[%s3270] ss:$4 sm:$0xff] %v2588
        %3361 = vst [vmem:[%s3272] ss:$4 sm:$0xff] %v2589
        %v3362 = vld.sshfl [vmem:[#allocation1] sm:$0xff pattern:$0x73625140]
        %v3363 = vld.sshfl [vmem:[#allocation1 + $0x20] sm:$0xff pattern:$0x73625140]
        %v3388 = vpack.c.bf16 %v3274, %v3274
        %v3389 = vpack.c.bf16 %v3275, %v3275
        %v3390 = vpack.c.bf16 %v3282, %v3282
        %v3391 = vpack.c.bf16 %v3283, %v3283
        %v3392 = vpack.c.bf16 %v3290, %v3290
        %v3393 = vpack.c.bf16 %v3291, %v3291
        %v3394 = vpack.c.bf16 %v3298, %v3298
        %v3395 = vpack.c.bf16 %v3299, %v3299
        %v3396 = vpack.c.bf16 %v3306, %v3306
        %v3397 = vpack.c.bf16 %v3307, %v3307
        %v3398 = vpack.c.bf16 %v3314, %v3314
        %v3399 = vpack.c.bf16 %v3315, %v3315
        %v3400 = vpack.c.bf16 %v3322, %v3322
        %v3401 = vpack.c.bf16 %v3323, %v3323
        %v3402 = vpack.c.bf16 %v3330, %v3330
        %v3403 = vpack.c.bf16 %v3331, %v3331
        %v3404 = vpack.c.bf16 %v3338, %v3338
        %v3405 = vpack.c.bf16 %v3339, %v3339
        %v3406 = vpack.c.bf16 %v3346, %v3346
        %v3407 = vpack.c.bf16 %v3347, %v3347
        %v3408 = vpack.c.bf16 %v3354, %v3354
        %v3409 = vpack.c.bf16 %v3355, %v3355
        %v3410 = vpack.c.bf16 %v3362, %v3362
        %v3411 = vpack.c.bf16 %v3363, %v3363
        %3436 = vrot.lane.b32.xlu0 %v3388, 64
        %v3437 = vpop.permute.xlu0 %3436
        %3438 = vrot.lane.b32.xlu0 %v3389, 64
        %v3439 = vpop.permute.xlu0 %3438
        %3440 = vrot.lane.b32.xlu0 %v3390, 64
        %v3441 = vpop.permute.xlu0 %3440
        %3442 = vrot.lane.b32.xlu0 %v3391, 64
        %v3443 = vpop.permute.xlu0 %3442
        %3444 = vrot.lane.b32.xlu0 %v3392, 64
        %v3445 = vpop.permute.xlu0 %3444
        %3446 = vrot.lane.b32.xlu0 %v3393, 64
        %v3447 = vpop.permute.xlu0 %3446
        %3448 = vrot.lane.b32.xlu0 %v3394, 64
        %v3449 = vpop.permute.xlu0 %3448
        %3450 = vrot.lane.b32.xlu0 %v3395, 64
        %v3451 = vpop.permute.xlu0 %3450
        %3452 = vrot.lane.b32.xlu0 %v3396, 64
        %v3453 = vpop.permute.xlu0 %3452
        %3454 = vrot.lane.b32.xlu0 %v3397, 64
        %v3455 = vpop.permute.xlu0 %3454
        %3456 = vrot.lane.b32.xlu0 %v3398, 64
        %v3457 = vpop.permute.xlu0 %3456
        %3458 = vrot.lane.b32.xlu0 %v3399, 64
        %v3459 = vpop.permute.xlu0 %3458
        %3460 = vrot.lane.b32.xlu0 %v3400, 64
        %v3461 = vpop.permute.xlu0 %3460
        %3462 = vrot.lane.b32.xlu0 %v3401, 64
        %v3463 = vpop.permute.xlu0 %3462
        %3464 = vrot.lane.b32.xlu0 %v3402, 64
        %v3465 = vpop.permute.xlu0 %3464
        %3466 = vrot.lane.b32.xlu0 %v3403, 64
        %v3467 = vpop.permute.xlu0 %3466
        %3468 = vrot.lane.b32.xlu0 %v3404, 64
        %v3469 = vpop.permute.xlu0 %3468
        %3470 = vrot.lane.b32.xlu0 %v3405, 64
        %v3471 = vpop.permute.xlu0 %3470
        %3472 = vrot.lane.b32.xlu0 %v3406, 64
        %v3473 = vpop.permute.xlu0 %3472
        %3474 = vrot.lane.b32.xlu0 %v3407, 64
        %v3475 = vpop.permute.xlu0 %3474
        %3476 = vrot.lane.b32.xlu0 %v3408, 64
        %v3477 = vpop.permute.xlu0 %3476
        %3478 = vrot.lane.b32.xlu0 %v3409, 64
        %v3479 = vpop.permute.xlu0 %3478
        %3480 = vrot.lane.b32.xlu0 %v3410, 64
        %v3481 = vpop.permute.xlu0 %3480
        %3482 = vrot.lane.b32.xlu0 %v3411, 64
        %v3483 = vpop.permute.xlu0 %3482
        %vm3508 = vcmask 781824
        %3509 = vst.msk [vmem:[#allocation3] sm:$0xf] %vm3508, %v3437
        %vm3510 = vcmask 779776
        %3511 = vst.msk [vmem:[#allocation3 + $0xc] sm:$0x3] %vm3510, %v3439
        %3512 = vst.msk [vmem:[#allocation3 + $0x18] sm:$0xf] %vm3508, %v3441
        %3513 = vst.msk [vmem:[#allocation3 + $0x24] sm:$0x3] %vm3510, %v3443
        %3514 = vst.msk [vmem:[#allocation3 + $0x30] sm:$0xf] %vm3508, %v3445
        %3515 = vst.msk [vmem:[#allocation3 + $0x3c] sm:$0x3] %vm3510, %v3447
        %3516 = vst.msk [vmem:[#allocation3 + $0x48] sm:$0xf] %vm3508, %v3449
        %3517 = vst.msk [vmem:[#allocation3 + $0x54] sm:$0x3] %vm3510, %v3451
        %3518 = vst.msk [vmem:[#allocation3 + $0x60] sm:$0xf] %vm3508, %v3453
        %3519 = vst.msk [vmem:[#allocation3 + $0x6c] sm:$0x3] %vm3510, %v3455
        %3520 = vst.msk [vmem:[#allocation3 + $0x78] sm:$0xf] %vm3508, %v3457
        %3521 = vst.msk [vmem:[#allocation3 + $0x84] sm:$0x3] %vm3510, %v3459
        %3522 = vst.msk [vmem:[#allocation3 + $0x90] sm:$0xf] %vm3508, %v3461
        %3523 = vst.msk [vmem:[#allocation3 + $0x9c] sm:$0x3] %vm3510, %v3463
        %3524 = vst.msk [vmem:[#allocation3 + $0xa8] sm:$0xf] %vm3508, %v3465
        %3525 = vst.msk [vmem:[#allocation3 + $0xb4] sm:$0x3] %vm3510, %v3467
        %3526 = vst.msk [vmem:[#allocation3 + $0xc0] sm:$0xf] %vm3508, %v3469
        %3527 = vst.msk [vmem:[#allocation3 + $0xcc] sm:$0x3] %vm3510, %v3471
        %3528 = vst.msk [vmem:[#allocation3 + $0xd8] sm:$0xf] %vm3508, %v3473
        %3529 = vst.msk [vmem:[#allocation3 + $0xe4] sm:$0x3] %vm3510, %v3475
        %3530 = vst.msk [vmem:[#allocation3 + $0xf0] sm:$0xf] %vm3508, %v3477
        %3531 = vst.msk [vmem:[#allocation3 + $0xfc] sm:$0x3] %vm3510, %v3479
        %3532 = vst.msk [vmem:[#allocation3 + $0x108] sm:$0xf] %vm3508, %v3481
        %3533 = vst.msk [vmem:[#allocation3 + $0x114] sm:$0x3] %vm3510, %v3483
        %3534 = vst [vmem:[#allocation1] ss:$4 sm:$0xff] %v2532
        %s3535 = scalar_lea.vmem [#allocation1], 1
        %3536 = vst [vmem:[%s3535] ss:$4 sm:$0xff] %v2479
        %s3537 = scalar_lea.vmem [#allocation1], 2
        %3538 = vst [vmem:[%s3537] ss:$4 sm:$0xff] %v2533
        %s3539 = scalar_lea.vmem [#allocation1], 3
        %3540 = vst [vmem:[%s3539] ss:$4 sm:$0xff] %v2534
        %s3541 = scalar_lea.vmem [#allocation1], 32
        %3542 = vst [vmem:[%s3541] ss:$4 sm:$0xff] %v2535
        %s3543 = scalar_lea.vmem [#allocation1], 33
        %3544 = vst [vmem:[%s3543] ss:$4 sm:$0xff] %v2480
        %v3545 = vld.sshfl [vmem:[#allocation1] sm:$0xff pattern:$0x73625140]
        %v3546 = vld.sshfl [vmem:[#allocation1 + $0x20] sm:$0xff pattern:$0x73625140]
        %3547 = vst [vmem:[#allocation1] ss:$4 sm:$0xff] %v2537
        %3548 = vst [vmem:[%s3535] ss:$4 sm:$0xff] %v2538
        %3549 = vst [vmem:[%s3537] ss:$4 sm:$0xff] %v2481
        %3550 = vst [vmem:[%s3539] ss:$4 sm:$0xff] %v2539
        %3551 = vst [vmem:[%s3541] ss:$4 sm:$0xff] %v2540
        %3552 = vst [vmem:[%s3543] ss:$4 sm:$0xff] %v2541
        %v3553 = vld.sshfl [vmem:[#allocation1] sm:$0xff pattern:$0x73625140]
        %v3554 = vld.sshfl [vmem:[#allocation1 + $0x20] sm:$0xff pattern:$0x73625140]
        %3555 = vst [vmem:[#allocation1] ss:$4 sm:$0xff] %v2542
        %3556 = vst [vmem:[%s3535] ss:$4 sm:$0xff] %v2543
        %3557 = vst [vmem:[%s3537] ss:$4 sm:$0xff] %v2544
        %3558 = vst [vmem:[%s3539] ss:$4 sm:$0xff] %v2483
        %3559 = vst [vmem:[%s3541] ss:$4 sm:$0xff] %v2545
        %3560 = vst [vmem:[%s3543] ss:$4 sm:$0xff] %v2546
        %v3561 = vld.sshfl [vmem:[#allocation1] sm:$0xff pattern:$0x73625140]
        %v3562 = vld.sshfl [vmem:[#allocation1 + $0x20] sm:$0xff pattern:$0x73625140]
        %3563 = vst [vmem:[#allocation1] ss:$4 sm:$0xff] %v2484
        %3564 = vst [vmem:[%s3535] ss:$4 sm:$0xff] %v2548
        %3565 = vst [vmem:[%s3537] ss:$4 sm:$0xff] %v2549
        %3566 = vst [vmem:[%s3539] ss:$4 sm:$0xff] %v2550
        %3567 = vst [vmem:[%s3541] ss:$4 sm:$0xff] %v2485
        %3568 = vst [vmem:[%s3543] ss:$4 sm:$0xff] %v2551
        %v3569 = vld.sshfl [vmem:[#allocation1] sm:$0xff pattern:$0x73625140]
        %v3570 = vld.sshfl [vmem:[#allocation1 + $0x20] sm:$0xff pattern:$0x73625140]
        %3571 = vst [vmem:[#allocation1] ss:$4 sm:$0xff] %v2553
        %3572 = vst [vmem:[%s3535] ss:$4 sm:$0xff] %v2486
        %3573 = vst [vmem:[%s3537] ss:$4 sm:$0xff] %v2554
        %3574 = vst [vmem:[%s3539] ss:$4 sm:$0xff] %v2555
        %3575 = vst [vmem:[%s3541] ss:$4 sm:$0xff] %v2556
        %3576 = vst [vmem:[%s3543] ss:$4 sm:$0xff] %v2487
        %v3577 = vld.sshfl [vmem:[#allocation1] sm:$0xff pattern:$0x73625140]
        %v3578 = vld.sshfl [vmem:[#allocation1 + $0x20] sm:$0xff pattern:$0x73625140]
        %3579 = vst [vmem:[#allocation1] ss:$4 sm:$0xff] %v2558
        %3580 = vst [vmem:[%s3535] ss:$4 sm:$0xff] %v2559
        %3581 = vst [vmem:[%s3537] ss:$4 sm:$0xff] %v2488
        %3582 = vst [vmem:[%s3539] ss:$4 sm:$0xff] %v2560
        %3583 = vst [vmem:[%s3541] ss:$4 sm:$0xff] %v2561
        %3584 = vst [vmem:[%s3543] ss:$4 sm:$0xff] %v2562
        %v3585 = vld.sshfl [vmem:[#allocation1] sm:$0xff pattern:$0x73625140]
        %v3586 = vld.sshfl [vmem:[#allocation1 + $0x20] sm:$0xff pattern:$0x73625140]
        %3587 = vst [vmem:[#allocation1] ss:$4 sm:$0xff] %v2563
        %3588 = vst [vmem:[%s3535] ss:$4 sm:$0xff] %v2564
        %3589 = vst [vmem:[%s3537] ss:$4 sm:$0xff] %v2565
        %3590 = vst [vmem:[%s3539] ss:$4 sm:$0xff] %v2490
        %3591 = vst [vmem:[%s3541] ss:$4 sm:$0xff] %v2566
        %3592 = vst [vmem:[%s3543] ss:$4 sm:$0xff] %v2567
        %v3593 = vld.sshfl [vmem:[#allocation1] sm:$0xff pattern:$0x73625140]
        %v3594 = vld.sshfl [vmem:[#allocation1 + $0x20] sm:$0xff pattern:$0x73625140]
        %3595 = vst [vmem:[#allocation1] ss:$4 sm:$0xff] %v2491
        %3596 = vst [vmem:[%s3535] ss:$4 sm:$0xff] %v2569
        %3597 = vst [vmem:[%s3537] ss:$4 sm:$0xff] %v2570
        %3598 = vst [vmem:[%s3539] ss:$4 sm:$0xff] %v2571
        %3599 = vst [vmem:[%s3541] ss:$4 sm:$0xff] %v2492
        %3600 = vst [vmem:[%s3543] ss:$4 sm:$0xff] %v2572
        %v3601 = vld.sshfl [vmem:[#allocation1] sm:$0xff pattern:$0x73625140]
        %v3602 = vld.sshfl [vmem:[#allocation1 + $0x20] sm:$0xff pattern:$0x73625140]
        %3603 = vst [vmem:[#allocation1] ss:$4 sm:$0xff] %v2574
        %3604 = vst [vmem:[%s3535] ss:$4 sm:$0xff] %v2493
        %3605 = vst [vmem:[%s3537] ss:$4 sm:$0xff] %v2575
        %3606 = vst [vmem:[%s3539] ss:$4 sm:$0xff] %v2576
        %3607 = vst [vmem:[%s3541] ss:$4 sm:$0xff] %v2577
        %3608 = vst [vmem:[%s3543] ss:$4 sm:$0xff] %v2494
        %v3609 = vld.sshfl [vmem:[#allocation1] sm:$0xff pattern:$0x73625140]
        %v3610 = vld.sshfl [vmem:[#allocation1 + $0x20] sm:$0xff pattern:$0x73625140]
        %3611 = vst [vmem:[#allocation1] ss:$4 sm:$0xff] %v2579
        %3612 = vst [vmem:[%s3535] ss:$4 sm:$0xff] %v2580
        %3613 = vst [vmem:[%s3537] ss:$4 sm:$0xff] %v2495
        %3614 = vst [vmem:[%s3539] ss:$4 sm:$0xff] %v2581
        %3615 = vst [vmem:[%s3541] ss:$4 sm:$0xff] %v2582
        %3616 = vst [vmem:[%s3543] ss:$4 sm:$0xff] %v2583
        %v3617 = vld.sshfl [vmem:[#allocation1] sm:$0xff pattern:$0x73625140]
        %v3618 = vld.sshfl [vmem:[#allocation1 + $0x20] sm:$0xff pattern:$0x73625140]
        %3619 = vst [vmem:[#allocation1] ss:$4 sm:$0xff] %v2584
        %3620 = vst [vmem:[%s3535] ss:$4 sm:$0xff] %v2585
        %3621 = vst [vmem:[%s3537] ss:$4 sm:$0xff] %v2586
        %3622 = vst [vmem:[%s3539] ss:$4 sm:$0xff] %v2497
        %3623 = vst [vmem:[%s3541] ss:$4 sm:$0xff] %v2587
        %3624 = vst [vmem:[%s3543] ss:$4 sm:$0xff] %v2588
        %v3625 = vld.sshfl [vmem:[#allocation1] sm:$0xff pattern:$0x73625140]
        %v3626 = vld.sshfl [vmem:[#allocation1 + $0x20] sm:$0xff pattern:$0x73625140]
        %3627 = vst [vmem:[#allocation1] ss:$4 sm:$0xff] %v2498
        %3628 = vst [vmem:[%s3535] ss:$4 sm:$0xff] %v2590
        %3629 = vst [vmem:[%s3537] ss:$4 sm:$0xff] %v2591
        %3630 = vst [vmem:[%s3539] ss:$4 sm:$0xff] %v2592
        %3631 = vst [vmem:[%s3541] ss:$4 sm:$0xff] %v2499
        %3632 = vst [vmem:[%s3543] ss:$4 sm:$0xff] %v2593
        %v3633 = vld.sshfl [vmem:[#allocation1] sm:$0xff pattern:$0x73625140]
        %v3634 = vld.sshfl [vmem:[#allocation1 + $0x20] sm:$0xff pattern:$0x73625140]
        %v3659 = vpack.c.bf16 %v3545, %v3545
        %v3660 = vpack.c.bf16 %v3546, %v3546
        %v3661 = vpack.c.bf16 %v3553, %v3553
        %v3662 = vpack.c.bf16 %v3554, %v3554
        %v3663 = vpack.c.bf16 %v3561, %v3561
        %v3664 = vpack.c.bf16 %v3562, %v3562
        %v3665 = vpack.c.bf16 %v3569, %v3569
        %v3666 = vpack.c.bf16 %v3570, %v3570
        %v3667 = vpack.c.bf16 %v3577, %v3577
        %v3668 = vpack.c.bf16 %v3578, %v3578
        %v3669 = vpack.c.bf16 %v3585, %v3585
        %v3670 = vpack.c.bf16 %v3586, %v3586
        %v3671 = vpack.c.bf16 %v3593, %v3593
        %v3672 = vpack.c.bf16 %v3594, %v3594
        %v3673 = vpack.c.bf16 %v3601, %v3601
        %v3674 = vpack.c.bf16 %v3602, %v3602
        %v3675 = vpack.c.bf16 %v3609, %v3609
        %v3676 = vpack.c.bf16 %v3610, %v3610
        %v3677 = vpack.c.bf16 %v3617, %v3617
        %v3678 = vpack.c.bf16 %v3618, %v3618
        %v3679 = vpack.c.bf16 %v3625, %v3625
        %v3680 = vpack.c.bf16 %v3626, %v3626
        %v3681 = vpack.c.bf16 %v3633, %v3633
        %v3682 = vpack.c.bf16 %v3634, %v3634
        %3707 = vrot.lane.b32.xlu0 %v3659, 96
        %v3708 = vpop.permute.xlu0 %3707
        %3709 = vrot.lane.b32.xlu0 %v3660, 96
        %v3710 = vpop.permute.xlu0 %3709
        %3711 = vrot.lane.b32.xlu0 %v3661, 96
        %v3712 = vpop.permute.xlu0 %3711
        %3713 = vrot.lane.b32.xlu0 %v3662, 96
        %v3714 = vpop.permute.xlu0 %3713
        %3715 = vrot.lane.b32.xlu0 %v3663, 96
        %v3716 = vpop.permute.xlu0 %3715
        %3717 = vrot.lane.b32.xlu0 %v3664, 96
        %v3718 = vpop.permute.xlu0 %3717
        %3719 = vrot.lane.b32.xlu0 %v3665, 96
        %v3720 = vpop.permute.xlu0 %3719
        %3721 = vrot.lane.b32.xlu0 %v3666, 96
        %v3722 = vpop.permute.xlu0 %3721
        %3723 = vrot.lane.b32.xlu0 %v3667, 96
        %v3724 = vpop.permute.xlu0 %3723
        %3725 = vrot.lane.b32.xlu0 %v3668, 96
        %v3726 = vpop.permute.xlu0 %3725
        %3727 = vrot.lane.b32.xlu0 %v3669, 96
        %v3728 = vpop.permute.xlu0 %3727
        %3729 = vrot.lane.b32.xlu0 %v3670, 96
        %v3730 = vpop.permute.xlu0 %3729
        %3731 = vrot.lane.b32.xlu0 %v3671, 96
        %v3732 = vpop.permute.xlu0 %3731
        %3733 = vrot.lane.b32.xlu0 %v3672, 96
        %v3734 = vpop.permute.xlu0 %3733
        %3735 = vrot.lane.b32.xlu0 %v3673, 96
        %v3736 = vpop.permute.xlu0 %3735
        %3737 = vrot.lane.b32.xlu0 %v3674, 96
        %v3738 = vpop.permute.xlu0 %3737
        %3739 = vrot.lane.b32.xlu0 %v3675, 96
        %v3740 = vpop.permute.xlu0 %3739
        %3741 = vrot.lane.b32.xlu0 %v3676, 96
        %v3742 = vpop.permute.xlu0 %3741
        %3743 = vrot.lane.b32.xlu0 %v3677, 96
        %v3744 = vpop.permute.xlu0 %3743
        %3745 = vrot.lane.b32.xlu0 %v3678, 96
        %v3746 = vpop.permute.xlu0 %3745
        %3747 = vrot.lane.b32.xlu0 %v3679, 96
        %v3748 = vpop.permute.xlu0 %3747
        %3749 = vrot.lane.b32.xlu0 %v3680, 96
        %v3750 = vpop.permute.xlu0 %3749
        %3751 = vrot.lane.b32.xlu0 %v3681, 96
        %v3752 = vpop.permute.xlu0 %3751
        %3753 = vrot.lane.b32.xlu0 %v3682, 96
        %v3754 = vpop.permute.xlu0 %3753
        %vm3779 = vcmask 1044224
        %3780 = vst.msk [vmem:[#allocation3] sm:$0xf] %vm3779, %v3708
        %vm3781 = vcmask 1042176
        %3782 = vst.msk [vmem:[#allocation3 + $0xc] sm:$0x3] %vm3781, %v3710
        %3783 = vst.msk [vmem:[#allocation3 + $0x18] sm:$0xf] %vm3779, %v3712
        %3784 = vst.msk [vmem:[#allocation3 + $0x24] sm:$0x3] %vm3781, %v3714
        %3785 = vst.msk [vmem:[#allocation3 + $0x30] sm:$0xf] %vm3779, %v3716
        %3786 = vst.msk [vmem:[#allocation3 + $0x3c] sm:$0x3] %vm3781, %v3718
        %3787 = vst.msk [vmem:[#allocation3 + $0x48] sm:$0xf] %vm3779, %v3720
        %3788 = vst.msk [vmem:[#allocation3 + $0x54] sm:$0x3] %vm3781, %v3722
        %3789 = vst.msk [vmem:[#allocation3 + $0x60] sm:$0xf] %vm3779, %v3724
        %3790 = vst.msk [vmem:[#allocation3 + $0x6c] sm:$0x3] %vm3781, %v3726
        %3791 = vst.msk [vmem:[#allocation3 + $0x78] sm:$0xf] %vm3779, %v3728
        %3792 = vst.msk [vmem:[#allocation3 + $0x84] sm:$0x3] %vm3781, %v3730
        %3793 = vst.msk [vmem:[#allocation3 + $0x90] sm:$0xf] %vm3779, %v3732
        %3794 = vst.msk [vmem:[#allocation3 + $0x9c] sm:$0x3] %vm3781, %v3734
        %3795 = vst.msk [vmem:[#allocation3 + $0xa8] sm:$0xf] %vm3779, %v3736
        %3796 = vst.msk [vmem:[#allocation3 + $0xb4] sm:$0x3] %vm3781, %v3738
        %3797 = vst.msk [vmem:[#allocation3 + $0xc0] sm:$0xf] %vm3779, %v3740
        %3798 = vst.msk [vmem:[#allocation3 + $0xcc] sm:$0x3] %vm3781, %v3742
        %3799 = vst.msk [vmem:[#allocation3 + $0xd8] sm:$0xf] %vm3779, %v3744
        %3800 = vst.msk [vmem:[#allocation3 + $0xe4] sm:$0x3] %vm3781, %v3746
        %3801 = vst.msk [vmem:[#allocation3 + $0xf0] sm:$0xf] %vm3779, %v3748
        %3802 = vst.msk [vmem:[#allocation3 + $0xfc] sm:$0x3] %vm3781, %v3750
        %3803 = vst.msk [vmem:[#allocation3 + $0x108] sm:$0xf] %vm3779, %v3752
        %3804 = vst.msk [vmem:[#allocation3 + $0x114] sm:$0x3] %vm3781, %v3754
        %3805 = vst [vmem:[#allocation1] ss:$4 sm:$0xff] %v2532
        %s3806 = scalar_lea.vmem [#allocation1], 1
        %3807 = vst [vmem:[%s3806] ss:$4 sm:$0xff] %v2479
        %s3808 = scalar_lea.vmem [#allocation1], 2
        %3809 = vst [vmem:[%s3808] ss:$4 sm:$0xff] %v2533
        %s3810 = scalar_lea.vmem [#allocation1], 3
        %3811 = vst [vmem:[%s3810] ss:$4 sm:$0xff] %v2534
        %s3812 = scalar_lea.vmem [#allocation1], 32
        %3813 = vst [vmem:[%s3812] ss:$4 sm:$0xff] %v2535
        %s3814 = scalar_lea.vmem [#allocation1], 33
        %3815 = vst [vmem:[%s3814] ss:$4 sm:$0xff] %v2480
        %s3816 = scalar_lea.vmem [#allocation1], 34
        %3817 = vst [vmem:[%s3816] ss:$4 sm:$0xff] %v2536
        %v3818 = vld.sshfl [vmem:[#allocation1] sm:$0xff pattern:$0x73625140]
        %v3819 = vld.sshfl [vmem:[#allocation1 + $0x20] sm:$0xff pattern:$0x73625140]
        %3820 = vst [vmem:[#allocation1] ss:$4 sm:$0xff] %v2537
        %3821 = vst [vmem:[%s3806] ss:$4 sm:$0xff] %v2538
        %3822 = vst [vmem:[%s3808] ss:$4 sm:$0xff] %v2481
        %3823 = vst [vmem:[%s3810] ss:$4 sm:$0xff] %v2539
        %3824 = vst [vmem:[%s3812] ss:$4 sm:$0xff] %v2540
        %3825 = vst [vmem:[%s3814] ss:$4 sm:$0xff] %v2541
        %3826 = vst [vmem:[%s3816] ss:$4 sm:$0xff] %v2482
        %v3827 = vld.sshfl [vmem:[#allocation1] sm:$0xff pattern:$0x73625140]
        %v3828 = vld.sshfl [vmem:[#allocation1 + $0x20] sm:$0xff pattern:$0x73625140]
        %3829 = vst [vmem:[#allocation1] ss:$4 sm:$0xff] %v2542
        %3830 = vst [vmem:[%s3806] ss:$4 sm:$0xff] %v2543
        %3831 = vst [vmem:[%s3808] ss:$4 sm:$0xff] %v2544
        %3832 = vst [vmem:[%s3810] ss:$4 sm:$0xff] %v2483
        %3833 = vst [vmem:[%s3812] ss:$4 sm:$0xff] %v2545
        %3834 = vst [vmem:[%s3814] ss:$4 sm:$0xff] %v2546
        %3835 = vst [vmem:[%s3816] ss:$4 sm:$0xff] %v2547
        %v3836 = vld.sshfl [vmem:[#allocation1] sm:$0xff pattern:$0x73625140]
        %v3837 = vld.sshfl [vmem:[#allocation1 + $0x20] sm:$0xff pattern:$0x73625140]
        %3838 = vst [vmem:[#allocation1] ss:$4 sm:$0xff] %v2484
        %3839 = vst [vmem:[%s3806] ss:$4 sm:$0xff] %v2548
        %3840 = vst [vmem:[%s3808] ss:$4 sm:$0xff] %v2549
        %3841 = vst [vmem:[%s3810] ss:$4 sm:$0xff] %v2550
        %3842 = vst [vmem:[%s3812] ss:$4 sm:$0xff] %v2485
        %3843 = vst [vmem:[%s3814] ss:$4 sm:$0xff] %v2551
        %3844 = vst [vmem:[%s3816] ss:$4 sm:$0xff] %v2552
        %v3845 = vld.sshfl [vmem:[#allocation1] sm:$0xff pattern:$0x73625140]
        %v3846 = vld.sshfl [vmem:[#allocation1 + $0x20] sm:$0xff pattern:$0x73625140]
        %3847 = vst [vmem:[#allocation1] ss:$4 sm:$0xff] %v2553
        %3848 = vst [vmem:[%s3806] ss:$4 sm:$0xff] %v2486
        %3849 = vst [vmem:[%s3808] ss:$4 sm:$0xff] %v2554
        %3850 = vst [vmem:[%s3810] ss:$4 sm:$0xff] %v2555
        %3851 = vst [vmem:[%s3812] ss:$4 sm:$0xff] %v2556
        %3852 = vst [vmem:[%s3814] ss:$4 sm:$0xff] %v2487
        %3853 = vst [vmem:[%s3816] ss:$4 sm:$0xff] %v2557
        %v3854 = vld.sshfl [vmem:[#allocation1] sm:$0xff pattern:$0x73625140]
        %v3855 = vld.sshfl [vmem:[#allocation1 + $0x20] sm:$0xff pattern:$0x73625140]
        %3856 = vst [vmem:[#allocation1] ss:$4 sm:$0xff] %v2558
        %3857 = vst [vmem:[%s3806] ss:$4 sm:$0xff] %v2559
        %3858 = vst [vmem:[%s3808] ss:$4 sm:$0xff] %v2488
        %3859 = vst [vmem:[%s3810] ss:$4 sm:$0xff] %v2560
        %3860 = vst [vmem:[%s3812] ss:$4 sm:$0xff] %v2561
        %3861 = vst [vmem:[%s3814] ss:$4 sm:$0xff] %v2562
        %3862 = vst [vmem:[%s3816] ss:$4 sm:$0xff] %v2489
        %v3863 = vld.sshfl [vmem:[#allocation1] sm:$0xff pattern:$0x73625140]
        %v3864 = vld.sshfl [vmem:[#allocation1 + $0x20] sm:$0xff pattern:$0x73625140]
        %3865 = vst [vmem:[#allocation1] ss:$4 sm:$0xff] %v2563
        %3866 = vst [vmem:[%s3806] ss:$4 sm:$0xff] %v2564
        %3867 = vst [vmem:[%s3808] ss:$4 sm:$0xff] %v2565
        %3868 = vst [vmem:[%s3810] ss:$4 sm:$0xff] %v2490
        %3869 = vst [vmem:[%s3812] ss:$4 sm:$0xff] %v2566
        %3870 = vst [vmem:[%s3814] ss:$4 sm:$0xff] %v2567
        %3871 = vst [vmem:[%s3816] ss:$4 sm:$0xff] %v2568
        %v3872 = vld.sshfl [vmem:[#allocation1] sm:$0xff pattern:$0x73625140]
        %v3873 = vld.sshfl [vmem:[#allocation1 + $0x20] sm:$0xff pattern:$0x73625140]
        %3874 = vst [vmem:[#allocation1] ss:$4 sm:$0xff] %v2491
        %3875 = vst [vmem:[%s3806] ss:$4 sm:$0xff] %v2569
        %3876 = vst [vmem:[%s3808] ss:$4 sm:$0xff] %v2570
        %3877 = vst [vmem:[%s3810] ss:$4 sm:$0xff] %v2571
        %3878 = vst [vmem:[%s3812] ss:$4 sm:$0xff] %v2492
        %3879 = vst [vmem:[%s3814] ss:$4 sm:$0xff] %v2572
        %3880 = vst [vmem:[%s3816] ss:$4 sm:$0xff] %v2573
        %v3881 = vld.sshfl [vmem:[#allocation1] sm:$0xff pattern:$0x73625140]
        %v3882 = vld.sshfl [vmem:[#allocation1 + $0x20] sm:$0xff pattern:$0x73625140]
        %3883 = vst [vmem:[#allocation1] ss:$4 sm:$0xff] %v2574
        %3884 = vst [vmem:[%s3806] ss:$4 sm:$0xff] %v2493
        %3885 = vst [vmem:[%s3808] ss:$4 sm:$0xff] %v2575
        %3886 = vst [vmem:[%s3810] ss:$4 sm:$0xff] %v2576
        %3887 = vst [vmem:[%s3812] ss:$4 sm:$0xff] %v2577
        %3888 = vst [vmem:[%s3814] ss:$4 sm:$0xff] %v2494
        %3889 = vst [vmem:[%s3816] ss:$4 sm:$0xff] %v2578
        %v3890 = vld.sshfl [vmem:[#allocation1] sm:$0xff pattern:$0x73625140]
        %v3891 = vld.sshfl [vmem:[#allocation1 + $0x20] sm:$0xff pattern:$0x73625140]
        %3892 = vst [vmem:[#allocation1] ss:$4 sm:$0xff] %v2579
        %3893 = vst [vmem:[%s3806] ss:$4 sm:$0xff] %v2580
        %3894 = vst [vmem:[%s3808] ss:$4 sm:$0xff] %v2495
        %3895 = vst [vmem:[%s3810] ss:$4 sm:$0xff] %v2581
        %3896 = vst [vmem:[%s3812] ss:$4 sm:$0xff] %v2582
        %3897 = vst [vmem:[%s3814] ss:$4 sm:$0xff] %v2583
        %3898 = vst [vmem:[%s3816] ss:$4 sm:$0xff] %v2496
        %v3899 = vld.sshfl [vmem:[#allocation1] sm:$0xff pattern:$0x73625140]
        %v3900 = vld.sshfl [vmem:[#allocation1 + $0x20] sm:$0xff pattern:$0x73625140]
        %3901 = vst [vmem:[#allocation1] ss:$4 sm:$0xff] %v2584
        %3902 = vst [vmem:[%s3806] ss:$4 sm:$0xff] %v2585
        %3903 = vst [vmem:[%s3808] ss:$4 sm:$0xff] %v2586
        %3904 = vst [vmem:[%s3810] ss:$4 sm:$0xff] %v2497
        %3905 = vst [vmem:[%s3812] ss:$4 sm:$0xff] %v2587
        %3906 = vst [vmem:[%s3814] ss:$4 sm:$0xff] %v2588
        %3907 = vst [vmem:[%s3816] ss:$4 sm:$0xff] %v2589
        %v3908 = vld.sshfl [vmem:[#allocation1] sm:$0xff pattern:$0x73625140]
        %v3909 = vld.sshfl [vmem:[#allocation1 + $0x20] sm:$0xff pattern:$0x73625140]
        %3910 = vst [vmem:[#allocation1] ss:$4 sm:$0xff] %v2498
        %3911 = vst [vmem:[%s3806] ss:$4 sm:$0xff] %v2590
        %3912 = vst [vmem:[%s3808] ss:$4 sm:$0xff] %v2591
        %3913 = vst [vmem:[%s3810] ss:$4 sm:$0xff] %v2592
        %3914 = vst [vmem:[%s3812] ss:$4 sm:$0xff] %v2499
        %3915 = vst [vmem:[%s3814] ss:$4 sm:$0xff] %v2593
        %3916 = vst [vmem:[%s3816] ss:$4 sm:$0xff] %v2594
        %v3917 = vld.sshfl [vmem:[#allocation1] sm:$0xff pattern:$0x73625140]
        %v3918 = vld.sshfl [vmem:[#allocation1 + $0x20] sm:$0xff pattern:$0x73625140]
        %v3943 = vpack.c.bf16 %v3818, %v3818
        %v3944 = vpack.c.bf16 %v3819, %v3819
        %v3945 = vpack.c.bf16 %v3827, %v3827
        %v3946 = vpack.c.bf16 %v3828, %v3828
        %v3947 = vpack.c.bf16 %v3836, %v3836
        %v3948 = vpack.c.bf16 %v3837, %v3837
        %v3949 = vpack.c.bf16 %v3845, %v3845
        %v3950 = vpack.c.bf16 %v3846, %v3846
        %v3951 = vpack.c.bf16 %v3854, %v3854
        %v3952 = vpack.c.bf16 %v3855, %v3855
        %v3953 = vpack.c.bf16 %v3863, %v3863
        %v3954 = vpack.c.bf16 %v3864, %v3864
        %v3955 = vpack.c.bf16 %v3872, %v3872
        %v3956 = vpack.c.bf16 %v3873, %v3873
        %v3957 = vpack.c.bf16 %v3881, %v3881
        %v3958 = vpack.c.bf16 %v3882, %v3882
        %v3959 = vpack.c.bf16 %v3890, %v3890
        %v3960 = vpack.c.bf16 %v3891, %v3891
        %v3961 = vpack.c.bf16 %v3899, %v3899
        %v3962 = vpack.c.bf16 %v3900, %v3900
        %v3963 = vpack.c.bf16 %v3908, %v3908
        %v3964 = vpack.c.bf16 %v3909, %v3909
        %v3965 = vpack.c.bf16 %v3917, %v3917
        %v3966 = vpack.c.bf16 %v3918, %v3918
        %v3968 = vshrl.u32 %v3943, 16
        %v3970 = vrot.slane %v3968, 4
        %v3971 = vshll.u32 %v3943, 16
        %v3973 = vrot.slane %v3971, 5
        %v3974 = vor.u32 %v3970, %v3973
        %v3975 = vrot.slane %v3974, 4
        %v3977 = vshll.u32 %v3944, 16
        %v3979 = vrot.slane %v3977, 5
        %v3980 = vsel %vm449, %v3975, %v3979
        %v3981 = vshrl.u32 %v3944, 16
        %v3983 = vrot.slane %v3981, 4
        %v3984 = vor.u32 %v3983, %v3979
        %v3985 = vrot.slane %v3984, 4
        %v3987 = vshrl.u32 %v3945, 16
        %v3989 = vrot.slane %v3987, 4
        %v3990 = vshll.u32 %v3945, 16
        %v3992 = vrot.slane %v3990, 5
        %v3993 = vor.u32 %v3989, %v3992
        %v3994 = vrot.slane %v3993, 4
        %v3996 = vshll.u32 %v3946, 16
        %v3998 = vrot.slane %v3996, 5
        %v3999 = vsel %vm449, %v3994, %v3998
        %v4000 = vshrl.u32 %v3946, 16
        %v4002 = vrot.slane %v4000, 4
        %v4003 = vor.u32 %v4002, %v3998
        %v4004 = vrot.slane %v4003, 4
        %v4006 = vshrl.u32 %v3947, 16
        %v4008 = vrot.slane %v4006, 4
        %v4009 = vshll.u32 %v3947, 16
        %v4011 = vrot.slane %v4009, 5
        %v4012 = vor.u32 %v4008, %v4011
        %v4013 = vrot.slane %v4012, 4
        %v4015 = vshll.u32 %v3948, 16
        %v4017 = vrot.slane %v4015, 5
        %v4018 = vsel %vm449, %v4013, %v4017
        %v4019 = vshrl.u32 %v3948, 16
        %v4021 = vrot.slane %v4019, 4
        %v4022 = vor.u32 %v4021, %v4017
        %v4023 = vrot.slane %v4022, 4
        %v4025 = vshrl.u32 %v3949, 16
        %v4027 = vrot.slane %v4025, 4
        %v4028 = vshll.u32 %v3949, 16
        %v4030 = vrot.slane %v4028, 5
        %v4031 = vor.u32 %v4027, %v4030
        %v4032 = vrot.slane %v4031, 4
        %v4034 = vshll.u32 %v3950, 16
        %v4036 = vrot.slane %v4034, 5
        %v4037 = vsel %vm449, %v4032, %v4036
        %v4038 = vshrl.u32 %v3950, 16
        %v4040 = vrot.slane %v4038, 4
        %v4041 = vor.u32 %v4040, %v4036
        %v4042 = vrot.slane %v4041, 4
        %v4044 = vshrl.u32 %v3951, 16
        %v4046 = vrot.slane %v4044, 4
        %v4047 = vshll.u32 %v3951, 16
        %v4049 = vrot.slane %v4047, 5
        %v4050 = vor.u32 %v4046, %v4049
        %v4051 = vrot.slane %v4050, 4
        %v4053 = vshll.u32 %v3952, 16
        %v4055 = vrot.slane %v4053, 5
        %v4056 = vsel %vm449, %v4051, %v4055
        %v4057 = vshrl.u32 %v3952, 16
        %v4059 = vrot.slane %v4057, 4
        %v4060 = vor.u32 %v4059, %v4055
        %v4061 = vrot.slane %v4060, 4
        %v4063 = vshrl.u32 %v3953, 16
        %v4065 = vrot.slane %v4063, 4
        %v4066 = vshll.u32 %v3953, 16
        %v4068 = vrot.slane %v4066, 5
        %v4069 = vor.u32 %v4065, %v4068
        %v4070 = vrot.slane %v4069, 4
        %v4072 = vshll.u32 %v3954, 16
        %v4074 = vrot.slane %v4072, 5
        %v4075 = vsel %vm449, %v4070, %v4074
        %v4076 = vshrl.u32 %v3954, 16
        %v4078 = vrot.slane %v4076, 4
        %v4079 = vor.u32 %v4078, %v4074
        %v4080 = vrot.slane %v4079, 4
        %v4082 = vshrl.u32 %v3955, 16
        %v4084 = vrot.slane %v4082, 4
        %v4085 = vshll.u32 %v3955, 16
        %v4087 = vrot.slane %v4085, 5
        %v4088 = vor.u32 %v4084, %v4087
        %v4089 = vrot.slane %v4088, 4
        %v4091 = vshll.u32 %v3956, 16
        %v4093 = vrot.slane %v4091, 5
        %v4094 = vsel %vm449, %v4089, %v4093
        %v4095 = vshrl.u32 %v3956, 16
        %v4097 = vrot.slane %v4095, 4
        %v4098 = vor.u32 %v4097, %v4093
        %v4099 = vrot.slane %v4098, 4
        %v4101 = vshrl.u32 %v3957, 16
        %v4103 = vrot.slane %v4101, 4
        %v4104 = vshll.u32 %v3957, 16
        %v4106 = vrot.slane %v4104, 5
        %v4107 = vor.u32 %v4103, %v4106
        %v4108 = vrot.slane %v4107, 4
        %v4110 = vshll.u32 %v3958, 16
        %v4112 = vrot.slane %v4110, 5
        %v4113 = vsel %vm449, %v4108, %v4112
        %v4114 = vshrl.u32 %v3958, 16
        %v4116 = vrot.slane %v4114, 4
        %v4117 = vor.u32 %v4116, %v4112
        %v4118 = vrot.slane %v4117, 4
        %v4120 = vshrl.u32 %v3959, 16
        %v4122 = vrot.slane %v4120, 4
        %v4123 = vshll.u32 %v3959, 16
        %v4125 = vrot.slane %v4123, 5
        %v4126 = vor.u32 %v4122, %v4125
        %v4127 = vrot.slane %v4126, 4
        %v4129 = vshll.u32 %v3960, 16
        %v4131 = vrot.slane %v4129, 5
        %v4132 = vsel %vm449, %v4127, %v4131
        %v4133 = vshrl.u32 %v3960, 16
        %v4135 = vrot.slane %v4133, 4
        %v4136 = vor.u32 %v4135, %v4131
        %v4137 = vrot.slane %v4136, 4
        %v4139 = vshrl.u32 %v3961, 16
        %v4141 = vrot.slane %v4139, 4
        %v4142 = vshll.u32 %v3961, 16
        %v4144 = vrot.slane %v4142, 5
        %v4145 = vor.u32 %v4141, %v4144
        %v4146 = vrot.slane %v4145, 4
        %v4148 = vshll.u32 %v3962, 16
        %v4150 = vrot.slane %v4148, 5
        %v4151 = vsel %vm449, %v4146, %v4150
        %v4152 = vshrl.u32 %v3962, 16
        %v4154 = vrot.slane %v4152, 4
        %v4155 = vor.u32 %v4154, %v4150
        %v4156 = vrot.slane %v4155, 4
        %v4158 = vshrl.u32 %v3963, 16
        %v4160 = vrot.slane %v4158, 4
        %v4161 = vshll.u32 %v3963, 16
        %v4163 = vrot.slane %v4161, 5
        %v4164 = vor.u32 %v4160, %v4163
        %v4165 = vrot.slane %v4164, 4
        %v4167 = vshll.u32 %v3964, 16
        %v4169 = vrot.slane %v4167, 5
        %v4170 = vsel %vm449, %v4165, %v4169
        %v4171 = vshrl.u32 %v3964, 16
        %v4173 = vrot.slane %v4171, 4
        %v4174 = vor.u32 %v4173, %v4169
        %v4175 = vrot.slane %v4174, 4
        %v4177 = vshrl.u32 %v3965, 16
        %v4179 = vrot.slane %v4177, 4
        %v4180 = vshll.u32 %v3965, 16
        %v4182 = vrot.slane %v4180, 5
        %v4183 = vor.u32 %v4179, %v4182
        %v4184 = vrot.slane %v4183, 4
        %v4186 = vshll.u32 %v3966, 16
        %v4188 = vrot.slane %v4186, 5
        %v4189 = vsel %vm449, %v4184, %v4188
        %v4190 = vshrl.u32 %v3966, 16
        %v4192 = vrot.slane %v4190, 4
        %v4193 = vor.u32 %v4192, %v4188
        %v4194 = vrot.slane %v4193, 4
        %4219 = vst.msk [vmem:[#allocation3 + $0x4] sm:$0xf] %vm2749, %v3980
        %4220 = vst.msk [vmem:[#allocation3 + $0x10] sm:$0x3] %vm2751, %v3985
        %4221 = vst.msk [vmem:[#allocation3 + $0x1c] sm:$0xf] %vm2749, %v3999
        %4222 = vst.msk [vmem:[#allocation3 + $0x28] sm:$0x3] %vm2751, %v4004
        %4223 = vst.msk [vmem:[#allocation3 + $0x34] sm:$0xf] %vm2749, %v4018
        %4224 = vst.msk [vmem:[#allocation3 + $0x40] sm:$0x3] %vm2751, %v4023
        %4225 = vst.msk [vmem:[#allocation3 + $0x4c] sm:$0xf] %vm2749, %v4037
        %4226 = vst.msk [vmem:[#allocation3 + $0x58] sm:$0x3] %vm2751, %v4042
        %4227 = vst.msk [vmem:[#allocation3 + $0x64] sm:$0xf] %vm2749, %v4056
        %4228 = vst.msk [vmem:[#allocation3 + $0x70] sm:$0x3] %vm2751, %v4061
        %4229 = vst.msk [vmem:[#allocation3 + $0x7c] sm:$0xf] %vm2749, %v4075
        %4230 = vst.msk [vmem:[#allocation3 + $0x88] sm:$0x3] %vm2751, %v4080
        %4231 = vst.msk [vmem:[#allocation3 + $0x94] sm:$0xf] %vm2749, %v4094
        %4232 = vst.msk [vmem:[#allocation3 + $0xa0] sm:$0x3] %vm2751, %v4099
        %4233 = vst.msk [vmem:[#allocation3 + $0xac] sm:$0xf] %vm2749, %v4113
        %4234 = vst.msk [vmem:[#allocation3 + $0xb8] sm:$0x3] %vm2751, %v4118
        %4235 = vst.msk [vmem:[#allocation3 + $0xc4] sm:$0xf] %vm2749, %v4132
        %4236 = vst.msk [vmem:[#allocation3 + $0xd0] sm:$0x3] %vm2751, %v4137
        %4237 = vst.msk [vmem:[#allocation3 + $0xdc] sm:$0xf] %vm2749, %v4151
        %4238 = vst.msk [vmem:[#allocation3 + $0xe8] sm:$0x3] %vm2751, %v4156
        %4239 = vst.msk [vmem:[#allocation3 + $0xf4] sm:$0xf] %vm2749, %v4170
        %4240 = vst.msk [vmem:[#allocation3 + $0x100] sm:$0x3] %vm2751, %v4175
        %4241 = vst.msk [vmem:[#allocation3 + $0x10c] sm:$0xf] %vm2749, %v4189
        %4242 = vst.msk [vmem:[#allocation3 + $0x118] sm:$0x3] %vm2751, %v4194
        %4243 = vst [vmem:[#allocation1] ss:$4 sm:$0xff] %v2479
        %s4244 = scalar_lea.vmem [#allocation1], 1
        %4245 = vst [vmem:[%s4244] ss:$4 sm:$0xff] %v2533
        %s4246 = scalar_lea.vmem [#allocation1], 2
        %4247 = vst [vmem:[%s4246] ss:$4 sm:$0xff] %v2534
        %s4248 = scalar_lea.vmem [#allocation1], 3
        %4249 = vst [vmem:[%s4248] ss:$4 sm:$0xff] %v2535
        %s4250 = scalar_lea.vmem [#allocation1], 32
        %4251 = vst [vmem:[%s4250] ss:$4 sm:$0xff] %v2480
        %s4252 = scalar_lea.vmem [#allocation1], 33
        %4253 = vst [vmem:[%s4252] ss:$4 sm:$0xff] %v2536
        %v4254 = vld.sshfl [vmem:[#allocation1] sm:$0xff pattern:$0x73625140]
        %v4255 = vld.sshfl [vmem:[#allocation1 + $0x20] sm:$0xff pattern:$0x73625140]
        %4256 = vst [vmem:[#allocation1] ss:$4 sm:$0xff] %v2538
        %4257 = vst [vmem:[%s4244] ss:$4 sm:$0xff] %v2481
        %4258 = vst [vmem:[%s4246] ss:$4 sm:$0xff] %v2539
        %4259 = vst [vmem:[%s4248] ss:$4 sm:$0xff] %v2540
        %4260 = vst [vmem:[%s4250] ss:$4 sm:$0xff] %v2541
        %4261 = vst [vmem:[%s4252] ss:$4 sm:$0xff] %v2482
        %v4262 = vld.sshfl [vmem:[#allocation1] sm:$0xff pattern:$0x73625140]
        %v4263 = vld.sshfl [vmem:[#allocation1 + $0x20] sm:$0xff pattern:$0x73625140]
        %4264 = vst [vmem:[#allocation1] ss:$4 sm:$0xff] %v2543
        %4265 = vst [vmem:[%s4244] ss:$4 sm:$0xff] %v2544
        %4266 = vst [vmem:[%s4246] ss:$4 sm:$0xff] %v2483
        %4267 = vst [vmem:[%s4248] ss:$4 sm:$0xff] %v2545
        %4268 = vst [vmem:[%s4250] ss:$4 sm:$0xff] %v2546
        %4269 = vst [vmem:[%s4252] ss:$4 sm:$0xff] %v2547
        %v4270 = vld.sshfl [vmem:[#allocation1] sm:$0xff pattern:$0x73625140]
        %v4271 = vld.sshfl [vmem:[#allocation1 + $0x20] sm:$0xff pattern:$0x73625140]
        %4272 = vst [vmem:[#allocation1] ss:$4 sm:$0xff] %v2548
        %4273 = vst [vmem:[%s4244] ss:$4 sm:$0xff] %v2549
        %4274 = vst [vmem:[%s4246] ss:$4 sm:$0xff] %v2550
        %4275 = vst [vmem:[%s4248] ss:$4 sm:$0xff] %v2485
        %4276 = vst [vmem:[%s4250] ss:$4 sm:$0xff] %v2551
        %4277 = vst [vmem:[%s4252] ss:$4 sm:$0xff] %v2552
        %v4278 = vld.sshfl [vmem:[#allocation1] sm:$0xff pattern:$0x73625140]
        %v4279 = vld.sshfl [vmem:[#allocation1 + $0x20] sm:$0xff pattern:$0x73625140]
        %4280 = vst [vmem:[#allocation1] ss:$4 sm:$0xff] %v2486
        %4281 = vst [vmem:[%s4244] ss:$4 sm:$0xff] %v2554
        %4282 = vst [vmem:[%s4246] ss:$4 sm:$0xff] %v2555
        %4283 = vst [vmem:[%s4248] ss:$4 sm:$0xff] %v2556
        %4284 = vst [vmem:[%s4250] ss:$4 sm:$0xff] %v2487
        %4285 = vst [vmem:[%s4252] ss:$4 sm:$0xff] %v2557
        %v4286 = vld.sshfl [vmem:[#allocation1] sm:$0xff pattern:$0x73625140]
        %v4287 = vld.sshfl [vmem:[#allocation1 + $0x20] sm:$0xff pattern:$0x73625140]
        %4288 = vst [vmem:[#allocation1] ss:$4 sm:$0xff] %v2559
        %4289 = vst [vmem:[%s4244] ss:$4 sm:$0xff] %v2488
        %4290 = vst [vmem:[%s4246] ss:$4 sm:$0xff] %v2560
        %4291 = vst [vmem:[%s4248] ss:$4 sm:$0xff] %v2561
        %4292 = vst [vmem:[%s4250] ss:$4 sm:$0xff] %v2562
        %4293 = vst [vmem:[%s4252] ss:$4 sm:$0xff] %v2489
        %v4294 = vld.sshfl [vmem:[#allocation1] sm:$0xff pattern:$0x73625140]
        %v4295 = vld.sshfl [vmem:[#allocation1 + $0x20] sm:$0xff pattern:$0x73625140]
        %4296 = vst [vmem:[#allocation1] ss:$4 sm:$0xff] %v2564
        %4297 = vst [vmem:[%s4244] ss:$4 sm:$0xff] %v2565
        %4298 = vst [vmem:[%s4246] ss:$4 sm:$0xff] %v2490
        %4299 = vst [vmem:[%s4248] ss:$4 sm:$0xff] %v2566
        %4300 = vst [vmem:[%s4250] ss:$4 sm:$0xff] %v2567
        %4301 = vst [vmem:[%s4252] ss:$4 sm:$0xff] %v2568
        %v4302 = vld.sshfl [vmem:[#allocation1] sm:$0xff pattern:$0x73625140]
        %v4303 = vld.sshfl [vmem:[#allocation1 + $0x20] sm:$0xff pattern:$0x73625140]
        %4304 = vst [vmem:[#allocation1] ss:$4 sm:$0xff] %v2569
        %4305 = vst [vmem:[%s4244] ss:$4 sm:$0xff] %v2570
        %4306 = vst [vmem:[%s4246] ss:$4 sm:$0xff] %v2571
        %4307 = vst [vmem:[%s4248] ss:$4 sm:$0xff] %v2492
        %4308 = vst [vmem:[%s4250] ss:$4 sm:$0xff] %v2572
        %4309 = vst [vmem:[%s4252] ss:$4 sm:$0xff] %v2573
        %v4310 = vld.sshfl [vmem:[#allocation1] sm:$0xff pattern:$0x73625140]
        %v4311 = vld.sshfl [vmem:[#allocation1 + $0x20] sm:$0xff pattern:$0x73625140]
        %4312 = vst [vmem:[#allocation1] ss:$4 sm:$0xff] %v2493
        %4313 = vst [vmem:[%s4244] ss:$4 sm:$0xff] %v2575
        %4314 = vst [vmem:[%s4246] ss:$4 sm:$0xff] %v2576
        %4315 = vst [vmem:[%s4248] ss:$4 sm:$0xff] %v2577
        %4316 = vst [vmem:[%s4250] ss:$4 sm:$0xff] %v2494
        %4317 = vst [vmem:[%s4252] ss:$4 sm:$0xff] %v2578
        %v4318 = vld.sshfl [vmem:[#allocation1] sm:$0xff pattern:$0x73625140]
        %v4319 = vld.sshfl [vmem:[#allocation1 + $0x20] sm:$0xff pattern:$0x73625140]
        %4320 = vst [vmem:[#allocation1] ss:$4 sm:$0xff] %v2580
        %4321 = vst [vmem:[%s4244] ss:$4 sm:$0xff] %v2495
        %4322 = vst [vmem:[%s4246] ss:$4 sm:$0xff] %v2581
        %4323 = vst [vmem:[%s4248] ss:$4 sm:$0xff] %v2582
        %4324 = vst [vmem:[%s4250] ss:$4 sm:$0xff] %v2583
        %4325 = vst [vmem:[%s4252] ss:$4 sm:$0xff] %v2496
        %v4326 = vld.sshfl [vmem:[#allocation1] sm:$0xff pattern:$0x73625140]
        %v4327 = vld.sshfl [vmem:[#allocation1 + $0x20] sm:$0xff pattern:$0x73625140]
        %4328 = vst [vmem:[#allocation1] ss:$4 sm:$0xff] %v2585
        %4329 = vst [vmem:[%s4244] ss:$4 sm:$0xff] %v2586
        %4330 = vst [vmem:[%s4246] ss:$4 sm:$0xff] %v2497
        %4331 = vst [vmem:[%s4248] ss:$4 sm:$0xff] %v2587
        %4332 = vst [vmem:[%s4250] ss:$4 sm:$0xff] %v2588
        %4333 = vst [vmem:[%s4252] ss:$4 sm:$0xff] %v2589
        %v4334 = vld.sshfl [vmem:[#allocation1] sm:$0xff pattern:$0x73625140]
        %v4335 = vld.sshfl [vmem:[#allocation1 + $0x20] sm:$0xff pattern:$0x73625140]
        %4336 = vst [vmem:[#allocation1] ss:$4 sm:$0xff] %v2590
        %4337 = vst [vmem:[%s4244] ss:$4 sm:$0xff] %v2591
        %4338 = vst [vmem:[%s4246] ss:$4 sm:$0xff] %v2592
        %4339 = vst [vmem:[%s4248] ss:$4 sm:$0xff] %v2499
        %4340 = vst [vmem:[%s4250] ss:$4 sm:$0xff] %v2593
        %4341 = vst [vmem:[%s4252] ss:$4 sm:$0xff] %v2594
        %v4342 = vld.sshfl [vmem:[#allocation1] sm:$0xff pattern:$0x73625140]
        %v4343 = vld.sshfl [vmem:[#allocation1 + $0x20] sm:$0xff pattern:$0x73625140]
        %v4368 = vpack.c.bf16 %v4254, %v4254
        %v4369 = vpack.c.bf16 %v4255, %v4255
        %v4370 = vpack.c.bf16 %v4262, %v4262
        %v4371 = vpack.c.bf16 %v4263, %v4263
        %v4372 = vpack.c.bf16 %v4270, %v4270
        %v4373 = vpack.c.bf16 %v4271, %v4271
        %v4374 = vpack.c.bf16 %v4278, %v4278
        %v4375 = vpack.c.bf16 %v4279, %v4279
        %v4376 = vpack.c.bf16 %v4286, %v4286
        %v4377 = vpack.c.bf16 %v4287, %v4287
        %v4378 = vpack.c.bf16 %v4294, %v4294
        %v4379 = vpack.c.bf16 %v4295, %v4295
        %v4380 = vpack.c.bf16 %v4302, %v4302
        %v4381 = vpack.c.bf16 %v4303, %v4303
        %v4382 = vpack.c.bf16 %v4310, %v4310
        %v4383 = vpack.c.bf16 %v4311, %v4311
        %v4384 = vpack.c.bf16 %v4318, %v4318
        %v4385 = vpack.c.bf16 %v4319, %v4319
        %v4386 = vpack.c.bf16 %v4326, %v4326
        %v4387 = vpack.c.bf16 %v4327, %v4327
        %v4388 = vpack.c.bf16 %v4334, %v4334
        %v4389 = vpack.c.bf16 %v4335, %v4335
        %v4390 = vpack.c.bf16 %v4342, %v4342
        %v4391 = vpack.c.bf16 %v4343, %v4343
        %4416 = vrot.lane.b32.xlu0 %v4368, 32
        %v4417 = vpop.permute.xlu0 %4416
        %4418 = vrot.lane.b32.xlu0 %v4369, 32
        %v4419 = vpop.permute.xlu0 %4418
        %4420 = vrot.lane.b32.xlu0 %v4370, 32
        %v4421 = vpop.permute.xlu0 %4420
        %4422 = vrot.lane.b32.xlu0 %v4371, 32
        %v4423 = vpop.permute.xlu0 %4422
        %4424 = vrot.lane.b32.xlu0 %v4372, 32
        %v4425 = vpop.permute.xlu0 %4424
        %4426 = vrot.lane.b32.xlu0 %v4373, 32
        %v4427 = vpop.permute.xlu0 %4426
        %4428 = vrot.lane.b32.xlu0 %v4374, 32
        %v4429 = vpop.permute.xlu0 %4428
        %4430 = vrot.lane.b32.xlu0 %v4375, 32
        %v4431 = vpop.permute.xlu0 %4430
        %4432 = vrot.lane.b32.xlu0 %v4376, 32
        %v4433 = vpop.permute.xlu0 %4432
        %4434 = vrot.lane.b32.xlu0 %v4377, 32
        %v4435 = vpop.permute.xlu0 %4434
        %4436 = vrot.lane.b32.xlu0 %v4378, 32
        %v4437 = vpop.permute.xlu0 %4436
        %4438 = vrot.lane.b32.xlu0 %v4379, 32
        %v4439 = vpop.permute.xlu0 %4438
        %4440 = vrot.lane.b32.xlu0 %v4380, 32
        %v4441 = vpop.permute.xlu0 %4440
        %4442 = vrot.lane.b32.xlu0 %v4381, 32
        %v4443 = vpop.permute.xlu0 %4442
        %4444 = vrot.lane.b32.xlu0 %v4382, 32
        %v4445 = vpop.permute.xlu0 %4444
        %4446 = vrot.lane.b32.xlu0 %v4383, 32
        %v4447 = vpop.permute.xlu0 %4446
        %4448 = vrot.lane.b32.xlu0 %v4384, 32
        %v4449 = vpop.permute.xlu0 %4448
        %4450 = vrot.lane.b32.xlu0 %v4385, 32
        %v4451 = vpop.permute.xlu0 %4450
        %4452 = vrot.lane.b32.xlu0 %v4386, 32
        %v4453 = vpop.permute.xlu0 %4452
        %4454 = vrot.lane.b32.xlu0 %v4387, 32
        %v4455 = vpop.permute.xlu0 %4454
        %4456 = vrot.lane.b32.xlu0 %v4388, 32
        %v4457 = vpop.permute.xlu0 %4456
        %4458 = vrot.lane.b32.xlu0 %v4389, 32
        %v4459 = vpop.permute.xlu0 %4458
        %4460 = vrot.lane.b32.xlu0 %v4390, 32
        %v4461 = vpop.permute.xlu0 %4460
        %4462 = vrot.lane.b32.xlu0 %v4391, 32
        %v4463 = vpop.permute.xlu0 %4462
        %4488 = vst.msk [vmem:[#allocation3 + $0x4] sm:$0xf] %vm3237, %v4417
        %4489 = vst.msk [vmem:[#allocation3 + $0x10] sm:$0x3] %vm3239, %v4419
        %4490 = vst.msk [vmem:[#allocation3 + $0x1c] sm:$0xf] %vm3237, %v4421
        %4491 = vst.msk [vmem:[#allocation3 + $0x28] sm:$0x3] %vm3239, %v4423
        %4492 = vst.msk [vmem:[#allocation3 + $0x34] sm:$0xf] %vm3237, %v4425
        %4493 = vst.msk [vmem:[#allocation3 + $0x40] sm:$0x3] %vm3239, %v4427
        %4494 = vst.msk [vmem:[#allocation3 + $0x4c] sm:$0xf] %vm3237, %v4429
        %4495 = vst.msk [vmem:[#allocation3 + $0x58] sm:$0x3] %vm3239, %v4431
        %4496 = vst.msk [vmem:[#allocation3 + $0x64] sm:$0xf] %vm3237, %v4433
        %4497 = vst.msk [vmem:[#allocation3 + $0x70] sm:$0x3] %vm3239, %v4435
        %4498 = vst.msk [vmem:[#allocation3 + $0x7c] sm:$0xf] %vm3237, %v4437
        %4499 = vst.msk [vmem:[#allocation3 + $0x88] sm:$0x3] %vm3239, %v4439
        %4500 = vst.msk [vmem:[#allocation3 + $0x94] sm:$0xf] %vm3237, %v4441
        %4501 = vst.msk [vmem:[#allocation3 + $0xa0] sm:$0x3] %vm3239, %v4443
        %4502 = vst.msk [vmem:[#allocation3 + $0xac] sm:$0xf] %vm3237, %v4445
        %4503 = vst.msk [vmem:[#allocation3 + $0xb8] sm:$0x3] %vm3239, %v4447
        %4504 = vst.msk [vmem:[#allocation3 + $0xc4] sm:$0xf] %vm3237, %v4449
        %4505 = vst.msk [vmem:[#allocation3 + $0xd0] sm:$0x3] %vm3239, %v4451
        %4506 = vst.msk [vmem:[#allocation3 + $0xdc] sm:$0xf] %vm3237, %v4453
        %4507 = vst.msk [vmem:[#allocation3 + $0xe8] sm:$0x3] %vm3239, %v4455
        %4508 = vst.msk [vmem:[#allocation3 + $0xf4] sm:$0xf] %vm3237, %v4457
        %4509 = vst.msk [vmem:[#allocation3 + $0x100] sm:$0x3] %vm3239, %v4459
        %4510 = vst.msk [vmem:[#allocation3 + $0x10c] sm:$0xf] %vm3237, %v4461
        %4511 = vst.msk [vmem:[#allocation3 + $0x118] sm:$0x3] %vm3239, %v4463
        %4512 = vst [vmem:[#allocation1] ss:$4 sm:$0xff] %v2537
        %s4513 = scalar_lea.vmem [#allocation1], 1
        %4514 = vst [vmem:[%s4513] ss:$4 sm:$0xff] %v2538
        %s4515 = scalar_lea.vmem [#allocation1], 2
        %4516 = vst [vmem:[%s4515] ss:$4 sm:$0xff] %v2481
        %s4517 = scalar_lea.vmem [#allocation1], 3
        %4518 = vst [vmem:[%s4517] ss:$4 sm:$0xff] %v2539
        %s4519 = scalar_lea.vmem [#allocation1], 32
        %4520 = vst [vmem:[%s4519] ss:$4 sm:$0xff] %v2540
        %s4521 = scalar_lea.vmem [#allocation1], 33
        %4522 = vst [vmem:[%s4521] ss:$4 sm:$0xff] %v2541
        %v4523 = vld.sshfl [vmem:[#allocation1] sm:$0xff pattern:$0x73625140]
        %v4524 = vld.sshfl [vmem:[#allocation1 + $0x20] sm:$0xff pattern:$0x73625140]
        %4525 = vst [vmem:[#allocation1] ss:$4 sm:$0xff] %v2542
        %4526 = vst [vmem:[%s4513] ss:$4 sm:$0xff] %v2543
        %4527 = vst [vmem:[%s4515] ss:$4 sm:$0xff] %v2544
        %4528 = vst [vmem:[%s4517] ss:$4 sm:$0xff] %v2483
        %4529 = vst [vmem:[%s4519] ss:$4 sm:$0xff] %v2545
        %4530 = vst [vmem:[%s4521] ss:$4 sm:$0xff] %v2546
        %v4531 = vld.sshfl [vmem:[#allocation1] sm:$0xff pattern:$0x73625140]
        %v4532 = vld.sshfl [vmem:[#allocation1 + $0x20] sm:$0xff pattern:$0x73625140]
        %4533 = vst [vmem:[#allocation1] ss:$4 sm:$0xff] %v2484
        %4534 = vst [vmem:[%s4513] ss:$4 sm:$0xff] %v2548
        %4535 = vst [vmem:[%s4515] ss:$4 sm:$0xff] %v2549
        %4536 = vst [vmem:[%s4517] ss:$4 sm:$0xff] %v2550
        %4537 = vst [vmem:[%s4519] ss:$4 sm:$0xff] %v2485
        %4538 = vst [vmem:[%s4521] ss:$4 sm:$0xff] %v2551
        %v4539 = vld.sshfl [vmem:[#allocation1] sm:$0xff pattern:$0x73625140]
        %v4540 = vld.sshfl [vmem:[#allocation1 + $0x20] sm:$0xff pattern:$0x73625140]
        %4541 = vst [vmem:[#allocation1] ss:$4 sm:$0xff] %v2553
        %4542 = vst [vmem:[%s4513] ss:$4 sm:$0xff] %v2486
        %4543 = vst [vmem:[%s4515] ss:$4 sm:$0xff] %v2554
        %4544 = vst [vmem:[%s4517] ss:$4 sm:$0xff] %v2555
        %4545 = vst [vmem:[%s4519] ss:$4 sm:$0xff] %v2556
        %4546 = vst [vmem:[%s4521] ss:$4 sm:$0xff] %v2487
        %v4547 = vld.sshfl [vmem:[#allocation1] sm:$0xff pattern:$0x73625140]
        %v4548 = vld.sshfl [vmem:[#allocation1 + $0x20] sm:$0xff pattern:$0x73625140]
        %4549 = vst [vmem:[#allocation1] ss:$4 sm:$0xff] %v2558
        %4550 = vst [vmem:[%s4513] ss:$4 sm:$0xff] %v2559
        %4551 = vst [vmem:[%s4515] ss:$4 sm:$0xff] %v2488
        %4552 = vst [vmem:[%s4517] ss:$4 sm:$0xff] %v2560
        %4553 = vst [vmem:[%s4519] ss:$4 sm:$0xff] %v2561
        %4554 = vst [vmem:[%s4521] ss:$4 sm:$0xff] %v2562
        %v4555 = vld.sshfl [vmem:[#allocation1] sm:$0xff pattern:$0x73625140]
        %v4556 = vld.sshfl [vmem:[#allocation1 + $0x20] sm:$0xff pattern:$0x73625140]
        %4557 = vst [vmem:[#allocation1] ss:$4 sm:$0xff] %v2563
        %4558 = vst [vmem:[%s4513] ss:$4 sm:$0xff] %v2564
        %4559 = vst [vmem:[%s4515] ss:$4 sm:$0xff] %v2565
        %4560 = vst [vmem:[%s4517] ss:$4 sm:$0xff] %v2490
        %4561 = vst [vmem:[%s4519] ss:$4 sm:$0xff] %v2566
        %4562 = vst [vmem:[%s4521] ss:$4 sm:$0xff] %v2567
        %v4563 = vld.sshfl [vmem:[#allocation1] sm:$0xff pattern:$0x73625140]
        %v4564 = vld.sshfl [vmem:[#allocation1 + $0x20] sm:$0xff pattern:$0x73625140]
        %4565 = vst [vmem:[#allocation1] ss:$4 sm:$0xff] %v2491
        %4566 = vst [vmem:[%s4513] ss:$4 sm:$0xff] %v2569
        %4567 = vst [vmem:[%s4515] ss:$4 sm:$0xff] %v2570
        %4568 = vst [vmem:[%s4517] ss:$4 sm:$0xff] %v2571
        %4569 = vst [vmem:[%s4519] ss:$4 sm:$0xff] %v2492
        %4570 = vst [vmem:[%s4521] ss:$4 sm:$0xff] %v2572
        %v4571 = vld.sshfl [vmem:[#allocation1] sm:$0xff pattern:$0x73625140]
        %v4572 = vld.sshfl [vmem:[#allocation1 + $0x20] sm:$0xff pattern:$0x73625140]
        %4573 = vst [vmem:[#allocation1] ss:$4 sm:$0xff] %v2574
        %4574 = vst [vmem:[%s4513] ss:$4 sm:$0xff] %v2493
        %4575 = vst [vmem:[%s4515] ss:$4 sm:$0xff] %v2575
        %4576 = vst [vmem:[%s4517] ss:$4 sm:$0xff] %v2576
        %4577 = vst [vmem:[%s4519] ss:$4 sm:$0xff] %v2577
        %4578 = vst [vmem:[%s4521] ss:$4 sm:$0xff] %v2494
        %v4579 = vld.sshfl [vmem:[#allocation1] sm:$0xff pattern:$0x73625140]
        %v4580 = vld.sshfl [vmem:[#allocation1 + $0x20] sm:$0xff pattern:$0x73625140]
        %4581 = vst [vmem:[#allocation1] ss:$4 sm:$0xff] %v2579
        %4582 = vst [vmem:[%s4513] ss:$4 sm:$0xff] %v2580
        %4583 = vst [vmem:[%s4515] ss:$4 sm:$0xff] %v2495
        %4584 = vst [vmem:[%s4517] ss:$4 sm:$0xff] %v2581
        %4585 = vst [vmem:[%s4519] ss:$4 sm:$0xff] %v2582
        %4586 = vst [vmem:[%s4521] ss:$4 sm:$0xff] %v2583
        %v4587 = vld.sshfl [vmem:[#allocation1] sm:$0xff pattern:$0x73625140]
        %v4588 = vld.sshfl [vmem:[#allocation1 + $0x20] sm:$0xff pattern:$0x73625140]
        %4589 = vst [vmem:[#allocation1] ss:$4 sm:$0xff] %v2584
        %4590 = vst [vmem:[%s4513] ss:$4 sm:$0xff] %v2585
        %4591 = vst [vmem:[%s4515] ss:$4 sm:$0xff] %v2586
        %4592 = vst [vmem:[%s4517] ss:$4 sm:$0xff] %v2497
        %4593 = vst [vmem:[%s4519] ss:$4 sm:$0xff] %v2587
        %4594 = vst [vmem:[%s4521] ss:$4 sm:$0xff] %v2588
        %v4595 = vld.sshfl [vmem:[#allocation1] sm:$0xff pattern:$0x73625140]
        %v4596 = vld.sshfl [vmem:[#allocation1 + $0x20] sm:$0xff pattern:$0x73625140]
        %4597 = vst [vmem:[#allocation1] ss:$4 sm:$0xff] %v2498
        %4598 = vst [vmem:[%s4513] ss:$4 sm:$0xff] %v2590
        %4599 = vst [vmem:[%s4515] ss:$4 sm:$0xff] %v2591
        %4600 = vst [vmem:[%s4517] ss:$4 sm:$0xff] %v2592
        %4601 = vst [vmem:[%s4519] ss:$4 sm:$0xff] %v2499
        %4602 = vst [vmem:[%s4521] ss:$4 sm:$0xff] %v2593
        %v4603 = vld.sshfl [vmem:[#allocation1] sm:$0xff pattern:$0x73625140]
        %v4604 = vld.sshfl [vmem:[#allocation1 + $0x20] sm:$0xff pattern:$0x73625140]
        %4605 = vst [vmem:[#allocation1] ss:$4 sm:$0xff] %v2595
        %4606 = vst [vmem:[%s4513] ss:$4 sm:$0xff] %v2500
        %4607 = vst [vmem:[%s4515] ss:$4 sm:$0xff] %v2596
        %4608 = vst [vmem:[%s4517] ss:$4 sm:$0xff] %v2597
        %4609 = vst [vmem:[%s4519] ss:$4 sm:$0xff] %v2598
        %4610 = vst [vmem:[%s4521] ss:$4 sm:$0xff] %v2501
        %v4611 = vld.sshfl [vmem:[#allocation1] sm:$0xff pattern:$0x73625140]
        %v4612 = vld.sshfl [vmem:[#allocation1 + $0x20] sm:$0xff pattern:$0x73625140]
        %v4637 = vpack.c.bf16 %v4523, %v4523
        %v4638 = vpack.c.bf16 %v4524, %v4524
        %v4639 = vpack.c.bf16 %v4531, %v4531
        %v4640 = vpack.c.bf16 %v4532, %v4532
        %v4641 = vpack.c.bf16 %v4539, %v4539
        %v4642 = vpack.c.bf16 %v4540, %v4540
        %v4643 = vpack.c.bf16 %v4547, %v4547
        %v4644 = vpack.c.bf16 %v4548, %v4548
        %v4645 = vpack.c.bf16 %v4555, %v4555
        %v4646 = vpack.c.bf16 %v4556, %v4556
        %v4647 = vpack.c.bf16 %v4563, %v4563
        %v4648 = vpack.c.bf16 %v4564, %v4564
        %v4649 = vpack.c.bf16 %v4571, %v4571
        %v4650 = vpack.c.bf16 %v4572, %v4572
        %v4651 = vpack.c.bf16 %v4579, %v4579
        %v4652 = vpack.c.bf16 %v4580, %v4580
        %v4653 = vpack.c.bf16 %v4587, %v4587
        %v4654 = vpack.c.bf16 %v4588, %v4588
        %v4655 = vpack.c.bf16 %v4595, %v4595
        %v4656 = vpack.c.bf16 %v4596, %v4596
        %v4657 = vpack.c.bf16 %v4603, %v4603
        %v4658 = vpack.c.bf16 %v4604, %v4604
        %v4659 = vpack.c.bf16 %v4611, %v4611
        %v4660 = vpack.c.bf16 %v4612, %v4612
        %4685 = vrot.lane.b32.xlu0 %v4637, 64
        %v4686 = vpop.permute.xlu0 %4685
        %4687 = vrot.lane.b32.xlu0 %v4638, 64
        %v4688 = vpop.permute.xlu0 %4687
        %4689 = vrot.lane.b32.xlu0 %v4639, 64
        %v4690 = vpop.permute.xlu0 %4689
        %4691 = vrot.lane.b32.xlu0 %v4640, 64
        %v4692 = vpop.permute.xlu0 %4691
        %4693 = vrot.lane.b32.xlu0 %v4641, 64
        %v4694 = vpop.permute.xlu0 %4693
        %4695 = vrot.lane.b32.xlu0 %v4642, 64
        %v4696 = vpop.permute.xlu0 %4695
        %4697 = vrot.lane.b32.xlu0 %v4643, 64
        %v4698 = vpop.permute.xlu0 %4697
        %4699 = vrot.lane.b32.xlu0 %v4644, 64
        %v4700 = vpop.permute.xlu0 %4699
        %4701 = vrot.lane.b32.xlu0 %v4645, 64
        %v4702 = vpop.permute.xlu0 %4701
        %4703 = vrot.lane.b32.xlu0 %v4646, 64
        %v4704 = vpop.permute.xlu0 %4703
        %4705 = vrot.lane.b32.xlu0 %v4647, 64
        %v4706 = vpop.permute.xlu0 %4705
        %4707 = vrot.lane.b32.xlu0 %v4648, 64
        %v4708 = vpop.permute.xlu0 %4707
        %4709 = vrot.lane.b32.xlu0 %v4649, 64
        %v4710 = vpop.permute.xlu0 %4709
        %4711 = vrot.lane.b32.xlu0 %v4650, 64
        %v4712 = vpop.permute.xlu0 %4711
        %4713 = vrot.lane.b32.xlu0 %v4651, 64
        %v4714 = vpop.permute.xlu0 %4713
        %4715 = vrot.lane.b32.xlu0 %v4652, 64
        %v4716 = vpop.permute.xlu0 %4715
        %4717 = vrot.lane.b32.xlu0 %v4653, 64
        %v4718 = vpop.permute.xlu0 %4717
        %4719 = vrot.lane.b32.xlu0 %v4654, 64
        %v4720 = vpop.permute.xlu0 %4719
        %4721 = vrot.lane.b32.xlu0 %v4655, 64
        %v4722 = vpop.permute.xlu0 %4721
        %4723 = vrot.lane.b32.xlu0 %v4656, 64
        %v4724 = vpop.permute.xlu0 %4723
        %4725 = vrot.lane.b32.xlu0 %v4657, 64
        %v4726 = vpop.permute.xlu0 %4725
        %4727 = vrot.lane.b32.xlu0 %v4658, 64
        %v4728 = vpop.permute.xlu0 %4727
        %4729 = vrot.lane.b32.xlu0 %v4659, 64
        %v4730 = vpop.permute.xlu0 %4729
        %4731 = vrot.lane.b32.xlu0 %v4660, 64
        %v4732 = vpop.permute.xlu0 %4731
        %4757 = vst.msk [vmem:[#allocation3 + $0x4] sm:$0xf] %vm3508, %v4686
        %4758 = vst.msk [vmem:[#allocation3 + $0x10] sm:$0x3] %vm3510, %v4688
        %4759 = vst.msk [vmem:[#allocation3 + $0x1c] sm:$0xf] %vm3508, %v4690
        %4760 = vst.msk [vmem:[#allocation3 + $0x28] sm:$0x3] %vm3510, %v4692
        %4761 = vst.msk [vmem:[#allocation3 + $0x34] sm:$0xf] %vm3508, %v4694
        %4762 = vst.msk [vmem:[#allocation3 + $0x40] sm:$0x3] %vm3510, %v4696
        %4763 = vst.msk [vmem:[#allocation3 + $0x4c] sm:$0xf] %vm3508, %v4698
        %4764 = vst.msk [vmem:[#allocation3 + $0x58] sm:$0x3] %vm3510, %v4700
        %4765 = vst.msk [vmem:[#allocation3 + $0x64] sm:$0xf] %vm3508, %v4702
        %4766 = vst.msk [vmem:[#allocation3 + $0x70] sm:$0x3] %vm3510, %v4704
        %4767 = vst.msk [vmem:[#allocation3 + $0x7c] sm:$0xf] %vm3508, %v4706
        %4768 = vst.msk [vmem:[#allocation3 + $0x88] sm:$0x3] %vm3510, %v4708
        %4769 = vst.msk [vmem:[#allocation3 + $0x94] sm:$0xf] %vm3508, %v4710
        %4770 = vst.msk [vmem:[#allocation3 + $0xa0] sm:$0x3] %vm3510, %v4712
        %4771 = vst.msk [vmem:[#allocation3 + $0xac] sm:$0xf] %vm3508, %v4714
        %4772 = vst.msk [vmem:[#allocation3 + $0xb8] sm:$0x3] %vm3510, %v4716
        %4773 = vst.msk [vmem:[#allocation3 + $0xc4] sm:$0xf] %vm3508, %v4718
        %4774 = vst.msk [vmem:[#allocation3 + $0xd0] sm:$0x3] %vm3510, %v4720
        %4775 = vst.msk [vmem:[#allocation3 + $0xdc] sm:$0xf] %vm3508, %v4722
        %4776 = vst.msk [vmem:[#allocation3 + $0xe8] sm:$0x3] %vm3510, %v4724
        %4777 = vst.msk [vmem:[#allocation3 + $0xf4] sm:$0xf] %vm3508, %v4726
        %4778 = vst.msk [vmem:[#allocation3 + $0x100] sm:$0x3] %vm3510, %v4728
        %4779 = vst.msk [vmem:[#allocation3 + $0x10c] sm:$0xf] %vm3508, %v4730
        %4780 = vst.msk [vmem:[#allocation3 + $0x118] sm:$0x3] %vm3510, %v4732
        %4781 = vst [vmem:[#allocation1] ss:$4 sm:$0xff] %v2537
        %s4782 = scalar_lea.vmem [#allocation1], 1
        %4783 = vst [vmem:[%s4782] ss:$4 sm:$0xff] %v2538
        %s4784 = scalar_lea.vmem [#allocation1], 2
        %4785 = vst [vmem:[%s4784] ss:$4 sm:$0xff] %v2481
        %s4786 = scalar_lea.vmem [#allocation1], 3
        %4787 = vst [vmem:[%s4786] ss:$4 sm:$0xff] %v2539
        %s4788 = scalar_lea.vmem [#allocation1], 32
        %4789 = vst [vmem:[%s4788] ss:$4 sm:$0xff] %v2540
        %s4790 = scalar_lea.vmem [#allocation1], 33
        %4791 = vst [vmem:[%s4790] ss:$4 sm:$0xff] %v2541
        %s4792 = scalar_lea.vmem [#allocation1], 34
        %4793 = vst [vmem:[%s4792] ss:$4 sm:$0xff] %v2482
        %v4794 = vld.sshfl [vmem:[#allocation1] sm:$0xff pattern:$0x73625140]
        %v4795 = vld.sshfl [vmem:[#allocation1 + $0x20] sm:$0xff pattern:$0x73625140]
        %4796 = vst [vmem:[#allocation1] ss:$4 sm:$0xff] %v2542
        %4797 = vst [vmem:[%s4782] ss:$4 sm:$0xff] %v2543
        %4798 = vst [vmem:[%s4784] ss:$4 sm:$0xff] %v2544
        %4799 = vst [vmem:[%s4786] ss:$4 sm:$0xff] %v2483
        %4800 = vst [vmem:[%s4788] ss:$4 sm:$0xff] %v2545
        %4801 = vst [vmem:[%s4790] ss:$4 sm:$0xff] %v2546
        %4802 = vst [vmem:[%s4792] ss:$4 sm:$0xff] %v2547
        %v4803 = vld.sshfl [vmem:[#allocation1] sm:$0xff pattern:$0x73625140]
        %v4804 = vld.sshfl [vmem:[#allocation1 + $0x20] sm:$0xff pattern:$0x73625140]
        %4805 = vst [vmem:[#allocation1] ss:$4 sm:$0xff] %v2484
        %4806 = vst [vmem:[%s4782] ss:$4 sm:$0xff] %v2548
        %4807 = vst [vmem:[%s4784] ss:$4 sm:$0xff] %v2549
        %4808 = vst [vmem:[%s4786] ss:$4 sm:$0xff] %v2550
        %4809 = vst [vmem:[%s4788] ss:$4 sm:$0xff] %v2485
        %4810 = vst [vmem:[%s4790] ss:$4 sm:$0xff] %v2551
        %4811 = vst [vmem:[%s4792] ss:$4 sm:$0xff] %v2552
        %v4812 = vld.sshfl [vmem:[#allocation1] sm:$0xff pattern:$0x73625140]
        %v4813 = vld.sshfl [vmem:[#allocation1 + $0x20] sm:$0xff pattern:$0x73625140]
        %4814 = vst [vmem:[#allocation1] ss:$4 sm:$0xff] %v2553
        %4815 = vst [vmem:[%s4782] ss:$4 sm:$0xff] %v2486
        %4816 = vst [vmem:[%s4784] ss:$4 sm:$0xff] %v2554
        %4817 = vst [vmem:[%s4786] ss:$4 sm:$0xff] %v2555
        %4818 = vst [vmem:[%s4788] ss:$4 sm:$0xff] %v2556
        %4819 = vst [vmem:[%s4790] ss:$4 sm:$0xff] %v2487
        %4820 = vst [vmem:[%s4792] ss:$4 sm:$0xff] %v2557
        %v4821 = vld.sshfl [vmem:[#allocation1] sm:$0xff pattern:$0x73625140]
        %v4822 = vld.sshfl [vmem:[#allocation1 + $0x20] sm:$0xff pattern:$0x73625140]
        %4823 = vst [vmem:[#allocation1] ss:$4 sm:$0xff] %v2558
        %4824 = vst [vmem:[%s4782] ss:$4 sm:$0xff] %v2559
        %4825 = vst [vmem:[%s4784] ss:$4 sm:$0xff] %v2488
        %4826 = vst [vmem:[%s4786] ss:$4 sm:$0xff] %v2560
        %4827 = vst [vmem:[%s4788] ss:$4 sm:$0xff] %v2561
        %4828 = vst [vmem:[%s4790] ss:$4 sm:$0xff] %v2562
        %4829 = vst [vmem:[%s4792] ss:$4 sm:$0xff] %v2489
        %v4830 = vld.sshfl [vmem:[#allocation1] sm:$0xff pattern:$0x73625140]
        %v4831 = vld.sshfl [vmem:[#allocation1 + $0x20] sm:$0xff pattern:$0x73625140]
        %4832 = vst [vmem:[#allocation1] ss:$4 sm:$0xff] %v2563
        %4833 = vst [vmem:[%s4782] ss:$4 sm:$0xff] %v2564
        %4834 = vst [vmem:[%s4784] ss:$4 sm:$0xff] %v2565
        %4835 = vst [vmem:[%s4786] ss:$4 sm:$0xff] %v2490
        %4836 = vst [vmem:[%s4788] ss:$4 sm:$0xff] %v2566
        %4837 = vst [vmem:[%s4790] ss:$4 sm:$0xff] %v2567
        %4838 = vst [vmem:[%s4792] ss:$4 sm:$0xff] %v2568
        %v4839 = vld.sshfl [vmem:[#allocation1] sm:$0xff pattern:$0x73625140]
        %v4840 = vld.sshfl [vmem:[#allocation1 + $0x20] sm:$0xff pattern:$0x73625140]
        %4841 = vst [vmem:[#allocation1] ss:$4 sm:$0xff] %v2491
        %4842 = vst [vmem:[%s4782] ss:$4 sm:$0xff] %v2569
        %4843 = vst [vmem:[%s4784] ss:$4 sm:$0xff] %v2570
        %4844 = vst [vmem:[%s4786] ss:$4 sm:$0xff] %v2571
        %4845 = vst [vmem:[%s4788] ss:$4 sm:$0xff] %v2492
        %4846 = vst [vmem:[%s4790] ss:$4 sm:$0xff] %v2572
        %4847 = vst [vmem:[%s4792] ss:$4 sm:$0xff] %v2573
        %v4848 = vld.sshfl [vmem:[#allocation1] sm:$0xff pattern:$0x73625140]
        %v4849 = vld.sshfl [vmem:[#allocation1 + $0x20] sm:$0xff pattern:$0x73625140]
        %4850 = vst [vmem:[#allocation1] ss:$4 sm:$0xff] %v2574
        %4851 = vst [vmem:[%s4782] ss:$4 sm:$0xff] %v2493
        %4852 = vst [vmem:[%s4784] ss:$4 sm:$0xff] %v2575
        %4853 = vst [vmem:[%s4786] ss:$4 sm:$0xff] %v2576
        %4854 = vst [vmem:[%s4788] ss:$4 sm:$0xff] %v2577
        %4855 = vst [vmem:[%s4790] ss:$4 sm:$0xff] %v2494
        %4856 = vst [vmem:[%s4792] ss:$4 sm:$0xff] %v2578
        %v4857 = vld.sshfl [vmem:[#allocation1] sm:$0xff pattern:$0x73625140]
        %v4858 = vld.sshfl [vmem:[#allocation1 + $0x20] sm:$0xff pattern:$0x73625140]
        %4859 = vst [vmem:[#allocation1] ss:$4 sm:$0xff] %v2579
        %4860 = vst [vmem:[%s4782] ss:$4 sm:$0xff] %v2580
        %4861 = vst [vmem:[%s4784] ss:$4 sm:$0xff] %v2495
        %4862 = vst [vmem:[%s4786] ss:$4 sm:$0xff] %v2581
        %4863 = vst [vmem:[%s4788] ss:$4 sm:$0xff] %v2582
        %4864 = vst [vmem:[%s4790] ss:$4 sm:$0xff] %v2583
        %4865 = vst [vmem:[%s4792] ss:$4 sm:$0xff] %v2496
        %v4866 = vld.sshfl [vmem:[#allocation1] sm:$0xff pattern:$0x73625140]
        %v4867 = vld.sshfl [vmem:[#allocation1 + $0x20] sm:$0xff pattern:$0x73625140]
        %4868 = vst [vmem:[#allocation1] ss:$4 sm:$0xff] %v2584
        %4869 = vst [vmem:[%s4782] ss:$4 sm:$0xff] %v2585
        %4870 = vst [vmem:[%s4784] ss:$4 sm:$0xff] %v2586
        %4871 = vst [vmem:[%s4786] ss:$4 sm:$0xff] %v2497
        %4872 = vst [vmem:[%s4788] ss:$4 sm:$0xff] %v2587
        %4873 = vst [vmem:[%s4790] ss:$4 sm:$0xff] %v2588
        %4874 = vst [vmem:[%s4792] ss:$4 sm:$0xff] %v2589
        %v4875 = vld.sshfl [vmem:[#allocation1] sm:$0xff pattern:$0x73625140]
        %v4876 = vld.sshfl [vmem:[#allocation1 + $0x20] sm:$0xff pattern:$0x73625140]
        %4877 = vst [vmem:[#allocation1] ss:$4 sm:$0xff] %v2498
        %4878 = vst [vmem:[%s4782] ss:$4 sm:$0xff] %v2590
        %4879 = vst [vmem:[%s4784] ss:$4 sm:$0xff] %v2591
        %4880 = vst [vmem:[%s4786] ss:$4 sm:$0xff] %v2592
        %4881 = vst [vmem:[%s4788] ss:$4 sm:$0xff] %v2499
        %4882 = vst [vmem:[%s4790] ss:$4 sm:$0xff] %v2593
        %4883 = vst [vmem:[%s4792] ss:$4 sm:$0xff] %v2594
        %v4884 = vld.sshfl [vmem:[#allocation1] sm:$0xff pattern:$0x73625140]
        %v4885 = vld.sshfl [vmem:[#allocation1 + $0x20] sm:$0xff pattern:$0x73625140]
        %4886 = vst [vmem:[#allocation1] ss:$4 sm:$0xff] %v2595
        %4887 = vst [vmem:[%s4782] ss:$4 sm:$0xff] %v2500
        %4888 = vst [vmem:[%s4784] ss:$4 sm:$0xff] %v2596
        %4889 = vst [vmem:[%s4786] ss:$4 sm:$0xff] %v2597
        %4890 = vst [vmem:[%s4788] ss:$4 sm:$0xff] %v2598
        %4891 = vst [vmem:[%s4790] ss:$4 sm:$0xff] %v2501
        %4892 = vst [vmem:[%s4792] ss:$4 sm:$0xff] %v2599
        %v4893 = vld.sshfl [vmem:[#allocation1] sm:$0xff pattern:$0x73625140]
        %v4894 = vld.sshfl [vmem:[#allocation1 + $0x20] sm:$0xff pattern:$0x73625140]
        %v4919 = vpack.c.bf16 %v4794, %v4794
        %v4920 = vpack.c.bf16 %v4795, %v4795
        %v4921 = vpack.c.bf16 %v4803, %v4803
        %v4922 = vpack.c.bf16 %v4804, %v4804
        %v4923 = vpack.c.bf16 %v4812, %v4812
        %v4924 = vpack.c.bf16 %v4813, %v4813
        %v4925 = vpack.c.bf16 %v4821, %v4821
        %v4926 = vpack.c.bf16 %v4822, %v4822
        %v4927 = vpack.c.bf16 %v4830, %v4830
        %v4928 = vpack.c.bf16 %v4831, %v4831
        %v4929 = vpack.c.bf16 %v4839, %v4839
        %v4930 = vpack.c.bf16 %v4840, %v4840
        %v4931 = vpack.c.bf16 %v4848, %v4848
        %v4932 = vpack.c.bf16 %v4849, %v4849
        %v4933 = vpack.c.bf16 %v4857, %v4857
        %v4934 = vpack.c.bf16 %v4858, %v4858
        %v4935 = vpack.c.bf16 %v4866, %v4866
        %v4936 = vpack.c.bf16 %v4867, %v4867
        %v4937 = vpack.c.bf16 %v4875, %v4875
        %v4938 = vpack.c.bf16 %v4876, %v4876
        %v4939 = vpack.c.bf16 %v4884, %v4884
        %v4940 = vpack.c.bf16 %v4885, %v4885
        %v4941 = vpack.c.bf16 %v4893, %v4893
        %v4942 = vpack.c.bf16 %v4894, %v4894
        %v4944 = vshrl.u32 %v4919, 16
        %v4946 = vrot.slane %v4944, 4
        %v4947 = vshll.u32 %v4919, 16
        %v4949 = vrot.slane %v4947, 5
        %v4950 = vor.u32 %v4946, %v4949
        %v4951 = vrot.slane %v4950, 4
        %v4953 = vshll.u32 %v4920, 16
        %v4955 = vrot.slane %v4953, 5
        %v4956 = vsel %vm449, %v4951, %v4955
        %v4957 = vshrl.u32 %v4920, 16
        %v4959 = vrot.slane %v4957, 4
        %v4960 = vor.u32 %v4959, %v4955
        %v4961 = vrot.slane %v4960, 4
        %v4963 = vshrl.u32 %v4921, 16
        %v4965 = vrot.slane %v4963, 4
        %v4966 = vshll.u32 %v4921, 16
        %v4968 = vrot.slane %v4966, 5
        %v4969 = vor.u32 %v4965, %v4968
        %v4970 = vrot.slane %v4969, 4
        %v4972 = vshll.u32 %v4922, 16
        %v4974 = vrot.slane %v4972, 5
        %v4975 = vsel %vm449, %v4970, %v4974
        %v4976 = vshrl.u32 %v4922, 16
        %v4978 = vrot.slane %v4976, 4
        %v4979 = vor.u32 %v4978, %v4974
        %v4980 = vrot.slane %v4979, 4
        %v4982 = vshrl.u32 %v4923, 16
        %v4984 = vrot.slane %v4982, 4
        %v4985 = vshll.u32 %v4923, 16
        %v4987 = vrot.slane %v4985, 5
        %v4988 = vor.u32 %v4984, %v4987
        %v4989 = vrot.slane %v4988, 4
        %v4991 = vshll.u32 %v4924, 16
        %v4993 = vrot.slane %v4991, 5
        %v4994 = vsel %vm449, %v4989, %v4993
        %v4995 = vshrl.u32 %v4924, 16
        %v4997 = vrot.slane %v4995, 4
        %v4998 = vor.u32 %v4997, %v4993
        %v4999 = vrot.slane %v4998, 4
        %v5001 = vshrl.u32 %v4925, 16
        %v5003 = vrot.slane %v5001, 4
        %v5004 = vshll.u32 %v4925, 16
        %v5006 = vrot.slane %v5004, 5
        %v5007 = vor.u32 %v5003, %v5006
        %v5008 = vrot.slane %v5007, 4
        %v5010 = vshll.u32 %v4926, 16
        %v5012 = vrot.slane %v5010, 5
        %v5013 = vsel %vm449, %v5008, %v5012
        %v5014 = vshrl.u32 %v4926, 16
        %v5016 = vrot.slane %v5014, 4
        %v5017 = vor.u32 %v5016, %v5012
        %v5018 = vrot.slane %v5017, 4
        %v5020 = vshrl.u32 %v4927, 16
        %v5022 = vrot.slane %v5020, 4
        %v5023 = vshll.u32 %v4927, 16
        %v5025 = vrot.slane %v5023, 5
        %v5026 = vor.u32 %v5022, %v5025
        %v5027 = vrot.slane %v5026, 4
        %v5029 = vshll.u32 %v4928, 16
        %v5031 = vrot.slane %v5029, 5
        %v5032 = vsel %vm449, %v5027, %v5031
        %v5033 = vshrl.u32 %v4928, 16
        %v5035 = vrot.slane %v5033, 4
        %v5036 = vor.u32 %v5035, %v5031
        %v5037 = vrot.slane %v5036, 4
        %v5039 = vshrl.u32 %v4929, 16
        %v5041 = vrot.slane %v5039, 4
        %v5042 = vshll.u32 %v4929, 16
        %v5044 = vrot.slane %v5042, 5
        %v5045 = vor.u32 %v5041, %v5044
        %v5046 = vrot.slane %v5045, 4
        %v5048 = vshll.u32 %v4930, 16
        %v5050 = vrot.slane %v5048, 5
        %v5051 = vsel %vm449, %v5046, %v5050
        %v5052 = vshrl.u32 %v4930, 16
        %v5054 = vrot.slane %v5052, 4
        %v5055 = vor.u32 %v5054, %v5050
        %v5056 = vrot.slane %v5055, 4
        %v5058 = vshrl.u32 %v4931, 16
        %v5060 = vrot.slane %v5058, 4
        %v5061 = vshll.u32 %v4931, 16
        %v5063 = vrot.slane %v5061, 5
        %v5064 = vor.u32 %v5060, %v5063
        %v5065 = vrot.slane %v5064, 4
        %v5067 = vshll.u32 %v4932, 16
        %v5069 = vrot.slane %v5067, 5
        %v5070 = vsel %vm449, %v5065, %v5069
        %v5071 = vshrl.u32 %v4932, 16
        %v5073 = vrot.slane %v5071, 4
        %v5074 = vor.u32 %v5073, %v5069
        %v5075 = vrot.slane %v5074, 4
        %v5077 = vshrl.u32 %v4933, 16
        %v5079 = vrot.slane %v5077, 4
        %v5080 = vshll.u32 %v4933, 16
        %v5082 = vrot.slane %v5080, 5
        %v5083 = vor.u32 %v5079, %v5082
        %v5084 = vrot.slane %v5083, 4
        %v5086 = vshll.u32 %v4934, 16
        %v5088 = vrot.slane %v5086, 5
        %v5089 = vsel %vm449, %v5084, %v5088
        %v5090 = vshrl.u32 %v4934, 16
        %v5092 = vrot.slane %v5090, 4
        %v5093 = vor.u32 %v5092, %v5088
        %v5094 = vrot.slane %v5093, 4
        %v5096 = vshrl.u32 %v4935, 16
        %v5098 = vrot.slane %v5096, 4
        %v5099 = vshll.u32 %v4935, 16
        %v5101 = vrot.slane %v5099, 5
        %v5102 = vor.u32 %v5098, %v5101
        %v5103 = vrot.slane %v5102, 4
        %v5105 = vshll.u32 %v4936, 16
        %v5107 = vrot.slane %v5105, 5
        %v5108 = vsel %vm449, %v5103, %v5107
        %v5109 = vshrl.u32 %v4936, 16
        %v5111 = vrot.slane %v5109, 4
        %v5112 = vor.u32 %v5111, %v5107
        %v5113 = vrot.slane %v5112, 4
        %v5115 = vshrl.u32 %v4937, 16
        %v5117 = vrot.slane %v5115, 4
        %v5118 = vshll.u32 %v4937, 16
        %v5120 = vrot.slane %v5118, 5
        %v5121 = vor.u32 %v5117, %v5120
        %v5122 = vrot.slane %v5121, 4
        %v5124 = vshll.u32 %v4938, 16
        %v5126 = vrot.slane %v5124, 5
        %v5127 = vsel %vm449, %v5122, %v5126
        %v5128 = vshrl.u32 %v4938, 16
        %v5130 = vrot.slane %v5128, 4
        %v5131 = vor.u32 %v5130, %v5126
        %v5132 = vrot.slane %v5131, 4
        %v5134 = vshrl.u32 %v4939, 16
        %v5136 = vrot.slane %v5134, 4
        %v5137 = vshll.u32 %v4939, 16
        %v5139 = vrot.slane %v5137, 5
        %v5140 = vor.u32 %v5136, %v5139
        %v5141 = vrot.slane %v5140, 4
        %v5143 = vshll.u32 %v4940, 16
        %v5145 = vrot.slane %v5143, 5
        %v5146 = vsel %vm449, %v5141, %v5145
        %v5147 = vshrl.u32 %v4940, 16
        %v5149 = vrot.slane %v5147, 4
        %v5150 = vor.u32 %v5149, %v5145
        %v5151 = vrot.slane %v5150, 4
        %v5153 = vshrl.u32 %v4941, 16
        %v5155 = vrot.slane %v5153, 4
        %v5156 = vshll.u32 %v4941, 16
        %v5158 = vrot.slane %v5156, 5
        %v5159 = vor.u32 %v5155, %v5158
        %v5160 = vrot.slane %v5159, 4
        %v5162 = vshll.u32 %v4942, 16
        %v5164 = vrot.slane %v5162, 5
        %v5165 = vsel %vm449, %v5160, %v5164
        %v5166 = vshrl.u32 %v4942, 16
        %v5168 = vrot.slane %v5166, 4
        %v5169 = vor.u32 %v5168, %v5164
        %v5170 = vrot.slane %v5169, 4
        %5171 = vrot.lane.b32.xlu0 %v4956, 96
        %v5172 = vpop.permute.xlu0 %5171
        %5173 = vrot.lane.b32.xlu0 %v4961, 96
        %v5174 = vpop.permute.xlu0 %5173
        %5175 = vrot.lane.b32.xlu0 %v4975, 96
        %v5176 = vpop.permute.xlu0 %5175
        %5177 = vrot.lane.b32.xlu0 %v4980, 96
        %v5178 = vpop.permute.xlu0 %5177
        %5179 = vrot.lane.b32.xlu0 %v4994, 96
        %v5180 = vpop.permute.xlu0 %5179
        %5181 = vrot.lane.b32.xlu0 %v4999, 96
        %v5182 = vpop.permute.xlu0 %5181
        %5183 = vrot.lane.b32.xlu0 %v5013, 96
        %v5184 = vpop.permute.xlu0 %5183
        %5185 = vrot.lane.b32.xlu0 %v5018, 96
        %v5186 = vpop.permute.xlu0 %5185
        %5187 = vrot.lane.b32.xlu0 %v5032, 96
        %v5188 = vpop.permute.xlu0 %5187
        %5189 = vrot.lane.b32.xlu0 %v5037, 96
        %v5190 = vpop.permute.xlu0 %5189
        %5191 = vrot.lane.b32.xlu0 %v5051, 96
        %v5192 = vpop.permute.xlu0 %5191
        %5193 = vrot.lane.b32.xlu0 %v5056, 96
        %v5194 = vpop.permute.xlu0 %5193
        %5195 = vrot.lane.b32.xlu0 %v5070, 96
        %v5196 = vpop.permute.xlu0 %5195
        %5197 = vrot.lane.b32.xlu0 %v5075, 96
        %v5198 = vpop.permute.xlu0 %5197
        %5199 = vrot.lane.b32.xlu0 %v5089, 96
        %v5200 = vpop.permute.xlu0 %5199
        %5201 = vrot.lane.b32.xlu0 %v5094, 96
        %v5202 = vpop.permute.xlu0 %5201
        %5203 = vrot.lane.b32.xlu0 %v5108, 96
        %v5204 = vpop.permute.xlu0 %5203
        %5205 = vrot.lane.b32.xlu0 %v5113, 96
        %v5206 = vpop.permute.xlu0 %5205
        %5207 = vrot.lane.b32.xlu0 %v5127, 96
        %v5208 = vpop.permute.xlu0 %5207
        %5209 = vrot.lane.b32.xlu0 %v5132, 96
        %v5210 = vpop.permute.xlu0 %5209
        %5211 = vrot.lane.b32.xlu0 %v5146, 96
        %v5212 = vpop.permute.xlu0 %5211
        %5213 = vrot.lane.b32.xlu0 %v5151, 96
        %v5214 = vpop.permute.xlu0 %5213
        %5215 = vrot.lane.b32.xlu0 %v5165, 96
        %v5216 = vpop.permute.xlu0 %5215
        %5217 = vrot.lane.b32.xlu0 %v5170, 96
        %v5218 = vpop.permute.xlu0 %5217
        %5243 = vst.msk [vmem:[#allocation3 + $0x4] sm:$0xf] %vm3779, %v5172
        %5244 = vst.msk [vmem:[#allocation3 + $0x10] sm:$0x3] %vm3781, %v5174
        %5245 = vst.msk [vmem:[#allocation3 + $0x1c] sm:$0xf] %vm3779, %v5176
        %5246 = vst.msk [vmem:[#allocation3 + $0x28] sm:$0x3] %vm3781, %v5178
        %5247 = vst.msk [vmem:[#allocation3 + $0x34] sm:$0xf] %vm3779, %v5180
        %5248 = vst.msk [vmem:[#allocation3 + $0x40] sm:$0x3] %vm3781, %v5182
        %5249 = vst.msk [vmem:[#allocation3 + $0x4c] sm:$0xf] %vm3779, %v5184
        %5250 = vst.msk [vmem:[#allocation3 + $0x58] sm:$0x3] %vm3781, %v5186
        %5251 = vst.msk [vmem:[#allocation3 + $0x64] sm:$0xf] %vm3779, %v5188
        %5252 = vst.msk [vmem:[#allocation3 + $0x70] sm:$0x3] %vm3781, %v5190
        %5253 = vst.msk [vmem:[#allocation3 + $0x7c] sm:$0xf] %vm3779, %v5192
        %5254 = vst.msk [vmem:[#allocation3 + $0x88] sm:$0x3] %vm3781, %v5194
        %5255 = vst.msk [vmem:[#allocation3 + $0x94] sm:$0xf] %vm3779, %v5196
        %5256 = vst.msk [vmem:[#allocation3 + $0xa0] sm:$0x3] %vm3781, %v5198
        %5257 = vst.msk [vmem:[#allocation3 + $0xac] sm:$0xf] %vm3779, %v5200
        %5258 = vst.msk [vmem:[#allocation3 + $0xb8] sm:$0x3] %vm3781, %v5202
        %5259 = vst.msk [vmem:[#allocation3 + $0xc4] sm:$0xf] %vm3779, %v5204
        %5260 = vst.msk [vmem:[#allocation3 + $0xd0] sm:$0x3] %vm3781, %v5206
        %5261 = vst.msk [vmem:[#allocation3 + $0xdc] sm:$0xf] %vm3779, %v5208
        %5262 = vst.msk [vmem:[#allocation3 + $0xe8] sm:$0x3] %vm3781, %v5210
        %5263 = vst.msk [vmem:[#allocation3 + $0xf4] sm:$0xf] %vm3779, %v5212
        %5264 = vst.msk [vmem:[#allocation3 + $0x100] sm:$0x3] %vm3781, %v5214
        %5265 = vst.msk [vmem:[#allocation3 + $0x10c] sm:$0xf] %vm3779, %v5216
        %5266 = vst.msk [vmem:[#allocation3 + $0x118] sm:$0x3] %vm3781, %v5218
        %5267 = vst [vmem:[#allocation1] ss:$4 sm:$0xff] %v2538
        %s5268 = scalar_lea.vmem [#allocation1], 1
        %5269 = vst [vmem:[%s5268] ss:$4 sm:$0xff] %v2481
        %s5270 = scalar_lea.vmem [#allocation1], 2
        %5271 = vst [vmem:[%s5270] ss:$4 sm:$0xff] %v2539
        %s5272 = scalar_lea.vmem [#allocation1], 3
        %5273 = vst [vmem:[%s5272] ss:$4 sm:$0xff] %v2540
        %s5274 = scalar_lea.vmem [#allocation1], 32
        %5275 = vst [vmem:[%s5274] ss:$4 sm:$0xff] %v2541
        %s5276 = scalar_lea.vmem [#allocation1], 33
        %5277 = vst [vmem:[%s5276] ss:$4 sm:$0xff] %v2482
        %v5278 = vld.sshfl [vmem:[#allocation1] sm:$0xff pattern:$0x73625140]
        %v5279 = vld.sshfl [vmem:[#allocation1 + $0x20] sm:$0xff pattern:$0x73625140]
        %5280 = vst [vmem:[#allocation1] ss:$4 sm:$0xff] %v2543
        %5281 = vst [vmem:[%s5268] ss:$4 sm:$0xff] %v2544
        %5282 = vst [vmem:[%s5270] ss:$4 sm:$0xff] %v2483
        %5283 = vst [vmem:[%s5272] ss:$4 sm:$0xff] %v2545
        %5284 = vst [vmem:[%s5274] ss:$4 sm:$0xff] %v2546
        %5285 = vst [vmem:[%s5276] ss:$4 sm:$0xff] %v2547
        %v5286 = vld.sshfl [vmem:[#allocation1] sm:$0xff pattern:$0x73625140]
        %v5287 = vld.sshfl [vmem:[#allocation1 + $0x20] sm:$0xff pattern:$0x73625140]
        %5288 = vst [vmem:[#allocation1] ss:$4 sm:$0xff] %v2548
        %5289 = vst [vmem:[%s5268] ss:$4 sm:$0xff] %v2549
        %5290 = vst [vmem:[%s5270] ss:$4 sm:$0xff] %v2550
        %5291 = vst [vmem:[%s5272] ss:$4 sm:$0xff] %v2485
        %5292 = vst [vmem:[%s5274] ss:$4 sm:$0xff] %v2551
        %5293 = vst [vmem:[%s5276] ss:$4 sm:$0xff] %v2552
        %v5294 = vld.sshfl [vmem:[#allocation1] sm:$0xff pattern:$0x73625140]
        %v5295 = vld.sshfl [vmem:[#allocation1 + $0x20] sm:$0xff pattern:$0x73625140]
        %5296 = vst [vmem:[#allocation1] ss:$4 sm:$0xff] %v2486
        %5297 = vst [vmem:[%s5268] ss:$4 sm:$0xff] %v2554
        %5298 = vst [vmem:[%s5270] ss:$4 sm:$0xff] %v2555
        %5299 = vst [vmem:[%s5272] ss:$4 sm:$0xff] %v2556
        %5300 = vst [vmem:[%s5274] ss:$4 sm:$0xff] %v2487
        %5301 = vst [vmem:[%s5276] ss:$4 sm:$0xff] %v2557
        %v5302 = vld.sshfl [vmem:[#allocation1] sm:$0xff pattern:$0x73625140]
        %v5303 = vld.sshfl [vmem:[#allocation1 + $0x20] sm:$0xff pattern:$0x73625140]
        %5304 = vst [vmem:[#allocation1] ss:$4 sm:$0xff] %v2559
        %5305 = vst [vmem:[%s5268] ss:$4 sm:$0xff] %v2488
        %5306 = vst [vmem:[%s5270] ss:$4 sm:$0xff] %v2560
        %5307 = vst [vmem:[%s5272] ss:$4 sm:$0xff] %v2561
        %5308 = vst [vmem:[%s5274] ss:$4 sm:$0xff] %v2562
        %5309 = vst [vmem:[%s5276] ss:$4 sm:$0xff] %v2489
        %v5310 = vld.sshfl [vmem:[#allocation1] sm:$0xff pattern:$0x73625140]
        %v5311 = vld.sshfl [vmem:[#allocation1 + $0x20] sm:$0xff pattern:$0x73625140]
        %5312 = vst [vmem:[#allocation1] ss:$4 sm:$0xff] %v2564
        %5313 = vst [vmem:[%s5268] ss:$4 sm:$0xff] %v2565
        %5314 = vst [vmem:[%s5270] ss:$4 sm:$0xff] %v2490
        %5315 = vst [vmem:[%s5272] ss:$4 sm:$0xff] %v2566
        %5316 = vst [vmem:[%s5274] ss:$4 sm:$0xff] %v2567
        %5317 = vst [vmem:[%s5276] ss:$4 sm:$0xff] %v2568
        %v5318 = vld.sshfl [vmem:[#allocation1] sm:$0xff pattern:$0x73625140]
        %v5319 = vld.sshfl [vmem:[#allocation1 + $0x20] sm:$0xff pattern:$0x73625140]
        %5320 = vst [vmem:[#allocation1] ss:$4 sm:$0xff] %v2569
        %5321 = vst [vmem:[%s5268] ss:$4 sm:$0xff] %v2570
        %5322 = vst [vmem:[%s5270] ss:$4 sm:$0xff] %v2571
        %5323 = vst [vmem:[%s5272] ss:$4 sm:$0xff] %v2492
        %5324 = vst [vmem:[%s5274] ss:$4 sm:$0xff] %v2572
        %5325 = vst [vmem:[%s5276] ss:$4 sm:$0xff] %v2573
        %v5326 = vld.sshfl [vmem:[#allocation1] sm:$0xff pattern:$0x73625140]
        %v5327 = vld.sshfl [vmem:[#allocation1 + $0x20] sm:$0xff pattern:$0x73625140]
        %5328 = vst [vmem:[#allocation1] ss:$4 sm:$0xff] %v2493
        %5329 = vst [vmem:[%s5268] ss:$4 sm:$0xff] %v2575
        %5330 = vst [vmem:[%s5270] ss:$4 sm:$0xff] %v2576
        %5331 = vst [vmem:[%s5272] ss:$4 sm:$0xff] %v2577
        %5332 = vst [vmem:[%s5274] ss:$4 sm:$0xff] %v2494
        %5333 = vst [vmem:[%s5276] ss:$4 sm:$0xff] %v2578
        %v5334 = vld.sshfl [vmem:[#allocation1] sm:$0xff pattern:$0x73625140]
        %v5335 = vld.sshfl [vmem:[#allocation1 + $0x20] sm:$0xff pattern:$0x73625140]
        %5336 = vst [vmem:[#allocation1] ss:$4 sm:$0xff] %v2580
        %5337 = vst [vmem:[%s5268] ss:$4 sm:$0xff] %v2495
        %5338 = vst [vmem:[%s5270] ss:$4 sm:$0xff] %v2581
        %5339 = vst [vmem:[%s5272] ss:$4 sm:$0xff] %v2582
        %5340 = vst [vmem:[%s5274] ss:$4 sm:$0xff] %v2583
        %5341 = vst [vmem:[%s5276] ss:$4 sm:$0xff] %v2496
        %v5342 = vld.sshfl [vmem:[#allocation1] sm:$0xff pattern:$0x73625140]
        %v5343 = vld.sshfl [vmem:[#allocation1 + $0x20] sm:$0xff pattern:$0x73625140]
        %5344 = vst [vmem:[#allocation1] ss:$4 sm:$0xff] %v2585
        %5345 = vst [vmem:[%s5268] ss:$4 sm:$0xff] %v2586
        %5346 = vst [vmem:[%s5270] ss:$4 sm:$0xff] %v2497
        %5347 = vst [vmem:[%s5272] ss:$4 sm:$0xff] %v2587
        %5348 = vst [vmem:[%s5274] ss:$4 sm:$0xff] %v2588
        %5349 = vst [vmem:[%s5276] ss:$4 sm:$0xff] %v2589
        %v5350 = vld.sshfl [vmem:[#allocation1] sm:$0xff pattern:$0x73625140]
        %v5351 = vld.sshfl [vmem:[#allocation1 + $0x20] sm:$0xff pattern:$0x73625140]
        %5352 = vst [vmem:[#allocation1] ss:$4 sm:$0xff] %v2590
        %5353 = vst [vmem:[%s5268] ss:$4 sm:$0xff] %v2591
        %5354 = vst [vmem:[%s5270] ss:$4 sm:$0xff] %v2592
        %5355 = vst [vmem:[%s5272] ss:$4 sm:$0xff] %v2499
        %5356 = vst [vmem:[%s5274] ss:$4 sm:$0xff] %v2593
        %5357 = vst [vmem:[%s5276] ss:$4 sm:$0xff] %v2594
        %v5358 = vld.sshfl [vmem:[#allocation1] sm:$0xff pattern:$0x73625140]
        %v5359 = vld.sshfl [vmem:[#allocation1 + $0x20] sm:$0xff pattern:$0x73625140]
        %5360 = vst [vmem:[#allocation1] ss:$4 sm:$0xff] %v2500
        %5361 = vst [vmem:[%s5268] ss:$4 sm:$0xff] %v2596
        %5362 = vst [vmem:[%s5270] ss:$4 sm:$0xff] %v2597
        %5363 = vst [vmem:[%s5272] ss:$4 sm:$0xff] %v2598
        %5364 = vst [vmem:[%s5274] ss:$4 sm:$0xff] %v2501
        %5365 = vst [vmem:[%s5276] ss:$4 sm:$0xff] %v2599
        %v5366 = vld.sshfl [vmem:[#allocation1] sm:$0xff pattern:$0x73625140]
        %v5367 = vld.sshfl [vmem:[#allocation1 + $0x20] sm:$0xff pattern:$0x73625140]
        %v5392 = vpack.c.bf16 %v5278, %v5278
        %v5393 = vpack.c.bf16 %v5279, %v5279
        %v5394 = vpack.c.bf16 %v5286, %v5286
        %v5395 = vpack.c.bf16 %v5287, %v5287
        %v5396 = vpack.c.bf16 %v5294, %v5294
        %v5397 = vpack.c.bf16 %v5295, %v5295
        %v5398 = vpack.c.bf16 %v5302, %v5302
        %v5399 = vpack.c.bf16 %v5303, %v5303
        %v5400 = vpack.c.bf16 %v5310, %v5310
        %v5401 = vpack.c.bf16 %v5311, %v5311
        %v5402 = vpack.c.bf16 %v5318, %v5318
        %v5403 = vpack.c.bf16 %v5319, %v5319
        %v5404 = vpack.c.bf16 %v5326, %v5326
        %v5405 = vpack.c.bf16 %v5327, %v5327
        %v5406 = vpack.c.bf16 %v5334, %v5334
        %v5407 = vpack.c.bf16 %v5335, %v5335
        %v5408 = vpack.c.bf16 %v5342, %v5342
        %v5409 = vpack.c.bf16 %v5343, %v5343
        %v5410 = vpack.c.bf16 %v5350, %v5350
        %v5411 = vpack.c.bf16 %v5351, %v5351
        %v5412 = vpack.c.bf16 %v5358, %v5358
        %v5413 = vpack.c.bf16 %v5359, %v5359
        %v5414 = vpack.c.bf16 %v5366, %v5366
        %v5415 = vpack.c.bf16 %v5367, %v5367
        %5416 = vst.msk [vmem:[#allocation3 + $0x8] sm:$0xf] %vm2749, %v5392
        %5417 = vst.msk [vmem:[#allocation3 + $0x14] sm:$0x3] %vm2751, %v5393
        %5418 = vst.msk [vmem:[#allocation3 + $0x20] sm:$0xf] %vm2749, %v5394
        %5419 = vst.msk [vmem:[#allocation3 + $0x2c] sm:$0x3] %vm2751, %v5395
        %5420 = vst.msk [vmem:[#allocation3 + $0x38] sm:$0xf] %vm2749, %v5396
        %5421 = vst.msk [vmem:[#allocation3 + $0x44] sm:$0x3] %vm2751, %v5397
        %5422 = vst.msk [vmem:[#allocation3 + $0x50] sm:$0xf] %vm2749, %v5398
        %5423 = vst.msk [vmem:[#allocation3 + $0x5c] sm:$0x3] %vm2751, %v5399
        %5424 = vst.msk [vmem:[#allocation3 + $0x68] sm:$0xf] %vm2749, %v5400
        %5425 = vst.msk [vmem:[#allocation3 + $0x74] sm:$0x3] %vm2751, %v5401
        %5426 = vst.msk [vmem:[#allocation3 + $0x80] sm:$0xf] %vm2749, %v5402
        %5427 = vst.msk [vmem:[#allocation3 + $0x8c] sm:$0x3] %vm2751, %v5403
        %5428 = vst.msk [vmem:[#allocation3 + $0x98] sm:$0xf] %vm2749, %v5404
        %5429 = vst.msk [vmem:[#allocation3 + $0xa4] sm:$0x3] %vm2751, %v5405
        %5430 = vst.msk [vmem:[#allocation3 + $0xb0] sm:$0xf] %vm2749, %v5406
        %5431 = vst.msk [vmem:[#allocation3 + $0xbc] sm:$0x3] %vm2751, %v5407
        %5432 = vst.msk [vmem:[#allocation3 + $0xc8] sm:$0xf] %vm2749, %v5408
        %5433 = vst.msk [vmem:[#allocation3 + $0xd4] sm:$0x3] %vm2751, %v5409
        %5434 = vst.msk [vmem:[#allocation3 + $0xe0] sm:$0xf] %vm2749, %v5410
        %5435 = vst.msk [vmem:[#allocation3 + $0xec] sm:$0x3] %vm2751, %v5411
        %5436 = vst.msk [vmem:[#allocation3 + $0xf8] sm:$0xf] %vm2749, %v5412
        %5437 = vst.msk [vmem:[#allocation3 + $0x104] sm:$0x3] %vm2751, %v5413
        %5438 = vst.msk [vmem:[#allocation3 + $0x110] sm:$0xf] %vm2749, %v5414
        %5439 = vst.msk [vmem:[#allocation3 + $0x11c] sm:$0x3] %vm2751, %v5415
        %v5440 = vld [vmem:[#allocation3] sm:$0xff]
        %v5441 = vld [vmem:[#allocation3 + $0x8] sm:$0xf]
        %v5442 = vld [vmem:[#allocation3 + $0xc] sm:$0x33]
        %v5443 = vld [vmem:[#allocation3 + $0x14] sm:$0x3]
        %v5444 = vld [vmem:[#allocation3 + $0x18] sm:$0xff]
        %v5445 = vld [vmem:[#allocation3 + $0x20] sm:$0xf]
        %v5446 = vld [vmem:[#allocation3 + $0x24] sm:$0x33]
        %v5447 = vld [vmem:[#allocation3 + $0x2c] sm:$0x3]
        %v5448 = vld [vmem:[#allocation3 + $0x30] sm:$0xff]
        %v5449 = vld [vmem:[#allocation3 + $0x38] sm:$0xf]
        %v5450 = vld [vmem:[#allocation3 + $0x3c] sm:$0x33]
        %v5451 = vld [vmem:[#allocation3 + $0x44] sm:$0x3]
        %v5452 = vld [vmem:[#allocation3 + $0x48] sm:$0xff]
        %v5453 = vld [vmem:[#allocation3 + $0x50] sm:$0xf]
        %v5454 = vld [vmem:[#allocation3 + $0x54] sm:$0x33]
        %v5455 = vld [vmem:[#allocation3 + $0x5c] sm:$0x3]
        %v5456 = vld [vmem:[#allocation3 + $0x60] sm:$0xff]
        %v5457 = vld [vmem:[#allocation3 + $0x68] sm:$0xf]
        %v5458 = vld [vmem:[#allocation3 + $0x6c] sm:$0x33]
        %v5459 = vld [vmem:[#allocation3 + $0x74] sm:$0x3]
        %v5460 = vld [vmem:[#allocation3 + $0x78] sm:$0xff]
        %v5461 = vld [vmem:[#allocation3 + $0x80] sm:$0xf]
        %v5462 = vld [vmem:[#allocation3 + $0x84] sm:$0x33]
        %v5463 = vld [vmem:[#allocation3 + $0x8c] sm:$0x3]
        %v5464 = vld [vmem:[#allocation3 + $0x90] sm:$0xff]
        %v5465 = vld [vmem:[#allocation3 + $0x98] sm:$0xf]
        %v5466 = vld [vmem:[#allocation3 + $0x9c] sm:$0x33]
        %v5467 = vld [vmem:[#allocation3 + $0xa4] sm:$0x3]
        %v5468 = vld [vmem:[#allocation3 + $0xa8] sm:$0xff]
        %v5469 = vld [vmem:[#allocation3 + $0xb0] sm:$0xf]
        %v5470 = vld [vmem:[#allocation3 + $0xb4] sm:$0x33]
        %v5471 = vld [vmem:[#allocation3 + $0xbc] sm:$0x3]
        %v5472 = vld [vmem:[#allocation3 + $0xc0] sm:$0xff]
        %v5473 = vld [vmem:[#allocation3 + $0xc8] sm:$0xf]
        %v5474 = vld [vmem:[#allocation3 + $0xcc] sm:$0x33]
        %v5475 = vld [vmem:[#allocation3 + $0xd4] sm:$0x3]
        %v5476 = vld [vmem:[#allocation3 + $0xd8] sm:$0xff]
        %v5477 = vld [vmem:[#allocation3 + $0xe0] sm:$0xf]
        %v5478 = vld [vmem:[#allocation3 + $0xe4] sm:$0x33]
        %v5479 = vld [vmem:[#allocation3 + $0xec] sm:$0x3]
        %v5480 = vld [vmem:[#allocation3 + $0xf0] sm:$0xff]
        %v5481 = vld [vmem:[#allocation3 + $0xf8] sm:$0xf]
        %v5482 = vld [vmem:[#allocation3 + $0xfc] sm:$0x33]
        %v5483 = vld [vmem:[#allocation3 + $0x104] sm:$0x3]
        %v5484 = vld [vmem:[#allocation3 + $0x108] sm:$0xff]
        %v5485 = vld [vmem:[#allocation3 + $0x110] sm:$0xf]
        %v5486 = vld [vmem:[#allocation3 + $0x114] sm:$0x33]
        %v5487 = vld [vmem:[#allocation3 + $0x11c] sm:$0x3]
        %v5536 = vrot.slane %v5440, 2
        %v5537 = vrot.slane %v5441, 4
        %v5538 = vrot.slane %v5441, 6
        %v5539 = vrot.slane %v5442, 2
        %v5540 = vrot.slane %v5443, 4
        %v5541 = vrot.slane %v5443, 6
        %v5542 = vrot.slane %v5444, 2
        %v5543 = vrot.slane %v5445, 4
        %v5544 = vrot.slane %v5445, 6
        %v5545 = vrot.slane %v5446, 2
        %v5546 = vrot.slane %v5447, 4
        %v5547 = vrot.slane %v5447, 6
        %v5548 = vrot.slane %v5448, 2
        %v5549 = vrot.slane %v5449, 4
        %v5550 = vrot.slane %v5449, 6
        %v5551 = vrot.slane %v5450, 2
        %v5552 = vrot.slane %v5451, 4
        %v5553 = vrot.slane %v5451, 6
        %v5554 = vrot.slane %v5452, 2
        %v5555 = vrot.slane %v5453, 4
        %v5556 = vrot.slane %v5453, 6
        %v5557 = vrot.slane %v5454, 2
        %v5558 = vrot.slane %v5455, 4
        %v5559 = vrot.slane %v5455, 6
        %v5560 = vrot.slane %v5456, 2
        %v5561 = vrot.slane %v5457, 4
        %v5562 = vrot.slane %v5457, 6
        %v5563 = vrot.slane %v5458, 2
        %v5564 = vrot.slane %v5459, 4
        %v5565 = vrot.slane %v5459, 6
        %v5566 = vrot.slane %v5460, 2
        %v5567 = vrot.slane %v5461, 4
        %v5568 = vrot.slane %v5461, 6
        %v5569 = vrot.slane %v5462, 2
        %v5570 = vrot.slane %v5463, 4
        %v5571 = vrot.slane %v5463, 6
        %v5572 = vrot.slane %v5464, 2
        %v5573 = vrot.slane %v5465, 4
        %v5574 = vrot.slane %v5465, 6
        %v5575 = vrot.slane %v5466, 2
        %v5576 = vrot.slane %v5467, 4
        %v5577 = vrot.slane %v5467, 6
        %v5578 = vrot.slane %v5468, 2
        %v5579 = vrot.slane %v5469, 4
        %v5580 = vrot.slane %v5469, 6
        %v5581 = vrot.slane %v5470, 2
        %v5582 = vrot.slane %v5471, 4
        %v5583 = vrot.slane %v5471, 6
        %v5584 = vrot.slane %v5472, 2
        %v5585 = vrot.slane %v5473, 4
        %v5586 = vrot.slane %v5473, 6
        %v5587 = vrot.slane %v5474, 2
        %v5588 = vrot.slane %v5475, 4
        %v5589 = vrot.slane %v5475, 6
        %v5590 = vrot.slane %v5476, 2
        %v5591 = vrot.slane %v5477, 4
        %v5592 = vrot.slane %v5477, 6
        %v5593 = vrot.slane %v5478, 2
        %v5594 = vrot.slane %v5479, 4
        %v5595 = vrot.slane %v5479, 6
        %v5596 = vrot.slane %v5480, 2
        %v5597 = vrot.slane %v5481, 4
        %v5598 = vrot.slane %v5481, 6
        %v5599 = vrot.slane %v5482, 2
        %v5600 = vrot.slane %v5483, 4
        %v5601 = vrot.slane %v5483, 6
        %v5602 = vrot.slane %v5484, 2
        %v5603 = vrot.slane %v5485, 4
        %v5604 = vrot.slane %v5485, 6
        %v5605 = vrot.slane %v5486, 2
        %v5606 = vrot.slane %v5487, 4
        %v5607 = vrot.slane %v5487, 6
        %vm5608 = vcmask 1041408
        %v5611 = vsel %vm5608, %v5440, %v5536
        %vm5612 = vcmask 1045508
        %v5615 = vsel %vm5612, %v5537, %v5538
        %vm5616 = vcmask 1043456
        %v5617 = vsel %vm5616, %v5611, %v5615
        %vm5618 = vcmask 1043458
        %v5619 = vsel %vm5618, %v5440, %v5536
        %v5620 = vsel %vm2398, %v5538, %v5537
        %vm5621 = vcmask 1045506
        %v5622 = vsel %vm5621, %v5619, %v5620
        %v5624 = vrot.slane %v5622, 2
        %v5627 = vsel %vm5608, %v5442, %v5539
        %v5630 = vsel %vm5612, %v5540, %v5541
        %v5631 = vsel %vm5616, %v5627, %v5630
        %v5634 = vsel %vm5608, %v5444, %v5542
        %v5637 = vsel %vm5612, %v5543, %v5544
        %v5638 = vsel %vm5616, %v5634, %v5637
        %v5639 = vsel %vm5618, %v5444, %v5542
        %v5640 = vsel %vm2398, %v5544, %v5543
        %v5641 = vsel %vm5621, %v5639, %v5640
        %v5643 = vrot.slane %v5641, 2
        %v5646 = vsel %vm5608, %v5446, %v5545
        %v5649 = vsel %vm5612, %v5546, %v5547
        %v5650 = vsel %vm5616, %v5646, %v5649
        %v5653 = vsel %vm5608, %v5448, %v5548
        %v5656 = vsel %vm5612, %v5549, %v5550
        %v5657 = vsel %vm5616, %v5653, %v5656
        %v5658 = vsel %vm5618, %v5448, %v5548
        %v5659 = vsel %vm2398, %v5550, %v5549
        %v5660 = vsel %vm5621, %v5658, %v5659
        %v5662 = vrot.slane %v5660, 2
        %v5665 = vsel %vm5608, %v5450, %v5551
        %v5668 = vsel %vm5612, %v5552, %v5553
        %v5669 = vsel %vm5616, %v5665, %v5668
        %v5672 = vsel %vm5608, %v5452, %v5554
        %v5675 = vsel %vm5612, %v5555, %v5556
        %v5676 = vsel %vm5616, %v5672, %v5675
        %v5677 = vsel %vm5618, %v5452, %v5554
        %v5678 = vsel %vm2398, %v5556, %v5555
        %v5679 = vsel %vm5621, %v5677, %v5678
        %v5681 = vrot.slane %v5679, 2
        %v5684 = vsel %vm5608, %v5454, %v5557
        %v5687 = vsel %vm5612, %v5558, %v5559
        %v5688 = vsel %vm5616, %v5684, %v5687
        %v5691 = vsel %vm5608, %v5456, %v5560
        %v5694 = vsel %vm5612, %v5561, %v5562
        %v5695 = vsel %vm5616, %v5691, %v5694
        %v5696 = vsel %vm5618, %v5456, %v5560
        %v5697 = vsel %vm2398, %v5562, %v5561
        %v5698 = vsel %vm5621, %v5696, %v5697
        %v5700 = vrot.slane %v5698, 2
        %v5703 = vsel %vm5608, %v5458, %v5563
        %v5706 = vsel %vm5612, %v5564, %v5565
        %v5707 = vsel %vm5616, %v5703, %v5706
        %v5710 = vsel %vm5608, %v5460, %v5566
        %v5713 = vsel %vm5612, %v5567, %v5568
        %v5714 = vsel %vm5616, %v5710, %v5713
        %v5715 = vsel %vm5618, %v5460, %v5566
        %v5716 = vsel %vm2398, %v5568, %v5567
        %v5717 = vsel %vm5621, %v5715, %v5716
        %v5719 = vrot.slane %v5717, 2
        %v5722 = vsel %vm5608, %v5462, %v5569
        %v5725 = vsel %vm5612, %v5570, %v5571
        %v5726 = vsel %vm5616, %v5722, %v5725
        %v5729 = vsel %vm5608, %v5464, %v5572
        %v5732 = vsel %vm5612, %v5573, %v5574
        %v5733 = vsel %vm5616, %v5729, %v5732
        %v5734 = vsel %vm5618, %v5464, %v5572
        %v5735 = vsel %vm2398, %v5574, %v5573
        %v5736 = vsel %vm5621, %v5734, %v5735
        %v5738 = vrot.slane %v5736, 2
        %v5741 = vsel %vm5608, %v5466, %v5575
        %v5744 = vsel %vm5612, %v5576, %v5577
        %v5745 = vsel %vm5616, %v5741, %v5744
        %v5748 = vsel %vm5608, %v5468, %v5578
        %v5751 = vsel %vm5612, %v5579, %v5580
        %v5752 = vsel %vm5616, %v5748, %v5751
        %v5753 = vsel %vm5618, %v5468, %v5578
        %v5754 = vsel %vm2398, %v5580, %v5579
        %v5755 = vsel %vm5621, %v5753, %v5754
        %v5757 = vrot.slane %v5755, 2
        %v5760 = vsel %vm5608, %v5470, %v5581
        %v5763 = vsel %vm5612, %v5582, %v5583
        %v5764 = vsel %vm5616, %v5760, %v5763
        %v5767 = vsel %vm5608, %v5472, %v5584
        %v5770 = vsel %vm5612, %v5585, %v5586
        %v5771 = vsel %vm5616, %v5767, %v5770
        %v5772 = vsel %vm5618, %v5472, %v5584
        %v5773 = vsel %vm2398, %v5586, %v5585
        %v5774 = vsel %vm5621, %v5772, %v5773
        %v5776 = vrot.slane %v5774, 2
        %v5779 = vsel %vm5608, %v5474, %v5587
        %v5782 = vsel %vm5612, %v5588, %v5589
        %v5783 = vsel %vm5616, %v5779, %v5782
        %v5786 = vsel %vm5608, %v5476, %v5590
        %v5789 = vsel %vm5612, %v5591, %v5592
        %v5790 = vsel %vm5616, %v5786, %v5789
        %v5791 = vsel %vm5618, %v5476, %v5590
        %v5792 = vsel %vm2398, %v5592, %v5591
        %v5793 = vsel %vm5621, %v5791, %v5792
        %v5795 = vrot.slane %v5793, 2
        %v5798 = vsel %vm5608, %v5478, %v5593
        %v5801 = vsel %vm5612, %v5594, %v5595
        %v5802 = vsel %vm5616, %v5798, %v5801
        %v5805 = vsel %vm5608, %v5480, %v5596
        %v5808 = vsel %vm5612, %v5597, %v5598
        %v5809 = vsel %vm5616, %v5805, %v5808
        %v5810 = vsel %vm5618, %v5480, %v5596
        %v5811 = vsel %vm2398, %v5598, %v5597
        %v5812 = vsel %vm5621, %v5810, %v5811
        %v5814 = vrot.slane %v5812, 2
        %v5817 = vsel %vm5608, %v5482, %v5599
        %v5820 = vsel %vm5612, %v5600, %v5601
        %v5821 = vsel %vm5616, %v5817, %v5820
        %v5824 = vsel %vm5608, %v5484, %v5602
        %v5827 = vsel %vm5612, %v5603, %v5604
        %v5828 = vsel %vm5616, %v5824, %v5827
        %v5829 = vsel %vm5618, %v5484, %v5602
        %v5830 = vsel %vm2398, %v5604, %v5603
        %v5831 = vsel %vm5621, %v5829, %v5830
        %v5833 = vrot.slane %v5831, 2
        %v5836 = vsel %vm5608, %v5486, %v5605
        %v5839 = vsel %vm5612, %v5606, %v5607
        %v5840 = vsel %vm5616, %v5836, %v5839
        %v5841 = vld [vmem:[%s3] sm:$0xf]
        %v5842 = vld [vmem:[%s3 + $0x4] sm:$0xf]
        %v5843 = vld [vmem:[%s3 + $0x8] sm:$0xf]
        %v5844 = vld [vmem:[%s3 + $0xc] sm:$0xf]
        %v5845 = vld [vmem:[%s3 + $0x10] sm:$0xf]
        %v5846 = vld [vmem:[%s3 + $0x14] sm:$0xf]
        %v5847 = vld [vmem:[%s3 + $0x18] sm:$0xf]
        %v5848 = vld [vmem:[%s3 + $0x1c] sm:$0xf]
        %v5849 = vld [vmem:[%s3 + $0x20] sm:$0xf]
        %v5850 = vld [vmem:[%s3 + $0x24] sm:$0xf]
        %v5851 = vld [vmem:[%s3 + $0x28] sm:$0xf]
        %v5852 = vld [vmem:[%s3 + $0x2c] sm:$0xf]
        %v5853 = vld [vmem:[%s3 + $0x30] sm:$0xf]
        %v5854 = vld [vmem:[%s3 + $0x34] sm:$0xf]
        %v5855 = vld [vmem:[%s3 + $0x38] sm:$0xf]
        %v5856 = vld [vmem:[%s3 + $0x3c] sm:$0xf]
        %v5857 = vld [vmem:[%s3 + $0x40] sm:$0xf]
        %v5858 = vld [vmem:[%s3 + $0x44] sm:$0xf]
        %v5859 = vld [vmem:[%s3 + $0x48] sm:$0xf]
        %v5860 = vld [vmem:[%s3 + $0x4c] sm:$0xf]
        %v5861 = vld [vmem:[%s3 + $0x50] sm:$0xf]
        %v5862 = vld [vmem:[%s3 + $0x54] sm:$0xf]
        %v5863 = vld [vmem:[%s3 + $0x58] sm:$0xf]
        %v5864 = vld [vmem:[%s3 + $0x5c] sm:$0xf]
        %v5865 = vld [vmem:[%s3 + $0x60] sm:$0xf]
        %v5866 = vld [vmem:[%s3 + $0x64] sm:$0xf]
        %v5867 = vld [vmem:[%s3 + $0x68] sm:$0xf]
        %v5868 = vld [vmem:[%s3 + $0x6c] sm:$0xf]
        %v5869 = vld [vmem:[%s3 + $0x70] sm:$0xf]
        %v5870 = vld [vmem:[%s3 + $0x74] sm:$0xf]
        %v5871 = vld [vmem:[%s3 + $0x78] sm:$0xf]
        %v5872 = vld [vmem:[%s3 + $0x7c] sm:$0xf]
        %v5873 = vld [vmem:[%s3 + $0x80] sm:$0xf]
        %v5874 = vld [vmem:[%s3 + $0x84] sm:$0xf]
        %v5875 = vld [vmem:[%s3 + $0x88] sm:$0xf]
        %v5876 = vld [vmem:[%s3 + $0x8c] sm:$0xf]
        %v5877 = vld [vmem:[%s4] sm:$0x1]
        %v5879 = vperm.slane %v5877, 0
        %5881 = vst [vmem:[#allocation1] ss:$4 sm:$0xff] %v5617
        %s5883 = scalar_lea.vmem [#allocation1], 1
        %5884 = vst [vmem:[%s5883] ss:$4 sm:$0xff] %v5624
        %s5885 = scalar_lea.vmem [#allocation1], 2
        %5886 = vst [vmem:[%s5885] ss:$4 sm:$0xff] %v5631
        %s5887 = scalar_lea.vmem [#allocation1], 3
        %5888 = vst [vmem:[%s5887] ss:$4 sm:$0xff] %v5638
        %s5890 = scalar_lea.vmem [#allocation1], 32
        %5891 = vst [vmem:[%s5890] ss:$4 sm:$0xff] %v5643
        %s5892 = scalar_lea.vmem [#allocation1], 33
        %5893 = vst [vmem:[%s5892] ss:$4 sm:$0xff] %v5650
        %s5894 = scalar_lea.vmem [#allocation1], 34
        %5895 = vst [vmem:[%s5894] ss:$4 sm:$0xff] %v5657
        %s5897 = scalar_lea.vmem [#allocation1], 35
        %5898 = vst [vmem:[%s5897] ss:$4 sm:$0xff] %v5662
        %v5899 = vld.sshfl [vmem:[#allocation1] sm:$0xff pattern:$0x73625140]
        %v5900 = vld.sshfl [vmem:[#allocation1 + $0x8] sm:$0xff pattern:$0x73625140]
        %v5901 = vld.sshfl [vmem:[#allocation1 + $0x10] sm:$0xff pattern:$0x73625140]
        %v5902 = vld.sshfl [vmem:[#allocation1 + $0x20] sm:$0xff pattern:$0x73625140]
        %v5903 = vld.sshfl [vmem:[#allocation1 + $0x28] sm:$0xff pattern:$0x73625140]
        %v5904 = vld.sshfl [vmem:[#allocation1 + $0x30] sm:$0xff pattern:$0x73625140]
        %5905 = vst [vmem:[#allocation1] ss:$4 sm:$0xff] %v5669
        %5906 = vst [vmem:[%s5883] ss:$4 sm:$0xff] %v5676
        %5908 = vst [vmem:[%s5885] ss:$4 sm:$0xff] %v5681
        %5909 = vst [vmem:[%s5887] ss:$4 sm:$0xff] %v5688
        %5910 = vst [vmem:[%s5890] ss:$4 sm:$0xff] %v5695
        %5912 = vst [vmem:[%s5892] ss:$4 sm:$0xff] %v5700
        %5913 = vst [vmem:[%s5894] ss:$4 sm:$0xff] %v5707
        %5914 = vst [vmem:[%s5897] ss:$4 sm:$0xff] %v5714
        %v5915 = vld.sshfl [vmem:[#allocation1] sm:$0xff pattern:$0x73625140]
        %v5916 = vld.sshfl [vmem:[#allocation1 + $0x8] sm:$0xff pattern:$0x73625140]
        %v5917 = vld.sshfl [vmem:[#allocation1 + $0x10] sm:$0xff pattern:$0x73625140]
        %v5918 = vld.sshfl [vmem:[#allocation1 + $0x20] sm:$0xff pattern:$0x73625140]
        %v5919 = vld.sshfl [vmem:[#allocation1 + $0x28] sm:$0xff pattern:$0x73625140]
        %v5920 = vld.sshfl [vmem:[#allocation1 + $0x30] sm:$0xff pattern:$0x73625140]
        %5922 = vst [vmem:[#allocation1] ss:$4 sm:$0xff] %v5719
        %5923 = vst [vmem:[%s5883] ss:$4 sm:$0xff] %v5726
        %5924 = vst [vmem:[%s5885] ss:$4 sm:$0xff] %v5733
        %5926 = vst [vmem:[%s5887] ss:$4 sm:$0xff] %v5738
        %5927 = vst [vmem:[%s5890] ss:$4 sm:$0xff] %v5745
        %5928 = vst [vmem:[%s5892] ss:$4 sm:$0xff] %v5752
        %5930 = vst [vmem:[%s5894] ss:$4 sm:$0xff] %v5757
        %5931 = vst [vmem:[%s5897] ss:$4 sm:$0xff] %v5764
        %v5932 = vld.sshfl [vmem:[#allocation1] sm:$0xff pattern:$0x73625140]
        %v5933 = vld.sshfl [vmem:[#allocation1 + $0x8] sm:$0xff pattern:$0x73625140]
        %v5934 = vld.sshfl [vmem:[#allocation1 + $0x10] sm:$0xff pattern:$0x73625140]
        %v5935 = vld.sshfl [vmem:[#allocation1 + $0x20] sm:$0xff pattern:$0x73625140]
        %v5936 = vld.sshfl [vmem:[#allocation1 + $0x28] sm:$0xff pattern:$0x73625140]
        %v5937 = vld.sshfl [vmem:[#allocation1 + $0x30] sm:$0xff pattern:$0x73625140]
        %5938 = vst [vmem:[#allocation1] ss:$4 sm:$0xff] %v5771
        %5940 = vst [vmem:[%s5883] ss:$4 sm:$0xff] %v5776
        %5941 = vst [vmem:[%s5885] ss:$4 sm:$0xff] %v5783
        %5942 = vst [vmem:[%s5887] ss:$4 sm:$0xff] %v5790
        %5944 = vst [vmem:[%s5890] ss:$4 sm:$0xff] %v5795
        %5945 = vst [vmem:[%s5892] ss:$4 sm:$0xff] %v5802
        %5946 = vst [vmem:[%s5894] ss:$4 sm:$0xff] %v5809
        %5948 = vst [vmem:[%s5897] ss:$4 sm:$0xff] %v5814
        %v5949 = vld.sshfl [vmem:[#allocation1] sm:$0xff pattern:$0x73625140]
        %v5950 = vld.sshfl [vmem:[#allocation1 + $0x8] sm:$0xff pattern:$0x73625140]
        %v5951 = vld.sshfl [vmem:[#allocation1 + $0x10] sm:$0xff pattern:$0x73625140]
        %v5952 = vld.sshfl [vmem:[#allocation1 + $0x20] sm:$0xff pattern:$0x73625140]
        %v5953 = vld.sshfl [vmem:[#allocation1 + $0x28] sm:$0xff pattern:$0x73625140]
        %v5954 = vld.sshfl [vmem:[#allocation1 + $0x30] sm:$0xff pattern:$0x73625140]
        %5955 = vst [vmem:[#allocation1] ss:$4 sm:$0xff] %v5821
        %5956 = vst [vmem:[%s5883] ss:$4 sm:$0xff] %v5828
        %5958 = vst [vmem:[%s5885] ss:$4 sm:$0xff] %v5833
        %5959 = vst [vmem:[%s5887] ss:$4 sm:$0xff] %v5840
        %v5960 = vld.sshfl [vmem:[#allocation1] sm:$0xff pattern:$0x73625140]
        %v5961 = vld.sshfl [vmem:[#allocation1 + $0x8] sm:$0xff pattern:$0x73625140]
        %v5962 = vld.sshfl [vmem:[#allocation1 + $0x10] sm:$0xff pattern:$0x73625140]
        %v6017 = vunpack.c.l.b16 %v5841
        %v6018 = vunpack.c.l.b16 %v5842
        %v6019 = vunpack.c.l.b16 %v5843
        %v6020 = vunpack.c.l.b16 %v5844
        %v6021 = vunpack.c.l.b16 %v5845
        %v6022 = vunpack.c.l.b16 %v5846
        %v6023 = vunpack.c.l.b16 %v5847
        %v6024 = vunpack.c.l.b16 %v5848
        %v6025 = vunpack.c.l.b16 %v5849
        %v6026 = vunpack.c.l.b16 %v5850
        %v6027 = vunpack.c.l.b16 %v5851
        %v6028 = vunpack.c.l.b16 %v5852
        %v6029 = vunpack.c.l.b16 %v5853
        %v6030 = vunpack.c.l.b16 %v5854
        %v6031 = vunpack.c.l.b16 %v5855
        %v6032 = vunpack.c.l.b16 %v5856
        %v6033 = vunpack.c.l.b16 %v5857
        %v6034 = vunpack.c.l.b16 %v5858
        %v6035 = vunpack.c.l.b16 %v5859
        %v6036 = vunpack.c.l.b16 %v5860
        %v6037 = vunpack.c.l.b16 %v5861
        %v6038 = vunpack.c.l.b16 %v5862
        %v6039 = vunpack.c.l.b16 %v5863
        %v6040 = vunpack.c.l.b16 %v5864
        %v6041 = vunpack.c.l.b16 %v5865
        %v6042 = vunpack.c.l.b16 %v5866
        %v6043 = vunpack.c.l.b16 %v5867
        %v6044 = vunpack.c.l.b16 %v5868
        %v6045 = vunpack.c.l.b16 %v5869
        %v6046 = vunpack.c.l.b16 %v5870
        %v6047 = vunpack.c.l.b16 %v5871
        %v6048 = vunpack.c.l.b16 %v5872
        %v6049 = vunpack.c.l.b16 %v5873
        %v6050 = vunpack.c.l.b16 %v5874
        %v6051 = vunpack.c.l.b16 %v5875
        %v6052 = vunpack.c.l.b16 %v5876
        %v6053 = vpack.c.b16 %v6018, %v6017
        %v6054 = vpack.c.b16 %v6020, %v6019
        %v6055 = vpack.c.b16 %v6022, %v6021
        %v6056 = vpack.c.b16 %v6024, %v6023
        %v6057 = vpack.c.b16 %v6026, %v6025
        %v6058 = vpack.c.b16 %v6028, %v6027
        %v6059 = vpack.c.b16 %v6030, %v6029
        %v6060 = vpack.c.b16 %v6032, %v6031
        %v6061 = vpack.c.b16 %v6034, %v6033
        %v6062 = vpack.c.b16 %v6036, %v6035
        %v6063 = vpack.c.b16 %v6038, %v6037
        %v6064 = vpack.c.b16 %v6040, %v6039
        %v6065 = vpack.c.b16 %v6042, %v6041
        %v6066 = vpack.c.b16 %v6044, %v6043
        %v6067 = vpack.c.b16 %v6046, %v6045
        %v6068 = vpack.c.b16 %v6048, %v6047
        %v6069 = vpack.c.b16 %v6050, %v6049
        %v6070 = vpack.c.b16 %v6052, %v6051
        %vm6089 = vcmask 261120
        %v6090 = vsel %vm6089, %v5901, 0
        %v6092 = vsel %vm6089, %v5904, 0
        %v6094 = vsel %vm6089, %v5917, 0
        %v6096 = vsel %vm6089, %v5920, 0
        %v6098 = vsel %vm6089, %v5934, 0
        %v6100 = vsel %vm6089, %v5937, 0
        %v6102 = vsel %vm6089, %v5951, 0
        %v6104 = vsel %vm6089, %v5954, 0
        %v6106 = vsel %vm6089, %v5962, 0
        %6108 = vmatpush.bf16.msra.mxu0 %v6060
        %6109 = vmatpush.bf16.msra.mxu0 %v6059
        %6110 = vmatpush.bf16.msra.mxu0 %v6058
        %6111 = vmatpush.bf16.msra.mxu0 %v6057
        %6112 = vmatpush.bf16.msra.mxu0 %v6056
        %6113 = vmatpush.bf16.msra.mxu0 %v6055
        %6114 = vmatpush.bf16.msra.mxu0 %v6054
        %6115 = vmatpush.bf16.msra.mxu0 %v6053
        %6116 = vmatmul.bf16.gmra.mxu0 %v5899
        %v6117 = vpop.f32.mrf.mxu0
        %v6118 = vadd.f32 %v5879, %v6117
        %v6119 = vpop.f32.mrf.mxu0
        %v6120 = vadd.f32 %v5879, %v6119
        %6121 = vmatmul.bf16.gmra.mxu0 %v5902
        %v6122 = vpop.f32.mrf.mxu0
        %v6123 = vadd.f32 %v5879, %v6122
        %v6124 = vpop.f32.mrf.mxu0
        %v6125 = vadd.f32 %v5879, %v6124
        %6126 = vmatmul.bf16.gmra.mxu0 %v5915
        %v6127 = vpop.f32.mrf.mxu0
        %v6128 = vadd.f32 %v5879, %v6127
        %v6129 = vpop.f32.mrf.mxu0
        %v6130 = vadd.f32 %v5879, %v6129
        %6131 = vmatmul.bf16.gmra.mxu0 %v5918
        %v6132 = vpop.f32.mrf.mxu0
        %v6133 = vadd.f32 %v5879, %v6132
        %v6134 = vpop.f32.mrf.mxu0
        %v6135 = vadd.f32 %v5879, %v6134
        %6136 = vmatmul.bf16.gmra.mxu0 %v5932
        %v6137 = vpop.f32.mrf.mxu0
        %v6138 = vadd.f32 %v5879, %v6137
        %v6139 = vpop.f32.mrf.mxu0
        %v6140 = vadd.f32 %v5879, %v6139
        %6141 = vmatmul.bf16.gmra.mxu0 %v5935
        %v6142 = vpop.f32.mrf.mxu0
        %v6143 = vadd.f32 %v5879, %v6142
        %v6144 = vpop.f32.mrf.mxu0
        %v6145 = vadd.f32 %v5879, %v6144
        %6146 = vmatmul.bf16.gmra.mxu0 %v5949
        %v6147 = vpop.f32.mrf.mxu0
        %v6148 = vadd.f32 %v5879, %v6147
        %v6149 = vpop.f32.mrf.mxu0
        %v6150 = vadd.f32 %v5879, %v6149
        %6151 = vmatmul.bf16.gmra.mxu0 %v5952
        %v6152 = vpop.f32.mrf.mxu0
        %v6153 = vadd.f32 %v5879, %v6152
        %v6154 = vpop.f32.mrf.mxu0
        %v6155 = vadd.f32 %v5879, %v6154
        %6156 = vmatmul.bf16.gmra.mxu0 %v5960
        %v6157 = vpop.f32.mrf.mxu0
        %v6158 = vadd.f32 %v5879, %v6157
        %v6159 = vpop.f32.mrf.mxu0
        %v6160 = vadd.f32 %v5879, %v6159
        %6161 = vdwg.mxu0
        %6162 = vmatpush.bf16.msra.mxu0 %v6068
        %6163 = vmatpush.bf16.msra.mxu0 %v6067
        %6164 = vmatpush.bf16.msra.mxu0 %v6066
        %6165 = vmatpush.bf16.msra.mxu0 %v6065
        %6166 = vmatpush.bf16.msra.mxu0 %v6064
        %6167 = vmatpush.bf16.msra.mxu0 %v6063
        %6168 = vmatpush.bf16.msra.mxu0 %v6062
        %6169 = vmatpush.bf16.msra.mxu0 %v6061
        %6170 = vmatmul.bf16.gmra.mxu0 %v5900
        %v6171 = vpop.f32.mrf.mxu0
        %v6172 = vadd.f32 %v6118, %v6171
        %v6173 = vpop.f32.mrf.mxu0
        %v6174 = vadd.f32 %v6120, %v6173
        %6175 = vmatmul.bf16.gmra.mxu0 %v5903
        %v6176 = vpop.f32.mrf.mxu0
        %v6177 = vadd.f32 %v6123, %v6176
        %v6178 = vpop.f32.mrf.mxu0
        %v6179 = vadd.f32 %v6125, %v6178
        %6180 = vmatmul.bf16.gmra.mxu0 %v5916
        %v6181 = vpop.f32.mrf.mxu0
        %v6182 = vadd.f32 %v6128, %v6181
        %v6183 = vpop.f32.mrf.mxu0
        %v6184 = vadd.f32 %v6130, %v6183
        %6185 = vmatmul.bf16.gmra.mxu0 %v5919
        %v6186 = vpop.f32.mrf.mxu0
        %v6187 = vadd.f32 %v6133, %v6186
        %v6188 = vpop.f32.mrf.mxu0
        %v6189 = vadd.f32 %v6135, %v6188
        %6190 = vmatmul.bf16.gmra.mxu0 %v5933
        %v6191 = vpop.f32.mrf.mxu0
        %v6192 = vadd.f32 %v6138, %v6191
        %v6193 = vpop.f32.mrf.mxu0
        %v6194 = vadd.f32 %v6140, %v6193
        %6195 = vmatmul.bf16.gmra.mxu0 %v5936
        %v6196 = vpop.f32.mrf.mxu0
        %v6197 = vadd.f32 %v6143, %v6196
        %v6198 = vpop.f32.mrf.mxu0
        %v6199 = vadd.f32 %v6145, %v6198
        %6200 = vmatmul.bf16.gmra.mxu0 %v5950
        %v6201 = vpop.f32.mrf.mxu0
        %v6202 = vadd.f32 %v6148, %v6201
        %v6203 = vpop.f32.mrf.mxu0
        %v6204 = vadd.f32 %v6150, %v6203
        %6205 = vmatmul.bf16.gmra.mxu0 %v5953
        %v6206 = vpop.f32.mrf.mxu0
        %v6207 = vadd.f32 %v6153, %v6206
        %v6208 = vpop.f32.mrf.mxu0
        %v6209 = vadd.f32 %v6155, %v6208
        %6210 = vmatmul.bf16.gmra.mxu0 %v5961
        %v6211 = vpop.f32.mrf.mxu0
        %v6212 = vadd.f32 %v6158, %v6211
        %v6213 = vpop.f32.mrf.mxu0
        %v6214 = vadd.f32 %v6160, %v6213
        %6215 = vdwg.mxu0
        %6216 = vmatpush.bf16.msra.mxu0 0
        %6217 = vmatpush.bf16.msra.mxu0 0
        %6218 = vmatpush.bf16.msra.mxu0 0
        %6219 = vmatpush.bf16.msra.mxu0 0
        %6220 = vmatpush.bf16.msra.mxu0 0
        %6221 = vmatpush.bf16.msra.mxu0 0
        %6222 = vmatpush.bf16.msra.mxu0 %v6070
        %6223 = vmatpush.bf16.msra.mxu0 %v6069
        %6224 = vmatmul.bf16.gmra.mxu0 %v6090
        %v6225 = vpop.f32.mrf.mxu0
        %v6226 = vadd.f32 %v6172, %v6225
        %v6227 = vpop.f32.mrf.mxu0
        %v6228 = vadd.f32 %v6174, %v6227
        %6229 = vmatmul.bf16.gmra.mxu0 %v6092
        %v6230 = vpop.f32.mrf.mxu0
        %v6231 = vadd.f32 %v6177, %v6230
        %v6232 = vpop.f32.mrf.mxu0
        %v6233 = vadd.f32 %v6179, %v6232
        %6234 = vmatmul.bf16.gmra.mxu0 %v6094
        %v6235 = vpop.f32.mrf.mxu0
        %v6236 = vadd.f32 %v6182, %v6235
        %v6237 = vpop.f32.mrf.mxu0
        %v6238 = vadd.f32 %v6184, %v6237
        %6239 = vmatmul.bf16.gmra.mxu0 %v6096
        %v6240 = vpop.f32.mrf.mxu0
        %v6241 = vadd.f32 %v6187, %v6240
        %v6242 = vpop.f32.mrf.mxu0
        %v6243 = vadd.f32 %v6189, %v6242
        %6244 = vmatmul.bf16.gmra.mxu0 %v6098
        %v6245 = vpop.f32.mrf.mxu0
        %v6246 = vadd.f32 %v6192, %v6245
        %v6247 = vpop.f32.mrf.mxu0
        %v6248 = vadd.f32 %v6194, %v6247
        %6249 = vmatmul.bf16.gmra.mxu0 %v6100
        %v6250 = vpop.f32.mrf.mxu0
        %v6251 = vadd.f32 %v6197, %v6250
        %v6252 = vpop.f32.mrf.mxu0
        %v6253 = vadd.f32 %v6199, %v6252
        %6254 = vmatmul.bf16.gmra.mxu0 %v6102
        %v6255 = vpop.f32.mrf.mxu0
        %v6256 = vadd.f32 %v6202, %v6255
        %v6257 = vpop.f32.mrf.mxu0
        %v6258 = vadd.f32 %v6204, %v6257
        %6259 = vmatmul.bf16.gmra.mxu0 %v6104
        %v6260 = vpop.f32.mrf.mxu0
        %v6261 = vadd.f32 %v6207, %v6260
        %v6262 = vpop.f32.mrf.mxu0
        %v6263 = vadd.f32 %v6209, %v6262
        %6264 = vmatmul.bf16.gmra.mxu0 %v6106
        %v6265 = vpop.f32.mrf.mxu0
        %v6266 = vadd.f32 %v6212, %v6265
        %v6267 = vpop.f32.mrf.mxu0
        %v6268 = vadd.f32 %v6214, %v6267
        %6269 = vdwg.mxu0
        %v6270 = vmax.f32 %v6226, 0.0
        %v6271 = vmax.f32 %v6228, 0.0
        %v6272 = vmax.f32 %v6231, 0.0
        %v6273 = vmax.f32 %v6233, 0.0
        %v6274 = vmax.f32 %v6236, 0.0
        %v6275 = vmax.f32 %v6238, 0.0
        %v6276 = vmax.f32 %v6241, 0.0
        %v6277 = vmax.f32 %v6243, 0.0
        %v6278 = vmax.f32 %v6246, 0.0
        %v6279 = vmax.f32 %v6248, 0.0
        %v6280 = vmax.f32 %v6251, 0.0
        %v6281 = vmax.f32 %v6253, 0.0
        %v6282 = vmax.f32 %v6256, 0.0
        %v6283 = vmax.f32 %v6258, 0.0
        %v6284 = vmax.f32 %v6261, 0.0
        %v6285 = vmax.f32 %v6263, 0.0
        %v6286 = vmax.f32 %v6266, 0.0
        %v6287 = vmax.f32 %v6268, 0.0
        %vm6288 = vcmask 523264
        %6289 = vst.msk [vmem:[#allocation5] sm:$0xff] %vm6288, %v6270
        %6290 = vst.msk [vmem:[#allocation5 + $0x8] sm:$0xff] %vm6288, %v6271
        %6291 = vst.msk [vmem:[#allocation5 + $0x10] sm:$0xff] %vm6288, %v6272
        %6292 = vst.msk [vmem:[#allocation5 + $0x18] sm:$0xff] %vm6288, %v6273
        %6293 = vst.msk [vmem:[#allocation5 + $0x20] sm:$0xff] %vm6288, %v6274
        %6294 = vst.msk [vmem:[#allocation5 + $0x28] sm:$0xff] %vm6288, %v6275
        %6295 = vst.msk [vmem:[#allocation5 + $0x30] sm:$0xff] %vm6288, %v6276
        %6296 = vst.msk [vmem:[#allocation5 + $0x38] sm:$0xff] %vm6288, %v6277
        %6297 = vst.msk [vmem:[#allocation5 + $0x40] sm:$0xff] %vm6288, %v6278
        %6298 = vst.msk [vmem:[#allocation5 + $0x48] sm:$0xff] %vm6288, %v6279
        %6299 = vst.msk [vmem:[#allocation5 + $0x50] sm:$0xff] %vm6288, %v6280
        %6300 = vst.msk [vmem:[#allocation5 + $0x58] sm:$0xff] %vm6288, %v6281
        %6301 = vst.msk [vmem:[#allocation5 + $0x60] sm:$0xff] %vm6288, %v6282
        %6302 = vst.msk [vmem:[#allocation5 + $0x68] sm:$0xff] %vm6288, %v6283
        %6303 = vst.msk [vmem:[#allocation5 + $0x70] sm:$0xff] %vm6288, %v6284
        %6304 = vst.msk [vmem:[#allocation5 + $0x78] sm:$0xff] %vm6288, %v6285
        %6305 = vst.msk [vmem:[#allocation5 + $0x80] sm:$0xff] %vm6288, %v6286
        %6306 = vst.msk [vmem:[#allocation5 + $0x88] sm:$0xff] %vm6288, %v6287
        %v6307 = vld [vmem:[#allocation5] ss:$2 sm:$0xff]
        %s6308 = scalar_lea.vmem [#allocation5], 16
        %v6309 = vld [vmem:[%s6308] ss:$2 sm:$0xff]
        %s6310 = scalar_lea.vmem [#allocation5], 32
        %v6311 = vld [vmem:[%s6310] ss:$2 sm:$0xff]
        %s6312 = scalar_lea.vmem [#allocation5], 48
        %v6313 = vld [vmem:[%s6312] ss:$2 sm:$0xff]
        %s6314 = scalar_lea.vmem [#allocation5], 64
        %v6315 = vld [vmem:[%s6314] ss:$2 sm:$0xff]
        %s6316 = scalar_lea.vmem [#allocation5], 80
        %v6317 = vld [vmem:[%s6316] ss:$2 sm:$0xff]
        %s6318 = scalar_lea.vmem [#allocation5], 96
        %v6319 = vld [vmem:[%s6318] ss:$2 sm:$0xff]
        %s6320 = scalar_lea.vmem [#allocation5], 112
        %v6321 = vld [vmem:[%s6320] ss:$2 sm:$0xff]
        %s6322 = scalar_lea.vmem [#allocation5], 128
        %v6323 = vld [vmem:[%s6322] ss:$2 sm:$0xff]
        %s6324 = scalar_lea.vmem [#allocation5], 1
        %v6325 = vld [vmem:[%s6324] ss:$2 sm:$0xff]
        %s6326 = scalar_lea.vmem [#allocation5], 17
        %v6327 = vld [vmem:[%s6326] ss:$2 sm:$0xff]
        %s6328 = scalar_lea.vmem [#allocation5], 33
        %v6329 = vld [vmem:[%s6328] ss:$2 sm:$0xff]
        %s6330 = scalar_lea.vmem [#allocation5], 49
        %v6331 = vld [vmem:[%s6330] ss:$2 sm:$0xff]
        %s6332 = scalar_lea.vmem [#allocation5], 65
        %v6333 = vld [vmem:[%s6332] ss:$2 sm:$0xff]
        %s6334 = scalar_lea.vmem [#allocation5], 81
        %v6335 = vld [vmem:[%s6334] ss:$2 sm:$0xff]
        %s6336 = scalar_lea.vmem [#allocation5], 97
        %v6337 = vld [vmem:[%s6336] ss:$2 sm:$0xff]
        %s6338 = scalar_lea.vmem [#allocation5], 113
        %v6339 = vld [vmem:[%s6338] ss:$2 sm:$0xff]
        %s6340 = scalar_lea.vmem [#allocation5], 129
        %v6341 = vld [vmem:[%s6340] ss:$2 sm:$0xff]
        %v6342 = vmax.f32 %v6307, %v6325
        %v6343 = vmax.f32 %v6309, %v6327
        %v6344 = vmax.f32 %v6311, %v6329
        %v6345 = vmax.f32 %v6313, %v6331
        %v6346 = vmax.f32 %v6315, %v6333
        %v6347 = vmax.f32 %v6317, %v6335
        %v6348 = vmax.f32 %v6319, %v6337
        %v6349 = vmax.f32 %v6321, %v6339
        %v6350 = vmax.f32 %v6323, %v6341
        %v6360 = vrot.slane %v6342, 2
        %v6361 = vrot.slane %v6342, 4
        %v6362 = vrot.slane %v6342, 6
        %v6363 = vrot.slane %v6343, 2
        %v6364 = vrot.slane %v6343, 4
        %v6365 = vrot.slane %v6343, 6
        %v6366 = vrot.slane %v6344, 2
        %v6367 = vrot.slane %v6344, 4
        %v6368 = vrot.slane %v6344, 6
        %v6369 = vrot.slane %v6345, 2
        %v6370 = vrot.slane %v6345, 4
        %v6371 = vrot.slane %v6345, 6
        %v6372 = vrot.slane %v6346, 2
        %v6373 = vrot.slane %v6346, 4
        %v6374 = vrot.slane %v6346, 6
        %v6375 = vrot.slane %v6347, 2
        %v6376 = vrot.slane %v6347, 4
        %v6377 = vrot.slane %v6347, 6
        %v6378 = vrot.slane %v6348, 2
        %v6379 = vrot.slane %v6348, 4
        %v6380 = vrot.slane %v6348, 6
        %v6381 = vrot.slane %v6349, 2
        %v6382 = vrot.slane %v6349, 4
        %v6383 = vrot.slane %v6349, 6
        %v6384 = vrot.slane %v6350, 2
        %v6385 = vrot.slane %v6350, 4
        %v6386 = vrot.slane %v6350, 6
        %vm6414 = vcmask 517120
        %v6415 = vsel %vm6414, %v6342, -inf
        %v6416 = vsel %vm6414, %v6362, -inf
        %v6417 = vmax.f32 %v6415, %v6416
        %v6418 = vsel %vm6414, %v6360, -inf
        %v6419 = vsel %vm6414, %v6343, -inf
        %v6420 = vmax.f32 %v6418, %v6419
        %v6421 = vsel %vm6414, %v6361, -inf
        %v6422 = vsel %vm6414, %v6363, -inf
        %v6423 = vmax.f32 %v6421, %v6422
        %v6424 = vsel %vm6414, %v6364, -inf
        %v6425 = vsel %vm6414, %v6366, -inf
        %v6426 = vmax.f32 %v6424, %v6425
        %v6427 = vsel %vm6414, %v6365, -inf
        %v6428 = vsel %vm6414, %v6367, -inf
        %v6429 = vmax.f32 %v6427, %v6428
        %v6430 = vsel %vm6414, %v6344, -inf
        %v6431 = vsel %vm6414, %v6368, -inf
        %v6432 = vmax.f32 %v6430, %v6431
        %v6433 = vsel %vm6414, %v6345, -inf
        %v6434 = vsel %vm6414, %v6371, -inf
        %v6435 = vmax.f32 %v6433, %v6434
        %v6436 = vsel %vm6414, %v6369, -inf
        %v6437 = vsel %vm6414, %v6346, -inf
        %v6438 = vmax.f32 %v6436, %v6437
        %v6439 = vsel %vm6414, %v6370, -inf
        %v6440 = vsel %vm6414, %v6372, -inf
        %v6441 = vmax.f32 %v6439, %v6440
        %v6442 = vsel %vm6414, %v6373, -inf
        %v6443 = vsel %vm6414, %v6375, -inf
        %v6444 = vmax.f32 %v6442, %v6443
        %v6445 = vsel %vm6414, %v6374, -inf
        %v6446 = vsel %vm6414, %v6376, -inf
        %v6447 = vmax.f32 %v6445, %v6446
        %v6448 = vsel %vm6414, %v6347, -inf
        %v6449 = vsel %vm6414, %v6377, -inf
        %v6450 = vmax.f32 %v6448, %v6449
        %v6451 = vsel %vm6414, %v6348, -inf
        %v6452 = vsel %vm6414, %v6380, -inf
        %v6453 = vmax.f32 %v6451, %v6452
        %v6454 = vsel %vm6414, %v6378, -inf
        %v6455 = vsel %vm6414, %v6349, -inf
        %v6456 = vmax.f32 %v6454, %v6455
        %v6457 = vsel %vm6414, %v6379, -inf
        %v6458 = vsel %vm6414, %v6381, -inf
        %v6459 = vmax.f32 %v6457, %v6458
        %v6460 = vsel %vm6414, %v6382, -inf
        %v6461 = vsel %vm6414, %v6384, -inf
        %v6462 = vmax.f32 %v6460, %v6461
        %v6463 = vsel %vm6414, %v6383, -inf
        %v6464 = vsel %vm6414, %v6385, -inf
        %v6465 = vmax.f32 %v6463, %v6464
        %v6466 = vsel %vm6414, %v6350, -inf
        %v6467 = vsel %vm6414, %v6386, -inf
        %v6468 = vmax.f32 %v6466, %v6467
        %6477 = vst [vmem:[#allocation1] ss:$4 sm:$0xff] %v6417
        %s6478 = scalar_lea.vmem [#allocation1], 1
        %6479 = vst [vmem:[%s6478] ss:$4 sm:$0xff] %v6420
        %v6480 = vld.sshfl [vmem:[#allocation1] sm:$0xff pattern:$0x73625140]
        %s6481 = scalar_lea.vmem [#allocation1], 32
        %6482 = vst [vmem:[%s6481] ss:$4 sm:$0xff] %v6426
        %s6483 = scalar_lea.vmem [#allocation1], 33
        %6484 = vst [vmem:[%s6483] ss:$4 sm:$0xff] %v6429
        %v6485 = vld.sshfl [vmem:[#allocation1 + $0x20] sm:$0xff pattern:$0x73625140]
        %6486 = vst [vmem:[#allocation1] ss:$4 sm:$0xff] %v6435
        %6487 = vst [vmem:[%s6478] ss:$4 sm:$0xff] %v6438
        %v6488 = vld.sshfl [vmem:[#allocation1] sm:$0xff pattern:$0x73625140]
        %6489 = vst [vmem:[%s6481] ss:$4 sm:$0xff] %v6444
        %6490 = vst [vmem:[%s6483] ss:$4 sm:$0xff] %v6447
        %v6491 = vld.sshfl [vmem:[#allocation1 + $0x20] sm:$0xff pattern:$0x73625140]
        %v6496 = vpack.c.bf16 %v6480, %v6480
        %v6497 = vpack.c.bf16 %v6485, %v6485
        %v6498 = vpack.c.bf16 %v6488, %v6488
        %v6499 = vpack.c.bf16 %v6491, %v6491
        %6500 = vst.msk [vmem:[#allocation4] sm:$0x3] %vm6414, %v6496
        %6501 = vst.msk [vmem:[#allocation4 + $0xa] sm:$0x3] %vm6414, %v6497
        %6502 = vst.msk [vmem:[#allocation4 + $0x14] sm:$0x3] %vm6414, %v6498
        %6503 = vst.msk [vmem:[#allocation4 + $0x1e] sm:$0x3] %vm6414, %v6499
        %6508 = vst [vmem:[#allocation1] ss:$4 sm:$0xff] %v6417
        %s6509 = scalar_lea.vmem [#allocation1], 1
        %6510 = vst [vmem:[%s6509] ss:$4 sm:$0xff] %v6420
        %s6511 = scalar_lea.vmem [#allocation1], 2
        %6512 = vst [vmem:[%s6511] ss:$4 sm:$0xff] %v6423
        %v6513 = vld.sshfl [vmem:[#allocation1] sm:$0xff pattern:$0x73625140]
        %s6514 = scalar_lea.vmem [#allocation1], 32
        %6515 = vst [vmem:[%s6514] ss:$4 sm:$0xff] %v6426
        %s6516 = scalar_lea.vmem [#allocation1], 33
        %6517 = vst [vmem:[%s6516] ss:$4 sm:$0xff] %v6429
        %s6518 = scalar_lea.vmem [#allocation1], 34
        %6519 = vst [vmem:[%s6518] ss:$4 sm:$0xff] %v6432
        %v6520 = vld.sshfl [vmem:[#allocation1 + $0x20] sm:$0xff pattern:$0x73625140]
        %6521 = vst [vmem:[#allocation1] ss:$4 sm:$0xff] %v6435
        %6522 = vst [vmem:[%s6509] ss:$4 sm:$0xff] %v6438
        %6523 = vst [vmem:[%s6511] ss:$4 sm:$0xff] %v6441
        %v6524 = vld.sshfl [vmem:[#allocation1] sm:$0xff pattern:$0x73625140]
        %6525 = vst [vmem:[%s6514] ss:$4 sm:$0xff] %v6444
        %6526 = vst [vmem:[%s6516] ss:$4 sm:$0xff] %v6447
        %6527 = vst [vmem:[%s6518] ss:$4 sm:$0xff] %v6450
        %v6528 = vld.sshfl [vmem:[#allocation1 + $0x20] sm:$0xff pattern:$0x73625140]
        %v6533 = vpack.c.bf16 %v6513, %v6513
        %v6534 = vpack.c.bf16 %v6520, %v6520
        %v6535 = vpack.c.bf16 %v6524, %v6524
        %v6536 = vpack.c.bf16 %v6528, %v6528
        %v6541 = vrot.slane %v6533, 2
        %v6542 = vrot.slane %v6534, 2
        %v6543 = vrot.slane %v6535, 2
        %v6544 = vrot.slane %v6536, 2
        %v6547 = vsel %vm5608, %v6533, %v6541
        %v6548 = vsel %vm5618, %v6533, %v6541
        %v6550 = vrot.slane %v6548, 2
        %v6553 = vsel %vm5608, %v6534, %v6542
        %v6554 = vsel %vm5618, %v6534, %v6542
        %v6556 = vrot.slane %v6554, 2
        %v6559 = vsel %vm5608, %v6535, %v6543
        %v6560 = vsel %vm5618, %v6535, %v6543
        %v6562 = vrot.slane %v6560, 2
        %v6565 = vsel %vm5608, %v6536, %v6544
        %v6566 = vsel %vm5618, %v6536, %v6544
        %v6568 = vrot.slane %v6566, 2
        %vm6569 = vsmask.f32 1280
        %vm6570 = vsmask.f32 3336
        %vm6571 = vmor %vm6569, %vm6570
        %vm6572 = vsmask.f32 5392
        %vm6573 = vmor %vm6571, %vm6572
        %vm6574 = vsmask.f32 7448
        %vm6575 = vmor %vm6573, %vm6574
        %v6576 = vshrl.u32 %v6547, 16
        %v6578 = vrot.slane %v6576, 6
        %v6579 = vshll.u32 %v6547, 16
        %v6581 = vrot.slane %v6579, 7
        %v6582 = vor.u32 %v6578, %v6581
        %v6583 = vrot.slane %v6582, 2
        %v6585 = vshll.u32 %v6550, 16
        %v6587 = vrot.slane %v6585, 7
        %v6588 = vsel %vm6575, %v6583, %v6587
        %v6589 = vshrl.u32 %v6553, 16
        %v6591 = vrot.slane %v6589, 6
        %v6592 = vshll.u32 %v6553, 16
        %v6594 = vrot.slane %v6592, 7
        %v6595 = vor.u32 %v6591, %v6594
        %v6596 = vrot.slane %v6595, 2
        %v6598 = vshll.u32 %v6556, 16
        %v6600 = vrot.slane %v6598, 7
        %v6601 = vsel %vm6575, %v6596, %v6600
        %v6602 = vshrl.u32 %v6559, 16
        %v6604 = vrot.slane %v6602, 6
        %v6605 = vshll.u32 %v6559, 16
        %v6607 = vrot.slane %v6605, 7
        %v6608 = vor.u32 %v6604, %v6607
        %v6609 = vrot.slane %v6608, 2
        %v6611 = vshll.u32 %v6562, 16
        %v6613 = vrot.slane %v6611, 7
        %v6614 = vsel %vm6575, %v6609, %v6613
        %v6615 = vshrl.u32 %v6565, 16
        %v6617 = vrot.slane %v6615, 6
        %v6618 = vshll.u32 %v6565, 16
        %v6620 = vrot.slane %v6618, 7
        %v6621 = vor.u32 %v6617, %v6620
        %v6622 = vrot.slane %v6621, 2
        %v6624 = vshll.u32 %v6568, 16
        %v6626 = vrot.slane %v6624, 7
        %v6627 = vsel %vm6575, %v6622, %v6626
        %6628 = vrot.lane.b32.xlu0 %v6588, 64
        %v6629 = vpop.permute.xlu0 %6628
        %6630 = vrot.lane.b32.xlu0 %v6601, 64
        %v6631 = vpop.permute.xlu0 %6630
        %6632 = vrot.lane.b32.xlu0 %v6614, 64
        %v6633 = vpop.permute.xlu0 %6632
        %6634 = vrot.lane.b32.xlu0 %v6627, 64
        %v6635 = vpop.permute.xlu0 %6634
        %vm6640 = vcmask 1041920
        %6641 = vst.msk [vmem:[#allocation4] sm:$0x3] %vm6640, %v6629
        %6642 = vst.msk [vmem:[#allocation4 + $0xa] sm:$0x3] %vm6640, %v6631
        %6643 = vst.msk [vmem:[#allocation4 + $0x14] sm:$0x3] %vm6640, %v6633
        %6644 = vst.msk [vmem:[#allocation4 + $0x1e] sm:$0x3] %vm6640, %v6635
        %6645 = vst [vmem:[#allocation1] ss:$4 sm:$0xff] %v6420
        %s6646 = scalar_lea.vmem [#allocation1], 1
        %6647 = vst [vmem:[%s6646] ss:$4 sm:$0xff] %v6423
        %v6648 = vld.sshfl [vmem:[#allocation1] sm:$0xff pattern:$0x73625140]
        %s6649 = scalar_lea.vmem [#allocation1], 32
        %6650 = vst [vmem:[%s6649] ss:$4 sm:$0xff] %v6429
        %s6651 = scalar_lea.vmem [#allocation1], 33
        %6652 = vst [vmem:[%s6651] ss:$4 sm:$0xff] %v6432
        %v6653 = vld.sshfl [vmem:[#allocation1 + $0x20] sm:$0xff pattern:$0x73625140]
        %6654 = vst [vmem:[#allocation1] ss:$4 sm:$0xff] %v6438
        %6655 = vst [vmem:[%s6646] ss:$4 sm:$0xff] %v6441
        %v6656 = vld.sshfl [vmem:[#allocation1] sm:$0xff pattern:$0x73625140]
        %6657 = vst [vmem:[%s6649] ss:$4 sm:$0xff] %v6447
        %6658 = vst [vmem:[%s6651] ss:$4 sm:$0xff] %v6450
        %v6659 = vld.sshfl [vmem:[#allocation1 + $0x20] sm:$0xff pattern:$0x73625140]
        %v6664 = vpack.c.bf16 %v6648, %v6648
        %v6665 = vpack.c.bf16 %v6653, %v6653
        %v6666 = vpack.c.bf16 %v6656, %v6656
        %v6667 = vpack.c.bf16 %v6659, %v6659
        %6668 = vst.msk [vmem:[#allocation4 + $0x2] sm:$0x3] %vm6414, %v6664
        %6669 = vst.msk [vmem:[#allocation4 + $0xc] sm:$0x3] %vm6414, %v6665
        %6670 = vst.msk [vmem:[#allocation4 + $0x16] sm:$0x3] %vm6414, %v6666
        %6671 = vst.msk [vmem:[#allocation4 + $0x20] sm:$0x3] %vm6414, %v6667
        %6674 = vst [vmem:[#allocation1] ss:$4 sm:$0xff] %v6426
        %s6675 = scalar_lea.vmem [#allocation1], 1
        %6676 = vst [vmem:[%s6675] ss:$4 sm:$0xff] %v6429
        %v6677 = vld.sshfl [vmem:[#allocation1] sm:$0xff pattern:$0x73625140]
        %s6678 = scalar_lea.vmem [#allocation1], 32
        %6679 = vst [vmem:[%s6678] ss:$4 sm:$0xff] %v6435
        %s6680 = scalar_lea.vmem [#allocation1], 33
        %6681 = vst [vmem:[%s6680] ss:$4 sm:$0xff] %v6438
        %v6682 = vld.sshfl [vmem:[#allocation1 + $0x20] sm:$0xff pattern:$0x73625140]
        %6683 = vst [vmem:[#allocation1] ss:$4 sm:$0xff] %v6444
        %6684 = vst [vmem:[%s6675] ss:$4 sm:$0xff] %v6447
        %v6685 = vld.sshfl [vmem:[#allocation1] sm:$0xff pattern:$0x73625140]
        %6686 = vst [vmem:[%s6678] ss:$4 sm:$0xff] %v6453
        %6687 = vst [vmem:[%s6680] ss:$4 sm:$0xff] %v6456
        %v6688 = vld.sshfl [vmem:[#allocation1 + $0x20] sm:$0xff pattern:$0x73625140]
        %v6693 = vpack.c.bf16 %v6677, %v6677
        %v6694 = vpack.c.bf16 %v6682, %v6682
        %v6695 = vpack.c.bf16 %v6685, %v6685
        %v6696 = vpack.c.bf16 %v6688, %v6688
        %v6701 = vrot.slane %v6693, 2
        %v6702 = vrot.slane %v6694, 2
        %v6703 = vrot.slane %v6695, 2
        %v6704 = vrot.slane %v6696, 2
        %v6707 = vsel %vm5608, %v6693, %v6701
        %v6711 = vsel %vm5608, %v6694, %v6702
        %v6715 = vsel %vm5608, %v6695, %v6703
        %v6719 = vsel %vm5608, %v6696, %v6704
        %6721 = vrot.lane.b32.xlu0 %v6707, 64
        %v6722 = vpop.permute.xlu0 %6721
        %6723 = vrot.lane.b32.xlu0 %v6711, 64
        %v6724 = vpop.permute.xlu0 %6723
        %6725 = vrot.lane.b32.xlu0 %v6715, 64
        %v6726 = vpop.permute.xlu0 %6725
        %6727 = vrot.lane.b32.xlu0 %v6719, 64
        %v6728 = vpop.permute.xlu0 %6727
        %6733 = vst.msk [vmem:[#allocation4 + $0x2] sm:$0x3] %vm6640, %v6722
        %6734 = vst.msk [vmem:[#allocation4 + $0xc] sm:$0x3] %vm6640, %v6724
        %6735 = vst.msk [vmem:[#allocation4 + $0x16] sm:$0x3] %vm6640, %v6726
        %6736 = vst.msk [vmem:[#allocation4 + $0x20] sm:$0x3] %vm6640, %v6728
        %6738 = vst [vmem:[#allocation1] ss:$4 sm:$0xff] %v6426
        %s6739 = scalar_lea.vmem [#allocation1], 1
        %6740 = vst [vmem:[%s6739] ss:$4 sm:$0xff] %v6429
        %s6741 = scalar_lea.vmem [#allocation1], 2
        %6742 = vst [vmem:[%s6741] ss:$4 sm:$0xff] %v6432
        %v6743 = vld.sshfl [vmem:[#allocation1] sm:$0xff pattern:$0x73625140]
        %s6744 = scalar_lea.vmem [#allocation1], 32
        %6745 = vst [vmem:[%s6744] ss:$4 sm:$0xff] %v6435
        %s6746 = scalar_lea.vmem [#allocation1], 33
        %6747 = vst [vmem:[%s6746] ss:$4 sm:$0xff] %v6438
        %s6748 = scalar_lea.vmem [#allocation1], 34
        %6749 = vst [vmem:[%s6748] ss:$4 sm:$0xff] %v6441
        %v6750 = vld.sshfl [vmem:[#allocation1 + $0x20] sm:$0xff pattern:$0x73625140]
        %6751 = vst [vmem:[#allocation1] ss:$4 sm:$0xff] %v6444
        %6752 = vst [vmem:[%s6739] ss:$4 sm:$0xff] %v6447
        %6753 = vst [vmem:[%s6741] ss:$4 sm:$0xff] %v6450
        %v6754 = vld.sshfl [vmem:[#allocation1] sm:$0xff pattern:$0x73625140]
        %6755 = vst [vmem:[%s6744] ss:$4 sm:$0xff] %v6453
        %6756 = vst [vmem:[%s6746] ss:$4 sm:$0xff] %v6456
        %6757 = vst [vmem:[%s6748] ss:$4 sm:$0xff] %v6459
        %v6758 = vld.sshfl [vmem:[#allocation1 + $0x20] sm:$0xff pattern:$0x73625140]
        %v6763 = vpack.c.bf16 %v6743, %v6743
        %v6764 = vpack.c.bf16 %v6750, %v6750
        %v6765 = vpack.c.bf16 %v6754, %v6754
        %v6766 = vpack.c.bf16 %v6758, %v6758
        %v6771 = vrot.slane %v6763, 2
        %v6772 = vrot.slane %v6764, 2
        %v6773 = vrot.slane %v6765, 2
        %v6774 = vrot.slane %v6766, 2
        %v6777 = vsel %vm5608, %v6763, %v6771
        %v6778 = vsel %vm5618, %v6763, %v6771
        %v6780 = vrot.slane %v6778, 2
        %v6783 = vsel %vm5608, %v6764, %v6772
        %v6784 = vsel %vm5618, %v6764, %v6772
        %v6786 = vrot.slane %v6784, 2
        %v6789 = vsel %vm5608, %v6765, %v6773
        %v6790 = vsel %vm5618, %v6765, %v6773
        %v6792 = vrot.slane %v6790, 2
        %v6795 = vsel %vm5608, %v6766, %v6774
        %v6796 = vsel %vm5618, %v6766, %v6774
        %v6798 = vrot.slane %v6796, 2
        %v6799 = vshrl.u32 %v6777, 16
        %v6801 = vrot.slane %v6799, 6
        %v6802 = vshll.u32 %v6777, 16
        %v6804 = vrot.slane %v6802, 7
        %v6805 = vor.u32 %v6801, %v6804
        %v6806 = vrot.slane %v6805, 2
        %v6808 = vshll.u32 %v6780, 16
        %v6810 = vrot.slane %v6808, 7
        %v6811 = vsel %vm6575, %v6806, %v6810
        %v6812 = vshrl.u32 %v6783, 16
        %v6814 = vrot.slane %v6812, 6
        %v6815 = vshll.u32 %v6783, 16
        %v6817 = vrot.slane %v6815, 7
        %v6818 = vor.u32 %v6814, %v6817
        %v6819 = vrot.slane %v6818, 2
        %v6821 = vshll.u32 %v6786, 16
        %v6823 = vrot.slane %v6821, 7
        %v6824 = vsel %vm6575, %v6819, %v6823
        %v6825 = vshrl.u32 %v6789, 16
        %v6827 = vrot.slane %v6825, 6
        %v6828 = vshll.u32 %v6789, 16
        %v6830 = vrot.slane %v6828, 7
        %v6831 = vor.u32 %v6827, %v6830
        %v6832 = vrot.slane %v6831, 2
        %v6834 = vshll.u32 %v6792, 16
        %v6836 = vrot.slane %v6834, 7
        %v6837 = vsel %vm6575, %v6832, %v6836
        %v6838 = vshrl.u32 %v6795, 16
        %v6840 = vrot.slane %v6838, 6
        %v6841 = vshll.u32 %v6795, 16
        %v6843 = vrot.slane %v6841, 7
        %v6844 = vor.u32 %v6840, %v6843
        %v6845 = vrot.slane %v6844, 2
        %v6847 = vshll.u32 %v6798, 16
        %v6849 = vrot.slane %v6847, 7
        %v6850 = vsel %vm6575, %v6845, %v6849
        %6855 = vst.msk [vmem:[#allocation4 + $0x4] sm:$0x3] %vm6414, %v6811
        %6856 = vst.msk [vmem:[#allocation4 + $0xe] sm:$0x3] %vm6414, %v6824
        %6857 = vst.msk [vmem:[#allocation4 + $0x18] sm:$0x3] %vm6414, %v6837
        %6858 = vst.msk [vmem:[#allocation4 + $0x22] sm:$0x3] %vm6414, %v6850
        %6859 = vst [vmem:[#allocation1] ss:$4 sm:$0xff] %v6429
        %s6860 = scalar_lea.vmem [#allocation1], 1
        %6861 = vst [vmem:[%s6860] ss:$4 sm:$0xff] %v6432
        %v6862 = vld.sshfl [vmem:[#allocation1] sm:$0xff pattern:$0x73625140]
        %s6863 = scalar_lea.vmem [#allocation1], 32
        %6864 = vst [vmem:[%s6863] ss:$4 sm:$0xff] %v6438
        %s6865 = scalar_lea.vmem [#allocation1], 33
        %6866 = vst [vmem:[%s6865] ss:$4 sm:$0xff] %v6441
        %v6867 = vld.sshfl [vmem:[#allocation1 + $0x20] sm:$0xff pattern:$0x73625140]
        %6868 = vst [vmem:[#allocation1] ss:$4 sm:$0xff] %v6447
        %6869 = vst [vmem:[%s6860] ss:$4 sm:$0xff] %v6450
        %v6870 = vld.sshfl [vmem:[#allocation1] sm:$0xff pattern:$0x73625140]
        %6871 = vst [vmem:[%s6863] ss:$4 sm:$0xff] %v6456
        %6872 = vst [vmem:[%s6865] ss:$4 sm:$0xff] %v6459
        %v6873 = vld.sshfl [vmem:[#allocation1 + $0x20] sm:$0xff pattern:$0x73625140]
        %v6878 = vpack.c.bf16 %v6862, %v6862
        %v6879 = vpack.c.bf16 %v6867, %v6867
        %v6880 = vpack.c.bf16 %v6870, %v6870
        %v6881 = vpack.c.bf16 %v6873, %v6873
        %v6886 = vrot.slane %v6878, 2
        %v6887 = vrot.slane %v6879, 2
        %v6888 = vrot.slane %v6880, 2
        %v6889 = vrot.slane %v6881, 2
        %v6892 = vsel %vm5608, %v6878, %v6886
        %v6896 = vsel %vm5608, %v6879, %v6887
        %v6900 = vsel %vm5608, %v6880, %v6888
        %v6904 = vsel %vm5608, %v6881, %v6889
        %6906 = vrot.lane.b32.xlu0 %v6892, 64
        %v6907 = vpop.permute.xlu0 %6906
        %6908 = vrot.lane.b32.xlu0 %v6896, 64
        %v6909 = vpop.permute.xlu0 %6908
        %6910 = vrot.lane.b32.xlu0 %v6900, 64
        %v6911 = vpop.permute.xlu0 %6910
        %6912 = vrot.lane.b32.xlu0 %v6904, 64
        %v6913 = vpop.permute.xlu0 %6912
        %6918 = vst.msk [vmem:[#allocation4 + $0x4] sm:$0x3] %vm6640, %v6907
        %6919 = vst.msk [vmem:[#allocation4 + $0xe] sm:$0x3] %vm6640, %v6909
        %6920 = vst.msk [vmem:[#allocation4 + $0x18] sm:$0x3] %vm6640, %v6911
        %6921 = vst.msk [vmem:[#allocation4 + $0x22] sm:$0x3] %vm6640, %v6913
        %6924 = vst [vmem:[#allocation1] ss:$4 sm:$0xff] %v6435
        %s6925 = scalar_lea.vmem [#allocation1], 1
        %6926 = vst [vmem:[%s6925] ss:$4 sm:$0xff] %v6438
        %v6927 = vld.sshfl [vmem:[#allocation1] sm:$0xff pattern:$0x73625140]
        %s6928 = scalar_lea.vmem [#allocation1], 32
        %6929 = vst [vmem:[%s6928] ss:$4 sm:$0xff] %v6444
        %s6930 = scalar_lea.vmem [#allocation1], 33
        %6931 = vst [vmem:[%s6930] ss:$4 sm:$0xff] %v6447
        %v6932 = vld.sshfl [vmem:[#allocation1 + $0x20] sm:$0xff pattern:$0x73625140]
        %6933 = vst [vmem:[#allocation1] ss:$4 sm:$0xff] %v6453
        %6934 = vst [vmem:[%s6925] ss:$4 sm:$0xff] %v6456
        %v6935 = vld.sshfl [vmem:[#allocation1] sm:$0xff pattern:$0x73625140]
        %6936 = vst [vmem:[%s6928] ss:$4 sm:$0xff] %v6462
        %6937 = vst [vmem:[%s6930] ss:$4 sm:$0xff] %v6465
        %v6938 = vld.sshfl [vmem:[#allocation1 + $0x20] sm:$0xff pattern:$0x73625140]
        %v6943 = vpack.c.bf16 %v6927, %v6927
        %v6944 = vpack.c.bf16 %v6932, %v6932
        %v6945 = vpack.c.bf16 %v6935, %v6935
        %v6946 = vpack.c.bf16 %v6938, %v6938
        %6947 = vst.msk [vmem:[#allocation4 + $0x6] sm:$0x3] %vm6414, %v6943
        %6948 = vst.msk [vmem:[#allocation4 + $0x10] sm:$0x3] %vm6414, %v6944
        %6949 = vst.msk [vmem:[#allocation4 + $0x1a] sm:$0x3] %vm6414, %v6945
        %6950 = vst.msk [vmem:[#allocation4 + $0x24] sm:$0x3] %vm6414, %v6946
        %6952 = vst [vmem:[#allocation1] ss:$4 sm:$0xff] %v6435
        %s6953 = scalar_lea.vmem [#allocation1], 1
        %6954 = vst [vmem:[%s6953] ss:$4 sm:$0xff] %v6438
        %s6955 = scalar_lea.vmem [#allocation1], 2
        %6956 = vst [vmem:[%s6955] ss:$4 sm:$0xff] %v6441
        %v6957 = vld.sshfl [vmem:[#allocation1] sm:$0xff pattern:$0x73625140]
        %s6958 = scalar_lea.vmem [#allocation1], 32
        %6959 = vst [vmem:[%s6958] ss:$4 sm:$0xff] %v6444
        %s6960 = scalar_lea.vmem [#allocation1], 33
        %6961 = vst [vmem:[%s6960] ss:$4 sm:$0xff] %v6447
        %s6962 = scalar_lea.vmem [#allocation1], 34
        %6963 = vst [vmem:[%s6962] ss:$4 sm:$0xff] %v6450
        %v6964 = vld.sshfl [vmem:[#allocation1 + $0x20] sm:$0xff pattern:$0x73625140]
        %6965 = vst [vmem:[#allocation1] ss:$4 sm:$0xff] %v6453
        %6966 = vst [vmem:[%s6953] ss:$4 sm:$0xff] %v6456
        %6967 = vst [vmem:[%s6955] ss:$4 sm:$0xff] %v6459
        %v6968 = vld.sshfl [vmem:[#allocation1] sm:$0xff pattern:$0x73625140]
        %6969 = vst [vmem:[%s6958] ss:$4 sm:$0xff] %v6462
        %6970 = vst [vmem:[%s6960] ss:$4 sm:$0xff] %v6465
        %6971 = vst [vmem:[%s6962] ss:$4 sm:$0xff] %v6468
        %v6972 = vld.sshfl [vmem:[#allocation1 + $0x20] sm:$0xff pattern:$0x73625140]
        %v6977 = vpack.c.bf16 %v6957, %v6957
        %v6978 = vpack.c.bf16 %v6964, %v6964
        %v6979 = vpack.c.bf16 %v6968, %v6968
        %v6980 = vpack.c.bf16 %v6972, %v6972
        %v6985 = vrot.slane %v6977, 2
        %v6986 = vrot.slane %v6978, 2
        %v6987 = vrot.slane %v6979, 2
        %v6988 = vrot.slane %v6980, 2
        %v6991 = vsel %vm5608, %v6977, %v6985
        %v6992 = vsel %vm5618, %v6977, %v6985
        %v6994 = vrot.slane %v6992, 2
        %v6997 = vsel %vm5608, %v6978, %v6986
        %v6998 = vsel %vm5618, %v6978, %v6986
        %v7000 = vrot.slane %v6998, 2
        %v7003 = vsel %vm5608, %v6979, %v6987
        %v7004 = vsel %vm5618, %v6979, %v6987
        %v7006 = vrot.slane %v7004, 2
        %v7009 = vsel %vm5608, %v6980, %v6988
        %v7010 = vsel %vm5618, %v6980, %v6988
        %v7012 = vrot.slane %v7010, 2
        %v7013 = vshrl.u32 %v6991, 16
        %v7015 = vrot.slane %v7013, 6
        %v7016 = vshll.u32 %v6991, 16
        %v7018 = vrot.slane %v7016, 7
        %v7019 = vor.u32 %v7015, %v7018
        %v7020 = vrot.slane %v7019, 2
        %v7022 = vshll.u32 %v6994, 16
        %v7024 = vrot.slane %v7022, 7
        %v7025 = vsel %vm6575, %v7020, %v7024
        %v7026 = vshrl.u32 %v6997, 16
        %v7028 = vrot.slane %v7026, 6
        %v7029 = vshll.u32 %v6997, 16
        %v7031 = vrot.slane %v7029, 7
        %v7032 = vor.u32 %v7028, %v7031
        %v7033 = vrot.slane %v7032, 2
        %v7035 = vshll.u32 %v7000, 16
        %v7037 = vrot.slane %v7035, 7
        %v7038 = vsel %vm6575, %v7033, %v7037
        %v7039 = vshrl.u32 %v7003, 16
        %v7041 = vrot.slane %v7039, 6
        %v7042 = vshll.u32 %v7003, 16
        %v7044 = vrot.slane %v7042, 7
        %v7045 = vor.u32 %v7041, %v7044
        %v7046 = vrot.slane %v7045, 2
        %v7048 = vshll.u32 %v7006, 16
        %v7050 = vrot.slane %v7048, 7
        %v7051 = vsel %vm6575, %v7046, %v7050
        %v7052 = vshrl.u32 %v7009, 16
        %v7054 = vrot.slane %v7052, 6
        %v7055 = vshll.u32 %v7009, 16
        %v7057 = vrot.slane %v7055, 7
        %v7058 = vor.u32 %v7054, %v7057
        %v7059 = vrot.slane %v7058, 2
        %v7061 = vshll.u32 %v7012, 16
        %v7063 = vrot.slane %v7061, 7
        %v7064 = vsel %vm6575, %v7059, %v7063
        %7065 = vrot.lane.b32.xlu0 %v7025, 64
        %v7066 = vpop.permute.xlu0 %7065
        %7067 = vrot.lane.b32.xlu0 %v7038, 64
        %v7068 = vpop.permute.xlu0 %7067
        %7069 = vrot.lane.b32.xlu0 %v7051, 64
        %v7070 = vpop.permute.xlu0 %7069
        %7071 = vrot.lane.b32.xlu0 %v7064, 64
        %v7072 = vpop.permute.xlu0 %7071
        %7077 = vst.msk [vmem:[#allocation4 + $0x6] sm:$0x3] %vm6640, %v7066
        %7078 = vst.msk [vmem:[#allocation4 + $0x10] sm:$0x3] %vm6640, %v7068
        %7079 = vst.msk [vmem:[#allocation4 + $0x1a] sm:$0x3] %vm6640, %v7070
        %7080 = vst.msk [vmem:[#allocation4 + $0x24] sm:$0x3] %vm6640, %v7072
        %7081 = vst [vmem:[#allocation1] ss:$4 sm:$0xff] %v6438
        %s7082 = scalar_lea.vmem [#allocation1], 1
        %7083 = vst [vmem:[%s7082] ss:$4 sm:$0xff] %v6441
        %v7084 = vld.sshfl [vmem:[#allocation1] sm:$0xff pattern:$0x73625140]
        %s7085 = scalar_lea.vmem [#allocation1], 32
        %7086 = vst [vmem:[%s7085] ss:$4 sm:$0xff] %v6447
        %s7087 = scalar_lea.vmem [#allocation1], 33
        %7088 = vst [vmem:[%s7087] ss:$4 sm:$0xff] %v6450
        %v7089 = vld.sshfl [vmem:[#allocation1 + $0x20] sm:$0xff pattern:$0x73625140]
        %7090 = vst [vmem:[#allocation1] ss:$4 sm:$0xff] %v6456
        %7091 = vst [vmem:[%s7082] ss:$4 sm:$0xff] %v6459
        %v7092 = vld.sshfl [vmem:[#allocation1] sm:$0xff pattern:$0x73625140]
        %7093 = vst [vmem:[%s7085] ss:$4 sm:$0xff] %v6465
        %7094 = vst [vmem:[%s7087] ss:$4 sm:$0xff] %v6468
        %v7095 = vld.sshfl [vmem:[#allocation1 + $0x20] sm:$0xff pattern:$0x73625140]
        %v7100 = vpack.c.bf16 %v7084, %v7084
        %v7101 = vpack.c.bf16 %v7089, %v7089
        %v7102 = vpack.c.bf16 %v7092, %v7092
        %v7103 = vpack.c.bf16 %v7095, %v7095
        %7104 = vst.msk [vmem:[#allocation4 + $0x8] sm:$0x3] %vm6414, %v7100
        %7105 = vst.msk [vmem:[#allocation4 + $0x12] sm:$0x3] %vm6414, %v7101
        %7106 = vst.msk [vmem:[#allocation4 + $0x1c] sm:$0x3] %vm6414, %v7102
        %7107 = vst.msk [vmem:[#allocation4 + $0x26] sm:$0x3] %vm6414, %v7103
        %v7108 = vld [vmem:[#allocation4] sm:$0xff]
        %v7109 = vld [vmem:[#allocation4 + $0x8] sm:$0x3]
        %v7110 = vld [vmem:[#allocation4 + $0xa] sm:$0xff]
        %v7111 = vld [vmem:[#allocation4 + $0x12] sm:$0x3]
        %v7112 = vld [vmem:[#allocation4 + $0x14] sm:$0xff]
        %v7113 = vld [vmem:[#allocation4 + $0x1c] sm:$0x3]
        %v7114 = vld [vmem:[#allocation4 + $0x1e] sm:$0xff]
        %v7115 = vld [vmem:[#allocation4 + $0x26] sm:$0x3]
        %v7116 = vld [vmem:[%s5] sm:$0xf]
        %v7117 = vld [vmem:[%s5 + $0x4] sm:$0xf]
        %v7118 = vld [vmem:[%s5 + $0x8] sm:$0xf]
        %v7119 = vld [vmem:[%s5 + $0xc] sm:$0xf]
        %v7120 = vld [vmem:[%s5 + $0x10] sm:$0xf]
        %v7121 = vld [vmem:[%s5 + $0x14] sm:$0xf]
        %v7122 = vld [vmem:[%s5 + $0x18] sm:$0xf]
        %v7123 = vld [vmem:[%s5 + $0x1c] sm:$0xf]
        %v7124 = vld [vmem:[%s5 + $0x20] sm:$0xf]
        %v7125 = vld [vmem:[%s5 + $0x24] sm:$0xf]
        %v7126 = vld [vmem:[%s5 + $0x28] sm:$0xf]
        %v7127 = vld [vmem:[%s5 + $0x2c] sm:$0xf]
        %v7128 = vld [vmem:[%s5 + $0x30] sm:$0xf]
        %v7129 = vld [vmem:[%s5 + $0x34] sm:$0xf]
        %v7130 = vld [vmem:[%s5 + $0x38] sm:$0xf]
        %v7131 = vld [vmem:[%s5 + $0x3c] sm:$0xf]
        %v7132 = vld [vmem:[%s5 + $0x40] sm:$0xf]
        %v7133 = vld [vmem:[%s5 + $0x44] sm:$0xf]
        %v7134 = vld [vmem:[%s5 + $0x48] sm:$0xf]
        %v7135 = vld [vmem:[%s5 + $0x4c] sm:$0xf]
        %v7136 = vld [vmem:[%s5 + $0x50] sm:$0xf]
        %v7137 = vld [vmem:[%s5 + $0x54] sm:$0xf]
        %v7138 = vld [vmem:[%s5 + $0x58] sm:$0xf]
        %v7139 = vld [vmem:[%s5 + $0x5c] sm:$0xf]
        %v7140 = vld [vmem:[%s5 + $0x60] sm:$0xf]
        %v7141 = vld [vmem:[%s5 + $0x64] sm:$0xf]
        %v7142 = vld [vmem:[%s5 + $0x68] sm:$0xf]
        %v7143 = vld [vmem:[%s5 + $0x6c] sm:$0xf]
        %v7144 = vld [vmem:[%s5 + $0x70] sm:$0xf]
        %v7145 = vld [vmem:[%s5 + $0x74] sm:$0xf]
        %v7146 = vld [vmem:[%s5 + $0x78] sm:$0xf]
        %v7147 = vld [vmem:[%s5 + $0x7c] sm:$0xf]
        %v7148 = vld [vmem:[%s5 + $0x80] sm:$0xf]
        %v7149 = vld [vmem:[%s5 + $0x84] sm:$0xf]
        %v7150 = vld [vmem:[%s5 + $0x88] sm:$0xf]
        %v7151 = vld [vmem:[%s5 + $0x8c] sm:$0xf]
        %v7152 = vld [vmem:[%s5 + $0x90] sm:$0xf]
        %v7153 = vld [vmem:[%s5 + $0x94] sm:$0xf]
        %v7154 = vld [vmem:[%s5 + $0x98] sm:$0xf]
        %v7155 = vld [vmem:[%s5 + $0x9c] sm:$0xf]
        %v7156 = vld [vmem:[%s5 + $0xa0] sm:$0xf]
        %v7157 = vld [vmem:[%s5 + $0xa4] sm:$0xf]
        %v7158 = vld [vmem:[%s5 + $0xa8] sm:$0xf]
        %v7159 = vld [vmem:[%s5 + $0xac] sm:$0xf]
        %v7160 = vld [vmem:[%s5 + $0xb0] sm:$0xf]
        %v7161 = vld [vmem:[%s5 + $0xb4] sm:$0xf]
        %v7162 = vld [vmem:[%s5 + $0xb8] sm:$0xf]
        %v7163 = vld [vmem:[%s5 + $0xbc] sm:$0xf]
        %v7164 = vld [vmem:[%s5 + $0xc0] sm:$0xf]
        %v7165 = vld [vmem:[%s5 + $0xc4] sm:$0xf]
        %v7166 = vld [vmem:[%s5 + $0xc8] sm:$0xf]
        %v7167 = vld [vmem:[%s5 + $0xcc] sm:$0xf]
        %v7168 = vld [vmem:[%s5 + $0xd0] sm:$0xf]
        %v7169 = vld [vmem:[%s5 + $0xd4] sm:$0xf]
        %v7170 = vld [vmem:[%s5 + $0xd8] sm:$0xf]
        %v7171 = vld [vmem:[%s5 + $0xdc] sm:$0xf]
        %v7172 = vld [vmem:[%s5 + $0xe0] sm:$0xf]
        %v7173 = vld [vmem:[%s5 + $0xe4] sm:$0xf]
        %v7174 = vld [vmem:[%s5 + $0xe8] sm:$0xf]
        %v7175 = vld [vmem:[%s5 + $0xec] sm:$0xf]
        %v7176 = vld [vmem:[%s5 + $0xf0] sm:$0xf]
        %v7177 = vld [vmem:[%s5 + $0xf4] sm:$0xf]
        %v7178 = vld [vmem:[%s5 + $0xf8] sm:$0xf]
        %v7179 = vld [vmem:[%s5 + $0xfc] sm:$0xf]
        %v7180 = vld [vmem:[%s5 + $0x100] sm:$0xf]
        %v7181 = vld [vmem:[%s5 + $0x104] sm:$0xf]
        %v7182 = vld [vmem:[%s5 + $0x108] sm:$0xf]
        %v7183 = vld [vmem:[%s5 + $0x10c] sm:$0xf]
        %v7184 = vld [vmem:[%s5 + $0x110] sm:$0xf]
        %v7185 = vld [vmem:[%s5 + $0x114] sm:$0xf]
        %v7186 = vld [vmem:[%s5 + $0x118] sm:$0xf]
        %v7187 = vld [vmem:[%s5 + $0x11c] sm:$0xf]
        %v7188 = vld [vmem:[%s6] sm:$0x1]
        %v7190 = vperm.slane %v7188, 0
        %7193 = vst [vmem:[#allocation1] ss:$4 sm:$0xff] %v7108
        %s7195 = scalar_lea.vmem [#allocation1], 1
        %7196 = vst [vmem:[%s7195] ss:$4 sm:$0xff] %v7110
        %s7198 = scalar_lea.vmem [#allocation1], 2
        %7199 = vst [vmem:[%s7198] ss:$4 sm:$0xff] %v7112
        %s7201 = scalar_lea.vmem [#allocation1], 3
        %7202 = vst [vmem:[%s7201] ss:$4 sm:$0xff] %v7114
        %s7204 = scalar_lea.vmem [#allocation1], 32
        %7205 = vst [vmem:[%s7204] ss:$4 sm:$0xff] %v7109
        %s7207 = scalar_lea.vmem [#allocation1], 33
        %7208 = vst [vmem:[%s7207] ss:$4 sm:$0xff] %v7111
        %s7210 = scalar_lea.vmem [#allocation1], 34
        %7211 = vst [vmem:[%s7210] ss:$4 sm:$0xff] %v7113
        %s7213 = scalar_lea.vmem [#allocation1], 35
        %7214 = vst [vmem:[%s7213] ss:$4 sm:$0xff] %v7115
        %v7215 = vld.sshfl [vmem:[#allocation1] sm:$0xff pattern:$0x73625140]
        %v7216 = vld.sshfl [vmem:[#allocation1 + $0x8] sm:$0xff pattern:$0x73625140]
        %v7217 = vld.sshfl [vmem:[#allocation1 + $0x10] sm:$0xff pattern:$0x73625140]
        %v7218 = vld.sshfl [vmem:[#allocation1 + $0x18] sm:$0xff pattern:$0x73625140]
        %v7219 = vld.sshfl [vmem:[#allocation1 + $0x20] sm:$0xff pattern:$0x73625140]
        %v7296 = vunpack.c.l.b16 %v7116
        %v7297 = vunpack.c.l.b16 %v7117
        %v7298 = vunpack.c.l.b16 %v7118
        %v7299 = vunpack.c.l.b16 %v7119
        %v7300 = vunpack.c.l.b16 %v7120
        %v7301 = vunpack.c.l.b16 %v7121
        %v7302 = vunpack.c.l.b16 %v7122
        %v7303 = vunpack.c.l.b16 %v7123
        %v7304 = vunpack.c.l.b16 %v7124
        %v7305 = vunpack.c.l.b16 %v7125
        %v7306 = vunpack.c.l.b16 %v7126
        %v7307 = vunpack.c.l.b16 %v7127
        %v7308 = vunpack.c.l.b16 %v7128
        %v7309 = vunpack.c.l.b16 %v7129
        %v7310 = vunpack.c.l.b16 %v7130
        %v7311 = vunpack.c.l.b16 %v7131
        %v7312 = vunpack.c.l.b16 %v7132
        %v7313 = vunpack.c.l.b16 %v7133
        %v7314 = vunpack.c.l.b16 %v7134
        %v7315 = vunpack.c.l.b16 %v7135
        %v7316 = vunpack.c.l.b16 %v7136
        %v7317 = vunpack.c.l.b16 %v7137
        %v7318 = vunpack.c.l.b16 %v7138
        %v7319 = vunpack.c.l.b16 %v7139
        %v7320 = vunpack.c.l.b16 %v7140
        %v7321 = vunpack.c.l.b16 %v7141
        %v7322 = vunpack.c.l.b16 %v7142
        %v7323 = vunpack.c.l.b16 %v7143
        %v7324 = vunpack.c.l.b16 %v7144
        %v7325 = vunpack.c.l.b16 %v7145
        %v7326 = vunpack.c.l.b16 %v7146
        %v7327 = vunpack.c.l.b16 %v7147
        %v7328 = vunpack.c.l.b16 %v7148
        %v7329 = vunpack.c.l.b16 %v7149
        %v7330 = vunpack.c.l.b16 %v7150
        %v7331 = vunpack.c.l.b16 %v7151
        %v7332 = vunpack.c.l.b16 %v7152
        %v7333 = vunpack.c.l.b16 %v7153
        %v7334 = vunpack.c.l.b16 %v7154
        %v7335 = vunpack.c.l.b16 %v7155
        %v7336 = vunpack.c.l.b16 %v7156
        %v7337 = vunpack.c.l.b16 %v7157
        %v7338 = vunpack.c.l.b16 %v7158
        %v7339 = vunpack.c.l.b16 %v7159
        %v7340 = vunpack.c.l.b16 %v7160
        %v7341 = vunpack.c.l.b16 %v7161
        %v7342 = vunpack.c.l.b16 %v7162
        %v7343 = vunpack.c.l.b16 %v7163
        %v7344 = vunpack.c.l.b16 %v7164
        %v7345 = vunpack.c.l.b16 %v7165
        %v7346 = vunpack.c.l.b16 %v7166
        %v7347 = vunpack.c.l.b16 %v7167
        %v7348 = vunpack.c.l.b16 %v7168
        %v7349 = vunpack.c.l.b16 %v7169
        %v7350 = vunpack.c.l.b16 %v7170
        %v7351 = vunpack.c.l.b16 %v7171
        %v7352 = vunpack.c.l.b16 %v7172
        %v7353 = vunpack.c.l.b16 %v7173
        %v7354 = vunpack.c.l.b16 %v7174
        %v7355 = vunpack.c.l.b16 %v7175
        %v7356 = vunpack.c.l.b16 %v7176
        %v7357 = vunpack.c.l.b16 %v7177
        %v7358 = vunpack.c.l.b16 %v7178
        %v7359 = vunpack.c.l.b16 %v7179
        %v7360 = vunpack.c.l.b16 %v7180
        %v7361 = vunpack.c.l.b16 %v7181
        %v7362 = vunpack.c.l.b16 %v7182
        %v7363 = vunpack.c.l.b16 %v7183
        %v7364 = vunpack.c.l.b16 %v7184
        %v7365 = vunpack.c.l.b16 %v7185
        %v7366 = vunpack.c.l.b16 %v7186
        %v7367 = vunpack.c.l.b16 %v7187
        %v7368 = vpack.c.b16 %v7297, %v7296
        %v7369 = vpack.c.b16 %v7299, %v7298
        %v7370 = vpack.c.b16 %v7301, %v7300
        %v7371 = vpack.c.b16 %v7303, %v7302
        %v7372 = vpack.c.b16 %v7305, %v7304
        %v7373 = vpack.c.b16 %v7307, %v7306
        %v7374 = vpack.c.b16 %v7309, %v7308
        %v7375 = vpack.c.b16 %v7311, %v7310
        %v7376 = vpack.c.b16 %v7313, %v7312
        %v7377 = vpack.c.b16 %v7315, %v7314
        %v7378 = vpack.c.b16 %v7317, %v7316
        %v7379 = vpack.c.b16 %v7319, %v7318
        %v7380 = vpack.c.b16 %v7321, %v7320
        %v7381 = vpack.c.b16 %v7323, %v7322
        %v7382 = vpack.c.b16 %v7325, %v7324
        %v7383 = vpack.c.b16 %v7327, %v7326
        %v7384 = vpack.c.b16 %v7329, %v7328
        %v7385 = vpack.c.b16 %v7331, %v7330
        %v7386 = vpack.c.b16 %v7333, %v7332
        %v7387 = vpack.c.b16 %v7335, %v7334
        %v7388 = vpack.c.b16 %v7337, %v7336
        %v7389 = vpack.c.b16 %v7339, %v7338
        %v7390 = vpack.c.b16 %v7341, %v7340
        %v7391 = vpack.c.b16 %v7343, %v7342
        %v7392 = vpack.c.b16 %v7345, %v7344
        %v7393 = vpack.c.b16 %v7347, %v7346
        %v7394 = vpack.c.b16 %v7349, %v7348
        %v7395 = vpack.c.b16 %v7351, %v7350
        %v7396 = vpack.c.b16 %v7353, %v7352
        %v7397 = vpack.c.b16 %v7355, %v7354
        %v7398 = vpack.c.b16 %v7357, %v7356
        %v7399 = vpack.c.b16 %v7359, %v7358
        %v7400 = vpack.c.b16 %v7361, %v7360
        %v7401 = vpack.c.b16 %v7363, %v7362
        %v7402 = vpack.c.b16 %v7365, %v7364
        %v7403 = vpack.c.b16 %v7367, %v7366
        %v7440 = vsel %vm6288, %v7219, 0
        %7442 = vmatpush.bf16.msra.mxu0 %v7375
        %7443 = vmatpush.bf16.msra.mxu0 %v7374
        %7444 = vmatpush.bf16.msra.mxu0 %v7373
        %7445 = vmatpush.bf16.msra.mxu0 %v7372
        %7446 = vmatpush.bf16.msra.mxu0 %v7371
        %7447 = vmatpush.bf16.msra.mxu0 %v7370
        %7448 = vmatpush.bf16.msra.mxu0 %v7369
        %7449 = vmatpush.bf16.msra.mxu0 %v7368
        %7450 = vmatmul.bf16.gmra.mxu0 %v7215
        %v7451 = vpop.f32.mrf.mxu0
        %v7452 = vadd.f32 %v7190, %v7451
        %v7453 = vpop.f32.mrf.mxu0
        %v7454 = vadd.f32 %v7190, %v7453
        %7455 = vdwg.mxu0
        %7456 = vmatpush.bf16.msra.mxu0 %v7383
        %7457 = vmatpush.bf16.msra.mxu0 %v7382
        %7458 = vmatpush.bf16.msra.mxu0 %v7381
        %7459 = vmatpush.bf16.msra.mxu0 %v7380
        %7460 = vmatpush.bf16.msra.mxu0 %v7379
        %7461 = vmatpush.bf16.msra.mxu0 %v7378
        %7462 = vmatpush.bf16.msra.mxu0 %v7377
        %7463 = vmatpush.bf16.msra.mxu0 %v7376
        %7464 = vmatmul.bf16.gmra.mxu0 %v7216
        %v7465 = vpop.f32.mrf.mxu0
        %v7466 = vadd.f32 %v7452, %v7465
        %v7467 = vpop.f32.mrf.mxu0
        %v7468 = vadd.f32 %v7454, %v7467
        %7469 = vdwg.mxu0
        %7470 = vmatpush.bf16.msra.mxu0 %v7391
        %7471 = vmatpush.bf16.msra.mxu0 %v7390
        %7472 = vmatpush.bf16.msra.mxu0 %v7389
        %7473 = vmatpush.bf16.msra.mxu0 %v7388
        %7474 = vmatpush.bf16.msra.mxu0 %v7387
        %7475 = vmatpush.bf16.msra.mxu0 %v7386
        %7476 = vmatpush.bf16.msra.mxu0 %v7385
        %7477 = vmatpush.bf16.msra.mxu0 %v7384
        %7478 = vmatmul.bf16.gmra.mxu0 %v7217
        %v7479 = vpop.f32.mrf.mxu0
        %v7480 = vadd.f32 %v7466, %v7479
        %v7481 = vpop.f32.mrf.mxu0
        %v7482 = vadd.f32 %v7468, %v7481
        %7483 = vdwg.mxu0
        %7484 = vmatpush.bf16.msra.mxu0 %v7399
        %7485 = vmatpush.bf16.msra.mxu0 %v7398
        %7486 = vmatpush.bf16.msra.mxu0 %v7397
        %7487 = vmatpush.bf16.msra.mxu0 %v7396
        %7488 = vmatpush.bf16.msra.mxu0 %v7395
        %7489 = vmatpush.bf16.msra.mxu0 %v7394
        %7490 = vmatpush.bf16.msra.mxu0 %v7393
        %7491 = vmatpush.bf16.msra.mxu0 %v7392
        %7492 = vmatmul.bf16.gmra.mxu0 %v7218
        %v7493 = vpop.f32.mrf.mxu0
        %v7494 = vadd.f32 %v7480, %v7493
        %v7495 = vpop.f32.mrf.mxu0
        %v7496 = vadd.f32 %v7482, %v7495
        %7497 = vdwg.mxu0
        %7498 = vmatpush.bf16.msra.mxu0 0
        %7499 = vmatpush.bf16.msra.mxu0 0
        %7500 = vmatpush.bf16.msra.mxu0 0
        %7501 = vmatpush.bf16.msra.mxu0 0
        %7502 = vmatpush.bf16.msra.mxu0 %v7403
        %7503 = vmatpush.bf16.msra.mxu0 %v7402
        %7504 = vmatpush.bf16.msra.mxu0 %v7401
        %7505 = vmatpush.bf16.msra.mxu0 %v7400
        %7506 = vmatmul.bf16.gmra.mxu0 %v7440
        %v7507 = vpop.f32.mrf.mxu0
        %v7508 = vadd.f32 %v7494, %v7507
        %v7509 = vpop.f32.mrf.mxu0
        %v7510 = vadd.f32 %v7496, %v7509
        %7511 = vdwg.mxu0
        %v7512 = vmax.f32 %v7508, 0.0
        %v7513 = vmax.f32 %v7510, 0.0
        %7514 = vst [vmem:[#allocation6] sm:$0xff] %v7512
        %7515 = vst [vmem:[#allocation6 + $0x8] sm:$0xff] %v7513
        %v7516 = vld [vmem:[#allocation6] ss:$2 sm:$0xff]
        %s7517 = scalar_lea.vmem [#allocation6], 1
        %v7518 = vld [vmem:[%s7517] ss:$2 sm:$0xff]
        %v7519 = vmax.f32 %v7516, %v7518
        %v7521 = vrot.slane %v7519, 2
        %v7522 = vrot.slane %v7519, 4
        %v7523 = vrot.slane %v7519, 6
        %v7527 = vsel %vm5608, %v7519, -inf
        %v7528 = vsel %vm5608, %v7521, -inf
        %v7529 = vmax.f32 %v7527, %v7528
        %v7530 = vsel %vm5608, %v7522, -inf
        %v7531 = vsel %vm5608, %v7523, -inf
        %v7532 = vmax.f32 %v7530, %v7531
        %v7533 = vpack.c.bf16 %v7529, %v7529
        %vm7534 = vcmask 1040384
        %vm7535 = vsmask.f32 256
        %vm7536 = vmand %vm7534, %vm7535
        %v7537 = vld [vmem:[#allocation7] sm:$0x1]
        %v7538 = vsel %vm7536, %v7533, %v7537
        %7539 = vst [vmem:[#allocation7] sm:$0x1] %v7538
        %v7541 = vrot.slane %v7533, 3
        %v7544 = vsel %vm1865, %v7533, %v7541
        %v7545 = vshrl.u32 %v7544, 16
        %v7547 = vrot.slane %v7545, 7
        %v7548 = vrot.slane %v7547, 1
        %v7550 = vld [vmem:[#allocation7 + $0x1] sm:$0x1]
        %v7551 = vsel %vm7536, %v7548, %v7550
        %7552 = vst [vmem:[#allocation7 + $0x1] sm:$0x1] %v7551
        %v7553 = vpack.c.bf16 %v7532, %v7532
        %v7554 = vld [vmem:[#allocation7 + $0x2] sm:$0x1]
        %v7555 = vsel %vm7536, %v7553, %v7554
        %7556 = vst [vmem:[#allocation7 + $0x2] sm:$0x1] %v7555
        %v7558 = vrot.slane %v7553, 3
        %v7561 = vsel %vm1865, %v7553, %v7558
        %v7562 = vshrl.u32 %v7561, 16
        %v7564 = vrot.slane %v7562, 7
        %v7565 = vrot.slane %v7564, 1
        %v7567 = vld [vmem:[#allocation7 + $0x3] sm:$0x1]
        %v7568 = vsel %vm7536, %v7565, %v7567
        %7569 = vst [vmem:[#allocation7 + $0x3] sm:$0x1] %v7568
        %v7570 = vld [vmem:[#allocation7] sm:$0xf]
        %v7571 = vld [vmem:[%s7] sm:$0xf]
        %v7572 = vld [vmem:[%s7 + $0x4] sm:$0xf]
        %v7573 = vld [vmem:[%s7 + $0x8] sm:$0xf]
        %v7574 = vld [vmem:[%s7 + $0xc] sm:$0xf]
        %v7575 = vld [vmem:[%s7 + $0x10] sm:$0xf]
        %v7576 = vld [vmem:[%s7 + $0x14] sm:$0xf]
        %v7577 = vld [vmem:[%s7 + $0x18] sm:$0xf]
        %v7578 = vld [vmem:[%s7 + $0x1c] sm:$0xf]
        %v7579 = vld [vmem:[%s7 + $0x20] sm:$0xf]
        %v7580 = vld [vmem:[%s7 + $0x24] sm:$0xf]
        %v7581 = vld [vmem:[%s7 + $0x28] sm:$0xf]
        %v7582 = vld [vmem:[%s7 + $0x2c] sm:$0xf]
        %v7583 = vld [vmem:[%s7 + $0x30] sm:$0xf]
        %v7584 = vld [vmem:[%s7 + $0x34] sm:$0xf]
        %v7585 = vld [vmem:[%s7 + $0x38] sm:$0xf]
        %v7586 = vld [vmem:[%s7 + $0x3c] sm:$0xf]
        %v7587 = vld [vmem:[%s7 + $0x40] sm:$0xf]
        %v7588 = vld [vmem:[%s7 + $0x44] sm:$0xf]
        %v7589 = vld [vmem:[%s7 + $0x48] sm:$0xf]
        %v7590 = vld [vmem:[%s7 + $0x4c] sm:$0xf]
        %v7591 = vld [vmem:[%s7 + $0x50] sm:$0xf]
        %v7592 = vld [vmem:[%s7 + $0x54] sm:$0xf]
        %v7593 = vld [vmem:[%s7 + $0x58] sm:$0xf]
        %v7594 = vld [vmem:[%s7 + $0x5c] sm:$0xf]
        %v7595 = vld [vmem:[%s7 + $0x60] sm:$0xf]
        %v7596 = vld [vmem:[%s7 + $0x64] sm:$0xf]
        %v7597 = vld [vmem:[%s7 + $0x68] sm:$0xf]
        %v7598 = vld [vmem:[%s7 + $0x6c] sm:$0xf]
        %v7599 = vld [vmem:[%s7 + $0x70] sm:$0xf]
        %v7600 = vld [vmem:[%s7 + $0x74] sm:$0xf]
        %v7601 = vld [vmem:[%s7 + $0x78] sm:$0xf]
        %v7602 = vld [vmem:[%s7 + $0x7c] sm:$0xf]
        %v7603 = vld [vmem:[%s7 + $0x80] sm:$0xf]
        %v7604 = vld [vmem:[%s7 + $0x84] sm:$0xf]
        %v7605 = vld [vmem:[%s7 + $0x88] sm:$0xf]
        %v7606 = vld [vmem:[%s7 + $0x8c] sm:$0xf]
        %v7607 = vld [vmem:[%s7 + $0x90] sm:$0xf]
        %v7608 = vld [vmem:[%s7 + $0x94] sm:$0xf]
        %v7609 = vld [vmem:[%s7 + $0x98] sm:$0xf]
        %v7610 = vld [vmem:[%s7 + $0x9c] sm:$0xf]
        %v7611 = vld [vmem:[%s7 + $0xa0] sm:$0xf]
        %v7612 = vld [vmem:[%s7 + $0xa4] sm:$0xf]
        %v7613 = vld [vmem:[%s7 + $0xa8] sm:$0xf]
        %v7614 = vld [vmem:[%s7 + $0xac] sm:$0xf]
        %v7615 = vld [vmem:[%s7 + $0xb0] sm:$0xf]
        %v7616 = vld [vmem:[%s7 + $0xb4] sm:$0xf]
        %v7617 = vld [vmem:[%s7 + $0xb8] sm:$0xf]
        %v7618 = vld [vmem:[%s7 + $0xbc] sm:$0xf]
        %v7619 = vld [vmem:[%s7 + $0xc0] sm:$0xf]
        %v7620 = vld [vmem:[%s7 + $0xc4] sm:$0xf]
        %v7621 = vld [vmem:[%s7 + $0xc8] sm:$0xf]
        %v7622 = vld [vmem:[%s7 + $0xcc] sm:$0xf]
        %v7623 = vld [vmem:[%s7 + $0xd0] sm:$0xf]
        %v7624 = vld [vmem:[%s7 + $0xd4] sm:$0xf]
        %v7625 = vld [vmem:[%s7 + $0xd8] sm:$0xf]
        %v7626 = vld [vmem:[%s7 + $0xdc] sm:$0xf]
        %v7627 = vld [vmem:[%s7 + $0xe0] sm:$0xf]
        %v7628 = vld [vmem:[%s7 + $0xe4] sm:$0xf]
        %v7629 = vld [vmem:[%s7 + $0xe8] sm:$0xf]
        %v7630 = vld [vmem:[%s7 + $0xec] sm:$0xf]
        %v7631 = vld [vmem:[%s7 + $0xf0] sm:$0xf]
        %v7632 = vld [vmem:[%s7 + $0xf4] sm:$0xf]
        %v7633 = vld [vmem:[%s7 + $0xf8] sm:$0xf]
        %v7634 = vld [vmem:[%s7 + $0xfc] sm:$0xf]
        %v7635 = vld [vmem:[%s8] sm:$0x1]
        %7637 = vst [vmem:[#allocation1] ss:$9 sm:$0xff] %v7570
        %v7638 = vld [vmem:[#allocation1] sm:$0xff]
        %v7639 = vld [vmem:[#allocation1 + $0x9] sm:$0xff]
        %v7640 = vld [vmem:[#allocation1 + $0x12] sm:$0xff]
        %v7641 = vld [vmem:[#allocation1 + $0x1b] sm:$0xff]
        %v7710 = vunpack.c.l.b16 %v7571
        %v7711 = vunpack.c.l.b16 %v7572
        %v7712 = vunpack.c.l.b16 %v7573
        %v7713 = vunpack.c.l.b16 %v7574
        %v7714 = vunpack.c.l.b16 %v7575
        %v7715 = vunpack.c.l.b16 %v7576
        %v7716 = vunpack.c.l.b16 %v7577
        %v7717 = vunpack.c.l.b16 %v7578
        %v7718 = vunpack.c.l.b16 %v7579
        %v7719 = vunpack.c.l.b16 %v7580
        %v7720 = vunpack.c.l.b16 %v7581
        %v7721 = vunpack.c.l.b16 %v7582
        %v7722 = vunpack.c.l.b16 %v7583
        %v7723 = vunpack.c.l.b16 %v7584
        %v7724 = vunpack.c.l.b16 %v7585
        %v7725 = vunpack.c.l.b16 %v7586
        %v7726 = vunpack.c.l.b16 %v7587
        %v7727 = vunpack.c.l.b16 %v7588
        %v7728 = vunpack.c.l.b16 %v7589
        %v7729 = vunpack.c.l.b16 %v7590
        %v7730 = vunpack.c.l.b16 %v7591
        %v7731 = vunpack.c.l.b16 %v7592
        %v7732 = vunpack.c.l.b16 %v7593
        %v7733 = vunpack.c.l.b16 %v7594
        %v7734 = vunpack.c.l.b16 %v7595
        %v7735 = vunpack.c.l.b16 %v7596
        %v7736 = vunpack.c.l.b16 %v7597
        %v7737 = vunpack.c.l.b16 %v7598
        %v7738 = vunpack.c.l.b16 %v7599
        %v7739 = vunpack.c.l.b16 %v7600
        %v7740 = vunpack.c.l.b16 %v7601
        %v7741 = vunpack.c.l.b16 %v7602
        %v7742 = vunpack.c.l.b16 %v7603
        %v7743 = vunpack.c.l.b16 %v7604
        %v7744 = vunpack.c.l.b16 %v7605
        %v7745 = vunpack.c.l.b16 %v7606
        %v7746 = vunpack.c.l.b16 %v7607
        %v7747 = vunpack.c.l.b16 %v7608
        %v7748 = vunpack.c.l.b16 %v7609
        %v7749 = vunpack.c.l.b16 %v7610
        %v7750 = vunpack.c.l.b16 %v7611
        %v7751 = vunpack.c.l.b16 %v7612
        %v7752 = vunpack.c.l.b16 %v7613
        %v7753 = vunpack.c.l.b16 %v7614
        %v7754 = vunpack.c.l.b16 %v7615
        %v7755 = vunpack.c.l.b16 %v7616
        %v7756 = vunpack.c.l.b16 %v7617
        %v7757 = vunpack.c.l.b16 %v7618
        %v7758 = vunpack.c.l.b16 %v7619
        %v7759 = vunpack.c.l.b16 %v7620
        %v7760 = vunpack.c.l.b16 %v7621
        %v7761 = vunpack.c.l.b16 %v7622
        %v7762 = vunpack.c.l.b16 %v7623
        %v7763 = vunpack.c.l.b16 %v7624
        %v7764 = vunpack.c.l.b16 %v7625
        %v7765 = vunpack.c.l.b16 %v7626
        %v7766 = vunpack.c.l.b16 %v7627
        %v7767 = vunpack.c.l.b16 %v7628
        %v7768 = vunpack.c.l.b16 %v7629
        %v7769 = vunpack.c.l.b16 %v7630
        %v7770 = vunpack.c.l.b16 %v7631
        %v7771 = vunpack.c.l.b16 %v7632
        %v7772 = vunpack.c.l.b16 %v7633
        %v7773 = vunpack.c.l.b16 %v7634
        %v7774 = vpack.c.b16 %v7711, %v7710
        %v7775 = vpack.c.b16 %v7713, %v7712
        %v7776 = vpack.c.b16 %v7715, %v7714
        %v7777 = vpack.c.b16 %v7717, %v7716
        %v7778 = vpack.c.b16 %v7719, %v7718
        %v7779 = vpack.c.b16 %v7721, %v7720
        %v7780 = vpack.c.b16 %v7723, %v7722
        %v7781 = vpack.c.b16 %v7725, %v7724
        %v7782 = vpack.c.b16 %v7727, %v7726
        %v7783 = vpack.c.b16 %v7729, %v7728
        %v7784 = vpack.c.b16 %v7731, %v7730
        %v7785 = vpack.c.b16 %v7733, %v7732
        %v7786 = vpack.c.b16 %v7735, %v7734
        %v7787 = vpack.c.b16 %v7737, %v7736
        %v7788 = vpack.c.b16 %v7739, %v7738
        %v7789 = vpack.c.b16 %v7741, %v7740
        %v7790 = vpack.c.b16 %v7743, %v7742
        %v7791 = vpack.c.b16 %v7745, %v7744
        %v7792 = vpack.c.b16 %v7747, %v7746
        %v7793 = vpack.c.b16 %v7749, %v7748
        %v7794 = vpack.c.b16 %v7751, %v7750
        %v7795 = vpack.c.b16 %v7753, %v7752
        %v7796 = vpack.c.b16 %v7755, %v7754
        %v7797 = vpack.c.b16 %v7757, %v7756
        %v7798 = vpack.c.b16 %v7759, %v7758
        %v7799 = vpack.c.b16 %v7761, %v7760
        %v7800 = vpack.c.b16 %v7763, %v7762
        %v7801 = vpack.c.b16 %v7765, %v7764
        %v7802 = vpack.c.b16 %v7767, %v7766
        %v7803 = vpack.c.b16 %v7769, %v7768
        %v7804 = vpack.c.b16 %v7771, %v7770
        %v7805 = vpack.c.b16 %v7773, %v7772
        %7838 = vmatpush.bf16.msra.mxu0 %v7781
        %7839 = vmatpush.bf16.msra.mxu0 %v7780
        %7840 = vmatpush.bf16.msra.mxu0 %v7779
        %7841 = vmatpush.bf16.msra.mxu0 %v7778
        %7842 = vmatpush.bf16.msra.mxu0 %v7777
        %7843 = vmatpush.bf16.msra.mxu0 %v7776
        %7844 = vmatpush.bf16.msra.mxu0 %v7775
        %7845 = vmatpush.bf16.msra.mxu0 %v7774
        %7846 = vmatmul.bf16.gmra.mxu0 %v7638
        %v7847 = vpop.f32.mrf.mxu0
        %v7848 = vadd.f32 %v7635, %v7847
        %v7849 = vpop.f32.mrf.mxu0
        %7850 = vdwg.mxu0
        %7851 = vmatpush.bf16.msra.mxu0 %v7789
        %7852 = vmatpush.bf16.msra.mxu0 %v7788
        %7853 = vmatpush.bf16.msra.mxu0 %v7787
        %7854 = vmatpush.bf16.msra.mxu0 %v7786
        %7855 = vmatpush.bf16.msra.mxu0 %v7785
        %7856 = vmatpush.bf16.msra.mxu0 %v7784
        %7857 = vmatpush.bf16.msra.mxu0 %v7783
        %7858 = vmatpush.bf16.msra.mxu0 %v7782
        %7859 = vmatmul.bf16.gmra.mxu0 %v7639
        %v7860 = vpop.f32.mrf.mxu0
        %v7861 = vadd.f32 %v7848, %v7860
        %v7862 = vpop.f32.mrf.mxu0
        %7863 = vdwg.mxu0
        %7864 = vmatpush.bf16.msra.mxu0 %v7797
        %7865 = vmatpush.bf16.msra.mxu0 %v7796
        %7866 = vmatpush.bf16.msra.mxu0 %v7795
        %7867 = vmatpush.bf16.msra.mxu0 %v7794
        %7868 = vmatpush.bf16.msra.mxu0 %v7793
        %7869 = vmatpush.bf16.msra.mxu0 %v7792
        %7870 = vmatpush.bf16.msra.mxu0 %v7791
        %7871 = vmatpush.bf16.msra.mxu0 %v7790
        %7872 = vmatmul.bf16.gmra.mxu0 %v7640
        %v7873 = vpop.f32.mrf.mxu0
        %v7874 = vadd.f32 %v7861, %v7873
        %v7875 = vpop.f32.mrf.mxu0
        %7876 = vdwg.mxu0
        %7877 = vmatpush.bf16.msra.mxu0 %v7805
        %7878 = vmatpush.bf16.msra.mxu0 %v7804
        %7879 = vmatpush.bf16.msra.mxu0 %v7803
        %7880 = vmatpush.bf16.msra.mxu0 %v7802
        %7881 = vmatpush.bf16.msra.mxu0 %v7801
        %7882 = vmatpush.bf16.msra.mxu0 %v7800
        %7883 = vmatpush.bf16.msra.mxu0 %v7799
        %7884 = vmatpush.bf16.msra.mxu0 %v7798
        %7885 = vmatmul.bf16.gmra.mxu0 %v7641
        %v7886 = vpop.f32.mrf.mxu0
        %v7887 = vadd.f32 %v7874, %v7886
        %v7888 = vpop.f32.mrf.mxu0
        %7889 = vdwg.mxu0
        %v7890 = vmax.f32 %v7887, 0.0
        %v7891 = vpack.c.bf16 %v7890, %v7890
        %v7892 = vld [vmem:[%s9] sm:$0xf]
        %v7893 = vld [vmem:[%s9 + $0x4] sm:$0xf]
        %v7894 = vld [vmem:[%s9 + $0x8] sm:$0xf]
        %v7895 = vld [vmem:[%s9 + $0xc] sm:$0xf]
        %v7896 = vld [vmem:[%s10] sm:$0x1]
        %v7901 = vunpack.c.l.b16 %v7892
        %v7902 = vunpack.c.l.b16 %v7893
        %v7903 = vunpack.c.l.b16 %v7894
        %v7904 = vunpack.c.l.b16 %v7895
        %v7905 = vpack.c.b16 %v7902, %v7901
        %v7906 = vpack.c.b16 %v7904, %v7903
        %v7910 = vsel %vm6089, %v7891, 0
        %7912 = vmatpush.bf16.msra.mxu0 0
        %7913 = vmatpush.bf16.msra.mxu0 0
        %7914 = vmatpush.bf16.msra.mxu0 0
        %7915 = vmatpush.bf16.msra.mxu0 0
        %7916 = vmatpush.bf16.msra.mxu0 0
        %7917 = vmatpush.bf16.msra.mxu0 0
        %7918 = vmatpush.bf16.msra.mxu0 %v7906
        %7919 = vmatpush.bf16.msra.mxu0 %v7905
        %7920 = vmatmul.bf16.gmra.mxu0 %v7910
        %v7921 = vpop.f32.mrf.mxu0
        %v7922 = vadd.f32 %v7896, %v7921
        %v7923 = vpop.f32.mrf.mxu0
        %7924 = vdwg.mxu0
        %7925 = vst [vmem:[%s378] sm:$0x1] %v7922
        %s7926 = sand.u32 %s269, 1
        %s7927 = scalar_lea.sflag [#allocation9], %s7926
        %s7928 = sand.u32 %s269, 1
        %s7929 = scalar_lea.vmem [#allocation8], %s7928
        // Predicated region
        $region65: #{room_classifier_forward.1} parent=63 // pred_check
          %p7930 = pneg %p279
        $region66: #{room_classifier_forward.1} parent=63 // pred_check_branch
          %7932 = sbr.rel (%p7930) target = $region68
        $region67: #{room_classifier_forward.1} parent=63 // pred_region
          %7934 = vsyncadd %s7927, 0
          %s7935 = scalar_lea.hbm %s11, %s25
          %s7937 = sshll.u32 %s7929, 4
          %s7938 = int_to_ptr.vmem [resolvable:$true] %s7937
          %s7939 = sshll.u32 %s7935, 4
          %s7940 = int_to_ptr.hbm [resolvable:$true] %s7939
          %7942 = dma.vmem_to_hbm [thread:$0]  %s7938, 16, %s7940, %s7927
        $region68: #{room_classifier_forward.1} parent=63 // pred_fallthru
          _
      $region64: #{room_classifier_forward.1} parent=5 // pred_fallthru
        _
      %p7943 = scmp.le.s32.totalorder 2, %s20
      // Predicated region
      $region69: #{room_classifier_forward.1} parent=5 // pred_check
        %p7944 = pneg %p7943
      $region70: #{room_classifier_forward.1} parent=5 // pred_check_branch
        %7946 = sbr.rel (%p7944) target = $region72
      $region71: #{room_classifier_forward.1} parent=5 // pred_region
        %s7947 = ssub.s32 %s20, 2
        // Predicated region
        $region73: #{room_classifier_forward.1} parent=71 // pred_check
          %p7948 = pneg %p285
        $region74: #{room_classifier_forward.1} parent=71 // pred_check_branch
          %7950 = sbr.rel (%p7948) target = $region76
        $region75: #{room_classifier_forward.1} parent=71 // pred_region
          %s7951 = sand.u32 %s270, 1
          %s7952 = scalar_lea.sflag [#allocation9], %s7951
          %s7953 = sand.u32 %s270, 1
          %s7954 = scalar_lea.vmem [#allocation8], %s7953
          %7956 = dma.done %s7952, 16
        $region76: #{room_classifier_forward.1} parent=71 // pred_fallthru
          _
      $region72: #{room_classifier_forward.1} parent=5 // pred_fallthru
        _
    $region6: #{room_classifier_forward.1} parent=1 // loop_footer
      %s24 = sadd.s32 1, %s20
    $region7: #{room_classifier_forward.1} parent=1 // loop_footer_branch
      %19 = sbr.rel target = $region3
    $region8: #{room_classifier_forward.1} parent=1 // loop_exit
      _
    %7957 = vsyncpa [#allocation9], 1
    %s7958 = scalar_lea.sflag [#allocation9], 1
    %7959 = vsyncpa %s7958, 1

</llo_original>
